<compile_context>
chip_gen: v5e
topology: v5e:2x2
jax: 0.10.0
libtpu: 0.0.40
codegen_flags: <defaults>
</compile_context>

<pallas_src>
import math
from functools import partial

import jax
import jax.numpy as jnp
from jax.experimental import pallas as pl
from jax.experimental.pallas import tpu as pltpu

LN_EPS = 1e-12        # reference (tutorial) LayerNorm eps; nn.LayerNorm default is 1e-5
NEG_INF = -10000.0    # masked_fill value in the reference attention


def _vmem_limit_bytes():
    """Generation-aware scoped-VMEM limit (v5e/v6e: 128 MiB physical, v7x: 64 MiB)."""
    try:
        cap = pltpu.get_tpu_info().vmem_capacity_bytes
    except Exception:
        cap = 64 * 1024 * 1024
    return int(min(max(cap // 2, 32 * 1024 * 1024), 96 * 1024 * 1024))


VMEM_LIMIT = _vmem_limit_bytes()
# Bigger GEMM tiles when VMEM allows (v5e/v6e); conservative on v7x.
_MM_TARGETS = (512, 512, 1024) if VMEM_LIMIT >= 64 * 1024 * 1024 else (256, 256, 512)


def _pick_tile(dim, target, quantum):
    """Largest tile <= target that divides `dim` and is a multiple of `quantum`,
    else the full dim (full-extent blocks are always legal)."""
    if dim <= target:
        return dim
    t = (target // quantum) * quantum
    while t >= quantum:
        if dim % t == 0:
            return t
        t -= quantum
    return dim


# --------------------------- in-kernel helpers -------------------------------

def _layernorm(x, g, b, eps):
    mean = jnp.mean(x, axis=-1, keepdims=True)
    var = jnp.mean((x - mean) ** 2, axis=-1, keepdims=True)
    return (x - mean) * jax.lax.rsqrt(var + eps) * g + b


def _mha_heads(q, k, v, bias, n_head):
    """Multi-head attention for one batch element.

    q: (Lq, D) bf16, already scaled by 1/sqrt(dh); k, v: (Lk, D) bf16;
    bias: additive mask (f32), broadcastable to (Lq, Lk).
    Returns (Lq, D) f32 with heads concatenated (single lane-dense value).
    """
    D = q.shape[-1]
    dh = D // n_head
    outs = []
    for h in range(n_head):                       # static loop over heads
        sl = slice(h * dh, (h + 1) * dh)
        # contract the LAST dim of both operands -> no in-kernel transpose
        s = jax.lax.dot_general(q[:, sl], k[:, sl],
                                (((1,), (1,)), ((), ())),
                                preferred_element_type=jnp.float32)
        s = s + bias                              # precomputed additive mask
        s = s - jnp.max(s, axis=-1, keepdims=True)
        p = jnp.exp(s)
        p = p * pl.reciprocal(jnp.sum(p, axis=-1, keepdims=True), approx=True)
        outs.append(jnp.dot(p.astype(jnp.bfloat16), v[:, sl],
                            preferred_element_type=jnp.float32))
    return jnp.concatenate(outs, axis=-1)         # (Lq, D) f32


# ------------------------- fused encoder layer kernel ------------------------

def _encoder_layer_kernel(x_ref, m_ref, wqkv_ref, bqkv_ref, wo_ref, bo_ref,
                          g1_ref, be1_ref, w1_ref, b1_ref, w2_ref, b2_ref,
                          g2_ref, be2_ref, o_ref, *, n_head, scale, eps):
    x_bf = x_ref[0]                               # (L, D) bf16
    x_f32 = x_bf.astype(jnp.float32)
    D = x_bf.shape[-1]

    # additive key-padding mask bias (1, L) (1=keep, 0=masked)
    bias = jnp.where(m_ref[0] == 0.0, NEG_INF, 0.0)

    # fused QKV projection; Q/K/V sliced in-kernel (never hits HBM)
    qkv = jnp.dot(x_bf, wqkv_ref[...],
                  preferred_element_type=jnp.float32) + bqkv_ref[...]
    q = (qkv[:, :D] * scale).astype(jnp.bfloat16)      # scale folded once
    k = qkv[:, D:2 * D].astype(jnp.bfloat16)
    v = qkv[:, 2 * D:].astype(jnp.bfloat16)
    ctx = _mha_heads(q, k, v, bias, n_head)            # (L, D) f32

    # out-projection + residual + LayerNorm1 (post-norm)
    y = jnp.dot(ctx.astype(jnp.bfloat16), wo_ref[...],
                preferred_element_type=jnp.float32) + bo_ref[...]
    x1 = _layernorm(y + x_f32, g1_ref[...], be1_ref[...], eps)

    # FFN (ReLU) + residual + LayerNorm2
    h = jnp.dot(x1.astype(jnp.bfloat16), w1_ref[...],
                preferred_element_type=jnp.float32) + b1_ref[...]
    h = jnp.maximum(h, 0.0)
    y2 = jnp.dot(h.astype(jnp.bfloat16), w2_ref[...],
                 preferred_element_type=jnp.float32) + b2_ref[...]
    x2 = _layernorm(y2 + x1, g2_ref[...], be2_ref[...], eps)

    o_ref[0] = x2.astype(o_ref.dtype)


def encoder_layer(x, pad_mask, p, n_head):
    """x: (B, L, D) bf16; pad_mask: (B, L) f32 key-padding mask (1=keep)."""
    B, L, D = x.shape
    a, f = p["attn"], p["ffn"]
    H = f["w1"].shape[1]
    mask3 = pad_mask.reshape(B, 1, -1)
    kernel = partial(_encoder_layer_kernel, n_head=n_head,
                     scale=1.0 / math.sqrt(D // n_head), eps=LN_EPS)
    const = lambda b: (0, 0)
    return pl.pallas_call(
        kernel,
        out_shape=jax.ShapeDtypeStruct((B, L, D), jnp.bfloat16),
        grid=(B,),
        in_specs=[
            pl.BlockSpec((1, L, D), lambda b: (b, 0, 0)),    # x
            pl.BlockSpec((1, 1, L), lambda b: (b, 0, 0)),    # key padding mask
            pl.BlockSpec((D, 3 * D), const),                 # wqkv
            pl.BlockSpec((1, 3 * D), const),                 # bqkv
            pl.BlockSpec((D, D), const),                     # wo
            pl.BlockSpec((1, D), const),                     # bo
            pl.BlockSpec((1, D), const),                     # ln1 gamma
            pl.BlockSpec((1, D), const),                     # ln1 beta
            pl.BlockSpec((D, H), const),                     # w1
            pl.BlockSpec((1, H), const),                     # b1
            pl.BlockSpec((H, D), const),                     # w2
            pl.BlockSpec((1, D), const),                     # b2
            pl.BlockSpec((1, D), const),                     # ln2 gamma
            pl.BlockSpec((1, D), const),                     # ln2 beta
        ],
        out_specs=pl.BlockSpec((1, L, D), lambda b: (b, 0, 0)),
        compiler_params=pltpu.CompilerParams(
            dimension_semantics=("parallel",), vmem_limit_bytes=VMEM_LIMIT),
    )(x, mask3, a["wqkv"], a["bqkv"], a["wo"], a["bo"],
      p["ln1_g"], p["ln1_b"], f["w1"], f["b1"], f["w2"], f["b2"],
      p["ln2_g"], p["ln2_b"])


# ------------------------- fused decoder layer kernel ------------------------

def _decoder_layer_kernel(trg_ref, enc_ref, tmask_ref, smask_ref,
                          wqkv_ref, bqkv_ref, wo1_ref, bo1_ref, g1_ref, be1_ref,
                          wq_ref, bq_ref, wkv_ref, bkv_ref, wo2_ref, bo2_ref,
                          g2_ref, be2_ref,
                          w1_ref, b1_ref, w2_ref, b2_ref, g3_ref, be3_ref,
                          o_ref, *, n_head, scale, eps):
    t_bf = trg_ref[0]                              # (Lt, D) bf16
    e_bf = enc_ref[0]                              # (Ls, D) bf16
    t_f32 = t_bf.astype(jnp.float32)
    Lt, D = t_bf.shape

    # masks: key-padding bias + in-kernel causal (no (B,Lq,Lk) HBM tensor)
    row = jax.lax.broadcasted_iota(jnp.int32, (Lt, Lt), 0)
    col = jax.lax.broadcasted_iota(jnp.int32, (Lt, Lt), 1)
    causal_bias = jnp.where(col > row, NEG_INF, 0.0)              # (Lt, Lt)
    self_bias = causal_bias + jnp.where(tmask_ref[0] == 0.0, NEG_INF, 0.0)
    cross_bias = jnp.where(smask_ref[0] == 0.0, NEG_INF, 0.0)     # (1, Ls)

    # --- masked self-attention ---
    qkv = jnp.dot(t_bf, wqkv_ref[...],
                  preferred_element_type=jnp.float32) + bqkv_ref[...]
    q = (qkv[:, :D] * scale).astype(jnp.bfloat16)
    k = qkv[:, D:2 * D].astype(jnp.bfloat16)
    v = qkv[:, 2 * D:].astype(jnp.bfloat16)
    ctx = _mha_heads(q, k, v, self_bias, n_head)
    y = jnp.dot(ctx.astype(jnp.bfloat16), wo1_ref[...],
                preferred_element_type=jnp.float32) + bo1_ref[...]
    x1 = _layernorm(y + t_f32, g1_ref[...], be1_ref[...], eps)

    # --- cross attention (K|V fused projection of the encoder output) ---
    q2 = jnp.dot(x1.astype(jnp.bfloat16), wq_ref[...],
                 preferred_element_type=jnp.float32) + bq_ref[...]
    q2 = (q2 * scale).astype(jnp.bfloat16)
    kv = jnp.dot(e_bf, wkv_ref[...],
                 preferred_element_type=jnp.float32) + bkv_ref[...]
    k2 = kv[:, :D].astype(jnp.bfloat16)
    v2 = kv[:, D:].astype(jnp.bfloat16)
    ctx2 = _mha_heads(q2, k2, v2, cross_bias, n_head)
    y2 = jnp.dot(ctx2.astype(jnp.bfloat16), wo2_ref[...],
                 preferred_element_type=jnp.float32) + bo2_ref[...]
    x2 = _layernorm(y2 + x1, g2_ref[...], be2_ref[...], eps)

    # --- FFN (ReLU) + residual + LayerNorm3 ---
    h = jnp.dot(x2.astype(jnp.bfloat16), w1_ref[...],
                preferred_element_type=jnp.float32) + b1_ref[...]
    h = jnp.maximum(h, 0.0)
    y3 = jnp.dot(h.astype(jnp.bfloat16), w2_ref[...],
                 preferred_element_type=jnp.float32) + b2_ref[...]
    x3 = _layernorm(y3 + x2, g3_ref[...], be3_ref[...], eps)

    o_ref[0] = x3.astype(o_ref.dtype)


def decoder_layer(trg, enc, trg_pad_mask, src_pad_mask, p, n_head):
    """trg: (B,Lt,D) bf16; enc: (B,Ls,D) bf16; *_pad_mask: (B,L) f32 (1=keep).
    Decoder self-attention applies pad-mask AND an in-kernel causal mask."""
    B, Lt, D = trg.shape
    Ls = enc.shape[1]
    sa, ca, f = p["self_attn"], p["cross_attn"], p["ffn"]
    H = f["w1"].shape[1]
    tmask3 = trg_pad_mask.reshape(B, 1, -1)
    smask3 = src_pad_mask.reshape(B, 1, -1)
    kernel = partial(_decoder_layer_kernel, n_head=n_head,
                     scale=1.0 / math.sqrt(D // n_head), eps=LN_EPS)
    const = lambda b: (0, 0)
    return pl.pallas_call(
        kernel,
        out_shape=jax.ShapeDtypeStruct((B, Lt, D), jnp.bfloat16),
        grid=(B,),
        in_specs=[
            pl.BlockSpec((1, Lt, D), lambda b: (b, 0, 0)),   # trg
            pl.BlockSpec((1, Ls, D), lambda b: (b, 0, 0)),   # enc output
            pl.BlockSpec((1, 1, Lt), lambda b: (b, 0, 0)),   # trg key-padding mask
            pl.BlockSpec((1, 1, Ls), lambda b: (b, 0, 0)),   # src key-padding mask
            pl.BlockSpec((D, 3 * D), const),                 # self wqkv
            pl.BlockSpec((1, 3 * D), const),                 # self bqkv
            pl.BlockSpec((D, D), const),                     # self wo
            pl.BlockSpec((1, D), const),                     # self bo
            pl.BlockSpec((1, D), const),                     # ln1 gamma
            pl.BlockSpec((1, D), const),                     # ln1 beta
            pl.BlockSpec((D, D), const),                     # cross wq
            pl.BlockSpec((1, D), const),                     # cross bq
            pl.BlockSpec((D, 2 * D), const),                 # cross wkv
            pl.BlockSpec((1, 2 * D), const),                 # cross bkv
            pl.BlockSpec((D, D), const),                     # cross wo
            pl.BlockSpec((1, D), const),                     # cross bo
            pl.BlockSpec((1, D), const),                     # ln2 gamma
            pl.BlockSpec((1, D), const),                     # ln2 beta
            pl.BlockSpec((D, H), const),                     # w1
            pl.BlockSpec((1, H), const),                     # b1
            pl.BlockSpec((H, D), const),                     # w2
            pl.BlockSpec((1, D), const),                     # b2
            pl.BlockSpec((1, D), const),                     # ln3 gamma
            pl.BlockSpec((1, D), const),                     # ln3 beta
        ],
        out_specs=pl.BlockSpec((1, Lt, D), lambda b: (b, 0, 0)),
        compiler_params=pltpu.CompilerParams(
            dimension_semantics=("parallel",), vmem_limit_bytes=VMEM_LIMIT),
    )(trg, enc, tmask3, smask3,
      sa["wqkv"], sa["bqkv"], sa["wo"], sa["bo"], p["ln1_g"], p["ln1_b"],
      ca["wq"], ca["bq"], ca["wkv"], ca["bkv"], ca["wo"], ca["bo"],
      p["ln2_g"], p["ln2_b"],
      f["w1"], f["b1"], f["w2"], f["b2"], p["ln3_g"], p["ln3_b"])


# ----------------- tiled matmul (+bias) for the final projection -------------

def _mm_bias_kernel(x_ref, w_ref, b_ref, o_ref, acc_ref):
    @pl.when(pl.program_id(2) == 0)
    def _():
        acc_ref[...] = jnp.zeros_like(acc_ref)

    # operands arrive bf16 (no per-k-step cast); accumulate f32 in VMEM
    acc_ref[...] += jnp.dot(x_ref[...], w_ref[...],
                            preferred_element_type=jnp.float32)

    @pl.when(pl.program_id(2) == pl.num_programs(2) - 1)
    def _():
        o_ref[...] = (acc_ref[...] + b_ref[...]).astype(o_ref.dtype)


def matmul_bias(x2d, w, b, out_dtype=jnp.float32):
    """y = x2d @ w + b.  x2d bf16 (M,K), w bf16 (K,N), b f32 (1,N)."""
    M, K = x2d.shape
    K2, N = w.shape
    assert K == K2
    tm = _pick_tile(M, _MM_TARGETS[0], 8)
    tn = _pick_tile(N, _MM_TARGETS[1], 128)
    tk = _pick_tile(K, _MM_TARGETS[2], 128)
    grid = (M // tm, N // tn, K // tk)
    return pl.pallas_call(
        _mm_bias_kernel,
        out_shape=jax.ShapeDtypeStruct((M, N), out_dtype),
        grid=grid,
        in_specs=[
            pl.BlockSpec((tm, tk), lambda i, j, k: (i, k)),
            pl.BlockSpec((tk, tn), lambda i, j, k: (k, j)),
            pl.BlockSpec((1, tn), lambda i, j, k: (0, j)),
        ],
        out_specs=pl.BlockSpec((tm, tn), lambda i, j, k: (i, j)),
        scratch_shapes=[pltpu.VMEM((tm, tn), jnp.float32)],
        compiler_params=pltpu.CompilerParams(
            dimension_semantics=("parallel", "parallel", "arbitrary"),
            vmem_limit_bytes=VMEM_LIMIT),
    )(x2d, w, b)


# ------------------------------ model pieces --------------------------------

def sinusoidal_encoding(max_len, d_model):
    pos = jnp.arange(max_len, dtype=jnp.float32)[:, None]
    i2 = jnp.arange(0, d_model, 2, dtype=jnp.float32)
    angle = pos / jnp.power(10000.0, i2 / d_model)
    pe = jnp.zeros((max_len, d_model), dtype=jnp.float32)
    pe = pe.at[:, 0::2].set(jnp.sin(angle))
    pe = pe.at[:, 1::2].set(jnp.cos(angle))
    return pe


def transformer_embedding(tokens, emb_table, pos_enc):
    # token embedding (gather) + positional encoding; dropout = identity.
    # TODO(synk): gather stays in plain JAX (no simple Pallas equivalent here).
    L = tokens.shape[1]
    x = jnp.take(emb_table, tokens, axis=0) + pos_enc[:L][None, :, :]
    return x.astype(jnp.bfloat16)        # bf16 activations between kernels


def encoder_decoder_forward(params, src, s_mask, trg, trg_mask, src_mask, *,
                            n_head, dec_voc):
    """Masks are key-padding masks of shape (B, L) with 1=keep, 0=masked.
    The decoder self-attention additionally applies the causal mask in-kernel,
    reproducing the reference trg_mask = pad & causal construction."""
    src_x = transformer_embedding(src, params["enc_emb"], params["pos_enc"])
    trg_x = transformer_embedding(trg, params["dec_emb"], params["pos_enc"])
    # Interleaving matches the reference forward: decoder layer i consumes the
    # encoder output after i+1 encoder layers (src is updated in the loop).
    for ep, dp in zip(params["enc_layers"], params["dec_layers"]):
        src_x = encoder_layer(src_x, s_mask, ep, n_head)
        trg_x = decoder_layer(trg_x, src_x, trg_mask, src_mask, dp, n_head)
    B, Lt, D = trg_x.shape
    # final projection: N padded to a multiple of 128 (lane-dense stores),
    # sliced back to dec_voc outside the kernel.
    out = matmul_bias(trg_x.reshape(-1, D), params["out_w"], params["out_b"])
    return out.reshape(B, Lt, -1)[..., :dec_voc]


# --------------------------- deterministic init ------------------------------

def init_params(key, enc_voc, dec_voc, max_len, d_model, ffn_hidden, n_layers):
    keys = iter(jax.random.split(key, 4096))

    def dense(din, dout):
        w = (jax.random.normal(next(keys), (din, dout), jnp.float32) * 0.02)
        b = jnp.zeros((1, dout), jnp.float32)
        return w.astype(jnp.bfloat16), b            # weights stored bf16 (MXU)

    def self_attn_params():
        wq, bq = dense(d_model, d_model)
        wk, bk = dense(d_model, d_model)
        wv, bv = dense(d_model, d_model)
        wo, bo = dense(d_model, d_model)
        return dict(wqkv=jnp.concatenate([wq, wk, wv], axis=1),
                    bqkv=jnp.concatenate([bq, bk, bv], axis=1),
                    wo=wo, bo=bo)

    def cross_attn_params():
        wq, bq = dense(d_model, d_model)
        wk, bk = dense(d_model, d_model)
        wv, bv = dense(d_model, d_model)
        wo, bo = dense(d_model, d_model)
        return dict(wq=wq, bq=bq,
                    wkv=jnp.concatenate([wk, wv], axis=1),
                    bkv=jnp.concatenate([bk, bv], axis=1),
                    wo=wo, bo=bo)

    def ffn_params():
        w1, b1 = dense(d_model, ffn_hidden)
        w2, b2 = dense(ffn_hidden, d_model)
        return dict(w1=w1, b1=b1, w2=w2, b2=b2)

    def ln():
        return (jnp.ones((1, d_model), jnp.float32),
                jnp.zeros((1, d_model), jnp.float32))

    enc_layers, dec_layers = [], []
    for _ in range(n_layers):
        g1, b1 = ln()
        g2, b2 = ln()
        enc_layers.append(dict(attn=self_attn_params(), ln1_g=g1, ln1_b=b1,
                               ffn=ffn_params(), ln2_g=g2, ln2_b=b2))
        dg1, db1 = ln()
        dg2, db2 = ln()
        dg3, db3 = ln()
        dec_layers.append(dict(self_attn=self_attn_params(), ln1_g=dg1, ln1_b=db1,
                               cross_attn=cross_attn_params(), ln2_g=dg2, ln2_b=db2,
                               ffn=ffn_params(), ln3_g=dg3, ln3_b=db3))

    enc_emb = jax.random.normal(next(keys), (enc_voc, d_model), jnp.float32) * 0.02
    dec_emb = jax.random.normal(next(keys), (dec_voc, d_model), jnp.float32) * 0.02
    # padding_idx = 1 in the reference token embedding
    enc_emb = enc_emb.at[1].set(0.0)
    dec_emb = dec_emb.at[1].set(0.0)

    out_w, out_b = dense(d_model, dec_voc)
    n_pad = ((dec_voc + 127) // 128) * 128
    out_w = jnp.pad(out_w, ((0, 0), (0, n_pad - dec_voc)))
    out_b = jnp.pad(out_b, ((0, 0), (0, n_pad - dec_voc)))

    return dict(enc_emb=enc_emb, dec_emb=dec_emb,
                pos_enc=sinusoidal_encoding(max_len, d_model),
                enc_layers=enc_layers, dec_layers=dec_layers,
                out_w=out_w, out_b=out_b)


# --------------------------------- main --------------------------------------

if __name__ == "__main__":
    # small config
    B, Ls, Lt = 2, 8, 8
    d_model, n_head, ffn_hidden, n_layers = 32, 4, 64, 2
    enc_voc, dec_voc, max_len = 50, 48, 16
    pad_idx = 1

    key = jax.random.PRNGKey(0)
    k_params, k_src, k_trg = jax.random.split(key, 3)

    params = init_params(k_params, enc_voc, dec_voc, max_len, d_model,
                         ffn_hidden, n_layers)

    src = jax.random.randint(k_src, (B, Ls), 0, enc_voc, dtype=jnp.int32)
    trg = jax.random.randint(k_trg, (B, Lt), 0, dec_voc, dtype=jnp.int32)

    # key-padding masks (1 = keep, 0 = masked); causal mask is built in-kernel.
    s_mask = (src != pad_idx).astype(jnp.float32)     # encoder self-attn keys
    trg_mask = (trg != pad_idx).astype(jnp.float32)   # decoder self-attn keys (+causal)
    src_mask = s_mask                                 # decoder cross-attn keys

    fwd = jax.jit(encoder_decoder_forward, static_argnames=("n_head", "dec_voc"))
    out = fwd(params, src, s_mask, trg, trg_mask, src_mask,
              n_head=n_head, dec_voc=dec_voc)
    jax.block_until_ready(out)
    assert out.shape == (B, Lt, dec_voc), out.shape
    assert bool(jnp.all(jnp.isfinite(out)))
    print("KERNEL_OK")
</pallas_src>

<mosaic_0001>
module attributes {stable_mosaic.version = 11 : i64} {
  func.func @_encoder_layer_kernel(%arg0: i32, %arg1: memref<1x8x32xbf16, #tpu.memory_space<vmem>>, %arg2: memref<1x1x8xf32, #tpu.memory_space<vmem>>, %arg3: memref<32x96xbf16, #tpu.memory_space<vmem>>, %arg4: memref<1x96xf32, #tpu.memory_space<vmem>>, %arg5: memref<32x32xbf16, #tpu.memory_space<vmem>>, %arg6: memref<1x32xf32, #tpu.memory_space<vmem>>, %arg7: memref<1x32xf32, #tpu.memory_space<vmem>>, %arg8: memref<1x32xf32, #tpu.memory_space<vmem>>, %arg9: memref<32x64xbf16, #tpu.memory_space<vmem>>, %arg10: memref<1x64xf32, #tpu.memory_space<vmem>>, %arg11: memref<64x32xbf16, #tpu.memory_space<vmem>>, %arg12: memref<1x32xf32, #tpu.memory_space<vmem>>, %arg13: memref<1x32xf32, #tpu.memory_space<vmem>>, %arg14: memref<1x32xf32, #tpu.memory_space<vmem>>, %arg15: memref<1x8x32xbf16, #tpu.memory_space<vmem>>) attributes {dimension_semantics = [#tpu.dimension_semantics<parallel>], iteration_bounds = array<i64: 2>, scalar_prefetch = 0 : i64, scratch_operands = 0 : i64, tpu.core_type = #tpu.core_type<tc>, window_params = [{transform_indices = @transform_0, window_bounds = array<i64: 1, 8, 32>}, {transform_indices = @transform_1, window_bounds = array<i64: 1, 1, 8>}, {pipeline_mode = #tpu.pipeline_mode<synchronous>, transform_indices = @transform_2, window_bounds = array<i64: 32, 96>}, {pipeline_mode = #tpu.pipeline_mode<synchronous>, transform_indices = @transform_3, window_bounds = array<i64: 1, 96>}, {pipeline_mode = #tpu.pipeline_mode<synchronous>, transform_indices = @transform_4, window_bounds = array<i64: 32, 32>}, {pipeline_mode = #tpu.pipeline_mode<synchronous>, transform_indices = @transform_5, window_bounds = array<i64: 1, 32>}, {pipeline_mode = #tpu.pipeline_mode<synchronous>, transform_indices = @transform_6, window_bounds = array<i64: 1, 32>}, {pipeline_mode = #tpu.pipeline_mode<synchronous>, transform_indices = @transform_7, window_bounds = array<i64: 1, 32>}, {pipeline_mode = #tpu.pipeline_mode<synchronous>, transform_indices = @transform_8, window_bounds = array<i64: 32, 64>}, {pipeline_mode = #tpu.pipeline_mode<synchronous>, transform_indices = @transform_9, window_bounds = array<i64: 1, 64>}, {pipeline_mode = #tpu.pipeline_mode<synchronous>, transform_indices = @transform_10, window_bounds = array<i64: 64, 32>}, {pipeline_mode = #tpu.pipeline_mode<synchronous>, transform_indices = @transform_11, window_bounds = array<i64: 1, 32>}, {pipeline_mode = #tpu.pipeline_mode<synchronous>, transform_indices = @transform_12, window_bounds = array<i64: 1, 32>}, {pipeline_mode = #tpu.pipeline_mode<synchronous>, transform_indices = @transform_13, window_bounds = array<i64: 1, 32>}, {transform_indices = @transform_14, window_bounds = array<i64: 1, 8, 32>}]} {
    %c0 = arith.constant 0 : index
    %c0_0 = arith.constant 0 : index
    %c0_1 = arith.constant 0 : index
    %0 = vector.load %arg1[%c0, %c0_0, %c0_1] : memref<1x8x32xbf16, #tpu.memory_space<vmem>>, vector<1x8x32xbf16>
    %1 = vector.shape_cast %0 : vector<1x8x32xbf16> to vector<8x32xbf16>
    %2 = arith.extf %1 : vector<8x32xbf16> to vector<8x32xf32>
    %c0_2 = arith.constant 0 : index
    %c0_3 = arith.constant 0 : index
    %c0_4 = arith.constant 0 : index
    %3 = vector.load %arg2[%c0_2, %c0_3, %c0_4] : memref<1x1x8xf32, #tpu.memory_space<vmem>>, vector<1x1x8xf32>
    %4 = vector.shape_cast %3 : vector<1x1x8xf32> to vector<1x8xf32>
    %cst = arith.constant 0.000000e+00 : f32
    %5 = vector.broadcast %cst : f32 to vector<1x8xf32>
    %6 = arith.cmpf oeq, %4, %5 : vector<1x8xf32>
    %cst_5 = arith.constant -1.000000e+04 : f32
    %cst_6 = arith.constant 0.000000e+00 : f32
    %7 = vector.broadcast %cst_5 : f32 to vector<1x8xf32>
    %8 = vector.broadcast %cst_6 : f32 to vector<1x8xf32>
    %9 = arith.select %6, %7, %8 : vector<1x8xi1>, vector<1x8xf32>
    %c0_7 = arith.constant 0 : index
    %c0_8 = arith.constant 0 : index
    %10 = vector.load %arg3[%c0_7, %c0_8] : memref<32x96xbf16, #tpu.memory_space<vmem>>, vector<32x96xbf16>
    %cst_9 = arith.constant dense<0.000000e+00> : vector<8x96xf32>
    %11 = tpu.matmul %1, %10, %cst_9 {dimension_numbers = #tpu.dot_dimension_numbers<[1], [0], [0], [1], [0, 0, 1, 1], [], []>} : vector<8x32xbf16>, vector<32x96xbf16>, vector<8x96xf32> -> vector<8x96xf32>
    %c0_10 = arith.constant 0 : index
    %c0_11 = arith.constant 0 : index
    %12 = vector.load %arg4[%c0_10, %c0_11] : memref<1x96xf32, #tpu.memory_space<vmem>>, vector<1x96xf32>
    %13 = vector.broadcast %12 : vector<1x96xf32> to vector<8x96xf32>
    %14 = arith.addf %11, %13 : vector<8x96xf32>
    %15 = vector.extract_strided_slice %14 {offsets = [0, 0], sizes = [8, 32], strides = [1, 1]} : vector<8x96xf32> to vector<8x32xf32>
    %cst_12 = arith.constant 0.353553385 : f32
    %16 = vector.broadcast %cst_12 : f32 to vector<8x32xf32>
    %17 = arith.mulf %15, %16 : vector<8x32xf32>
    %18 = arith.truncf %17 : vector<8x32xf32> to vector<8x32xbf16>
    %19 = vector.extract_strided_slice %14 {offsets = [0, 32], sizes = [8, 32], strides = [1, 1]} : vector<8x96xf32> to vector<8x32xf32>
    %20 = arith.truncf %19 : vector<8x32xf32> to vector<8x32xbf16>
    %21 = vector.extract_strided_slice %14 {offsets = [0, 64], sizes = [8, 32], strides = [1, 1]} : vector<8x96xf32> to vector<8x32xf32>
    %22 = arith.truncf %21 : vector<8x32xf32> to vector<8x32xbf16>
    %23 = vector.extract_strided_slice %18 {offsets = [0, 0], sizes = [8, 8], strides = [1, 1]} : vector<8x32xbf16> to vector<8x8xbf16>
    %24 = vector.extract_strided_slice %20 {offsets = [0, 0], sizes = [8, 8], strides = [1, 1]} : vector<8x32xbf16> to vector<8x8xbf16>
    %cst_13 = arith.constant dense<0.000000e+00> : vector<8x8xf32>
    %25 = tpu.matmul %23, %24, %cst_13 {dimension_numbers = #tpu.dot_dimension_numbers<[1], [1], [0], [0], [0, 0, 1, 0], [], []>} : vector<8x8xbf16>, vector<8x8xbf16>, vector<8x8xf32> -> vector<8x8xf32>
    %26 = vector.broadcast %9 : vector<1x8xf32> to vector<8x8xf32>
    %27 = arith.addf %25, %26 : vector<8x8xf32>
    %cst_14 = arith.constant dense<0xFF800000> : vector<8xf32>
    %28 = vector.multi_reduction <maximumf>, %27, %cst_14 [1] : vector<8x8xf32> to vector<8xf32>
    %29 = vector.shape_cast %28 : vector<8xf32> to vector<8x1xf32>
    %30 = vector.broadcast %29 : vector<8x1xf32> to vector<8x8xf32>
    %31 = arith.subf %27, %30 : vector<8x8xf32>
    %32 = math.exp %31 : vector<8x8xf32>
    %cst_15 = arith.constant dense<0.000000e+00> : vector<8xf32>
    %33 = vector.multi_reduction <add>, %32, %cst_15 [1] : vector<8x8xf32> to vector<8xf32>
    %34 = vector.shape_cast %33 : vector<8xf32> to vector<8x1xf32>
    %35 = tpu.reciprocal %34 {approx = true} : vector<8x1xf32> -> vector<8x1xf32>
    %36 = vector.broadcast %35 : vector<8x1xf32> to vector<8x8xf32>
    %37 = arith.mulf %32, %36 : vector<8x8xf32>
    %38 = arith.truncf %37 : vector<8x8xf32> to vector<8x8xbf16>
    %39 = vector.extract_strided_slice %22 {offsets = [0, 0], sizes = [8, 8], strides = [1, 1]} : vector<8x32xbf16> to vector<8x8xbf16>
    %cst_16 = arith.constant dense<0.000000e+00> : vector<8x8xf32>
    %40 = tpu.matmul %38, %39, %cst_16 {dimension_numbers = #tpu.dot_dimension_numbers<[1], [0], [0], [1], [0, 0, 1, 1], [], []>} : vector<8x8xbf16>, vector<8x8xbf16>, vector<8x8xf32> -> vector<8x8xf32>
    %41 = vector.extract_strided_slice %18 {offsets = [0, 8], sizes = [8, 8], strides = [1, 1]} : vector<8x32xbf16> to vector<8x8xbf16>
    %42 = vector.extract_strided_slice %20 {offsets = [0, 8], sizes = [8, 8], strides = [1, 1]} : vector<8x32xbf16> to vector<8x8xbf16>
    %cst_17 = arith.constant dense<0.000000e+00> : vector<8x8xf32>
    %43 = tpu.matmul %41, %42, %cst_17 {dimension_numbers = #tpu.dot_dimension_numbers<[1], [1], [0], [0], [0, 0, 1, 0], [], []>} : vector<8x8xbf16>, vector<8x8xbf16>, vector<8x8xf32> -> vector<8x8xf32>
    %44 = vector.broadcast %9 : vector<1x8xf32> to vector<8x8xf32>
    %45 = arith.addf %43, %44 : vector<8x8xf32>
    %cst_18 = arith.constant dense<0xFF800000> : vector<8xf32>
    %46 = vector.multi_reduction <maximumf>, %45, %cst_18 [1] : vector<8x8xf32> to vector<8xf32>
    %47 = vector.shape_cast %46 : vector<8xf32> to vector<8x1xf32>
    %48 = vector.broadcast %47 : vector<8x1xf32> to vector<8x8xf32>
    %49 = arith.subf %45, %48 : vector<8x8xf32>
    %50 = math.exp %49 : vector<8x8xf32>
    %cst_19 = arith.constant dense<0.000000e+00> : vector<8xf32>
    %51 = vector.multi_reduction <add>, %50, %cst_19 [1] : vector<8x8xf32> to vector<8xf32>
    %52 = vector.shape_cast %51 : vector<8xf32> to vector<8x1xf32>
    %53 = tpu.reciprocal %52 {approx = true} : vector<8x1xf32> -> vector<8x1xf32>
    %54 = vector.broadcast %53 : vector<8x1xf32> to vector<8x8xf32>
    %55 = arith.mulf %50, %54 : vector<8x8xf32>
    %56 = arith.truncf %55 : vector<8x8xf32> to vector<8x8xbf16>
    %57 = vector.extract_strided_slice %22 {offsets = [0, 8], sizes = [8, 8], strides = [1, 1]} : vector<8x32xbf16> to vector<8x8xbf16>
    %cst_20 = arith.constant dense<0.000000e+00> : vector<8x8xf32>
    %58 = tpu.matmul %56, %57, %cst_20 {dimension_numbers = #tpu.dot_dimension_numbers<[1], [0], [0], [1], [0, 0, 1, 1], [], []>} : vector<8x8xbf16>, vector<8x8xbf16>, vector<8x8xf32> -> vector<8x8xf32>
    %59 = vector.extract_strided_slice %18 {offsets = [0, 16], sizes = [8, 8], strides = [1, 1]} : vector<8x32xbf16> to vector<8x8xbf16>
    %60 = vector.extract_strided_slice %20 {offsets = [0, 16], sizes = [8, 8], strides = [1, 1]} : vector<8x32xbf16> to vector<8x8xbf16>
    %cst_21 = arith.constant dense<0.000000e+00> : vector<8x8xf32>
    %61 = tpu.matmul %59, %60, %cst_21 {dimension_numbers = #tpu.dot_dimension_numbers<[1], [1], [0], [0], [0, 0, 1, 0], [], []>} : vector<8x8xbf16>, vector<8x8xbf16>, vector<8x8xf32> -> vector<8x8xf32>
    %62 = vector.broadcast %9 : vector<1x8xf32> to vector<8x8xf32>
    %63 = arith.addf %61, %62 : vector<8x8xf32>
    %cst_22 = arith.constant dense<0xFF800000> : vector<8xf32>
    %64 = vector.multi_reduction <maximumf>, %63, %cst_22 [1] : vector<8x8xf32> to vector<8xf32>
    %65 = vector.shape_cast %64 : vector<8xf32> to vector<8x1xf32>
    %66 = vector.broadcast %65 : vector<8x1xf32> to vector<8x8xf32>
    %67 = arith.subf %63, %66 : vector<8x8xf32>
    %68 = math.exp %67 : vector<8x8xf32>
    %cst_23 = arith.constant dense<0.000000e+00> : vector<8xf32>
    %69 = vector.multi_reduction <add>, %68, %cst_23 [1] : vector<8x8xf32> to vector<8xf32>
    %70 = vector.shape_cast %69 : vector<8xf32> to vector<8x1xf32>
    %71 = tpu.reciprocal %70 {approx = true} : vector<8x1xf32> -> vector<8x1xf32>
    %72 = vector.broadcast %71 : vector<8x1xf32> to vector<8x8xf32>
    %73 = arith.mulf %68, %72 : vector<8x8xf32>
    %74 = arith.truncf %73 : vector<8x8xf32> to vector<8x8xbf16>
    %75 = vector.extract_strided_slice %22 {offsets = [0, 16], sizes = [8, 8], strides = [1, 1]} : vector<8x32xbf16> to vector<8x8xbf16>
    %cst_24 = arith.constant dense<0.000000e+00> : vector<8x8xf32>
    %76 = tpu.matmul %74, %75, %cst_24 {dimension_numbers = #tpu.dot_dimension_numbers<[1], [0], [0], [1], [0, 0, 1, 1], [], []>} : vector<8x8xbf16>, vector<8x8xbf16>, vector<8x8xf32> -> vector<8x8xf32>
    %77 = vector.extract_strided_slice %18 {offsets = [0, 24], sizes = [8, 8], strides = [1, 1]} : vector<8x32xbf16> to vector<8x8xbf16>
    %78 = vector.extract_strided_slice %20 {offsets = [0, 24], sizes = [8, 8], strides = [1, 1]} : vector<8x32xbf16> to vector<8x8xbf16>
    %cst_25 = arith.constant dense<0.000000e+00> : vector<8x8xf32>
    %79 = tpu.matmul %77, %78, %cst_25 {dimension_numbers = #tpu.dot_dimension_numbers<[1], [1], [0], [0], [0, 0, 1, 0], [], []>} : vector<8x8xbf16>, vector<8x8xbf16>, vector<8x8xf32> -> vector<8x8xf32>
    %80 = vector.broadcast %9 : vector<1x8xf32> to vector<8x8xf32>
    %81 = arith.addf %79, %80 : vector<8x8xf32>
    %cst_26 = arith.constant dense<0xFF800000> : vector<8xf32>
    %82 = vector.multi_reduction <maximumf>, %81, %cst_26 [1] : vector<8x8xf32> to vector<8xf32>
    %83 = vector.shape_cast %82 : vector<8xf32> to vector<8x1xf32>
    %84 = vector.broadcast %83 : vector<8x1xf32> to vector<8x8xf32>
    %85 = arith.subf %81, %84 : vector<8x8xf32>
    %86 = math.exp %85 : vector<8x8xf32>
    %cst_27 = arith.constant dense<0.000000e+00> : vector<8xf32>
    %87 = vector.multi_reduction <add>, %86, %cst_27 [1] : vector<8x8xf32> to vector<8xf32>
    %88 = vector.shape_cast %87 : vector<8xf32> to vector<8x1xf32>
    %89 = tpu.reciprocal %88 {approx = true} : vector<8x1xf32> -> vector<8x1xf32>
    %90 = vector.broadcast %89 : vector<8x1xf32> to vector<8x8xf32>
    %91 = arith.mulf %86, %90 : vector<8x8xf32>
    %92 = arith.truncf %91 : vector<8x8xf32> to vector<8x8xbf16>
    %93 = vector.extract_strided_slice %22 {offsets = [0, 24], sizes = [8, 8], strides = [1, 1]} : vector<8x32xbf16> to vector<8x8xbf16>
    %cst_28 = arith.constant dense<0.000000e+00> : vector<8x8xf32>
    %94 = tpu.matmul %92, %93, %cst_28 {dimension_numbers = #tpu.dot_dimension_numbers<[1], [0], [0], [1], [0, 0, 1, 1], [], []>} : vector<8x8xbf16>, vector<8x8xbf16>, vector<8x8xf32> -> vector<8x8xf32>
    %95 = tpu.concatenate %40, %58, %76, %94 in 1 : vector<8x8xf32>, vector<8x8xf32>, vector<8x8xf32>, vector<8x8xf32> -> vector<8x32xf32>
    %96 = arith.truncf %95 : vector<8x32xf32> to vector<8x32xbf16>
    %c0_29 = arith.constant 0 : index
    %c0_30 = arith.constant 0 : index
    %97 = vector.load %arg5[%c0_29, %c0_30] : memref<32x32xbf16, #tpu.memory_space<vmem>>, vector<32x32xbf16>
    %cst_31 = arith.constant dense<0.000000e+00> : vector<8x32xf32>
    %98 = tpu.matmul %96, %97, %cst_31 {dimension_numbers = #tpu.dot_dimension_numbers<[1], [0], [0], [1], [0, 0, 1, 1], [], []>} : vector<8x32xbf16>, vector<32x32xbf16>, vector<8x32xf32> -> vector<8x32xf32>
    %c0_32 = arith.constant 0 : index
    %c0_33 = arith.constant 0 : index
    %99 = vector.load %arg6[%c0_32, %c0_33] : memref<1x32xf32, #tpu.memory_space<vmem>>, vector<1x32xf32>
    %100 = vector.broadcast %99 : vector<1x32xf32> to vector<8x32xf32>
    %101 = arith.addf %98, %100 : vector<8x32xf32>
    %102 = arith.addf %101, %2 : vector<8x32xf32>
    %c0_34 = arith.constant 0 : index
    %c0_35 = arith.constant 0 : index
    %103 = vector.load %arg7[%c0_34, %c0_35] : memref<1x32xf32, #tpu.memory_space<vmem>>, vector<1x32xf32>
    %c0_36 = arith.constant 0 : index
    %c0_37 = arith.constant 0 : index
    %104 = vector.load %arg8[%c0_36, %c0_37] : memref<1x32xf32, #tpu.memory_space<vmem>>, vector<1x32xf32>
    %cst_38 = arith.constant dense<0.000000e+00> : vector<8xf32>
    %105 = vector.multi_reduction <add>, %102, %cst_38 [1] : vector<8x32xf32> to vector<8xf32>
    %106 = vector.shape_cast %105 : vector<8xf32> to vector<8x1xf32>
    %cst_39 = arith.constant 3.200000e+01 : f32
    %107 = vector.broadcast %cst_39 : f32 to vector<8x1xf32>
    %108 = arith.divf %106, %107 : vector<8x1xf32>
    %109 = vector.broadcast %108 : vector<8x1xf32> to vector<8x32xf32>
    %110 = arith.subf %102, %109 : vector<8x32xf32>
    %111 = arith.mulf %110, %110 : vector<8x32xf32>
    %cst_40 = arith.constant dense<0.000000e+00> : vector<8xf32>
    %112 = vector.multi_reduction <add>, %111, %cst_40 [1] : vector<8x32xf32> to vector<8xf32>
    %113 = vector.shape_cast %112 : vector<8xf32> to vector<8x1xf32>
    %cst_41 = arith.constant 3.200000e+01 : f32
    %114 = vector.broadcast %cst_41 : f32 to vector<8x1xf32>
    %115 = arith.divf %113, %114 : vector<8x1xf32>
    %116 = vector.broadcast %108 : vector<8x1xf32> to vector<8x32xf32>
    %117 = arith.subf %102, %116 : vector<8x32xf32>
    %cst_42 = arith.constant 9.99999996E-13 : f32
    %118 = vector.broadcast %cst_42 : f32 to vector<8x1xf32>
    %119 = arith.addf %115, %118 : vector<8x1xf32>
    %120 = math.rsqrt %119 : vector<8x1xf32>
    %121 = vector.broadcast %120 : vector<8x1xf32> to vector<8x32xf32>
    %122 = arith.mulf %117, %121 : vector<8x32xf32>
    %123 = vector.broadcast %103 : vector<1x32xf32> to vector<8x32xf32>
    %124 = arith.mulf %122, %123 : vector<8x32xf32>
    %125 = vector.broadcast %104 : vector<1x32xf32> to vector<8x32xf32>
    %126 = arith.addf %124, %125 : vector<8x32xf32>
    %127 = arith.truncf %126 : vector<8x32xf32> to vector<8x32xbf16>
    %c0_43 = arith.constant 0 : index
    %c0_44 = arith.constant 0 : index
    %128 = vector.load %arg9[%c0_43, %c0_44] : memref<32x64xbf16, #tpu.memory_space<vmem>>, vector<32x64xbf16>
    %cst_45 = arith.constant dense<0.000000e+00> : vector<8x64xf32>
    %129 = tpu.matmul %127, %128, %cst_45 {dimension_numbers = #tpu.dot_dimension_numbers<[1], [0], [0], [1], [0, 0, 1, 1], [], []>} : vector<8x32xbf16>, vector<32x64xbf16>, vector<8x64xf32> -> vector<8x64xf32>
    %c0_46 = arith.constant 0 : index
    %c0_47 = arith.constant 0 : index
    %130 = vector.load %arg10[%c0_46, %c0_47] : memref<1x64xf32, #tpu.memory_space<vmem>>, vector<1x64xf32>
    %131 = vector.broadcast %130 : vector<1x64xf32> to vector<8x64xf32>
    %132 = arith.addf %129, %131 : vector<8x64xf32>
    %cst_48 = arith.constant 0.000000e+00 : f32
    %133 = vector.broadcast %cst_48 : f32 to vector<8x64xf32>
    %134 = arith.maximumf %132, %133 : vector<8x64xf32>
    %135 = arith.truncf %134 : vector<8x64xf32> to vector<8x64xbf16>
    %c0_49 = arith.constant 0 : index
    %c0_50 = arith.constant 0 : index
    %136 = vector.load %arg11[%c0_49, %c0_50] : memref<64x32xbf16, #tpu.memory_space<vmem>>, vector<64x32xbf16>
    %cst_51 = arith.constant dense<0.000000e+00> : vector<8x32xf32>
    %137 = tpu.matmul %135, %136, %cst_51 {dimension_numbers = #tpu.dot_dimension_numbers<[1], [0], [0], [1], [0, 0, 1, 1], [], []>} : vector<8x64xbf16>, vector<64x32xbf16>, vector<8x32xf32> -> vector<8x32xf32>
    %c0_52 = arith.constant 0 : index
    %c0_53 = arith.constant 0 : index
    %138 = vector.load %arg12[%c0_52, %c0_53] : memref<1x32xf32, #tpu.memory_space<vmem>>, vector<1x32xf32>
    %139 = vector.broadcast %138 : vector<1x32xf32> to vector<8x32xf32>
    %140 = arith.addf %137, %139 : vector<8x32xf32>
    %141 = arith.addf %140, %126 : vector<8x32xf32>
    %c0_54 = arith.constant 0 : index
    %c0_55 = arith.constant 0 : index
    %142 = vector.load %arg13[%c0_54, %c0_55] : memref<1x32xf32, #tpu.memory_space<vmem>>, vector<1x32xf32>
    %c0_56 = arith.constant 0 : index
    %c0_57 = arith.constant 0 : index
    %143 = vector.load %arg14[%c0_56, %c0_57] : memref<1x32xf32, #tpu.memory_space<vmem>>, vector<1x32xf32>
    %cst_58 = arith.constant dense<0.000000e+00> : vector<8xf32>
    %144 = vector.multi_reduction <add>, %141, %cst_58 [1] : vector<8x32xf32> to vector<8xf32>
    %145 = vector.shape_cast %144 : vector<8xf32> to vector<8x1xf32>
    %cst_59 = arith.constant 3.200000e+01 : f32
    %146 = vector.broadcast %cst_59 : f32 to vector<8x1xf32>
    %147 = arith.divf %145, %146 : vector<8x1xf32>
    %148 = vector.broadcast %147 : vector<8x1xf32> to vector<8x32xf32>
    %149 = arith.subf %141, %148 : vector<8x32xf32>
    %150 = arith.mulf %149, %149 : vector<8x32xf32>
    %cst_60 = arith.constant dense<0.000000e+00> : vector<8xf32>
    %151 = vector.multi_reduction <add>, %150, %cst_60 [1] : vector<8x32xf32> to vector<8xf32>
    %152 = vector.shape_cast %151 : vector<8xf32> to vector<8x1xf32>
    %cst_61 = arith.constant 3.200000e+01 : f32
    %153 = vector.broadcast %cst_61 : f32 to vector<8x1xf32>
    %154 = arith.divf %152, %153 : vector<8x1xf32>
    %155 = vector.broadcast %147 : vector<8x1xf32> to vector<8x32xf32>
    %156 = arith.subf %141, %155 : vector<8x32xf32>
    %cst_62 = arith.constant 9.99999996E-13 : f32
    %157 = vector.broadcast %cst_62 : f32 to vector<8x1xf32>
    %158 = arith.addf %154, %157 : vector<8x1xf32>
    %159 = math.rsqrt %158 : vector<8x1xf32>
    %160 = vector.broadcast %159 : vector<8x1xf32> to vector<8x32xf32>
    %161 = arith.mulf %156, %160 : vector<8x32xf32>
    %162 = vector.broadcast %142 : vector<1x32xf32> to vector<8x32xf32>
    %163 = arith.mulf %161, %162 : vector<8x32xf32>
    %164 = vector.broadcast %143 : vector<1x32xf32> to vector<8x32xf32>
    %165 = arith.addf %163, %164 : vector<8x32xf32>
    %166 = arith.truncf %165 : vector<8x32xf32> to vector<8x32xbf16>
    %c0_63 = arith.constant 0 : index
    %c0_64 = arith.constant 0 : index
    %c0_65 = arith.constant 0 : index
    %167 = vector.load %arg15[%c0_63, %c0_64, %c0_65] : memref<1x8x32xbf16, #tpu.memory_space<vmem>>, vector<1x8x32xbf16>
    %168 = vector.shape_cast %167 : vector<1x8x32xbf16> to vector<8x32xbf16>
    %169 = vector.shape_cast %166 : vector<8x32xbf16> to vector<1x8x32xbf16>
    tpu.vector_store %arg15[%c0_63, %c0_64, %c0_65], %169 {strides = array<i32>} : memref<1x8x32xbf16, #tpu.memory_space<vmem>>, vector<1x8x32xbf16>,
    return
  }
  func.func @transform_0(%arg0: i32) -> (i32, i32, i32) {
    %c0_i32 = arith.constant 0 : i32
    %c0_i32_0 = arith.constant 0 : i32
    %c0_i32_1 = arith.constant 0 : i32
    return %arg0, %c0_i32, %c0_i32_0 : i32, i32, i32
  }
  func.func @transform_1(%arg0: i32) -> (i32, i32, i32) {
    %c0_i32 = arith.constant 0 : i32
    %c0_i32_0 = arith.constant 0 : i32
    %c0_i32_1 = arith.constant 0 : i32
    return %arg0, %c0_i32, %c0_i32_0 : i32, i32, i32
  }
  func.func @transform_2(%arg0: i32) -> (i32, i32) {
    %c0_i32 = arith.constant 0 : i32
    %c0_i32_0 = arith.constant 0 : i32
    %c0_i32_1 = arith.constant 0 : i32
    return %c0_i32, %c0_i32_0 : i32, i32
  }
  func.func @transform_3(%arg0: i32) -> (i32, i32) {
    %c0_i32 = arith.constant 0 : i32
    %c0_i32_0 = arith.constant 0 : i32
    %c0_i32_1 = arith.constant 0 : i32
    return %c0_i32, %c0_i32_0 : i32, i32
  }
  func.func @transform_4(%arg0: i32) -> (i32, i32) {
    %c0_i32 = arith.constant 0 : i32
    %c0_i32_0 = arith.constant 0 : i32
    %c0_i32_1 = arith.constant 0 : i32
    return %c0_i32, %c0_i32_0 : i32, i32
  }
  func.func @transform_5(%arg0: i32) -> (i32, i32) {
    %c0_i32 = arith.constant 0 : i32
    %c0_i32_0 = arith.constant 0 : i32
    %c0_i32_1 = arith.constant 0 : i32
    return %c0_i32, %c0_i32_0 : i32, i32
  }
  func.func @transform_6(%arg0: i32) -> (i32, i32) {
    %c0_i32 = arith.constant 0 : i32
    %c0_i32_0 = arith.constant 0 : i32
    %c0_i32_1 = arith.constant 0 : i32
    return %c0_i32, %c0_i32_0 : i32, i32
  }
  func.func @transform_7(%arg0: i32) -> (i32, i32) {
    %c0_i32 = arith.constant 0 : i32
    %c0_i32_0 = arith.constant 0 : i32
    %c0_i32_1 = arith.constant 0 : i32
    return %c0_i32, %c0_i32_0 : i32, i32
  }
  func.func @transform_8(%arg0: i32) -> (i32, i32) {
    %c0_i32 = arith.constant 0 : i32
    %c0_i32_0 = arith.constant 0 : i32
    %c0_i32_1 = arith.constant 0 : i32
    return %c0_i32, %c0_i32_0 : i32, i32
  }
  func.func @transform_9(%arg0: i32) -> (i32, i32) {
    %c0_i32 = arith.constant 0 : i32
    %c0_i32_0 = arith.constant 0 : i32
    %c0_i32_1 = arith.constant 0 : i32
    return %c0_i32, %c0_i32_0 : i32, i32
  }
  func.func @transform_10(%arg0: i32) -> (i32, i32) {
    %c0_i32 = arith.constant 0 : i32
    %c0_i32_0 = arith.constant 0 : i32
    %c0_i32_1 = arith.constant 0 : i32
    return %c0_i32, %c0_i32_0 : i32, i32
  }
  func.func @transform_11(%arg0: i32) -> (i32, i32) {
    %c0_i32 = arith.constant 0 : i32
    %c0_i32_0 = arith.constant 0 : i32
    %c0_i32_1 = arith.constant 0 : i32
    return %c0_i32, %c0_i32_0 : i32, i32
  }
  func.func @transform_12(%arg0: i32) -> (i32, i32) {
    %c0_i32 = arith.constant 0 : i32
    %c0_i32_0 = arith.constant 0 : i32
    %c0_i32_1 = arith.constant 0 : i32
    return %c0_i32, %c0_i32_0 : i32, i32
  }
  func.func @transform_13(%arg0: i32) -> (i32, i32) {
    %c0_i32 = arith.constant 0 : i32
    %c0_i32_0 = arith.constant 0 : i32
    %c0_i32_1 = arith.constant 0 : i32
    return %c0_i32, %c0_i32_0 : i32, i32
  }
  func.func @transform_14(%arg0: i32) -> (i32, i32, i32) {
    %c0_i32 = arith.constant 0 : i32
    %c0_i32_0 = arith.constant 0 : i32
    %c0_i32_1 = arith.constant 0 : i32
    return %arg0, %c0_i32, %c0_i32_0 : i32, i32, i32
  }
}

module attributes {stable_mosaic.version = 11 : i64} {
  func.func @_encoder_layer_kernel(%arg0: i32, %arg1: memref<1x8x32xbf16, #tpu.memory_space<vmem>>, %arg2: memref<1x1x8xf32, #tpu.memory_space<vmem>>, %arg3: memref<32x96xbf16, #tpu.memory_space<vmem>>, %arg4: memref<1x96xf32, #tpu.memory_space<vmem>>, %arg5: memref<32x32xbf16, #tpu.memory_space<vmem>>, %arg6: memref<1x32xf32, #tpu.memory_space<vmem>>, %arg7: memref<1x32xf32, #tpu.memory_space<vmem>>, %arg8: memref<1x32xf32, #tpu.memory_space<vmem>>, %arg9: memref<32x64xbf16, #tpu.memory_space<vmem>>, %arg10: memref<1x64xf32, #tpu.memory_space<vmem>>, %arg11: memref<64x32xbf16, #tpu.memory_space<vmem>>, %arg12: memref<1x32xf32, #tpu.memory_space<vmem>>, %arg13: memref<1x32xf32, #tpu.memory_space<vmem>>, %arg14: memref<1x32xf32, #tpu.memory_space<vmem>>, %arg15: memref<1x8x32xbf16, #tpu.memory_space<vmem>>) attributes {dimension_semantics = [#tpu.dimension_semantics<parallel>], iteration_bounds = array<i64: 2>, scalar_prefetch = 0 : i64, scratch_operands = 0 : i64, tpu.core_type = #tpu.core_type<tc>, window_params = [{transform_indices = @transform_0, window_bounds = array<i64: 1, 8, 32>}, {transform_indices = @transform_1, window_bounds = array<i64: 1, 1, 8>}, {pipeline_mode = #tpu.pipeline_mode<synchronous>, transform_indices = @transform_2, window_bounds = array<i64: 32, 96>}, {pipeline_mode = #tpu.pipeline_mode<synchronous>, transform_indices = @transform_3, window_bounds = array<i64: 1, 96>}, {pipeline_mode = #tpu.pipeline_mode<synchronous>, transform_indices = @transform_4, window_bounds = array<i64: 32, 32>}, {pipeline_mode = #tpu.pipeline_mode<synchronous>, transform_indices = @transform_5, window_bounds = array<i64: 1, 32>}, {pipeline_mode = #tpu.pipeline_mode<synchronous>, transform_indices = @transform_6, window_bounds = array<i64: 1, 32>}, {pipeline_mode = #tpu.pipeline_mode<synchronous>, transform_indices = @transform_7, window_bounds = array<i64: 1, 32>}, {pipeline_mode = #tpu.pipeline_mode<synchronous>, transform_indices = @transform_8, window_bounds = array<i64: 32, 64>}, {pipeline_mode = #tpu.pipeline_mode<synchronous>, transform_indices = @transform_9, window_bounds = array<i64: 1, 64>}, {pipeline_mode = #tpu.pipeline_mode<synchronous>, transform_indices = @transform_10, window_bounds = array<i64: 64, 32>}, {pipeline_mode = #tpu.pipeline_mode<synchronous>, transform_indices = @transform_11, window_bounds = array<i64: 1, 32>}, {pipeline_mode = #tpu.pipeline_mode<synchronous>, transform_indices = @transform_12, window_bounds = array<i64: 1, 32>}, {pipeline_mode = #tpu.pipeline_mode<synchronous>, transform_indices = @transform_13, window_bounds = array<i64: 1, 32>}, {transform_indices = @transform_14, window_bounds = array<i64: 1, 8, 32>}]} {
    %c0 = arith.constant 0 : index
    %c0_0 = arith.constant 0 : index
    %c0_1 = arith.constant 0 : index
    %0 = vector.load %arg1[%c0, %c0_0, %c0_1] : memref<1x8x32xbf16, #tpu.memory_space<vmem>>, vector<1x8x32xbf16>
    %1 = vector.shape_cast %0 : vector<1x8x32xbf16> to vector<8x32xbf16>
    %2 = arith.extf %1 : vector<8x32xbf16> to vector<8x32xf32>
    %c0_2 = arith.constant 0 : index
    %c0_3 = arith.constant 0 : index
    %c0_4 = arith.constant 0 : index
    %3 = vector.load %arg2[%c0_2, %c0_3, %c0_4] : memref<1x1x8xf32, #tpu.memory_space<vmem>>, vector<1x1x8xf32>
    %4 = vector.shape_cast %3 : vector<1x1x8xf32> to vector<1x8xf32>
    %cst = arith.constant 0.000000e+00 : f32
    %5 = vector.broadcast %cst : f32 to vector<1x8xf32>
    %6 = arith.cmpf oeq, %4, %5 : vector<1x8xf32>
    %cst_5 = arith.constant -1.000000e+04 : f32
    %cst_6 = arith.constant 0.000000e+00 : f32
    %7 = vector.broadcast %cst_5 : f32 to vector<1x8xf32>
    %8 = vector.broadcast %cst_6 : f32 to vector<1x8xf32>
    %9 = arith.select %6, %7, %8 : vector<1x8xi1>, vector<1x8xf32>
    %c0_7 = arith.constant 0 : index
    %c0_8 = arith.constant 0 : index
    %10 = vector.load %arg3[%c0_7, %c0_8] : memref<32x96xbf16, #tpu.memory_space<vmem>>, vector<32x96xbf16>
    %cst_9 = arith.constant dense<0.000000e+00> : vector<8x96xf32>
    %11 = tpu.matmul %1, %10, %cst_9 {dimension_numbers = #tpu.dot_dimension_numbers<[1], [0], [0], [1], [0, 0, 1, 1], [], []>} : vector<8x32xbf16>, vector<32x96xbf16>, vector<8x96xf32> -> vector<8x96xf32>
    %c0_10 = arith.constant 0 : index
    %c0_11 = arith.constant 0 : index
    %12 = vector.load %arg4[%c0_10, %c0_11] : memref<1x96xf32, #tpu.memory_space<vmem>>, vector<1x96xf32>
    %13 = vector.broadcast %12 : vector<1x96xf32> to vector<8x96xf32>
    %14 = arith.addf %11, %13 : vector<8x96xf32>
    %15 = vector.extract_strided_slice %14 {offsets = [0, 0], sizes = [8, 32], strides = [1, 1]} : vector<8x96xf32> to vector<8x32xf32>
    %cst_12 = arith.constant 0.353553385 : f32
    %16 = vector.broadcast %cst_12 : f32 to vector<8x32xf32>
    %17 = arith.mulf %15, %16 : vector<8x32xf32>
    %18 = arith.truncf %17 : vector<8x32xf32> to vector<8x32xbf16>
    %19 = vector.extract_strided_slice %14 {offsets = [0, 32], sizes = [8, 32], strides = [1, 1]} : vector<8x96xf32> to vector<8x32xf32>
    %20 = arith.truncf %19 : vector<8x32xf32> to vector<8x32xbf16>
    %21 = vector.extract_strided_slice %14 {offsets = [0, 64], sizes = [8, 32], strides = [1, 1]} : vector<8x96xf32> to vector<8x32xf32>
    %22 = arith.truncf %21 : vector<8x32xf32> to vector<8x32xbf16>
    %23 = vector.extract_strided_slice %18 {offsets = [0, 0], sizes = [8, 8], strides = [1, 1]} : vector<8x32xbf16> to vector<8x8xbf16>
    %24 = vector.extract_strided_slice %20 {offsets = [0, 0], sizes = [8, 8], strides = [1, 1]} : vector<8x32xbf16> to vector<8x8xbf16>
    %cst_13 = arith.constant dense<0.000000e+00> : vector<8x8xf32>
    %25 = tpu.matmul %23, %24, %cst_13 {dimension_numbers = #tpu.dot_dimension_numbers<[1], [1], [0], [0], [0, 0, 1, 0], [], []>} : vector<8x8xbf16>, vector<8x8xbf16>, vector<8x8xf32> -> vector<8x8xf32>
    %26 = vector.broadcast %9 : vector<1x8xf32> to vector<8x8xf32>
    %27 = arith.addf %25, %26 : vector<8x8xf32>
    %cst_14 = arith.constant dense<0xFF800000> : vector<8xf32>
    %28 = vector.multi_reduction <maximumf>, %27, %cst_14 [1] : vector<8x8xf32> to vector<8xf32>
    %29 = vector.shape_cast %28 : vector<8xf32> to vector<8x1xf32>
    %30 = vector.broadcast %29 : vector<8x1xf32> to vector<8x8xf32>
    %31 = arith.subf %27, %30 : vector<8x8xf32>
    %32 = math.exp %31 : vector<8x8xf32>
    %cst_15 = arith.constant dense<0.000000e+00> : vector<8xf32>
    %33 = vector.multi_reduction <add>, %32, %cst_15 [1] : vector<8x8xf32> to vector<8xf32>
    %34 = vector.shape_cast %33 : vector<8xf32> to vector<8x1xf32>
    %35 = tpu.reciprocal %34 {approx = true} : vector<8x1xf32> -> vector<8x1xf32>
    %36 = vector.broadcast %35 : vector<8x1xf32> to vector<8x8xf32>
    %37 = arith.mulf %32, %36 : vector<8x8xf32>
    %38 = arith.truncf %37 : vector<8x8xf32> to vector<8x8xbf16>
    %39 = vector.extract_strided_slice %22 {offsets = [0, 0], sizes = [8, 8], strides = [1, 1]} : vector<8x32xbf16> to vector<8x8xbf16>
    %cst_16 = arith.constant dense<0.000000e+00> : vector<8x8xf32>
    %40 = tpu.matmul %38, %39, %cst_16 {dimension_numbers = #tpu.dot_dimension_numbers<[1], [0], [0], [1], [0, 0, 1, 1], [], []>} : vector<8x8xbf16>, vector<8x8xbf16>, vector<8x8xf32> -> vector<8x8xf32>
    %41 = vector.extract_strided_slice %18 {offsets = [0, 8], sizes = [8, 8], strides = [1, 1]} : vector<8x32xbf16> to vector<8x8xbf16>
    %42 = vector.extract_strided_slice %20 {offsets = [0, 8], sizes = [8, 8], strides = [1, 1]} : vector<8x32xbf16> to vector<8x8xbf16>
    %cst_17 = arith.constant dense<0.000000e+00> : vector<8x8xf32>
    %43 = tpu.matmul %41, %42, %cst_17 {dimension_numbers = #tpu.dot_dimension_numbers<[1], [1], [0], [0], [0, 0, 1, 0], [], []>} : vector<8x8xbf16>, vector<8x8xbf16>, vector<8x8xf32> -> vector<8x8xf32>
    %44 = vector.broadcast %9 : vector<1x8xf32> to vector<8x8xf32>
    %45 = arith.addf %43, %44 : vector<8x8xf32>
    %cst_18 = arith.constant dense<0xFF800000> : vector<8xf32>
    %46 = vector.multi_reduction <maximumf>, %45, %cst_18 [1] : vector<8x8xf32> to vector<8xf32>
    %47 = vector.shape_cast %46 : vector<8xf32> to vector<8x1xf32>
    %48 = vector.broadcast %47 : vector<8x1xf32> to vector<8x8xf32>
    %49 = arith.subf %45, %48 : vector<8x8xf32>
    %50 = math.exp %49 : vector<8x8xf32>
    %cst_19 = arith.constant dense<0.000000e+00> : vector<8xf32>
    %51 = vector.multi_reduction <add>, %50, %cst_19 [1] : vector<8x8xf32> to vector<8xf32>
    %52 = vector.shape_cast %51 : vector<8xf32> to vector<8x1xf32>
    %53 = tpu.reciprocal %52 {approx = true} : vector<8x1xf32> -> vector<8x1xf32>
    %54 = vector.broadcast %53 : vector<8x1xf32> to vector<8x8xf32>
    %55 = arith.mulf %50, %54 : vector<8x8xf32>
    %56 = arith.truncf %55 : vector<8x8xf32> to vector<8x8xbf16>
    %57 = vector.extract_strided_slice %22 {offsets = [0, 8], sizes = [8, 8], strides = [1, 1]} : vector<8x32xbf16> to vector<8x8xbf16>
    %cst_20 = arith.constant dense<0.000000e+00> : vector<8x8xf32>
    %58 = tpu.matmul %56, %57, %cst_20 {dimension_numbers = #tpu.dot_dimension_numbers<[1], [0], [0], [1], [0, 0, 1, 1], [], []>} : vector<8x8xbf16>, vector<8x8xbf16>, vector<8x8xf32> -> vector<8x8xf32>
    %59 = vector.extract_strided_slice %18 {offsets = [0, 16], sizes = [8, 8], strides = [1, 1]} : vector<8x32xbf16> to vector<8x8xbf16>
    %60 = vector.extract_strided_slice %20 {offsets = [0, 16], sizes = [8, 8], strides = [1, 1]} : vector<8x32xbf16> to vector<8x8xbf16>
    %cst_21 = arith.constant dense<0.000000e+00> : vector<8x8xf32>
    %61 = tpu.matmul %59, %60, %cst_21 {dimension_numbers = #tpu.dot_dimension_numbers<[1], [1], [0], [0], [0, 0, 1, 0], [], []>} : vector<8x8xbf16>, vector<8x8xbf16>, vector<8x8xf32> -> vector<8x8xf32>
    %62 = vector.broadcast %9 : vector<1x8xf32> to vector<8x8xf32>
    %63 = arith.addf %61, %62 : vector<8x8xf32>
    %cst_22 = arith.constant dense<0xFF800000> : vector<8xf32>
    %64 = vector.multi_reduction <maximumf>, %63, %cst_22 [1] : vector<8x8xf32> to vector<8xf32>
    %65 = vector.shape_cast %64 : vector<8xf32> to vector<8x1xf32>
    %66 = vector.broadcast %65 : vector<8x1xf32> to vector<8x8xf32>
    %67 = arith.subf %63, %66 : vector<8x8xf32>
    %68 = math.exp %67 : vector<8x8xf32>
    %cst_23 = arith.constant dense<0.000000e+00> : vector<8xf32>
    %69 = vector.multi_reduction <add>, %68, %cst_23 [1] : vector<8x8xf32> to vector<8xf32>
    %70 = vector.shape_cast %69 : vector<8xf32> to vector<8x1xf32>
    %71 = tpu.reciprocal %70 {approx = true} : vector<8x1xf32> -> vector<8x1xf32>
    %72 = vector.broadcast %71 : vector<8x1xf32> to vector<8x8xf32>
    %73 = arith.mulf %68, %72 : vector<8x8xf32>
    %74 = arith.truncf %73 : vector<8x8xf32> to vector<8x8xbf16>
    %75 = vector.extract_strided_slice %22 {offsets = [0, 16], sizes = [8, 8], strides = [1, 1]} : vector<8x32xbf16> to vector<8x8xbf16>
    %cst_24 = arith.constant dense<0.000000e+00> : vector<8x8xf32>
    %76 = tpu.matmul %74, %75, %cst_24 {dimension_numbers = #tpu.dot_dimension_numbers<[1], [0], [0], [1], [0, 0, 1, 1], [], []>} : vector<8x8xbf16>, vector<8x8xbf16>, vector<8x8xf32> -> vector<8x8xf32>
    %77 = vector.extract_strided_slice %18 {offsets = [0, 24], sizes = [8, 8], strides = [1, 1]} : vector<8x32xbf16> to vector<8x8xbf16>
    %78 = vector.extract_strided_slice %20 {offsets = [0, 24], sizes = [8, 8], strides = [1, 1]} : vector<8x32xbf16> to vector<8x8xbf16>
    %cst_25 = arith.constant dense<0.000000e+00> : vector<8x8xf32>
    %79 = tpu.matmul %77, %78, %cst_25 {dimension_numbers = #tpu.dot_dimension_numbers<[1], [1], [0], [0], [0, 0, 1, 0], [], []>} : vector<8x8xbf16>, vector<8x8xbf16>, vector<8x8xf32> -> vector<8x8xf32>
    %80 = vector.broadcast %9 : vector<1x8xf32> to vector<8x8xf32>
    %81 = arith.addf %79, %80 : vector<8x8xf32>
    %cst_26 = arith.constant dense<0xFF800000> : vector<8xf32>
    %82 = vector.multi_reduction <maximumf>, %81, %cst_26 [1] : vector<8x8xf32> to vector<8xf32>
    %83 = vector.shape_cast %82 : vector<8xf32> to vector<8x1xf32>
    %84 = vector.broadcast %83 : vector<8x1xf32> to vector<8x8xf32>
    %85 = arith.subf %81, %84 : vector<8x8xf32>
    %86 = math.exp %85 : vector<8x8xf32>
    %cst_27 = arith.constant dense<0.000000e+00> : vector<8xf32>
    %87 = vector.multi_reduction <add>, %86, %cst_27 [1] : vector<8x8xf32> to vector<8xf32>
    %88 = vector.shape_cast %87 : vector<8xf32> to vector<8x1xf32>
    %89 = tpu.reciprocal %88 {approx = true} : vector<8x1xf32> -> vector<8x1xf32>
    %90 = vector.broadcast %89 : vector<8x1xf32> to vector<8x8xf32>
    %91 = arith.mulf %86, %90 : vector<8x8xf32>
    %92 = arith.truncf %91 : vector<8x8xf32> to vector<8x8xbf16>
    %93 = vector.extract_strided_slice %22 {offsets = [0, 24], sizes = [8, 8], strides = [1, 1]} : vector<8x32xbf16> to vector<8x8xbf16>
    %cst_28 = arith.constant dense<0.000000e+00> : vector<8x8xf32>
    %94 = tpu.matmul %92, %93, %cst_28 {dimension_numbers = #tpu.dot_dimension_numbers<[1], [0], [0], [1], [0, 0, 1, 1], [], []>} : vector<8x8xbf16>, vector<8x8xbf16>, vector<8x8xf32> -> vector<8x8xf32>
    %95 = tpu.concatenate %40, %58, %76, %94 in 1 : vector<8x8xf32>, vector<8x8xf32>, vector<8x8xf32>, vector<8x8xf32> -> vector<8x32xf32>
    %96 = arith.truncf %95 : vector<8x32xf32> to vector<8x32xbf16>
    %c0_29 = arith.constant 0 : index
    %c0_30 = arith.constant 0 : index
    %97 = vector.load %arg5[%c0_29, %c0_30] : memref<32x32xbf16, #tpu.memory_space<vmem>>, vector<32x32xbf16>
    %cst_31 = arith.constant dense<0.000000e+00> : vector<8x32xf32>
    %98 = tpu.matmul %96, %97, %cst_31 {dimension_numbers = #tpu.dot_dimension_numbers<[1], [0], [0], [1], [0, 0, 1, 1], [], []>} : vector<8x32xbf16>, vector<32x32xbf16>, vector<8x32xf32> -> vector<8x32xf32>
    %c0_32 = arith.constant 0 : index
    %c0_33 = arith.constant 0 : index
    %99 = vector.load %arg6[%c0_32, %c0_33] : memref<1x32xf32, #tpu.memory_space<vmem>>, vector<1x32xf32>
    %100 = vector.broadcast %99 : vector<1x32xf32> to vector<8x32xf32>
    %101 = arith.addf %98, %100 : vector<8x32xf32>
    %102 = arith.addf %101, %2 : vector<8x32xf32>
    %c0_34 = arith.constant 0 : index
    %c0_35 = arith.constant 0 : index
    %103 = vector.load %arg7[%c0_34, %c0_35] : memref<1x32xf32, #tpu.memory_space<vmem>>, vector<1x32xf32>
    %c0_36 = arith.constant 0 : index
    %c0_37 = arith.constant 0 : index
    %104 = vector.load %arg8[%c0_36, %c0_37] : memref<1x32xf32, #tpu.memory_space<vmem>>, vector<1x32xf32>
    %cst_38 = arith.constant dense<0.000000e+00> : vector<8xf32>
    %105 = vector.multi_reduction <add>, %102, %cst_38 [1] : vector<8x32xf32> to vector<8xf32>
    %106 = vector.shape_cast %105 : vector<8xf32> to vector<8x1xf32>
    %cst_39 = arith.constant 3.200000e+01 : f32
    %107 = vector.broadcast %cst_39 : f32 to vector<8x1xf32>
    %108 = arith.divf %106, %107 : vector<8x1xf32>
    %109 = vector.broadcast %108 : vector<8x1xf32> to vector<8x32xf32>
    %110 = arith.subf %102, %109 : vector<8x32xf32>
    %111 = arith.mulf %110, %110 : vector<8x32xf32>
    %cst_40 = arith.constant dense<0.000000e+00> : vector<8xf32>
    %112 = vector.multi_reduction <add>, %111, %cst_40 [1] : vector<8x32xf32> to vector<8xf32>
    %113 = vector.shape_cast %112 : vector<8xf32> to vector<8x1xf32>
    %cst_41 = arith.constant 3.200000e+01 : f32
    %114 = vector.broadcast %cst_41 : f32 to vector<8x1xf32>
    %115 = arith.divf %113, %114 : vector<8x1xf32>
    %116 = vector.broadcast %108 : vector<8x1xf32> to vector<8x32xf32>
    %117 = arith.subf %102, %116 : vector<8x32xf32>
    %cst_42 = arith.constant 9.99999996E-13 : f32
    %118 = vector.broadcast %cst_42 : f32 to vector<8x1xf32>
    %119 = arith.addf %115, %118 : vector<8x1xf32>
    %120 = math.rsqrt %119 : vector<8x1xf32>
    %121 = vector.broadcast %120 : vector<8x1xf32> to vector<8x32xf32>
    %122 = arith.mulf %117, %121 : vector<8x32xf32>
    %123 = vector.broadcast %103 : vector<1x32xf32> to vector<8x32xf32>
    %124 = arith.mulf %122, %123 : vector<8x32xf32>
    %125 = vector.broadcast %104 : vector<1x32xf32> to vector<8x32xf32>
    %126 = arith.addf %124, %125 : vector<8x32xf32>
    %127 = arith.truncf %126 : vector<8x32xf32> to vector<8x32xbf16>
    %c0_43 = arith.constant 0 : index
    %c0_44 = arith.constant 0 : index
    %128 = vector.load %arg9[%c0_43, %c0_44] : memref<32x64xbf16, #tpu.memory_space<vmem>>, vector<32x64xbf16>
    %cst_45 = arith.constant dense<0.000000e+00> : vector<8x64xf32>
    %129 = tpu.matmul %127, %128, %cst_45 {dimension_numbers = #tpu.dot_dimension_numbers<[1], [0], [0], [1], [0, 0, 1, 1], [], []>} : vector<8x32xbf16>, vector<32x64xbf16>, vector<8x64xf32> -> vector<8x64xf32>
    %c0_46 = arith.constant 0 : index
    %c0_47 = arith.constant 0 : index
    %130 = vector.load %arg10[%c0_46, %c0_47] : memref<1x64xf32, #tpu.memory_space<vmem>>, vector<1x64xf32>
    %131 = vector.broadcast %130 : vector<1x64xf32> to vector<8x64xf32>
    %132 = arith.addf %129, %131 : vector<8x64xf32>
    %cst_48 = arith.constant 0.000000e+00 : f32
    %133 = vector.broadcast %cst_48 : f32 to vector<8x64xf32>
    %134 = arith.maximumf %132, %133 : vector<8x64xf32>
    %135 = arith.truncf %134 : vector<8x64xf32> to vector<8x64xbf16>
    %c0_49 = arith.constant 0 : index
    %c0_50 = arith.constant 0 : index
    %136 = vector.load %arg11[%c0_49, %c0_50] : memref<64x32xbf16, #tpu.memory_space<vmem>>, vector<64x32xbf16>
    %cst_51 = arith.constant dense<0.000000e+00> : vector<8x32xf32>
    %137 = tpu.matmul %135, %136, %cst_51 {dimension_numbers = #tpu.dot_dimension_numbers<[1], [0], [0], [1], [0, 0, 1, 1], [], []>} : vector<8x64xbf16>, vector<64x32xbf16>, vector<8x32xf32> -> vector<8x32xf32>
    %c0_52 = arith.constant 0 : index
    %c0_53 = arith.constant 0 : index
    %138 = vector.load %arg12[%c0_52, %c0_53] : memref<1x32xf32, #tpu.memory_space<vmem>>, vector<1x32xf32>
    %139 = vector.broadcast %138 : vector<1x32xf32> to vector<8x32xf32>
    %140 = arith.addf %137, %139 : vector<8x32xf32>
    %141 = arith.addf %140, %126 : vector<8x32xf32>
    %c0_54 = arith.constant 0 : index
    %c0_55 = arith.constant 0 : index
    %142 = vector.load %arg13[%c0_54, %c0_55] : memref<1x32xf32, #tpu.memory_space<vmem>>, vector<1x32xf32>
    %c0_56 = arith.constant 0 : index
    %c0_57 = arith.constant 0 : index
    %143 = vector.load %arg14[%c0_56, %c0_57] : memref<1x32xf32, #tpu.memory_space<vmem>>, vector<1x32xf32>
    %cst_58 = arith.constant dense<0.000000e+00> : vector<8xf32>
    %144 = vector.multi_reduction <add>, %141, %cst_58 [1] : vector<8x32xf32> to vector<8xf32>
    %145 = vector.shape_cast %144 : vector<8xf32> to vector<8x1xf32>
    %cst_59 = arith.constant 3.200000e+01 : f32
    %146 = vector.broadcast %cst_59 : f32 to vector<8x1xf32>
    %147 = arith.divf %145, %146 : vector<8x1xf32>
    %148 = vector.broadcast %147 : vector<8x1xf32> to vector<8x32xf32>
    %149 = arith.subf %141, %148 : vector<8x32xf32>
    %150 = arith.mulf %149, %149 : vector<8x32xf32>
    %cst_60 = arith.constant dense<0.000000e+00> : vector<8xf32>
    %151 = vector.multi_reduction <add>, %150, %cst_60 [1] : vector<8x32xf32> to vector<8xf32>
    %152 = vector.shape_cast %151 : vector<8xf32> to vector<8x1xf32>
    %cst_61 = arith.constant 3.200000e+01 : f32
    %153 = vector.broadcast %cst_61 : f32 to vector<8x1xf32>
    %154 = arith.divf %152, %153 : vector<8x1xf32>
    %155 = vector.broadcast %147 : vector<8x1xf32> to vector<8x32xf32>
    %156 = arith.subf %141, %155 : vector<8x32xf32>
    %cst_62 = arith.constant 9.99999996E-13 : f32
    %157 = vector.broadcast %cst_62 : f32 to vector<8x1xf32>
    %158 = arith.addf %154, %157 : vector<8x1xf32>
    %159 = math.rsqrt %158 : vector<8x1xf32>
    %160 = vector.broadcast %159 : vector<8x1xf32> to vector<8x32xf32>
    %161 = arith.mulf %156, %160 : vector<8x32xf32>
    %162 = vector.broadcast %142 : vector<1x32xf32> to vector<8x32xf32>
    %163 = arith.mulf %161, %162 : vector<8x32xf32>
    %164 = vector.broadcast %143 : vector<1x32xf32> to vector<8x32xf32>
    %165 = arith.addf %163, %164 : vector<8x32xf32>
    %166 = arith.truncf %165 : vector<8x32xf32> to vector<8x32xbf16>
    %c0_63 = arith.constant 0 : index
    %c0_64 = arith.constant 0 : index
    %c0_65 = arith.constant 0 : index
    %167 = vector.load %arg15[%c0_63, %c0_64, %c0_65] : memref<1x8x32xbf16, #tpu.memory_space<vmem>>, vector<1x8x32xbf16>
    %168 = vector.shape_cast %167 : vector<1x8x32xbf16> to vector<8x32xbf16>
    %169 = vector.shape_cast %166 : vector<8x32xbf16> to vector<1x8x32xbf16>
    tpu.vector_store %arg15[%c0_63, %c0_64, %c0_65], %169 {strides = array<i32>} : memref<1x8x32xbf16, #tpu.memory_space<vmem>>, vector<1x8x32xbf16>,
    return
  }
  func.func @transform_0(%arg0: i32) -> (i32, i32, i32) {
    %c0_i32 = arith.constant 0 : i32
    %c0_i32_0 = arith.constant 0 : i32
    %c0_i32_1 = arith.constant 0 : i32
    return %arg0, %c0_i32, %c0_i32_0 : i32, i32, i32
  }
  func.func @transform_1(%arg0: i32) -> (i32, i32, i32) {
    %c0_i32 = arith.constant 0 : i32
    %c0_i32_0 = arith.constant 0 : i32
    %c0_i32_1 = arith.constant 0 : i32
    return %arg0, %c0_i32, %c0_i32_0 : i32, i32, i32
  }
  func.func @transform_2(%arg0: i32) -> (i32, i32) {
    %c0_i32 = arith.constant 0 : i32
    %c0_i32_0 = arith.constant 0 : i32
    %c0_i32_1 = arith.constant 0 : i32
    return %c0_i32, %c0_i32_0 : i32, i32
  }
  func.func @transform_3(%arg0: i32) -> (i32, i32) {
    %c0_i32 = arith.constant 0 : i32
    %c0_i32_0 = arith.constant 0 : i32
    %c0_i32_1 = arith.constant 0 : i32
    return %c0_i32, %c0_i32_0 : i32, i32
  }
  func.func @transform_4(%arg0: i32) -> (i32, i32) {
    %c0_i32 = arith.constant 0 : i32
    %c0_i32_0 = arith.constant 0 : i32
    %c0_i32_1 = arith.constant 0 : i32
    return %c0_i32, %c0_i32_0 : i32, i32
  }
  func.func @transform_5(%arg0: i32) -> (i32, i32) {
    %c0_i32 = arith.constant 0 : i32
    %c0_i32_0 = arith.constant 0 : i32
    %c0_i32_1 = arith.constant 0 : i32
    return %c0_i32, %c0_i32_0 : i32, i32
  }
  func.func @transform_6(%arg0: i32) -> (i32, i32) {
    %c0_i32 = arith.constant 0 : i32
    %c0_i32_0 = arith.constant 0 : i32
    %c0_i32_1 = arith.constant 0 : i32
    return %c0_i32, %c0_i32_0 : i32, i32
  }
  func.func @transform_7(%arg0: i32) -> (i32, i32) {
    %c0_i32 = arith.constant 0 : i32
    %c0_i32_0 = arith.constant 0 : i32
    %c0_i32_1 = arith.constant 0 : i32
    return %c0_i32, %c0_i32_0 : i32, i32
  }
  func.func @transform_8(%arg0: i32) -> (i32, i32) {
    %c0_i32 = arith.constant 0 : i32
    %c0_i32_0 = arith.constant 0 : i32
    %c0_i32_1 = arith.constant 0 : i32
    return %c0_i32, %c0_i32_0 : i32, i32
  }
  func.func @transform_9(%arg0: i32) -> (i32, i32) {
    %c0_i32 = arith.constant 0 : i32
    %c0_i32_0 = arith.constant 0 : i32
    %c0_i32_1 = arith.constant 0 : i32
    return %c0_i32, %c0_i32_0 : i32, i32
  }
  func.func @transform_10(%arg0: i32) -> (i32, i32) {
    %c0_i32 = arith.constant 0 : i32
    %c0_i32_0 = arith.constant 0 : i32
    %c0_i32_1 = arith.constant 0 : i32
    return %c0_i32, %c0_i32_0 : i32, i32
  }
  func.func @transform_11(%arg0: i32) -> (i32, i32) {
    %c0_i32 = arith.constant 0 : i32
    %c0_i32_0 = arith.constant 0 : i32
    %c0_i32_1 = arith.constant 0 : i32
    return %c0_i32, %c0_i32_0 : i32, i32
  }
  func.func @transform_12(%arg0: i32) -> (i32, i32) {
    %c0_i32 = arith.constant 0 : i32
    %c0_i32_0 = arith.constant 0 : i32
    %c0_i32_1 = arith.constant 0 : i32
    return %c0_i32, %c0_i32_0 : i32, i32
  }
  func.func @transform_13(%arg0: i32) -> (i32, i32) {
    %c0_i32 = arith.constant 0 : i32
    %c0_i32_0 = arith.constant 0 : i32
    %c0_i32_1 = arith.constant 0 : i32
    return %c0_i32, %c0_i32_0 : i32, i32
  }
  func.func @transform_14(%arg0: i32) -> (i32, i32, i32) {
    %c0_i32 = arith.constant 0 : i32
    %c0_i32_0 = arith.constant 0 : i32
    %c0_i32_1 = arith.constant 0 : i32
    return %arg0, %c0_i32, %c0_i32_0 : i32, i32, i32
  }
}

module attributes {stable_mosaic.version = 11 : i64} {
  func.func @_decoder_layer_kernel(%arg0: i32, %arg1: memref<1x8x32xbf16, #tpu.memory_space<vmem>>, %arg2: memref<1x8x32xbf16, #tpu.memory_space<vmem>>, %arg3: memref<1x1x8xf32, #tpu.memory_space<vmem>>, %arg4: memref<1x1x8xf32, #tpu.memory_space<vmem>>, %arg5: memref<32x96xbf16, #tpu.memory_space<vmem>>, %arg6: memref<1x96xf32, #tpu.memory_space<vmem>>, %arg7: memref<32x32xbf16, #tpu.memory_space<vmem>>, %arg8: memref<1x32xf32, #tpu.memory_space<vmem>>, %arg9: memref<1x32xf32, #tpu.memory_space<vmem>>, %arg10: memref<1x32xf32, #tpu.memory_space<vmem>>, %arg11: memref<32x32xbf16, #tpu.memory_space<vmem>>, %arg12: memref<1x32xf32, #tpu.memory_space<vmem>>, %arg13: memref<32x64xbf16, #tpu.memory_space<vmem>>, %arg14: memref<1x64xf32, #tpu.memory_space<vmem>>, %arg15: memref<32x32xbf16, #tpu.memory_space<vmem>>, %arg16: memref<1x32xf32, #tpu.memory_space<vmem>>, %arg17: memref<1x32xf32, #tpu.memory_space<vmem>>, %arg18: memref<1x32xf32, #tpu.memory_space<vmem>>, %arg19: memref<32x64xbf16, #tpu.memory_space<vmem>>, %arg20: memref<1x64xf32, #tpu.memory_space<vmem>>, %arg21: memref<64x32xbf16, #tpu.memory_space<vmem>>, %arg22: memref<1x32xf32, #tpu.memory_space<vmem>>, %arg23: memref<1x32xf32, #tpu.memory_space<vmem>>, %arg24: memref<1x32xf32, #tpu.memory_space<vmem>>, %arg25: memref<1x8x32xbf16, #tpu.memory_space<vmem>>) attributes {dimension_semantics = [#tpu.dimension_semantics<parallel>], iteration_bounds = array<i64: 2>, scalar_prefetch = 0 : i64, scratch_operands = 0 : i64, tpu.core_type = #tpu.core_type<tc>, window_params = [{transform_indices = @transform_0, window_bounds = array<i64: 1, 8, 32>}, {transform_indices = @transform_1, window_bounds = array<i64: 1, 8, 32>}, {transform_indices = @transform_2, window_bounds = array<i64: 1, 1, 8>}, {transform_indices = @transform_3, window_bounds = array<i64: 1, 1, 8>}, {pipeline_mode = #tpu.pipeline_mode<synchronous>, transform_indices = @transform_4, window_bounds = array<i64: 32, 96>}, {pipeline_mode = #tpu.pipeline_mode<synchronous>, transform_indices = @transform_5, window_bounds = array<i64: 1, 96>}, {pipeline_mode = #tpu.pipeline_mode<synchronous>, transform_indices = @transform_6, window_bounds = array<i64: 32, 32>}, {pipeline_mode = #tpu.pipeline_mode<synchronous>, transform_indices = @transform_7, window_bounds = array<i64: 1, 32>}, {pipeline_mode = #tpu.pipeline_mode<synchronous>, transform_indices = @transform_8, window_bounds = array<i64: 1, 32>}, {pipeline_mode = #tpu.pipeline_mode<synchronous>, transform_indices = @transform_9, window_bounds = array<i64: 1, 32>}, {pipeline_mode = #tpu.pipeline_mode<synchronous>, transform_indices = @transform_10, window_bounds = array<i64: 32, 32>}, {pipeline_mode = #tpu.pipeline_mode<synchronous>, transform_indices = @transform_11, window_bounds = array<i64: 1, 32>}, {pipeline_mode = #tpu.pipeline_mode<synchronous>, transform_indices = @transform_12, window_bounds = array<i64: 32, 64>}, {pipeline_mode = #tpu.pipeline_mode<synchronous>, transform_indices = @transform_13, window_bounds = array<i64: 1, 64>}, {pipeline_mode = #tpu.pipeline_mode<synchronous>, transform_indices = @transform_14, window_bounds = array<i64: 32, 32>}, {pipeline_mode = #tpu.pipeline_mode<synchronous>, transform_indices = @transform_15, window_bounds = array<i64: 1, 32>}, {pipeline_mode = #tpu.pipeline_mode<synchronous>, transform_indices = @transform_16, window_bounds = array<i64: 1, 32>}, {pipeline_mode = #tpu.pipeline_mode<synchronous>, transform_indices = @transform_17, window_bounds = array<i64: 1, 32>}, {pipeline_mode = #tpu.pipeline_mode<synchronous>, transform_indices = @transform_18, window_bounds = array<i64: 32, 64>}, {pipeline_mode = #tpu.pipeline_mode<synchronous>, transform_indices = @transform_19, window_bounds = array<i64: 1, 64>}, {pipeline_mode = #tpu.pipeline_mode<synchronous>, transform_indices = @transform_20, window_bounds = array<i64: 64, 32>}, {pipeline_mode = #tpu.pipeline_mode<synchronous>, transform_indices = @transform_21, window_bounds = array<i64: 1, 32>}, {pipeline_mode = #tpu.pipeline_mode<synchronous>, transform_indices = @transform_22, window_bounds = array<i64: 1, 32>}, {pipeline_mode = #tpu.pipeline_mode<synchronous>, transform_indices = @transform_23, window_bounds = array<i64: 1, 32>}, {transform_indices = @transform_24, window_bounds = array<i64: 1, 8, 32>}]} {
    %c0 = arith.constant 0 : index
    %c0_0 = arith.constant 0 : index
    %c0_1 = arith.constant 0 : index
    %0 = vector.load %arg1[%c0, %c0_0, %c0_1] : memref<1x8x32xbf16, #tpu.memory_space<vmem>>, vector<1x8x32xbf16>
    %1 = vector.shape_cast %0 : vector<1x8x32xbf16> to vector<8x32xbf16>
    %c0_2 = arith.constant 0 : index
    %c0_3 = arith.constant 0 : index
    %c0_4 = arith.constant 0 : index
    %2 = vector.load %arg2[%c0_2, %c0_3, %c0_4] : memref<1x8x32xbf16, #tpu.memory_space<vmem>>, vector<1x8x32xbf16>
    %3 = vector.shape_cast %2 : vector<1x8x32xbf16> to vector<8x32xbf16>
    %4 = arith.extf %1 : vector<8x32xbf16> to vector<8x32xf32>
    %5 = tpu.iota {dimensions = array<i32: 0>} : vector<8x8xi32>
    %6 = tpu.iota {dimensions = array<i32: 1>} : vector<8x8xi32>
    %7 = arith.cmpi sgt, %6, %5 : vector<8x8xi32>
    %cst = arith.constant -1.000000e+04 : f32
    %cst_5 = arith.constant 0.000000e+00 : f32
    %8 = vector.broadcast %cst : f32 to vector<8x8xf32>
    %9 = vector.broadcast %cst_5 : f32 to vector<8x8xf32>
    %10 = arith.select %7, %8, %9 : vector<8x8xi1>, vector<8x8xf32>
    %c0_6 = arith.constant 0 : index
    %c0_7 = arith.constant 0 : index
    %c0_8 = arith.constant 0 : index
    %11 = vector.load %arg3[%c0_6, %c0_7, %c0_8] : memref<1x1x8xf32, #tpu.memory_space<vmem>>, vector<1x1x8xf32>
    %12 = vector.shape_cast %11 : vector<1x1x8xf32> to vector<1x8xf32>
    %cst_9 = arith.constant 0.000000e+00 : f32
    %13 = vector.broadcast %cst_9 : f32 to vector<1x8xf32>
    %14 = arith.cmpf oeq, %12, %13 : vector<1x8xf32>
    %cst_10 = arith.constant -1.000000e+04 : f32
    %cst_11 = arith.constant 0.000000e+00 : f32
    %15 = vector.broadcast %cst_10 : f32 to vector<1x8xf32>
    %16 = vector.broadcast %cst_11 : f32 to vector<1x8xf32>
    %17 = arith.select %14, %15, %16 : vector<1x8xi1>, vector<1x8xf32>
    %18 = vector.broadcast %17 : vector<1x8xf32> to vector<8x8xf32>
    %19 = arith.addf %10, %18 : vector<8x8xf32>
    %c0_12 = arith.constant 0 : index
    %c0_13 = arith.constant 0 : index
    %c0_14 = arith.constant 0 : index
    %20 = vector.load %arg4[%c0_12, %c0_13, %c0_14] : memref<1x1x8xf32, #tpu.memory_space<vmem>>, vector<1x1x8xf32>
    %21 = vector.shape_cast %20 : vector<1x1x8xf32> to vector<1x8xf32>
    %cst_15 = arith.constant 0.000000e+00 : f32
    %22 = vector.broadcast %cst_15 : f32 to vector<1x8xf32>
    %23 = arith.cmpf oeq, %21, %22 : vector<1x8xf32>
    %cst_16 = arith.constant -1.000000e+04 : f32
    %cst_17 = arith.constant 0.000000e+00 : f32
    %24 = vector.broadcast %cst_16 : f32 to vector<1x8xf32>
    %25 = vector.broadcast %cst_17 : f32 to vector<1x8xf32>
    %26 = arith.select %23, %24, %25 : vector<1x8xi1>, vector<1x8xf32>
    %c0_18 = arith.constant 0 : index
    %c0_19 = arith.constant 0 : index
    %27 = vector.load %arg5[%c0_18, %c0_19] : memref<32x96xbf16, #tpu.memory_space<vmem>>, vector<32x96xbf16>
    %cst_20 = arith.constant dense<0.000000e+00> : vector<8x96xf32>
    %28 = tpu.matmul %1, %27, %cst_20 {dimension_numbers = #tpu.dot_dimension_numbers<[1], [0], [0], [1], [0, 0, 1, 1], [], []>} : vector<8x32xbf16>, vector<32x96xbf16>, vector<8x96xf32> -> vector<8x96xf32>
    %c0_21 = arith.constant 0 : index
    %c0_22 = arith.constant 0 : index
    %29 = vector.load %arg6[%c0_21, %c0_22] : memref<1x96xf32, #tpu.memory_space<vmem>>, vector<1x96xf32>
    %30 = vector.broadcast %29 : vector<1x96xf32> to vector<8x96xf32>
    %31 = arith.addf %28, %30 : vector<8x96xf32>
    %32 = vector.extract_strided_slice %31 {offsets = [0, 0], sizes = [8, 32], strides = [1, 1]} : vector<8x96xf32> to vector<8x32xf32>
    %cst_23 = arith.constant 0.353553385 : f32
    %33 = vector.broadcast %cst_23 : f32 to vector<8x32xf32>
    %34 = arith.mulf %32, %33 : vector<8x32xf32>
    %35 = arith.truncf %34 : vector<8x32xf32> to vector<8x32xbf16>
    %36 = vector.extract_strided_slice %31 {offsets = [0, 32], sizes = [8, 32], strides = [1, 1]} : vector<8x96xf32> to vector<8x32xf32>
    %37 = arith.truncf %36 : vector<8x32xf32> to vector<8x32xbf16>
    %38 = vector.extract_strided_slice %31 {offsets = [0, 64], sizes = [8, 32], strides = [1, 1]} : vector<8x96xf32> to vector<8x32xf32>
    %39 = arith.truncf %38 : vector<8x32xf32> to vector<8x32xbf16>
    %40 = vector.extract_strided_slice %35 {offsets = [0, 0], sizes = [8, 8], strides = [1, 1]} : vector<8x32xbf16> to vector<8x8xbf16>
    %41 = vector.extract_strided_slice %37 {offsets = [0, 0], sizes = [8, 8], strides = [1, 1]} : vector<8x32xbf16> to vector<8x8xbf16>
    %cst_24 = arith.constant dense<0.000000e+00> : vector<8x8xf32>
    %42 = tpu.matmul %40, %41, %cst_24 {dimension_numbers = #tpu.dot_dimension_numbers<[1], [1], [0], [0], [0, 0, 1, 0], [], []>} : vector<8x8xbf16>, vector<8x8xbf16>, vector<8x8xf32> -> vector<8x8xf32>
    %43 = arith.addf %42, %19 : vector<8x8xf32>
    %cst_25 = arith.constant dense<0xFF800000> : vector<8xf32>
    %44 = vector.multi_reduction <maximumf>, %43, %cst_25 [1] : vector<8x8xf32> to vector<8xf32>
    %45 = vector.shape_cast %44 : vector<8xf32> to vector<8x1xf32>
    %46 = vector.broadcast %45 : vector<8x1xf32> to vector<8x8xf32>
    %47 = arith.subf %43, %46 : vector<8x8xf32>
    %48 = math.exp %47 : vector<8x8xf32>
    %cst_26 = arith.constant dense<0.000000e+00> : vector<8xf32>
    %49 = vector.multi_reduction <add>, %48, %cst_26 [1] : vector<8x8xf32> to vector<8xf32>
    %50 = vector.shape_cast %49 : vector<8xf32> to vector<8x1xf32>
    %51 = tpu.reciprocal %50 {approx = true} : vector<8x1xf32> -> vector<8x1xf32>
    %52 = vector.broadcast %51 : vector<8x1xf32> to vector<8x8xf32>
    %53 = arith.mulf %48, %52 : vector<8x8xf32>
    %54 = arith.truncf %53 : vector<8x8xf32> to vector<8x8xbf16>
    %55 = vector.extract_strided_slice %39 {offsets = [0, 0], sizes = [8, 8], strides = [1, 1]} : vector<8x32xbf16> to vector<8x8xbf16>
    %cst_27 = arith.constant dense<0.000000e+00> : vector<8x8xf32>
    %56 = tpu.matmul %54, %55, %cst_27 {dimension_numbers = #tpu.dot_dimension_numbers<[1], [0], [0], [1], [0, 0, 1, 1], [], []>} : vector<8x8xbf16>, vector<8x8xbf16>, vector<8x8xf32> -> vector<8x8xf32>
    %57 = vector.extract_strided_slice %35 {offsets = [0, 8], sizes = [8, 8], strides = [1, 1]} : vector<8x32xbf16> to vector<8x8xbf16>
    %58 = vector.extract_strided_slice %37 {offsets = [0, 8], sizes = [8, 8], strides = [1, 1]} : vector<8x32xbf16> to vector<8x8xbf16>
    %cst_28 = arith.constant dense<0.000000e+00> : vector<8x8xf32>
    %59 = tpu.matmul %57, %58, %cst_28 {dimension_numbers = #tpu.dot_dimension_numbers<[1], [1], [0], [0], [0, 0, 1, 0], [], []>} : vector<8x8xbf16>, vector<8x8xbf16>, vector<8x8xf32> -> vector<8x8xf32>
    %60 = arith.addf %59, %19 : vector<8x8xf32>
    %cst_29 = arith.constant dense<0xFF800000> : vector<8xf32>
    %61 = vector.multi_reduction <maximumf>, %60, %cst_29 [1] : vector<8x8xf32> to vector<8xf32>
    %62 = vector.shape_cast %61 : vector<8xf32> to vector<8x1xf32>
    %63 = vector.broadcast %62 : vector<8x1xf32> to vector<8x8xf32>
    %64 = arith.subf %60, %63 : vector<8x8xf32>
    %65 = math.exp %64 : vector<8x8xf32>
    %cst_30 = arith.constant dense<0.000000e+00> : vector<8xf32>
    %66 = vector.multi_reduction <add>, %65, %cst_30 [1] : vector<8x8xf32> to vector<8xf32>
    %67 = vector.shape_cast %66 : vector<8xf32> to vector<8x1xf32>
    %68 = tpu.reciprocal %67 {approx = true} : vector<8x1xf32> -> vector<8x1xf32>
    %69 = vector.broadcast %68 : vector<8x1xf32> to vector<8x8xf32>
    %70 = arith.mulf %65, %69 : vector<8x8xf32>
    %71 = arith.truncf %70 : vector<8x8xf32> to vector<8x8xbf16>
    %72 = vector.extract_strided_slice %39 {offsets = [0, 8], sizes = [8, 8], strides = [1, 1]} : vector<8x32xbf16> to vector<8x8xbf16>
    %cst_31 = arith.constant dense<0.000000e+00> : vector<8x8xf32>
    %73 = tpu.matmul %71, %72, %cst_31 {dimension_numbers = #tpu.dot_dimension_numbers<[1], [0], [0], [1], [0, 0, 1, 1], [], []>} : vector<8x8xbf16>, vector<8x8xbf16>, vector<8x8xf32> -> vector<8x8xf32>
    %74 = vector.extract_strided_slice %35 {offsets = [0, 16], sizes = [8, 8], strides = [1, 1]} : vector<8x32xbf16> to vector<8x8xbf16>
    %75 = vector.extract_strided_slice %37 {offsets = [0, 16], sizes = [8, 8], strides = [1, 1]} : vector<8x32xbf16> to vector<8x8xbf16>
    %cst_32 = arith.constant dense<0.000000e+00> : vector<8x8xf32>
    %76 = tpu.matmul %74, %75, %cst_32 {dimension_numbers = #tpu.dot_dimension_numbers<[1], [1], [0], [0], [0, 0, 1, 0], [], []>} : vector<8x8xbf16>, vector<8x8xbf16>, vector<8x8xf32> -> vector<8x8xf32>
    %77 = arith.addf %76, %19 : vector<8x8xf32>
    %cst_33 = arith.constant dense<0xFF800000> : vector<8xf32>
    %78 = vector.multi_reduction <maximumf>, %77, %cst_33 [1] : vector<8x8xf32> to vector<8xf32>
    %79 = vector.shape_cast %78 : vector<8xf32> to vector<8x1xf32>
    %80 = vector.broadcast %79 : vector<8x1xf32> to vector<8x8xf32>
    %81 = arith.subf %77, %80 : vector<8x8xf32>
    %82 = math.exp %81 : vector<8x8xf32>
    %cst_34 = arith.constant dense<0.000000e+00> : vector<8xf32>
    %83 = vector.multi_reduction <add>, %82, %cst_34 [1] : vector<8x8xf32> to vector<8xf32>
    %84 = vector.shape_cast %83 : vector<8xf32> to vector<8x1xf32>
    %85 = tpu.reciprocal %84 {approx = true} : vector<8x1xf32> -> vector<8x1xf32>
    %86 = vector.broadcast %85 : vector<8x1xf32> to vector<8x8xf32>
    %87 = arith.mulf %82, %86 : vector<8x8xf32>
    %88 = arith.truncf %87 : vector<8x8xf32> to vector<8x8xbf16>
    %89 = vector.extract_strided_slice %39 {offsets = [0, 16], sizes = [8, 8], strides = [1, 1]} : vector<8x32xbf16> to vector<8x8xbf16>
    %cst_35 = arith.constant dense<0.000000e+00> : vector<8x8xf32>
    %90 = tpu.matmul %88, %89, %cst_35 {dimension_numbers = #tpu.dot_dimension_numbers<[1], [0], [0], [1], [0, 0, 1, 1], [], []>} : vector<8x8xbf16>, vector<8x8xbf16>, vector<8x8xf32> -> vector<8x8xf32>
    %91 = vector.extract_strided_slice %35 {offsets = [0, 24], sizes = [8, 8], strides = [1, 1]} : vector<8x32xbf16> to vector<8x8xbf16>
    %92 = vector.extract_strided_slice %37 {offsets = [0, 24], sizes = [8, 8], strides = [1, 1]} : vector<8x32xbf16> to vector<8x8xbf16>
    %cst_36 = arith.constant dense<0.000000e+00> : vector<8x8xf32>
    %93 = tpu.matmul %91, %92, %cst_36 {dimension_numbers = #tpu.dot_dimension_numbers<[1], [1], [0], [0], [0, 0, 1, 0], [], []>} : vector<8x8xbf16>, vector<8x8xbf16>, vector<8x8xf32> -> vector<8x8xf32>
    %94 = arith.addf %93, %19 : vector<8x8xf32>
    %cst_37 = arith.constant dense<0xFF800000> : vector<8xf32>
    %95 = vector.multi_reduction <maximumf>, %94, %cst_37 [1] : vector<8x8xf32> to vector<8xf32>
    %96 = vector.shape_cast %95 : vector<8xf32> to vector<8x1xf32>
    %97 = vector.broadcast %96 : vector<8x1xf32> to vector<8x8xf32>
    %98 = arith.subf %94, %97 : vector<8x8xf32>
    %99 = math.exp %98 : vector<8x8xf32>
    %cst_38 = arith.constant dense<0.000000e+00> : vector<8xf32>
    %100 = vector.multi_reduction <add>, %99, %cst_38 [1] : vector<8x8xf32> to vector<8xf32>
    %101 = vector.shape_cast %100 : vector<8xf32> to vector<8x1xf32>
    %102 = tpu.reciprocal %101 {approx = true} : vector<8x1xf32> -> vector<8x1xf32>
    %103 = vector.broadcast %102 : vector<8x1xf32> to vector<8x8xf32>
    %104 = arith.mulf %99, %103 : vector<8x8xf32>
    %105 = arith.truncf %104 : vector<8x8xf32> to vector<8x8xbf16>
    %106 = vector.extract_strided_slice %39 {offsets = [0, 24], sizes = [8, 8], strides = [1, 1]} : vector<8x32xbf16> to vector<8x8xbf16>
    %cst_39 = arith.constant dense<0.000000e+00> : vector<8x8xf32>
    %107 = tpu.matmul %105, %106, %cst_39 {dimension_numbers = #tpu.dot_dimension_numbers<[1], [0], [0], [1], [0, 0, 1, 1], [], []>} : vector<8x8xbf16>, vector<8x8xbf16>, vector<8x8xf32> -> vector<8x8xf32>
    %108 = tpu.concatenate %56, %73, %90, %107 in 1 : vector<8x8xf32>, vector<8x8xf32>, vector<8x8xf32>, vector<8x8xf32> -> vector<8x32xf32>
    %109 = arith.truncf %108 : vector<8x32xf32> to vector<8x32xbf16>
    %c0_40 = arith.constant 0 : index
    %c0_41 = arith.constant 0 : index
    %110 = vector.load %arg7[%c0_40, %c0_41] : memref<32x32xbf16, #tpu.memory_space<vmem>>, vector<32x32xbf16>
    %cst_42 = arith.constant dense<0.000000e+00> : vector<8x32xf32>
    %111 = tpu.matmul %109, %110, %cst_42 {dimension_numbers = #tpu.dot_dimension_numbers<[1], [0], [0], [1], [0, 0, 1, 1], [], []>} : vector<8x32xbf16>, vector<32x32xbf16>, vector<8x32xf32> -> vector<8x32xf32>
    %c0_43 = arith.constant 0 : index
    %c0_44 = arith.constant 0 : index
    %112 = vector.load %arg8[%c0_43, %c0_44] : memref<1x32xf32, #tpu.memory_space<vmem>>, vector<1x32xf32>
    %113 = vector.broadcast %112 : vector<1x32xf32> to vector<8x32xf32>
    %114 = arith.addf %111, %113 : vector<8x32xf32>
    %115 = arith.addf %114, %4 : vector<8x32xf32>
    %c0_45 = arith.constant 0 : index
    %c0_46 = arith.constant 0 : index
    %116 = vector.load %arg9[%c0_45, %c0_46] : memref<1x32xf32, #tpu.memory_space<vmem>>, vector<1x32xf32>
    %c0_47 = arith.constant 0 : index
    %c0_48 = arith.constant 0 : index
    %117 = vector.load %arg10[%c0_47, %c0_48] : memref<1x32xf32, #tpu.memory_space<vmem>>, vector<1x32xf32>
    %cst_49 = arith.constant dense<0.000000e+00> : vector<8xf32>
    %118 = vector.multi_reduction <add>, %115, %cst_49 [1] : vector<8x32xf32> to vector<8xf32>
    %119 = vector.shape_cast %118 : vector<8xf32> to vector<8x1xf32>
    %cst_50 = arith.constant 3.200000e+01 : f32
    %120 = vector.broadcast %cst_50 : f32 to vector<8x1xf32>
    %121 = arith.divf %119, %120 : vector<8x1xf32>
    %122 = vector.broadcast %121 : vector<8x1xf32> to vector<8x32xf32>
    %123 = arith.subf %115, %122 : vector<8x32xf32>
    %124 = arith.mulf %123, %123 : vector<8x32xf32>
    %cst_51 = arith.constant dense<0.000000e+00> : vector<8xf32>
    %125 = vector.multi_reduction <add>, %124, %cst_51 [1] : vector<8x32xf32> to vector<8xf32>
    %126 = vector.shape_cast %125 : vector<8xf32> to vector<8x1xf32>
    %cst_52 = arith.constant 3.200000e+01 : f32
    %127 = vector.broadcast %cst_52 : f32 to vector<8x1xf32>
    %128 = arith.divf %126, %127 : vector<8x1xf32>
    %129 = vector.broadcast %121 : vector<8x1xf32> to vector<8x32xf32>
    %130 = arith.subf %115, %129 : vector<8x32xf32>
    %cst_53 = arith.constant 9.99999996E-13 : f32
    %131 = vector.broadcast %cst_53 : f32 to vector<8x1xf32>
    %132 = arith.addf %128, %131 : vector<8x1xf32>
    %133 = math.rsqrt %132 : vector<8x1xf32>
    %134 = vector.broadcast %133 : vector<8x1xf32> to vector<8x32xf32>
    %135 = arith.mulf %130, %134 : vector<8x32xf32>
    %136 = vector.broadcast %116 : vector<1x32xf32> to vector<8x32xf32>
    %137 = arith.mulf %135, %136 : vector<8x32xf32>
    %138 = vector.broadcast %117 : vector<1x32xf32> to vector<8x32xf32>
    %139 = arith.addf %137, %138 : vector<8x32xf32>
    %140 = arith.truncf %139 : vector<8x32xf32> to vector<8x32xbf16>
    %c0_54 = arith.constant 0 : index
    %c0_55 = arith.constant 0 : index
    %141 = vector.load %arg11[%c0_54, %c0_55] : memref<32x32xbf16, #tpu.memory_space<vmem>>, vector<32x32xbf16>
    %cst_56 = arith.constant dense<0.000000e+00> : vector<8x32xf32>
    %142 = tpu.matmul %140, %141, %cst_56 {dimension_numbers = #tpu.dot_dimension_numbers<[1], [0], [0], [1], [0, 0, 1, 1], [], []>} : vector<8x32xbf16>, vector<32x32xbf16>, vector<8x32xf32> -> vector<8x32xf32>
    %c0_57 = arith.constant 0 : index
    %c0_58 = arith.constant 0 : index
    %143 = vector.load %arg12[%c0_57, %c0_58] : memref<1x32xf32, #tpu.memory_space<vmem>>, vector<1x32xf32>
    %144 = vector.broadcast %143 : vector<1x32xf32> to vector<8x32xf32>
    %145 = arith.addf %142, %144 : vector<8x32xf32>
    %cst_59 = arith.constant 0.353553385 : f32
    %146 = vector.broadcast %cst_59 : f32 to vector<8x32xf32>
    %147 = arith.mulf %145, %146 : vector<8x32xf32>
    %148 = arith.truncf %147 : vector<8x32xf32> to vector<8x32xbf16>
    %c0_60 = arith.constant 0 : index
    %c0_61 = arith.constant 0 : index
    %149 = vector.load %arg13[%c0_60, %c0_61] : memref<32x64xbf16, #tpu.memory_space<vmem>>, vector<32x64xbf16>
    %cst_62 = arith.constant dense<0.000000e+00> : vector<8x64xf32>
    %150 = tpu.matmul %3, %149, %cst_62 {dimension_numbers = #tpu.dot_dimension_numbers<[1], [0], [0], [1], [0, 0, 1, 1], [], []>} : vector<8x32xbf16>, vector<32x64xbf16>, vector<8x64xf32> -> vector<8x64xf32>
    %c0_63 = arith.constant 0 : index
    %c0_64 = arith.constant 0 : index
    %151 = vector.load %arg14[%c0_63, %c0_64] : memref<1x64xf32, #tpu.memory_space<vmem>>, vector<1x64xf32>
    %152 = vector.broadcast %151 : vector<1x64xf32> to vector<8x64xf32>
    %153 = arith.addf %150, %152 : vector<8x64xf32>
    %154 = vector.extract_strided_slice %153 {offsets = [0, 0], sizes = [8, 32], strides = [1, 1]} : vector<8x64xf32> to vector<8x32xf32>
    %155 = arith.truncf %154 : vector<8x32xf32> to vector<8x32xbf16>
    %156 = vector.extract_strided_slice %153 {offsets = [0, 32], sizes = [8, 32], strides = [1, 1]} : vector<8x64xf32> to vector<8x32xf32>
    %157 = arith.truncf %156 : vector<8x32xf32> to vector<8x32xbf16>
    %158 = vector.extract_strided_slice %148 {offsets = [0, 0], sizes = [8, 8], strides = [1, 1]} : vector<8x32xbf16> to vector<8x8xbf16>
    %159 = vector.extract_strided_slice %155 {offsets = [0, 0], sizes = [8, 8], strides = [1, 1]} : vector<8x32xbf16> to vector<8x8xbf16>
    %cst_65 = arith.constant dense<0.000000e+00> : vector<8x8xf32>
    %160 = tpu.matmul %158, %159, %cst_65 {dimension_numbers = #tpu.dot_dimension_numbers<[1], [1], [0], [0], [0, 0, 1, 0], [], []>} : vector<8x8xbf16>, vector<8x8xbf16>, vector<8x8xf32> -> vector<8x8xf32>
    %161 = vector.broadcast %26 : vector<1x8xf32> to vector<8x8xf32>
    %162 = arith.addf %160, %161 : vector<8x8xf32>
    %cst_66 = arith.constant dense<0xFF800000> : vector<8xf32>
    %163 = vector.multi_reduction <maximumf>, %162, %cst_66 [1] : vector<8x8xf32> to vector<8xf32>
    %164 = vector.shape_cast %163 : vector<8xf32> to vector<8x1xf32>
    %165 = vector.broadcast %164 : vector<8x1xf32> to vector<8x8xf32>
    %166 = arith.subf %162, %165 : vector<8x8xf32>
    %167 = math.exp %166 : vector<8x8xf32>
    %cst_67 = arith.constant dense<0.000000e+00> : vector<8xf32>
    %168 = vector.multi_reduction <add>, %167, %cst_67 [1] : vector<8x8xf32> to vector<8xf32>
    %169 = vector.shape_cast %168 : vector<8xf32> to vector<8x1xf32>
    %170 = tpu.reciprocal %169 {approx = true} : vector<8x1xf32> -> vector<8x1xf32>
    %171 = vector.broadcast %170 : vector<8x1xf32> to vector<8x8xf32>
    %172 = arith.mulf %167, %171 : vector<8x8xf32>
    %173 = arith.truncf %172 : vector<8x8xf32> to vector<8x8xbf16>
    %174 = vector.extract_strided_slice %157 {offsets = [0, 0], sizes = [8, 8], strides = [1, 1]} : vector<8x32xbf16> to vector<8x8xbf16>
    %cst_68 = arith.constant dense<0.000000e+00> : vector<8x8xf32>
    %175 = tpu.matmul %173, %174, %cst_68 {dimension_numbers = #tpu.dot_dimension_numbers<[1], [0], [0], [1], [0, 0, 1, 1], [], []>} : vector<8x8xbf16>, vector<8x8xbf16>, vector<8x8xf32> -> vector<8x8xf32>
    %176 = vector.extract_strided_slice %148 {offsets = [0, 8], sizes = [8, 8], strides = [1, 1]} : vector<8x32xbf16> to vector<8x8xbf16>
    %177 = vector.extract_strided_slice %155 {offsets = [0, 8], sizes = [8, 8], strides = [1, 1]} : vector<8x32xbf16> to vector<8x8xbf16>
    %cst_69 = arith.constant dense<0.000000e+00> : vector<8x8xf32>
    %178 = tpu.matmul %176, %177, %cst_69 {dimension_numbers = #tpu.dot_dimension_numbers<[1], [1], [0], [0], [0, 0, 1, 0], [], []>} : vector<8x8xbf16>, vector<8x8xbf16>, vector<8x8xf32> -> vector<8x8xf32>
    %179 = vector.broadcast %26 : vector<1x8xf32> to vector<8x8xf32>
    %180 = arith.addf %178, %179 : vector<8x8xf32>
    %cst_70 = arith.constant dense<0xFF800000> : vector<8xf32>
    %181 = vector.multi_reduction <maximumf>, %180, %cst_70 [1] : vector<8x8xf32> to vector<8xf32>
    %182 = vector.shape_cast %181 : vector<8xf32> to vector<8x1xf32>
    %183 = vector.broadcast %182 : vector<8x1xf32> to vector<8x8xf32>
    %184 = arith.subf %180, %183 : vector<8x8xf32>
    %185 = math.exp %184 : vector<8x8xf32>
    %cst_71 = arith.constant dense<0.000000e+00> : vector<8xf32>
    %186 = vector.multi_reduction <add>, %185, %cst_71 [1] : vector<8x8xf32> to vector<8xf32>
    %187 = vector.shape_cast %186 : vector<8xf32> to vector<8x1xf32>
    %188 = tpu.reciprocal %187 {approx = true} : vector<8x1xf32> -> vector<8x1xf32>
    %189 = vector.broadcast %188 : vector<8x1xf32> to vector<8x8xf32>
    %190 = arith.mulf %185, %189 : vector<8x8xf32>
    %191 = arith.truncf %190 : vector<8x8xf32> to vector<8x8xbf16>
    %192 = vector.extract_strided_slice %157 {offsets = [0, 8], sizes = [8, 8], strides = [1, 1]} : vector<8x32xbf16> to vector<8x8xbf16>
    %cst_72 = arith.constant dense<0.000000e+00> : vector<8x8xf32>
    %193 = tpu.matmul %191, %192, %cst_72 {dimension_numbers = #tpu.dot_dimension_numbers<[1], [0], [0], [1], [0, 0, 1, 1], [], []>} : vector<8x8xbf16>, vector<8x8xbf16>, vector<8x8xf32> -> vector<8x8xf32>
    %194 = vector.extract_strided_slice %148 {offsets = [0, 16], sizes = [8, 8], strides = [1, 1]} : vector<8x32xbf16> to vector<8x8xbf16>
    %195 = vector.extract_strided_slice %155 {offsets = [0, 16], sizes = [8, 8], strides = [1, 1]} : vector<8x32xbf16> to vector<8x8xbf16>
    %cst_73 = arith.constant dense<0.000000e+00> : vector<8x8xf32>
    %196 = tpu.matmul %194, %195, %cst_73 {dimension_numbers = #tpu.dot_dimension_numbers<[1], [1], [0], [0], [0, 0, 1, 0], [], []>} : vector<8x8xbf16>, vector<8x8xbf16>, vector<8x8xf32> -> vector<8x8xf32>
    %197 = vector.broadcast %26 : vector<1x8xf32> to vector<8x8xf32>
    %198 = arith.addf %196, %197 : vector<8x8xf32>
    %cst_74 = arith.constant dense<0xFF800000> : vector<8xf32>
    %199 = vector.multi_reduction <maximumf>, %198, %cst_74 [1] : vector<8x8xf32> to vector<8xf32>
    %200 = vector.shape_cast %199 : vector<8xf32> to vector<8x1xf32>
    %201 = vector.broadcast %200 : vector<8x1xf32> to vector<8x8xf32>
    %202 = arith.subf %198, %201 : vector<8x8xf32>
    %203 = math.exp %202 : vector<8x8xf32>
    %cst_75 = arith.constant dense<0.000000e+00> : vector<8xf32>
    %204 = vector.multi_reduction <add>, %203, %cst_75 [1] : vector<8x8xf32> to vector<8xf32>
    %205 = vector.shape_cast %204 : vector<8xf32> to vector<8x1xf32>
    %206 = tpu.reciprocal %205 {approx = true} : vector<8x1xf32> -> vector<8x1xf32>
    %207 = vector.broadcast %206 : vector<8x1xf32> to vector<8x8xf32>
    %208 = arith.mulf %203, %207 : vector<8x8xf32>
    %209 = arith.truncf %208 : vector<8x8xf32> to vector<8x8xbf16>
    %210 = vector.extract_strided_slice %157 {offsets = [0, 16], sizes = [8, 8], strides = [1, 1]} : vector<8x32xbf16> to vector<8x8xbf16>
    %cst_76 = arith.constant dense<0.000000e+00> : vector<8x8xf32>
    %211 = tpu.matmul %209, %210, %cst_76 {dimension_numbers = #tpu.dot_dimension_numbers<[1], [0], [0], [1], [0, 0, 1, 1], [], []>} : vector<8x8xbf16>, vector<8x8xbf16>, vector<8x8xf32> -> vector<8x8xf32>
    %212 = vector.extract_strided_slice %148 {offsets = [0, 24], sizes = [8, 8], strides = [1, 1]} : vector<8x32xbf16> to vector<8x8xbf16>
    %213 = vector.extract_strided_slice %155 {offsets = [0, 24], sizes = [8, 8], strides = [1, 1]} : vector<8x32xbf16> to vector<8x8xbf16>
    %cst_77 = arith.constant dense<0.000000e+00> : vector<8x8xf32>
    %214 = tpu.matmul %212, %213, %cst_77 {dimension_numbers = #tpu.dot_dimension_numbers<[1], [1], [0], [0], [0, 0, 1, 0], [], []>} : vector<8x8xbf16>, vector<8x8xbf16>, vector<8x8xf32> -> vector<8x8xf32>
    %215 = vector.broadcast %26 : vector<1x8xf32> to vector<8x8xf32>
    %216 = arith.addf %214, %215 : vector<8x8xf32>
    %cst_78 = arith.constant dense<0xFF800000> : vector<8xf32>
    %217 = vector.multi_reduction <maximumf>, %216, %cst_78 [1] : vector<8x8xf32> to vector<8xf32>
    %218 = vector.shape_cast %217 : vector<8xf32> to vector<8x1xf32>
    %219 = vector.broadcast %218 : vector<8x1xf32> to vector<8x8xf32>
    %220 = arith.subf %216, %219 : vector<8x8xf32>
    %221 = math.exp %220 : vector<8x8xf32>
    %cst_79 = arith.constant dense<0.000000e+00> : vector<8xf32>
    %222 = vector.multi_reduction <add>, %221, %cst_79 [1] : vector<8x8xf32> to vector<8xf32>
    %223 = vector.shape_cast %222 : vector<8xf32> to vector<8x1xf32>
    %224 = tpu.reciprocal %223 {approx = true} : vector<8x1xf32> -> vector<8x1xf32>
    %225 = vector.broadcast %224 : vector<8x1xf32> to vector<8x8xf32>
    %226 = arith.mulf %221, %225 : vector<8x8xf32>
    %227 = arith.truncf %226 : vector<8x8xf32> to vector<8x8xbf16>
    %228 = vector.extract_strided_slice %157 {offsets = [0, 24], sizes = [8, 8], strides = [1, 1]} : vector<8x32xbf16> to vector<8x8xbf16>
    %cst_80 = arith.constant dense<0.000000e+00> : vector<8x8xf32>
    %229 = tpu.matmul %227, %228, %cst_80 {dimension_numbers = #tpu.dot_dimension_numbers<[1], [0], [0], [1], [0, 0, 1, 1], [], []>} : vector<8x8xbf16>, vector<8x8xbf16>, vector<8x8xf32> -> vector<8x8xf32>
    %230 = tpu.concatenate %175, %193, %211, %229 in 1 : vector<8x8xf32>, vector<8x8xf32>, vector<8x8xf32>, vector<8x8xf32> -> vector<8x32xf32>
    %231 = arith.truncf %230 : vector<8x32xf32> to vector<8x32xbf16>
    %c0_81 = arith.constant 0 : index
    %c0_82 = arith.constant 0 : index
    %232 = vector.load %arg15[%c0_81, %c0_82] : memref<32x32xbf16, #tpu.memory_space<vmem>>, vector<32x32xbf16>
    %cst_83 = arith.constant dense<0.000000e+00> : vector<8x32xf32>
    %233 = tpu.matmul %231, %232, %cst_83 {dimension_numbers = #tpu.dot_dimension_numbers<[1], [0], [0], [1], [0, 0, 1, 1], [], []>} : vector<8x32xbf16>, vector<32x32xbf16>, vector<8x32xf32> -> vector<8x32xf32>
    %c0_84 = arith.constant 0 : index
    %c0_85 = arith.constant 0 : index
    %234 = vector.load %arg16[%c0_84, %c0_85] : memref<1x32xf32, #tpu.memory_space<vmem>>, vector<1x32xf32>
    %235 = vector.broadcast %234 : vector<1x32xf32> to vector<8x32xf32>
    %236 = arith.addf %233, %235 : vector<8x32xf32>
    %237 = arith.addf %236, %139 : vector<8x32xf32>
    %c0_86 = arith.constant 0 : index
    %c0_87 = arith.constant 0 : index
    %238 = vector.load %arg17[%c0_86, %c0_87] : memref<1x32xf32, #tpu.memory_space<vmem>>, vector<1x32xf32>
    %c0_88 = arith.constant 0 : index
    %c0_89 = arith.constant 0 : index
    %239 = vector.load %arg18[%c0_88, %c0_89] : memref<1x32xf32, #tpu.memory_space<vmem>>, vector<1x32xf32>
    %cst_90 = arith.constant dense<0.000000e+00> : vector<8xf32>
    %240 = vector.multi_reduction <add>, %237, %cst_90 [1] : vector<8x32xf32> to vector<8xf32>
    %241 = vector.shape_cast %240 : vector<8xf32> to vector<8x1xf32>
    %cst_91 = arith.constant 3.200000e+01 : f32
    %242 = vector.broadcast %cst_91 : f32 to vector<8x1xf32>
    %243 = arith.divf %241, %242 : vector<8x1xf32>
    %244 = vector.broadcast %243 : vector<8x1xf32> to vector<8x32xf32>
    %245 = arith.subf %237, %244 : vector<8x32xf32>
    %246 = arith.mulf %245, %245 : vector<8x32xf32>
    %cst_92 = arith.constant dense<0.000000e+00> : vector<8xf32>
    %247 = vector.multi_reduction <add>, %246, %cst_92 [1] : vector<8x32xf32> to vector<8xf32>
    %248 = vector.shape_cast %247 : vector<8xf32> to vector<8x1xf32>
    %cst_93 = arith.constant 3.200000e+01 : f32
    %249 = vector.broadcast %cst_93 : f32 to vector<8x1xf32>
    %250 = arith.divf %248, %249 : vector<8x1xf32>
    %251 = vector.broadcast %243 : vector<8x1xf32> to vector<8x32xf32>
    %252 = arith.subf %237, %251 : vector<8x32xf32>
    %cst_94 = arith.constant 9.99999996E-13 : f32
    %253 = vector.broadcast %cst_94 : f32 to vector<8x1xf32>
    %254 = arith.addf %250, %253 : vector<8x1xf32>
    %255 = math.rsqrt %254 : vector<8x1xf32>
    %256 = vector.broadcast %255 : vector<8x1xf32> to vector<8x32xf32>
    %257 = arith.mulf %252, %256 : vector<8x32xf32>
    %258 = vector.broadcast %238 : vector<1x32xf32> to vector<8x32xf32>
    %259 = arith.mulf %257, %258 : vector<8x32xf32>
    %260 = vector.broadcast %239 : vector<1x32xf32> to vector<8x32xf32>
    %261 = arith.addf %259, %260 : vector<8x32xf32>
    %262 = arith.truncf %261 : vector<8x32xf32> to vector<8x32xbf16>
    %c0_95 = arith.constant 0 : index
    %c0_96 = arith.constant 0 : index
    %263 = vector.load %arg19[%c0_95, %c0_96] : memref<32x64xbf16, #tpu.memory_space<vmem>>, vector<32x64xbf16>
    %cst_97 = arith.constant dense<0.000000e+00> : vector<8x64xf32>
    %264 = tpu.matmul %262, %263, %cst_97 {dimension_numbers = #tpu.dot_dimension_numbers<[1], [0], [0], [1], [0, 0, 1, 1], [], []>} : vector<8x32xbf16>, vector<32x64xbf16>, vector<8x64xf32> -> vector<8x64xf32>
    %c0_98 = arith.constant 0 : index
    %c0_99 = arith.constant 0 : index
    %265 = vector.load %arg20[%c0_98, %c0_99] : memref<1x64xf32, #tpu.memory_space<vmem>>, vector<1x64xf32>
    %266 = vector.broadcast %265 : vector<1x64xf32> to vector<8x64xf32>
    %267 = arith.addf %264, %266 : vector<8x64xf32>
    %cst_100 = arith.constant 0.000000e+00 : f32
    %268 = vector.broadcast %cst_100 : f32 to vector<8x64xf32>
    %269 = arith.maximumf %267, %268 : vector<8x64xf32>
    %270 = arith.truncf %269 : vector<8x64xf32> to vector<8x64xbf16>
    %c0_101 = arith.constant 0 : index
    %c0_102 = arith.constant 0 : index
    %271 = vector.load %arg21[%c0_101, %c0_102] : memref<64x32xbf16, #tpu.memory_space<vmem>>, vector<64x32xbf16>
    %cst_103 = arith.constant dense<0.000000e+00> : vector<8x32xf32>
    %272 = tpu.matmul %270, %271, %cst_103 {dimension_numbers = #tpu.dot_dimension_numbers<[1], [0], [0], [1], [0, 0, 1, 1], [], []>} : vector<8x64xbf16>, vector<64x32xbf16>, vector<8x32xf32> -> vector<8x32xf32>
    %c0_104 = arith.constant 0 : index
    %c0_105 = arith.constant 0 : index
    %273 = vector.load %arg22[%c0_104, %c0_105] : memref<1x32xf32, #tpu.memory_space<vmem>>, vector<1x32xf32>
    %274 = vector.broadcast %273 : vector<1x32xf32> to vector<8x32xf32>
    %275 = arith.addf %272, %274 : vector<8x32xf32>
    %276 = arith.addf %275, %261 : vector<8x32xf32>
    %c0_106 = arith.constant 0 : index
    %c0_107 = arith.constant 0 : index
    %277 = vector.load %arg23[%c0_106, %c0_107] : memref<1x32xf32, #tpu.memory_space<vmem>>, vector<1x32xf32>
    %c0_108 = arith.constant 0 : index
    %c0_109 = arith.constant 0 : index
    %278 = vector.load %arg24[%c0_108, %c0_109] : memref<1x32xf32, #tpu.memory_space<vmem>>, vector<1x32xf32>
    %cst_110 = arith.constant dense<0.000000e+00> : vector<8xf32>
    %279 = vector.multi_reduction <add>, %276, %cst_110 [1] : vector<8x32xf32> to vector<8xf32>
    %280 = vector.shape_cast %279 : vector<8xf32> to vector<8x1xf32>
    %cst_111 = arith.constant 3.200000e+01 : f32
    %281 = vector.broadcast %cst_111 : f32 to vector<8x1xf32>
    %282 = arith.divf %280, %281 : vector<8x1xf32>
    %283 = vector.broadcast %282 : vector<8x1xf32> to vector<8x32xf32>
    %284 = arith.subf %276, %283 : vector<8x32xf32>
    %285 = arith.mulf %284, %284 : vector<8x32xf32>
    %cst_112 = arith.constant dense<0.000000e+00> : vector<8xf32>
    %286 = vector.multi_reduction <add>, %285, %cst_112 [1] : vector<8x32xf32> to vector<8xf32>
    %287 = vector.shape_cast %286 : vector<8xf32> to vector<8x1xf32>
    %cst_113 = arith.constant 3.200000e+01 : f32
    %288 = vector.broadcast %cst_113 : f32 to vector<8x1xf32>
    %289 = arith.divf %287, %288 : vector<8x1xf32>
    %290 = vector.broadcast %282 : vector<8x1xf32> to vector<8x32xf32>
    %291 = arith.subf %276, %290 : vector<8x32xf32>
    %cst_114 = arith.constant 9.99999996E-13 : f32
    %292 = vector.broadcast %cst_114 : f32 to vector<8x1xf32>
    %293 = arith.addf %289, %292 : vector<8x1xf32>
    %294 = math.rsqrt %293 : vector<8x1xf32>
    %295 = vector.broadcast %294 : vector<8x1xf32> to vector<8x32xf32>
    %296 = arith.mulf %291, %295 : vector<8x32xf32>
    %297 = vector.broadcast %277 : vector<1x32xf32> to vector<8x32xf32>
    %298 = arith.mulf %296, %297 : vector<8x32xf32>
    %299 = vector.broadcast %278 : vector<1x32xf32> to vector<8x32xf32>
    %300 = arith.addf %298, %299 : vector<8x32xf32>
    %301 = arith.truncf %300 : vector<8x32xf32> to vector<8x32xbf16>
    %c0_115 = arith.constant 0 : index
    %c0_116 = arith.constant 0 : index
    %c0_117 = arith.constant 0 : index
    %302 = vector.load %arg25[%c0_115, %c0_116, %c0_117] : memref<1x8x32xbf16, #tpu.memory_space<vmem>>, vector<1x8x32xbf16>
    %303 = vector.shape_cast %302 : vector<1x8x32xbf16> to vector<8x32xbf16>
    %304 = vector.shape_cast %301 : vector<8x32xbf16> to vector<1x8x32xbf16>
    tpu.vector_store %arg25[%c0_115, %c0_116, %c0_117], %304 {strides = array<i32>} : memref<1x8x32xbf16, #tpu.memory_space<vmem>>, vector<1x8x32xbf16>,
    return
  }
  func.func @transform_0(%arg0: i32) -> (i32, i32, i32) {
    %c0_i32 = arith.constant 0 : i32
    %c0_i32_0 = arith.constant 0 : i32
    %c0_i32_1 = arith.constant 0 : i32
    return %arg0, %c0_i32, %c0_i32_0 : i32, i32, i32
  }
  func.func @transform_1(%arg0: i32) -> (i32, i32, i32) {
    %c0_i32 = arith.constant 0 : i32
    %c0_i32_0 = arith.constant 0 : i32
    %c0_i32_1 = arith.constant 0 : i32
    return %arg0, %c0_i32, %c0_i32_0 : i32, i32, i32
  }
  func.func @transform_2(%arg0: i32) -> (i32, i32, i32) {
    %c0_i32 = arith.constant 0 : i32
    %c0_i32_0 = arith.constant 0 : i32
    %c0_i32_1 = arith.constant 0 : i32
    return %arg0, %c0_i32, %c0_i32_0 : i32, i32, i32
  }
  func.func @transform_3(%arg0: i32) -> (i32, i32, i32) {
    %c0_i32 = arith.constant 0 : i32
    %c0_i32_0 = arith.constant 0 : i32
    %c0_i32_1 = arith.constant 0 : i32
    return %arg0, %c0_i32, %c0_i32_0 : i32, i32, i32
  }
  func.func @transform_4(%arg0: i32) -> (i32, i32) {
    %c0_i32 = arith.constant 0 : i32
    %c0_i32_0 = arith.constant 0 : i32
    %c0_i32_1 = arith.constant 0 : i32
    return %c0_i32, %c0_i32_0 : i32, i32
  }
  func.func @transform_5(%arg0: i32) -> (i32, i32) {
    %c0_i32 = arith.constant 0 : i32
    %c0_i32_0 = arith.constant 0 : i32
    %c0_i32_1 = arith.constant 0 : i32
    return %c0_i32, %c0_i32_0 : i32, i32
  }
  func.func @transform_6(%arg0: i32) -> (i32, i32) {
    %c0_i32 = arith.constant 0 : i32
    %c0_i32_0 = arith.constant 0 : i32
    %c0_i32_1 = arith.constant 0 : i32
    return %c0_i32, %c0_i32_0 : i32, i32
  }
  func.func @transform_7(%arg0: i32) -> (i32, i32) {
    %c0_i32 = arith.constant 0 : i32
    %c0_i32_0 = arith.constant 0 : i32
    %c0_i32_1 = arith.constant 0 : i32
    return %c0_i32, %c0_i32_0 : i32, i32
  }
  func.func @transform_8(%arg0: i32) -> (i32, i32) {
    %c0_i32 = arith.constant 0 : i32
    %c0_i32_0 = arith.constant 0 : i32
    %c0_i32_1 = arith.constant 0 : i32
    return %c0_i32, %c0_i32_0 : i32, i32
  }
  func.func @transform_9(%arg0: i32) -> (i32, i32) {
    %c0_i32 = arith.constant 0 : i32
    %c0_i32_0 = arith.constant 0 : i32
    %c0_i32_1 = arith.constant 0 : i32
    return %c0_i32, %c0_i32_0 : i32, i32
  }
  func.func @transform_10(%arg0: i32) -> (i32, i32) {
    %c0_i32 = arith.constant 0 : i32
    %c0_i32_0 = arith.constant 0 : i32
    %c0_i32_1 = arith.constant 0 : i32
    return %c0_i32, %c0_i32_0 : i32, i32
  }
  func.func @transform_11(%arg0: i32) -> (i32, i32) {
    %c0_i32 = arith.constant 0 : i32
    %c0_i32_0 = arith.constant 0 : i32
    %c0_i32_1 = arith.constant 0 : i32
    return %c0_i32, %c0_i32_0 : i32, i32
  }
  func.func @transform_12(%arg0: i32) -> (i32, i32) {
    %c0_i32 = arith.constant 0 : i32
    %c0_i32_0 = arith.constant 0 : i32
    %c0_i32_1 = arith.constant 0 : i32
    return %c0_i32, %c0_i32_0 : i32, i32
  }
  func.func @transform_13(%arg0: i32) -> (i32, i32) {
    %c0_i32 = arith.constant 0 : i32
    %c0_i32_0 = arith.constant 0 : i32
    %c0_i32_1 = arith.constant 0 : i32
    return %c0_i32, %c0_i32_0 : i32, i32
  }
  func.func @transform_14(%arg0: i32) -> (i32, i32) {
    %c0_i32 = arith.constant 0 : i32
    %c0_i32_0 = arith.constant 0 : i32
    %c0_i32_1 = arith.constant 0 : i32
    return %c0_i32, %c0_i32_0 : i32, i32
  }
  func.func @transform_15(%arg0: i32) -> (i32, i32) {
    %c0_i32 = arith.constant 0 : i32
    %c0_i32_0 = arith.constant 0 : i32
    %c0_i32_1 = arith.constant 0 : i32
    return %c0_i32, %c0_i32_0 : i32, i32
  }
  func.func @transform_16(%arg0: i32) -> (i32, i32) {
    %c0_i32 = arith.constant 0 : i32
    %c0_i32_0 = arith.constant 0 : i32
    %c0_i32_1 = arith.constant 0 : i32
    return %c0_i32, %c0_i32_0 : i32, i32
  }
  func.func @transform_17(%arg0: i32) -> (i32, i32) {
    %c0_i32 = arith.constant 0 : i32
    %c0_i32_0 = arith.constant 0 : i32
    %c0_i32_1 = arith.constant 0 : i32
    return %c0_i32, %c0_i32_0 : i32, i32
  }
  func.func @transform_18(%arg0: i32) -> (i32, i32) {
    %c0_i32 = arith.constant 0 : i32
    %c0_i32_0 = arith.constant 0 : i32
    %c0_i32_1 = arith.constant 0 : i32
    return %c0_i32, %c0_i32_0 : i32, i32
  }
  func.func @transform_19(%arg0: i32) -> (i32, i32) {
    %c0_i32 = arith.constant 0 : i32
    %c0_i32_0 = arith.constant 0 : i32
    %c0_i32_1 = arith.constant 0 : i32
    return %c0_i32, %c0_i32_0 : i32, i32
  }
  func.func @transform_20(%arg0: i32) -> (i32, i32) {
    %c0_i32 = arith.constant 0 : i32
    %c0_i32_0 = arith.constant 0 : i32
    %c0_i32_1 = arith.constant 0 : i32
    return %c0_i32, %c0_i32_0 : i32, i32
  }
  func.func @transform_21(%arg0: i32) -> (i32, i32) {
    %c0_i32 = arith.constant 0 : i32
    %c0_i32_0 = arith.constant 0 : i32
    %c0_i32_1 = arith.constant 0 : i32
    return %c0_i32, %c0_i32_0 : i32, i32
  }
  func.func @transform_22(%arg0: i32) -> (i32, i32) {
    %c0_i32 = arith.constant 0 : i32
    %c0_i32_0 = arith.constant 0 : i32
    %c0_i32_1 = arith.constant 0 : i32
    return %c0_i32, %c0_i32_0 : i32, i32
  }
  func.func @transform_23(%arg0: i32) -> (i32, i32) {
    %c0_i32 = arith.constant 0 : i32
    %c0_i32_0 = arith.constant 0 : i32
    %c0_i32_1 = arith.constant 0 : i32
    return %c0_i32, %c0_i32_0 : i32, i32
  }
  func.func @transform_24(%arg0: i32) -> (i32, i32, i32) {
    %c0_i32 = arith.constant 0 : i32
    %c0_i32_0 = arith.constant 0 : i32
    %c0_i32_1 = arith.constant 0 : i32
    return %arg0, %c0_i32, %c0_i32_0 : i32, i32, i32
  }
}

module attributes {stable_mosaic.version = 11 : i64} {
  func.func @_decoder_layer_kernel(%arg0: i32, %arg1: memref<1x8x32xbf16, #tpu.memory_space<vmem>>, %arg2: memref<1x8x32xbf16, #tpu.memory_space<vmem>>, %arg3: memref<1x1x8xf32, #tpu.memory_space<vmem>>, %arg4: memref<1x1x8xf32, #tpu.memory_space<vmem>>, %arg5: memref<32x96xbf16, #tpu.memory_space<vmem>>, %arg6: memref<1x96xf32, #tpu.memory_space<vmem>>, %arg7: memref<32x32xbf16, #tpu.memory_space<vmem>>, %arg8: memref<1x32xf32, #tpu.memory_space<vmem>>, %arg9: memref<1x32xf32, #tpu.memory_space<vmem>>, %arg10: memref<1x32xf32, #tpu.memory_space<vmem>>, %arg11: memref<32x32xbf16, #tpu.memory_space<vmem>>, %arg12: memref<1x32xf32, #tpu.memory_space<vmem>>, %arg13: memref<32x64xbf16, #tpu.memory_space<vmem>>, %arg14: memref<1x64xf32, #tpu.memory_space<vmem>>, %arg15: memref<32x32xbf16, #tpu.memory_space<vmem>>, %arg16: memref<1x32xf32, #tpu.memory_space<vmem>>, %arg17: memref<1x32xf32, #tpu.memory_space<vmem>>, %arg18: memref<1x32xf32, #tpu.memory_space<vmem>>, %arg19: memref<32x64xbf16, #tpu.memory_space<vmem>>, %arg20: memref<1x64xf32, #tpu.memory_space<vmem>>, %arg21: memref<64x32xbf16, #tpu.memory_space<vmem>>, %arg22: memref<1x32xf32, #tpu.memory_space<vmem>>, %arg23: memref<1x32xf32, #tpu.memory_space<vmem>>, %arg24: memref<1x32xf32, #tpu.memory_space<vmem>>, %arg25: memref<1x8x32xbf16, #tpu.memory_space<vmem>>) attributes {dimension_semantics = [#tpu.dimension_semantics<parallel>], iteration_bounds = array<i64: 2>, scalar_prefetch = 0 : i64, scratch_operands = 0 : i64, tpu.core_type = #tpu.core_type<tc>, window_params = [{transform_indices = @transform_0, window_bounds = array<i64: 1, 8, 32>}, {transform_indices = @transform_1, window_bounds = array<i64: 1, 8, 32>}, {transform_indices = @transform_2, window_bounds = array<i64: 1, 1, 8>}, {transform_indices = @transform_3, window_bounds = array<i64: 1, 1, 8>}, {pipeline_mode = #tpu.pipeline_mode<synchronous>, transform_indices = @transform_4, window_bounds = array<i64: 32, 96>}, {pipeline_mode = #tpu.pipeline_mode<synchronous>, transform_indices = @transform_5, window_bounds = array<i64: 1, 96>}, {pipeline_mode = #tpu.pipeline_mode<synchronous>, transform_indices = @transform_6, window_bounds = array<i64: 32, 32>}, {pipeline_mode = #tpu.pipeline_mode<synchronous>, transform_indices = @transform_7, window_bounds = array<i64: 1, 32>}, {pipeline_mode = #tpu.pipeline_mode<synchronous>, transform_indices = @transform_8, window_bounds = array<i64: 1, 32>}, {pipeline_mode = #tpu.pipeline_mode<synchronous>, transform_indices = @transform_9, window_bounds = array<i64: 1, 32>}, {pipeline_mode = #tpu.pipeline_mode<synchronous>, transform_indices = @transform_10, window_bounds = array<i64: 32, 32>}, {pipeline_mode = #tpu.pipeline_mode<synchronous>, transform_indices = @transform_11, window_bounds = array<i64: 1, 32>}, {pipeline_mode = #tpu.pipeline_mode<synchronous>, transform_indices = @transform_12, window_bounds = array<i64: 32, 64>}, {pipeline_mode = #tpu.pipeline_mode<synchronous>, transform_indices = @transform_13, window_bounds = array<i64: 1, 64>}, {pipeline_mode = #tpu.pipeline_mode<synchronous>, transform_indices = @transform_14, window_bounds = array<i64: 32, 32>}, {pipeline_mode = #tpu.pipeline_mode<synchronous>, transform_indices = @transform_15, window_bounds = array<i64: 1, 32>}, {pipeline_mode = #tpu.pipeline_mode<synchronous>, transform_indices = @transform_16, window_bounds = array<i64: 1, 32>}, {pipeline_mode = #tpu.pipeline_mode<synchronous>, transform_indices = @transform_17, window_bounds = array<i64: 1, 32>}, {pipeline_mode = #tpu.pipeline_mode<synchronous>, transform_indices = @transform_18, window_bounds = array<i64: 32, 64>}, {pipeline_mode = #tpu.pipeline_mode<synchronous>, transform_indices = @transform_19, window_bounds = array<i64: 1, 64>}, {pipeline_mode = #tpu.pipeline_mode<synchronous>, transform_indices = @transform_20, window_bounds = array<i64: 64, 32>}, {pipeline_mode = #tpu.pipeline_mode<synchronous>, transform_indices = @transform_21, window_bounds = array<i64: 1, 32>}, {pipeline_mode = #tpu.pipeline_mode<synchronous>, transform_indices = @transform_22, window_bounds = array<i64: 1, 32>}, {pipeline_mode = #tpu.pipeline_mode<synchronous>, transform_indices = @transform_23, window_bounds = array<i64: 1, 32>}, {transform_indices = @transform_24, window_bounds = array<i64: 1, 8, 32>}]} {
    %c0 = arith.constant 0 : index
    %c0_0 = arith.constant 0 : index
    %c0_1 = arith.constant 0 : index
    %0 = vector.load %arg1[%c0, %c0_0, %c0_1] : memref<1x8x32xbf16, #tpu.memory_space<vmem>>, vector<1x8x32xbf16>
    %1 = vector.shape_cast %0 : vector<1x8x32xbf16> to vector<8x32xbf16>
    %c0_2 = arith.constant 0 : index
    %c0_3 = arith.constant 0 : index
    %c0_4 = arith.constant 0 : index
    %2 = vector.load %arg2[%c0_2, %c0_3, %c0_4] : memref<1x8x32xbf16, #tpu.memory_space<vmem>>, vector<1x8x32xbf16>
    %3 = vector.shape_cast %2 : vector<1x8x32xbf16> to vector<8x32xbf16>
    %4 = arith.extf %1 : vector<8x32xbf16> to vector<8x32xf32>
    %5 = tpu.iota {dimensions = array<i32: 0>} : vector<8x8xi32>
    %6 = tpu.iota {dimensions = array<i32: 1>} : vector<8x8xi32>
    %7 = arith.cmpi sgt, %6, %5 : vector<8x8xi32>
    %cst = arith.constant -1.000000e+04 : f32
    %cst_5 = arith.constant 0.000000e+00 : f32
    %8 = vector.broadcast %cst : f32 to vector<8x8xf32>
    %9 = vector.broadcast %cst_5 : f32 to vector<8x8xf32>
    %10 = arith.select %7, %8, %9 : vector<8x8xi1>, vector<8x8xf32>
    %c0_6 = arith.constant 0 : index
    %c0_7 = arith.constant 0 : index
    %c0_8 = arith.constant 0 : index
    %11 = vector.load %arg3[%c0_6, %c0_7, %c0_8] : memref<1x1x8xf32, #tpu.memory_space<vmem>>, vector<1x1x8xf32>
    %12 = vector.shape_cast %11 : vector<1x1x8xf32> to vector<1x8xf32>
    %cst_9 = arith.constant 0.000000e+00 : f32
    %13 = vector.broadcast %cst_9 : f32 to vector<1x8xf32>
    %14 = arith.cmpf oeq, %12, %13 : vector<1x8xf32>
    %cst_10 = arith.constant -1.000000e+04 : f32
    %cst_11 = arith.constant 0.000000e+00 : f32
    %15 = vector.broadcast %cst_10 : f32 to vector<1x8xf32>
    %16 = vector.broadcast %cst_11 : f32 to vector<1x8xf32>
    %17 = arith.select %14, %15, %16 : vector<1x8xi1>, vector<1x8xf32>
    %18 = vector.broadcast %17 : vector<1x8xf32> to vector<8x8xf32>
    %19 = arith.addf %10, %18 : vector<8x8xf32>
    %c0_12 = arith.constant 0 : index
    %c0_13 = arith.constant 0 : index
    %c0_14 = arith.constant 0 : index
    %20 = vector.load %arg4[%c0_12, %c0_13, %c0_14] : memref<1x1x8xf32, #tpu.memory_space<vmem>>, vector<1x1x8xf32>
    %21 = vector.shape_cast %20 : vector<1x1x8xf32> to vector<1x8xf32>
    %cst_15 = arith.constant 0.000000e+00 : f32
    %22 = vector.broadcast %cst_15 : f32 to vector<1x8xf32>
    %23 = arith.cmpf oeq, %21, %22 : vector<1x8xf32>
    %cst_16 = arith.constant -1.000000e+04 : f32
    %cst_17 = arith.constant 0.000000e+00 : f32
    %24 = vector.broadcast %cst_16 : f32 to vector<1x8xf32>
    %25 = vector.broadcast %cst_17 : f32 to vector<1x8xf32>
    %26 = arith.select %23, %24, %25 : vector<1x8xi1>, vector<1x8xf32>
    %c0_18 = arith.constant 0 : index
    %c0_19 = arith.constant 0 : index
    %27 = vector.load %arg5[%c0_18, %c0_19] : memref<32x96xbf16, #tpu.memory_space<vmem>>, vector<32x96xbf16>
    %cst_20 = arith.constant dense<0.000000e+00> : vector<8x96xf32>
    %28 = tpu.matmul %1, %27, %cst_20 {dimension_numbers = #tpu.dot_dimension_numbers<[1], [0], [0], [1], [0, 0, 1, 1], [], []>} : vector<8x32xbf16>, vector<32x96xbf16>, vector<8x96xf32> -> vector<8x96xf32>
    %c0_21 = arith.constant 0 : index
    %c0_22 = arith.constant 0 : index
    %29 = vector.load %arg6[%c0_21, %c0_22] : memref<1x96xf32, #tpu.memory_space<vmem>>, vector<1x96xf32>
    %30 = vector.broadcast %29 : vector<1x96xf32> to vector<8x96xf32>
    %31 = arith.addf %28, %30 : vector<8x96xf32>
    %32 = vector.extract_strided_slice %31 {offsets = [0, 0], sizes = [8, 32], strides = [1, 1]} : vector<8x96xf32> to vector<8x32xf32>
    %cst_23 = arith.constant 0.353553385 : f32
    %33 = vector.broadcast %cst_23 : f32 to vector<8x32xf32>
    %34 = arith.mulf %32, %33 : vector<8x32xf32>
    %35 = arith.truncf %34 : vector<8x32xf32> to vector<8x32xbf16>
    %36 = vector.extract_strided_slice %31 {offsets = [0, 32], sizes = [8, 32], strides = [1, 1]} : vector<8x96xf32> to vector<8x32xf32>
    %37 = arith.truncf %36 : vector<8x32xf32> to vector<8x32xbf16>
    %38 = vector.extract_strided_slice %31 {offsets = [0, 64], sizes = [8, 32], strides = [1, 1]} : vector<8x96xf32> to vector<8x32xf32>
    %39 = arith.truncf %38 : vector<8x32xf32> to vector<8x32xbf16>
    %40 = vector.extract_strided_slice %35 {offsets = [0, 0], sizes = [8, 8], strides = [1, 1]} : vector<8x32xbf16> to vector<8x8xbf16>
    %41 = vector.extract_strided_slice %37 {offsets = [0, 0], sizes = [8, 8], strides = [1, 1]} : vector<8x32xbf16> to vector<8x8xbf16>
    %cst_24 = arith.constant dense<0.000000e+00> : vector<8x8xf32>
    %42 = tpu.matmul %40, %41, %cst_24 {dimension_numbers = #tpu.dot_dimension_numbers<[1], [1], [0], [0], [0, 0, 1, 0], [], []>} : vector<8x8xbf16>, vector<8x8xbf16>, vector<8x8xf32> -> vector<8x8xf32>
    %43 = arith.addf %42, %19 : vector<8x8xf32>
    %cst_25 = arith.constant dense<0xFF800000> : vector<8xf32>
    %44 = vector.multi_reduction <maximumf>, %43, %cst_25 [1] : vector<8x8xf32> to vector<8xf32>
    %45 = vector.shape_cast %44 : vector<8xf32> to vector<8x1xf32>
    %46 = vector.broadcast %45 : vector<8x1xf32> to vector<8x8xf32>
    %47 = arith.subf %43, %46 : vector<8x8xf32>
    %48 = math.exp %47 : vector<8x8xf32>
    %cst_26 = arith.constant dense<0.000000e+00> : vector<8xf32>
    %49 = vector.multi_reduction <add>, %48, %cst_26 [1] : vector<8x8xf32> to vector<8xf32>
    %50 = vector.shape_cast %49 : vector<8xf32> to vector<8x1xf32>
    %51 = tpu.reciprocal %50 {approx = true} : vector<8x1xf32> -> vector<8x1xf32>
    %52 = vector.broadcast %51 : vector<8x1xf32> to vector<8x8xf32>
    %53 = arith.mulf %48, %52 : vector<8x8xf32>
    %54 = arith.truncf %53 : vector<8x8xf32> to vector<8x8xbf16>
    %55 = vector.extract_strided_slice %39 {offsets = [0, 0], sizes = [8, 8], strides = [1, 1]} : vector<8x32xbf16> to vector<8x8xbf16>
    %cst_27 = arith.constant dense<0.000000e+00> : vector<8x8xf32>
    %56 = tpu.matmul %54, %55, %cst_27 {dimension_numbers = #tpu.dot_dimension_numbers<[1], [0], [0], [1], [0, 0, 1, 1], [], []>} : vector<8x8xbf16>, vector<8x8xbf16>, vector<8x8xf32> -> vector<8x8xf32>
    %57 = vector.extract_strided_slice %35 {offsets = [0, 8], sizes = [8, 8], strides = [1, 1]} : vector<8x32xbf16> to vector<8x8xbf16>
    %58 = vector.extract_strided_slice %37 {offsets = [0, 8], sizes = [8, 8], strides = [1, 1]} : vector<8x32xbf16> to vector<8x8xbf16>
    %cst_28 = arith.constant dense<0.000000e+00> : vector<8x8xf32>
    %59 = tpu.matmul %57, %58, %cst_28 {dimension_numbers = #tpu.dot_dimension_numbers<[1], [1], [0], [0], [0, 0, 1, 0], [], []>} : vector<8x8xbf16>, vector<8x8xbf16>, vector<8x8xf32> -> vector<8x8xf32>
    %60 = arith.addf %59, %19 : vector<8x8xf32>
    %cst_29 = arith.constant dense<0xFF800000> : vector<8xf32>
    %61 = vector.multi_reduction <maximumf>, %60, %cst_29 [1] : vector<8x8xf32> to vector<8xf32>
    %62 = vector.shape_cast %61 : vector<8xf32> to vector<8x1xf32>
    %63 = vector.broadcast %62 : vector<8x1xf32> to vector<8x8xf32>
    %64 = arith.subf %60, %63 : vector<8x8xf32>
    %65 = math.exp %64 : vector<8x8xf32>
    %cst_30 = arith.constant dense<0.000000e+00> : vector<8xf32>
    %66 = vector.multi_reduction <add>, %65, %cst_30 [1] : vector<8x8xf32> to vector<8xf32>
    %67 = vector.shape_cast %66 : vector<8xf32> to vector<8x1xf32>
    %68 = tpu.reciprocal %67 {approx = true} : vector<8x1xf32> -> vector<8x1xf32>
    %69 = vector.broadcast %68 : vector<8x1xf32> to vector<8x8xf32>
    %70 = arith.mulf %65, %69 : vector<8x8xf32>
    %71 = arith.truncf %70 : vector<8x8xf32> to vector<8x8xbf16>
    %72 = vector.extract_strided_slice %39 {offsets = [0, 8], sizes = [8, 8], strides = [1, 1]} : vector<8x32xbf16> to vector<8x8xbf16>
    %cst_31 = arith.constant dense<0.000000e+00> : vector<8x8xf32>
    %73 = tpu.matmul %71, %72, %cst_31 {dimension_numbers = #tpu.dot_dimension_numbers<[1], [0], [0], [1], [0, 0, 1, 1], [], []>} : vector<8x8xbf16>, vector<8x8xbf16>, vector<8x8xf32> -> vector<8x8xf32>
    %74 = vector.extract_strided_slice %35 {offsets = [0, 16], sizes = [8, 8], strides = [1, 1]} : vector<8x32xbf16> to vector<8x8xbf16>
    %75 = vector.extract_strided_slice %37 {offsets = [0, 16], sizes = [8, 8], strides = [1, 1]} : vector<8x32xbf16> to vector<8x8xbf16>
    %cst_32 = arith.constant dense<0.000000e+00> : vector<8x8xf32>
    %76 = tpu.matmul %74, %75, %cst_32 {dimension_numbers = #tpu.dot_dimension_numbers<[1], [1], [0], [0], [0, 0, 1, 0], [], []>} : vector<8x8xbf16>, vector<8x8xbf16>, vector<8x8xf32> -> vector<8x8xf32>
    %77 = arith.addf %76, %19 : vector<8x8xf32>
    %cst_33 = arith.constant dense<0xFF800000> : vector<8xf32>
    %78 = vector.multi_reduction <maximumf>, %77, %cst_33 [1] : vector<8x8xf32> to vector<8xf32>
    %79 = vector.shape_cast %78 : vector<8xf32> to vector<8x1xf32>
    %80 = vector.broadcast %79 : vector<8x1xf32> to vector<8x8xf32>
    %81 = arith.subf %77, %80 : vector<8x8xf32>
    %82 = math.exp %81 : vector<8x8xf32>
    %cst_34 = arith.constant dense<0.000000e+00> : vector<8xf32>
    %83 = vector.multi_reduction <add>, %82, %cst_34 [1] : vector<8x8xf32> to vector<8xf32>
    %84 = vector.shape_cast %83 : vector<8xf32> to vector<8x1xf32>
    %85 = tpu.reciprocal %84 {approx = true} : vector<8x1xf32> -> vector<8x1xf32>
    %86 = vector.broadcast %85 : vector<8x1xf32> to vector<8x8xf32>
    %87 = arith.mulf %82, %86 : vector<8x8xf32>
    %88 = arith.truncf %87 : vector<8x8xf32> to vector<8x8xbf16>
    %89 = vector.extract_strided_slice %39 {offsets = [0, 16], sizes = [8, 8], strides = [1, 1]} : vector<8x32xbf16> to vector<8x8xbf16>
    %cst_35 = arith.constant dense<0.000000e+00> : vector<8x8xf32>
    %90 = tpu.matmul %88, %89, %cst_35 {dimension_numbers = #tpu.dot_dimension_numbers<[1], [0], [0], [1], [0, 0, 1, 1], [], []>} : vector<8x8xbf16>, vector<8x8xbf16>, vector<8x8xf32> -> vector<8x8xf32>
    %91 = vector.extract_strided_slice %35 {offsets = [0, 24], sizes = [8, 8], strides = [1, 1]} : vector<8x32xbf16> to vector<8x8xbf16>
    %92 = vector.extract_strided_slice %37 {offsets = [0, 24], sizes = [8, 8], strides = [1, 1]} : vector<8x32xbf16> to vector<8x8xbf16>
    %cst_36 = arith.constant dense<0.000000e+00> : vector<8x8xf32>
    %93 = tpu.matmul %91, %92, %cst_36 {dimension_numbers = #tpu.dot_dimension_numbers<[1], [1], [0], [0], [0, 0, 1, 0], [], []>} : vector<8x8xbf16>, vector<8x8xbf16>, vector<8x8xf32> -> vector<8x8xf32>
    %94 = arith.addf %93, %19 : vector<8x8xf32>
    %cst_37 = arith.constant dense<0xFF800000> : vector<8xf32>
    %95 = vector.multi_reduction <maximumf>, %94, %cst_37 [1] : vector<8x8xf32> to vector<8xf32>
    %96 = vector.shape_cast %95 : vector<8xf32> to vector<8x1xf32>
    %97 = vector.broadcast %96 : vector<8x1xf32> to vector<8x8xf32>
    %98 = arith.subf %94, %97 : vector<8x8xf32>
    %99 = math.exp %98 : vector<8x8xf32>
    %cst_38 = arith.constant dense<0.000000e+00> : vector<8xf32>
    %100 = vector.multi_reduction <add>, %99, %cst_38 [1] : vector<8x8xf32> to vector<8xf32>
    %101 = vector.shape_cast %100 : vector<8xf32> to vector<8x1xf32>
    %102 = tpu.reciprocal %101 {approx = true} : vector<8x1xf32> -> vector<8x1xf32>
    %103 = vector.broadcast %102 : vector<8x1xf32> to vector<8x8xf32>
    %104 = arith.mulf %99, %103 : vector<8x8xf32>
    %105 = arith.truncf %104 : vector<8x8xf32> to vector<8x8xbf16>
    %106 = vector.extract_strided_slice %39 {offsets = [0, 24], sizes = [8, 8], strides = [1, 1]} : vector<8x32xbf16> to vector<8x8xbf16>
    %cst_39 = arith.constant dense<0.000000e+00> : vector<8x8xf32>
    %107 = tpu.matmul %105, %106, %cst_39 {dimension_numbers = #tpu.dot_dimension_numbers<[1], [0], [0], [1], [0, 0, 1, 1], [], []>} : vector<8x8xbf16>, vector<8x8xbf16>, vector<8x8xf32> -> vector<8x8xf32>
    %108 = tpu.concatenate %56, %73, %90, %107 in 1 : vector<8x8xf32>, vector<8x8xf32>, vector<8x8xf32>, vector<8x8xf32> -> vector<8x32xf32>
    %109 = arith.truncf %108 : vector<8x32xf32> to vector<8x32xbf16>
    %c0_40 = arith.constant 0 : index
    %c0_41 = arith.constant 0 : index
    %110 = vector.load %arg7[%c0_40, %c0_41] : memref<32x32xbf16, #tpu.memory_space<vmem>>, vector<32x32xbf16>
    %cst_42 = arith.constant dense<0.000000e+00> : vector<8x32xf32>
    %111 = tpu.matmul %109, %110, %cst_42 {dimension_numbers = #tpu.dot_dimension_numbers<[1], [0], [0], [1], [0, 0, 1, 1], [], []>} : vector<8x32xbf16>, vector<32x32xbf16>, vector<8x32xf32> -> vector<8x32xf32>
    %c0_43 = arith.constant 0 : index
    %c0_44 = arith.constant 0 : index
    %112 = vector.load %arg8[%c0_43, %c0_44] : memref<1x32xf32, #tpu.memory_space<vmem>>, vector<1x32xf32>
    %113 = vector.broadcast %112 : vector<1x32xf32> to vector<8x32xf32>
    %114 = arith.addf %111, %113 : vector<8x32xf32>
    %115 = arith.addf %114, %4 : vector<8x32xf32>
    %c0_45 = arith.constant 0 : index
    %c0_46 = arith.constant 0 : index
    %116 = vector.load %arg9[%c0_45, %c0_46] : memref<1x32xf32, #tpu.memory_space<vmem>>, vector<1x32xf32>
    %c0_47 = arith.constant 0 : index
    %c0_48 = arith.constant 0 : index
    %117 = vector.load %arg10[%c0_47, %c0_48] : memref<1x32xf32, #tpu.memory_space<vmem>>, vector<1x32xf32>
    %cst_49 = arith.constant dense<0.000000e+00> : vector<8xf32>
    %118 = vector.multi_reduction <add>, %115, %cst_49 [1] : vector<8x32xf32> to vector<8xf32>
    %119 = vector.shape_cast %118 : vector<8xf32> to vector<8x1xf32>
    %cst_50 = arith.constant 3.200000e+01 : f32
    %120 = vector.broadcast %cst_50 : f32 to vector<8x1xf32>
    %121 = arith.divf %119, %120 : vector<8x1xf32>
    %122 = vector.broadcast %121 : vector<8x1xf32> to vector<8x32xf32>
    %123 = arith.subf %115, %122 : vector<8x32xf32>
    %124 = arith.mulf %123, %123 : vector<8x32xf32>
    %cst_51 = arith.constant dense<0.000000e+00> : vector<8xf32>
    %125 = vector.multi_reduction <add>, %124, %cst_51 [1] : vector<8x32xf32> to vector<8xf32>
    %126 = vector.shape_cast %125 : vector<8xf32> to vector<8x1xf32>
    %cst_52 = arith.constant 3.200000e+01 : f32
    %127 = vector.broadcast %cst_52 : f32 to vector<8x1xf32>
    %128 = arith.divf %126, %127 : vector<8x1xf32>
    %129 = vector.broadcast %121 : vector<8x1xf32> to vector<8x32xf32>
    %130 = arith.subf %115, %129 : vector<8x32xf32>
    %cst_53 = arith.constant 9.99999996E-13 : f32
    %131 = vector.broadcast %cst_53 : f32 to vector<8x1xf32>
    %132 = arith.addf %128, %131 : vector<8x1xf32>
    %133 = math.rsqrt %132 : vector<8x1xf32>
    %134 = vector.broadcast %133 : vector<8x1xf32> to vector<8x32xf32>
    %135 = arith.mulf %130, %134 : vector<8x32xf32>
    %136 = vector.broadcast %116 : vector<1x32xf32> to vector<8x32xf32>
    %137 = arith.mulf %135, %136 : vector<8x32xf32>
    %138 = vector.broadcast %117 : vector<1x32xf32> to vector<8x32xf32>
    %139 = arith.addf %137, %138 : vector<8x32xf32>
    %140 = arith.truncf %139 : vector<8x32xf32> to vector<8x32xbf16>
    %c0_54 = arith.constant 0 : index
    %c0_55 = arith.constant 0 : index
    %141 = vector.load %arg11[%c0_54, %c0_55] : memref<32x32xbf16, #tpu.memory_space<vmem>>, vector<32x32xbf16>
    %cst_56 = arith.constant dense<0.000000e+00> : vector<8x32xf32>
    %142 = tpu.matmul %140, %141, %cst_56 {dimension_numbers = #tpu.dot_dimension_numbers<[1], [0], [0], [1], [0, 0, 1, 1], [], []>} : vector<8x32xbf16>, vector<32x32xbf16>, vector<8x32xf32> -> vector<8x32xf32>
    %c0_57 = arith.constant 0 : index
    %c0_58 = arith.constant 0 : index
    %143 = vector.load %arg12[%c0_57, %c0_58] : memref<1x32xf32, #tpu.memory_space<vmem>>, vector<1x32xf32>
    %144 = vector.broadcast %143 : vector<1x32xf32> to vector<8x32xf32>
    %145 = arith.addf %142, %144 : vector<8x32xf32>
    %cst_59 = arith.constant 0.353553385 : f32
    %146 = vector.broadcast %cst_59 : f32 to vector<8x32xf32>
    %147 = arith.mulf %145, %146 : vector<8x32xf32>
    %148 = arith.truncf %147 : vector<8x32xf32> to vector<8x32xbf16>
    %c0_60 = arith.constant 0 : index
    %c0_61 = arith.constant 0 : index
    %149 = vector.load %arg13[%c0_60, %c0_61] : memref<32x64xbf16, #tpu.memory_space<vmem>>, vector<32x64xbf16>
    %cst_62 = arith.constant dense<0.000000e+00> : vector<8x64xf32>
    %150 = tpu.matmul %3, %149, %cst_62 {dimension_numbers = #tpu.dot_dimension_numbers<[1], [0], [0], [1], [0, 0, 1, 1], [], []>} : vector<8x32xbf16>, vector<32x64xbf16>, vector<8x64xf32> -> vector<8x64xf32>
    %c0_63 = arith.constant 0 : index
    %c0_64 = arith.constant 0 : index
    %151 = vector.load %arg14[%c0_63, %c0_64] : memref<1x64xf32, #tpu.memory_space<vmem>>, vector<1x64xf32>
    %152 = vector.broadcast %151 : vector<1x64xf32> to vector<8x64xf32>
    %153 = arith.addf %150, %152 : vector<8x64xf32>
    %154 = vector.extract_strided_slice %153 {offsets = [0, 0], sizes = [8, 32], strides = [1, 1]} : vector<8x64xf32> to vector<8x32xf32>
    %155 = arith.truncf %154 : vector<8x32xf32> to vector<8x32xbf16>
    %156 = vector.extract_strided_slice %153 {offsets = [0, 32], sizes = [8, 32], strides = [1, 1]} : vector<8x64xf32> to vector<8x32xf32>
    %157 = arith.truncf %156 : vector<8x32xf32> to vector<8x32xbf16>
    %158 = vector.extract_strided_slice %148 {offsets = [0, 0], sizes = [8, 8], strides = [1, 1]} : vector<8x32xbf16> to vector<8x8xbf16>
    %159 = vector.extract_strided_slice %155 {offsets = [0, 0], sizes = [8, 8], strides = [1, 1]} : vector<8x32xbf16> to vector<8x8xbf16>
    %cst_65 = arith.constant dense<0.000000e+00> : vector<8x8xf32>
    %160 = tpu.matmul %158, %159, %cst_65 {dimension_numbers = #tpu.dot_dimension_numbers<[1], [1], [0], [0], [0, 0, 1, 0], [], []>} : vector<8x8xbf16>, vector<8x8xbf16>, vector<8x8xf32> -> vector<8x8xf32>
    %161 = vector.broadcast %26 : vector<1x8xf32> to vector<8x8xf32>
    %162 = arith.addf %160, %161 : vector<8x8xf32>
    %cst_66 = arith.constant dense<0xFF800000> : vector<8xf32>
    %163 = vector.multi_reduction <maximumf>, %162, %cst_66 [1] : vector<8x8xf32> to vector<8xf32>
    %164 = vector.shape_cast %163 : vector<8xf32> to vector<8x1xf32>
    %165 = vector.broadcast %164 : vector<8x1xf32> to vector<8x8xf32>
    %166 = arith.subf %162, %165 : vector<8x8xf32>
    %167 = math.exp %166 : vector<8x8xf32>
    %cst_67 = arith.constant dense<0.000000e+00> : vector<8xf32>
    %168 = vector.multi_reduction <add>, %167, %cst_67 [1] : vector<8x8xf32> to vector<8xf32>
    %169 = vector.shape_cast %168 : vector<8xf32> to vector<8x1xf32>
    %170 = tpu.reciprocal %169 {approx = true} : vector<8x1xf32> -> vector<8x1xf32>
    %171 = vector.broadcast %170 : vector<8x1xf32> to vector<8x8xf32>
    %172 = arith.mulf %167, %171 : vector<8x8xf32>
    %173 = arith.truncf %172 : vector<8x8xf32> to vector<8x8xbf16>
    %174 = vector.extract_strided_slice %157 {offsets = [0, 0], sizes = [8, 8], strides = [1, 1]} : vector<8x32xbf16> to vector<8x8xbf16>
    %cst_68 = arith.constant dense<0.000000e+00> : vector<8x8xf32>
    %175 = tpu.matmul %173, %174, %cst_68 {dimension_numbers = #tpu.dot_dimension_numbers<[1], [0], [0], [1], [0, 0, 1, 1], [], []>} : vector<8x8xbf16>, vector<8x8xbf16>, vector<8x8xf32> -> vector<8x8xf32>
    %176 = vector.extract_strided_slice %148 {offsets = [0, 8], sizes = [8, 8], strides = [1, 1]} : vector<8x32xbf16> to vector<8x8xbf16>
    %177 = vector.extract_strided_slice %155 {offsets = [0, 8], sizes = [8, 8], strides = [1, 1]} : vector<8x32xbf16> to vector<8x8xbf16>
    %cst_69 = arith.constant dense<0.000000e+00> : vector<8x8xf32>
    %178 = tpu.matmul %176, %177, %cst_69 {dimension_numbers = #tpu.dot_dimension_numbers<[1], [1], [0], [0], [0, 0, 1, 0], [], []>} : vector<8x8xbf16>, vector<8x8xbf16>, vector<8x8xf32> -> vector<8x8xf32>
    %179 = vector.broadcast %26 : vector<1x8xf32> to vector<8x8xf32>
    %180 = arith.addf %178, %179 : vector<8x8xf32>
    %cst_70 = arith.constant dense<0xFF800000> : vector<8xf32>
    %181 = vector.multi_reduction <maximumf>, %180, %cst_70 [1] : vector<8x8xf32> to vector<8xf32>
    %182 = vector.shape_cast %181 : vector<8xf32> to vector<8x1xf32>
    %183 = vector.broadcast %182 : vector<8x1xf32> to vector<8x8xf32>
    %184 = arith.subf %180, %183 : vector<8x8xf32>
    %185 = math.exp %184 : vector<8x8xf32>
    %cst_71 = arith.constant dense<0.000000e+00> : vector<8xf32>
    %186 = vector.multi_reduction <add>, %185, %cst_71 [1] : vector<8x8xf32> to vector<8xf32>
    %187 = vector.shape_cast %186 : vector<8xf32> to vector<8x1xf32>
    %188 = tpu.reciprocal %187 {approx = true} : vector<8x1xf32> -> vector<8x1xf32>
    %189 = vector.broadcast %188 : vector<8x1xf32> to vector<8x8xf32>
    %190 = arith.mulf %185, %189 : vector<8x8xf32>
    %191 = arith.truncf %190 : vector<8x8xf32> to vector<8x8xbf16>
    %192 = vector.extract_strided_slice %157 {offsets = [0, 8], sizes = [8, 8], strides = [1, 1]} : vector<8x32xbf16> to vector<8x8xbf16>
    %cst_72 = arith.constant dense<0.000000e+00> : vector<8x8xf32>
    %193 = tpu.matmul %191, %192, %cst_72 {dimension_numbers = #tpu.dot_dimension_numbers<[1], [0], [0], [1], [0, 0, 1, 1], [], []>} : vector<8x8xbf16>, vector<8x8xbf16>, vector<8x8xf32> -> vector<8x8xf32>
    %194 = vector.extract_strided_slice %148 {offsets = [0, 16], sizes = [8, 8], strides = [1, 1]} : vector<8x32xbf16> to vector<8x8xbf16>
    %195 = vector.extract_strided_slice %155 {offsets = [0, 16], sizes = [8, 8], strides = [1, 1]} : vector<8x32xbf16> to vector<8x8xbf16>
    %cst_73 = arith.constant dense<0.000000e+00> : vector<8x8xf32>
    %196 = tpu.matmul %194, %195, %cst_73 {dimension_numbers = #tpu.dot_dimension_numbers<[1], [1], [0], [0], [0, 0, 1, 0], [], []>} : vector<8x8xbf16>, vector<8x8xbf16>, vector<8x8xf32> -> vector<8x8xf32>
    %197 = vector.broadcast %26 : vector<1x8xf32> to vector<8x8xf32>
    %198 = arith.addf %196, %197 : vector<8x8xf32>
    %cst_74 = arith.constant dense<0xFF800000> : vector<8xf32>
    %199 = vector.multi_reduction <maximumf>, %198, %cst_74 [1] : vector<8x8xf32> to vector<8xf32>
    %200 = vector.shape_cast %199 : vector<8xf32> to vector<8x1xf32>
    %201 = vector.broadcast %200 : vector<8x1xf32> to vector<8x8xf32>
    %202 = arith.subf %198, %201 : vector<8x8xf32>
    %203 = math.exp %202 : vector<8x8xf32>
    %cst_75 = arith.constant dense<0.000000e+00> : vector<8xf32>
    %204 = vector.multi_reduction <add>, %203, %cst_75 [1] : vector<8x8xf32> to vector<8xf32>
    %205 = vector.shape_cast %204 : vector<8xf32> to vector<8x1xf32>
    %206 = tpu.reciprocal %205 {approx = true} : vector<8x1xf32> -> vector<8x1xf32>
    %207 = vector.broadcast %206 : vector<8x1xf32> to vector<8x8xf32>
    %208 = arith.mulf %203, %207 : vector<8x8xf32>
    %209 = arith.truncf %208 : vector<8x8xf32> to vector<8x8xbf16>
    %210 = vector.extract_strided_slice %157 {offsets = [0, 16], sizes = [8, 8], strides = [1, 1]} : vector<8x32xbf16> to vector<8x8xbf16>
    %cst_76 = arith.constant dense<0.000000e+00> : vector<8x8xf32>
    %211 = tpu.matmul %209, %210, %cst_76 {dimension_numbers = #tpu.dot_dimension_numbers<[1], [0], [0], [1], [0, 0, 1, 1], [], []>} : vector<8x8xbf16>, vector<8x8xbf16>, vector<8x8xf32> -> vector<8x8xf32>
    %212 = vector.extract_strided_slice %148 {offsets = [0, 24], sizes = [8, 8], strides = [1, 1]} : vector<8x32xbf16> to vector<8x8xbf16>
    %213 = vector.extract_strided_slice %155 {offsets = [0, 24], sizes = [8, 8], strides = [1, 1]} : vector<8x32xbf16> to vector<8x8xbf16>
    %cst_77 = arith.constant dense<0.000000e+00> : vector<8x8xf32>
    %214 = tpu.matmul %212, %213, %cst_77 {dimension_numbers = #tpu.dot_dimension_numbers<[1], [1], [0], [0], [0, 0, 1, 0], [], []>} : vector<8x8xbf16>, vector<8x8xbf16>, vector<8x8xf32> -> vector<8x8xf32>
    %215 = vector.broadcast %26 : vector<1x8xf32> to vector<8x8xf32>
    %216 = arith.addf %214, %215 : vector<8x8xf32>
    %cst_78 = arith.constant dense<0xFF800000> : vector<8xf32>
    %217 = vector.multi_reduction <maximumf>, %216, %cst_78 [1] : vector<8x8xf32> to vector<8xf32>
    %218 = vector.shape_cast %217 : vector<8xf32> to vector<8x1xf32>
    %219 = vector.broadcast %218 : vector<8x1xf32> to vector<8x8xf32>
    %220 = arith.subf %216, %219 : vector<8x8xf32>
    %221 = math.exp %220 : vector<8x8xf32>
    %cst_79 = arith.constant dense<0.000000e+00> : vector<8xf32>
    %222 = vector.multi_reduction <add>, %221, %cst_79 [1] : vector<8x8xf32> to vector<8xf32>
    %223 = vector.shape_cast %222 : vector<8xf32> to vector<8x1xf32>
    %224 = tpu.reciprocal %223 {approx = true} : vector<8x1xf32> -> vector<8x1xf32>
    %225 = vector.broadcast %224 : vector<8x1xf32> to vector<8x8xf32>
    %226 = arith.mulf %221, %225 : vector<8x8xf32>
    %227 = arith.truncf %226 : vector<8x8xf32> to vector<8x8xbf16>
    %228 = vector.extract_strided_slice %157 {offsets = [0, 24], sizes = [8, 8], strides = [1, 1]} : vector<8x32xbf16> to vector<8x8xbf16>
    %cst_80 = arith.constant dense<0.000000e+00> : vector<8x8xf32>
    %229 = tpu.matmul %227, %228, %cst_80 {dimension_numbers = #tpu.dot_dimension_numbers<[1], [0], [0], [1], [0, 0, 1, 1], [], []>} : vector<8x8xbf16>, vector<8x8xbf16>, vector<8x8xf32> -> vector<8x8xf32>
    %230 = tpu.concatenate %175, %193, %211, %229 in 1 : vector<8x8xf32>, vector<8x8xf32>, vector<8x8xf32>, vector<8x8xf32> -> vector<8x32xf32>
    %231 = arith.truncf %230 : vector<8x32xf32> to vector<8x32xbf16>
    %c0_81 = arith.constant 0 : index
    %c0_82 = arith.constant 0 : index
    %232 = vector.load %arg15[%c0_81, %c0_82] : memref<32x32xbf16, #tpu.memory_space<vmem>>, vector<32x32xbf16>
    %cst_83 = arith.constant dense<0.000000e+00> : vector<8x32xf32>
    %233 = tpu.matmul %231, %232, %cst_83 {dimension_numbers = #tpu.dot_dimension_numbers<[1], [0], [0], [1], [0, 0, 1, 1], [], []>} : vector<8x32xbf16>, vector<32x32xbf16>, vector<8x32xf32> -> vector<8x32xf32>
    %c0_84 = arith.constant 0 : index
    %c0_85 = arith.constant 0 : index
    %234 = vector.load %arg16[%c0_84, %c0_85] : memref<1x32xf32, #tpu.memory_space<vmem>>, vector<1x32xf32>
    %235 = vector.broadcast %234 : vector<1x32xf32> to vector<8x32xf32>
    %236 = arith.addf %233, %235 : vector<8x32xf32>
    %237 = arith.addf %236, %139 : vector<8x32xf32>
    %c0_86 = arith.constant 0 : index
    %c0_87 = arith.constant 0 : index
    %238 = vector.load %arg17[%c0_86, %c0_87] : memref<1x32xf32, #tpu.memory_space<vmem>>, vector<1x32xf32>
    %c0_88 = arith.constant 0 : index
    %c0_89 = arith.constant 0 : index
    %239 = vector.load %arg18[%c0_88, %c0_89] : memref<1x32xf32, #tpu.memory_space<vmem>>, vector<1x32xf32>
    %cst_90 = arith.constant dense<0.000000e+00> : vector<8xf32>
    %240 = vector.multi_reduction <add>, %237, %cst_90 [1] : vector<8x32xf32> to vector<8xf32>
    %241 = vector.shape_cast %240 : vector<8xf32> to vector<8x1xf32>
    %cst_91 = arith.constant 3.200000e+01 : f32
    %242 = vector.broadcast %cst_91 : f32 to vector<8x1xf32>
    %243 = arith.divf %241, %242 : vector<8x1xf32>
    %244 = vector.broadcast %243 : vector<8x1xf32> to vector<8x32xf32>
    %245 = arith.subf %237, %244 : vector<8x32xf32>
    %246 = arith.mulf %245, %245 : vector<8x32xf32>
    %cst_92 = arith.constant dense<0.000000e+00> : vector<8xf32>
    %247 = vector.multi_reduction <add>, %246, %cst_92 [1] : vector<8x32xf32> to vector<8xf32>
    %248 = vector.shape_cast %247 : vector<8xf32> to vector<8x1xf32>
    %cst_93 = arith.constant 3.200000e+01 : f32
    %249 = vector.broadcast %cst_93 : f32 to vector<8x1xf32>
    %250 = arith.divf %248, %249 : vector<8x1xf32>
    %251 = vector.broadcast %243 : vector<8x1xf32> to vector<8x32xf32>
    %252 = arith.subf %237, %251 : vector<8x32xf32>
    %cst_94 = arith.constant 9.99999996E-13 : f32
    %253 = vector.broadcast %cst_94 : f32 to vector<8x1xf32>
    %254 = arith.addf %250, %253 : vector<8x1xf32>
    %255 = math.rsqrt %254 : vector<8x1xf32>
    %256 = vector.broadcast %255 : vector<8x1xf32> to vector<8x32xf32>
    %257 = arith.mulf %252, %256 : vector<8x32xf32>
    %258 = vector.broadcast %238 : vector<1x32xf32> to vector<8x32xf32>
    %259 = arith.mulf %257, %258 : vector<8x32xf32>
    %260 = vector.broadcast %239 : vector<1x32xf32> to vector<8x32xf32>
    %261 = arith.addf %259, %260 : vector<8x32xf32>
    %262 = arith.truncf %261 : vector<8x32xf32> to vector<8x32xbf16>
    %c0_95 = arith.constant 0 : index
    %c0_96 = arith.constant 0 : index
    %263 = vector.load %arg19[%c0_95, %c0_96] : memref<32x64xbf16, #tpu.memory_space<vmem>>, vector<32x64xbf16>
    %cst_97 = arith.constant dense<0.000000e+00> : vector<8x64xf32>
    %264 = tpu.matmul %262, %263, %cst_97 {dimension_numbers = #tpu.dot_dimension_numbers<[1], [0], [0], [1], [0, 0, 1, 1], [], []>} : vector<8x32xbf16>, vector<32x64xbf16>, vector<8x64xf32> -> vector<8x64xf32>
    %c0_98 = arith.constant 0 : index
    %c0_99 = arith.constant 0 : index
    %265 = vector.load %arg20[%c0_98, %c0_99] : memref<1x64xf32, #tpu.memory_space<vmem>>, vector<1x64xf32>
    %266 = vector.broadcast %265 : vector<1x64xf32> to vector<8x64xf32>
    %267 = arith.addf %264, %266 : vector<8x64xf32>
    %cst_100 = arith.constant 0.000000e+00 : f32
    %268 = vector.broadcast %cst_100 : f32 to vector<8x64xf32>
    %269 = arith.maximumf %267, %268 : vector<8x64xf32>
    %270 = arith.truncf %269 : vector<8x64xf32> to vector<8x64xbf16>
    %c0_101 = arith.constant 0 : index
    %c0_102 = arith.constant 0 : index
    %271 = vector.load %arg21[%c0_101, %c0_102] : memref<64x32xbf16, #tpu.memory_space<vmem>>, vector<64x32xbf16>
    %cst_103 = arith.constant dense<0.000000e+00> : vector<8x32xf32>
    %272 = tpu.matmul %270, %271, %cst_103 {dimension_numbers = #tpu.dot_dimension_numbers<[1], [0], [0], [1], [0, 0, 1, 1], [], []>} : vector<8x64xbf16>, vector<64x32xbf16>, vector<8x32xf32> -> vector<8x32xf32>
    %c0_104 = arith.constant 0 : index
    %c0_105 = arith.constant 0 : index
    %273 = vector.load %arg22[%c0_104, %c0_105] : memref<1x32xf32, #tpu.memory_space<vmem>>, vector<1x32xf32>
    %274 = vector.broadcast %273 : vector<1x32xf32> to vector<8x32xf32>
    %275 = arith.addf %272, %274 : vector<8x32xf32>
    %276 = arith.addf %275, %261 : vector<8x32xf32>
    %c0_106 = arith.constant 0 : index
    %c0_107 = arith.constant 0 : index
    %277 = vector.load %arg23[%c0_106, %c0_107] : memref<1x32xf32, #tpu.memory_space<vmem>>, vector<1x32xf32>
    %c0_108 = arith.constant 0 : index
    %c0_109 = arith.constant 0 : index
    %278 = vector.load %arg24[%c0_108, %c0_109] : memref<1x32xf32, #tpu.memory_space<vmem>>, vector<1x32xf32>
    %cst_110 = arith.constant dense<0.000000e+00> : vector<8xf32>
    %279 = vector.multi_reduction <add>, %276, %cst_110 [1] : vector<8x32xf32> to vector<8xf32>
    %280 = vector.shape_cast %279 : vector<8xf32> to vector<8x1xf32>
    %cst_111 = arith.constant 3.200000e+01 : f32
    %281 = vector.broadcast %cst_111 : f32 to vector<8x1xf32>
    %282 = arith.divf %280, %281 : vector<8x1xf32>
    %283 = vector.broadcast %282 : vector<8x1xf32> to vector<8x32xf32>
    %284 = arith.subf %276, %283 : vector<8x32xf32>
    %285 = arith.mulf %284, %284 : vector<8x32xf32>
    %cst_112 = arith.constant dense<0.000000e+00> : vector<8xf32>
    %286 = vector.multi_reduction <add>, %285, %cst_112 [1] : vector<8x32xf32> to vector<8xf32>
    %287 = vector.shape_cast %286 : vector<8xf32> to vector<8x1xf32>
    %cst_113 = arith.constant 3.200000e+01 : f32
    %288 = vector.broadcast %cst_113 : f32 to vector<8x1xf32>
    %289 = arith.divf %287, %288 : vector<8x1xf32>
    %290 = vector.broadcast %282 : vector<8x1xf32> to vector<8x32xf32>
    %291 = arith.subf %276, %290 : vector<8x32xf32>
    %cst_114 = arith.constant 9.99999996E-13 : f32
    %292 = vector.broadcast %cst_114 : f32 to vector<8x1xf32>
    %293 = arith.addf %289, %292 : vector<8x1xf32>
    %294 = math.rsqrt %293 : vector<8x1xf32>
    %295 = vector.broadcast %294 : vector<8x1xf32> to vector<8x32xf32>
    %296 = arith.mulf %291, %295 : vector<8x32xf32>
    %297 = vector.broadcast %277 : vector<1x32xf32> to vector<8x32xf32>
    %298 = arith.mulf %296, %297 : vector<8x32xf32>
    %299 = vector.broadcast %278 : vector<1x32xf32> to vector<8x32xf32>
    %300 = arith.addf %298, %299 : vector<8x32xf32>
    %301 = arith.truncf %300 : vector<8x32xf32> to vector<8x32xbf16>
    %c0_115 = arith.constant 0 : index
    %c0_116 = arith.constant 0 : index
    %c0_117 = arith.constant 0 : index
    %302 = vector.load %arg25[%c0_115, %c0_116, %c0_117] : memref<1x8x32xbf16, #tpu.memory_space<vmem>>, vector<1x8x32xbf16>
    %303 = vector.shape_cast %302 : vector<1x8x32xbf16> to vector<8x32xbf16>
    %304 = vector.shape_cast %301 : vector<8x32xbf16> to vector<1x8x32xbf16>
    tpu.vector_store %arg25[%c0_115, %c0_116, %c0_117], %304 {strides = array<i32>} : memref<1x8x32xbf16, #tpu.memory_space<vmem>>, vector<1x8x32xbf16>,
    return
  }
  func.func @transform_0(%arg0: i32) -> (i32, i32, i32) {
    %c0_i32 = arith.constant 0 : i32
    %c0_i32_0 = arith.constant 0 : i32
    %c0_i32_1 = arith.constant 0 : i32
    return %arg0, %c0_i32, %c0_i32_0 : i32, i32, i32
  }
  func.func @transform_1(%arg0: i32) -> (i32, i32, i32) {
    %c0_i32 = arith.constant 0 : i32
    %c0_i32_0 = arith.constant 0 : i32
    %c0_i32_1 = arith.constant 0 : i32
    return %arg0, %c0_i32, %c0_i32_0 : i32, i32, i32
  }
  func.func @transform_2(%arg0: i32) -> (i32, i32, i32) {
    %c0_i32 = arith.constant 0 : i32
    %c0_i32_0 = arith.constant 0 : i32
    %c0_i32_1 = arith.constant 0 : i32
    return %arg0, %c0_i32, %c0_i32_0 : i32, i32, i32
  }
  func.func @transform_3(%arg0: i32) -> (i32, i32, i32) {
    %c0_i32 = arith.constant 0 : i32
    %c0_i32_0 = arith.constant 0 : i32
    %c0_i32_1 = arith.constant 0 : i32
    return %arg0, %c0_i32, %c0_i32_0 : i32, i32, i32
  }
  func.func @transform_4(%arg0: i32) -> (i32, i32) {
    %c0_i32 = arith.constant 0 : i32
    %c0_i32_0 = arith.constant 0 : i32
    %c0_i32_1 = arith.constant 0 : i32
    return %c0_i32, %c0_i32_0 : i32, i32
  }
  func.func @transform_5(%arg0: i32) -> (i32, i32) {
    %c0_i32 = arith.constant 0 : i32
    %c0_i32_0 = arith.constant 0 : i32
    %c0_i32_1 = arith.constant 0 : i32
    return %c0_i32, %c0_i32_0 : i32, i32
  }
  func.func @transform_6(%arg0: i32) -> (i32, i32) {
    %c0_i32 = arith.constant 0 : i32
    %c0_i32_0 = arith.constant 0 : i32
    %c0_i32_1 = arith.constant 0 : i32
    return %c0_i32, %c0_i32_0 : i32, i32
  }
  func.func @transform_7(%arg0: i32) -> (i32, i32) {
    %c0_i32 = arith.constant 0 : i32
    %c0_i32_0 = arith.constant 0 : i32
    %c0_i32_1 = arith.constant 0 : i32
    return %c0_i32, %c0_i32_0 : i32, i32
  }
  func.func @transform_8(%arg0: i32) -> (i32, i32) {
    %c0_i32 = arith.constant 0 : i32
    %c0_i32_0 = arith.constant 0 : i32
    %c0_i32_1 = arith.constant 0 : i32
    return %c0_i32, %c0_i32_0 : i32, i32
  }
  func.func @transform_9(%arg0: i32) -> (i32, i32) {
    %c0_i32 = arith.constant 0 : i32
    %c0_i32_0 = arith.constant 0 : i32
    %c0_i32_1 = arith.constant 0 : i32
    return %c0_i32, %c0_i32_0 : i32, i32
  }
  func.func @transform_10(%arg0: i32) -> (i32, i32) {
    %c0_i32 = arith.constant 0 : i32
    %c0_i32_0 = arith.constant 0 : i32
    %c0_i32_1 = arith.constant 0 : i32
    return %c0_i32, %c0_i32_0 : i32, i32
  }
  func.func @transform_11(%arg0: i32) -> (i32, i32) {
    %c0_i32 = arith.constant 0 : i32
    %c0_i32_0 = arith.constant 0 : i32
    %c0_i32_1 = arith.constant 0 : i32
    return %c0_i32, %c0_i32_0 : i32, i32
  }
  func.func @transform_12(%arg0: i32) -> (i32, i32) {
    %c0_i32 = arith.constant 0 : i32
    %c0_i32_0 = arith.constant 0 : i32
    %c0_i32_1 = arith.constant 0 : i32
    return %c0_i32, %c0_i32_0 : i32, i32
  }
  func.func @transform_13(%arg0: i32) -> (i32, i32) {
    %c0_i32 = arith.constant 0 : i32
    %c0_i32_0 = arith.constant 0 : i32
    %c0_i32_1 = arith.constant 0 : i32
    return %c0_i32, %c0_i32_0 : i32, i32
  }
  func.func @transform_14(%arg0: i32) -> (i32, i32) {
    %c0_i32 = arith.constant 0 : i32
    %c0_i32_0 = arith.constant 0 : i32
    %c0_i32_1 = arith.constant 0 : i32
    return %c0_i32, %c0_i32_0 : i32, i32
  }
  func.func @transform_15(%arg0: i32) -> (i32, i32) {
    %c0_i32 = arith.constant 0 : i32
    %c0_i32_0 = arith.constant 0 : i32
    %c0_i32_1 = arith.constant 0 : i32
    return %c0_i32, %c0_i32_0 : i32, i32
  }
  func.func @transform_16(%arg0: i32) -> (i32, i32) {
    %c0_i32 = arith.constant 0 : i32
    %c0_i32_0 = arith.constant 0 : i32
    %c0_i32_1 = arith.constant 0 : i32
    return %c0_i32, %c0_i32_0 : i32, i32
  }
  func.func @transform_17(%arg0: i32) -> (i32, i32) {
    %c0_i32 = arith.constant 0 : i32
    %c0_i32_0 = arith.constant 0 : i32
    %c0_i32_1 = arith.constant 0 : i32
    return %c0_i32, %c0_i32_0 : i32, i32
  }
  func.func @transform_18(%arg0: i32) -> (i32, i32) {
    %c0_i32 = arith.constant 0 : i32
    %c0_i32_0 = arith.constant 0 : i32
    %c0_i32_1 = arith.constant 0 : i32
    return %c0_i32, %c0_i32_0 : i32, i32
  }
  func.func @transform_19(%arg0: i32) -> (i32, i32) {
    %c0_i32 = arith.constant 0 : i32
    %c0_i32_0 = arith.constant 0 : i32
    %c0_i32_1 = arith.constant 0 : i32
    return %c0_i32, %c0_i32_0 : i32, i32
  }
  func.func @transform_20(%arg0: i32) -> (i32, i32) {
    %c0_i32 = arith.constant 0 : i32
    %c0_i32_0 = arith.constant 0 : i32
    %c0_i32_1 = arith.constant 0 : i32
    return %c0_i32, %c0_i32_0 : i32, i32
  }
  func.func @transform_21(%arg0: i32) -> (i32, i32) {
    %c0_i32 = arith.constant 0 : i32
    %c0_i32_0 = arith.constant 0 : i32
    %c0_i32_1 = arith.constant 0 : i32
    return %c0_i32, %c0_i32_0 : i32, i32
  }
  func.func @transform_22(%arg0: i32) -> (i32, i32) {
    %c0_i32 = arith.constant 0 : i32
    %c0_i32_0 = arith.constant 0 : i32
    %c0_i32_1 = arith.constant 0 : i32
    return %c0_i32, %c0_i32_0 : i32, i32
  }
  func.func @transform_23(%arg0: i32) -> (i32, i32) {
    %c0_i32 = arith.constant 0 : i32
    %c0_i32_0 = arith.constant 0 : i32
    %c0_i32_1 = arith.constant 0 : i32
    return %c0_i32, %c0_i32_0 : i32, i32
  }
  func.func @transform_24(%arg0: i32) -> (i32, i32, i32) {
    %c0_i32 = arith.constant 0 : i32
    %c0_i32_0 = arith.constant 0 : i32
    %c0_i32_1 = arith.constant 0 : i32
    return %arg0, %c0_i32, %c0_i32_0 : i32, i32, i32
  }
}

module attributes {stable_mosaic.version = 11 : i64} {
  func.func @_mm_bias_kernel(%arg0: i32, %arg1: i32, %arg2: i32, %arg3: memref<16x32xbf16, #tpu.memory_space<vmem>>, %arg4: memref<32x128xbf16, #tpu.memory_space<vmem>>, %arg5: memref<1x128xf32, #tpu.memory_space<vmem>>, %arg6: memref<16x128xf32, #tpu.memory_space<vmem>>, %arg7: memref<16x128xf32, #tpu.memory_space<vmem>>) attributes {dimension_semantics = [#tpu.dimension_semantics<parallel>, #tpu.dimension_semantics<parallel>, #tpu.dimension_semantics<arbitrary>], iteration_bounds = array<i64: 1, 1, 1>, scalar_prefetch = 0 : i64, scratch_operands = 1 : i64, tpu.core_type = #tpu.core_type<tc>, window_params = [{transform_indices = @transform_0, window_bounds = array<i64: 16, 32>}, {transform_indices = @transform_1, window_bounds = array<i64: 32, 128>}, {transform_indices = @transform_2, window_bounds = array<i64: 1, 128>}, {transform_indices = @transform_3, window_bounds = array<i64: 16, 128>}]} {
    %c0_i32 = arith.constant 0 : i32
    %0 = arith.cmpi eq, %arg2, %c0_i32 : i32
    %1 = arith.extui %0 : i1 to i32
    %c0_i32_0 = arith.constant 0 : i32
    %2 = arith.cmpi ne, %1, %c0_i32_0 : i32
    scf.if %2 {
      %cst_10 = arith.constant 0.000000e+00 : f32
      %12 = vector.broadcast %cst_10 : f32 to vector<16x128xf32>
      %c0_11 = arith.constant 0 : index
      %c0_12 = arith.constant 0 : index
      %13 = vector.load %arg7[%c0_11, %c0_12] : memref<16x128xf32, #tpu.memory_space<vmem>>, vector<16x128xf32>
      tpu.vector_store %arg7[%c0_11, %c0_12], %12 {strides = array<i32>} : memref<16x128xf32, #tpu.memory_space<vmem>>, vector<16x128xf32>,
    } else {
    }
    %c0 = arith.constant 0 : index
    %c0_1 = arith.constant 0 : index
    %3 = vector.load %arg7[%c0, %c0_1] : memref<16x128xf32, #tpu.memory_space<vmem>>, vector<16x128xf32>
    %c0_2 = arith.constant 0 : index
    %c0_3 = arith.constant 0 : index
    %4 = vector.load %arg3[%c0_2, %c0_3] : memref<16x32xbf16, #tpu.memory_space<vmem>>, vector<16x32xbf16>
    %c0_4 = arith.constant 0 : index
    %c0_5 = arith.constant 0 : index
    %5 = vector.load %arg4[%c0_4, %c0_5] : memref<32x128xbf16, #tpu.memory_space<vmem>>, vector<32x128xbf16>
    %cst = arith.constant dense<0.000000e+00> : vector<16x128xf32>
    %6 = tpu.matmul %4, %5, %cst {dimension_numbers = #tpu.dot_dimension_numbers<[1], [0], [0], [1], [0, 0, 1, 1], [], []>} : vector<16x32xbf16>, vector<32x128xbf16>, vector<16x128xf32> -> vector<16x128xf32>
    %7 = arith.addf %3, %6 : vector<16x128xf32>
    %c0_6 = arith.constant 0 : index
    %c0_7 = arith.constant 0 : index
    %8 = vector.load %arg7[%c0_6, %c0_7] : memref<16x128xf32, #tpu.memory_space<vmem>>, vector<16x128xf32>
    tpu.vector_store %arg7[%c0_6, %c0_7], %7 {strides = array<i32>} : memref<16x128xf32, #tpu.memory_space<vmem>>, vector<16x128xf32>,
    %c0_i32_8 = arith.constant 0 : i32
    %9 = arith.cmpi eq, %arg2, %c0_i32_8 : i32
    %10 = arith.extui %9 : i1 to i32
    %c0_i32_9 = arith.constant 0 : i32
    %11 = arith.cmpi ne, %10, %c0_i32_9 : i32
    scf.if %11 {
      %c0_10 = arith.constant 0 : index
      %c0_11 = arith.constant 0 : index
      %12 = vector.load %arg7[%c0_10, %c0_11] : memref<16x128xf32, #tpu.memory_space<vmem>>, vector<16x128xf32>
      %c0_12 = arith.constant 0 : index
      %c0_13 = arith.constant 0 : index
      %13 = vector.load %arg5[%c0_12, %c0_13] : memref<1x128xf32, #tpu.memory_space<vmem>>, vector<1x128xf32>
      %14 = vector.broadcast %13 : vector<1x128xf32> to vector<16x128xf32>
      %15 = arith.addf %12, %14 : vector<16x128xf32>
      %c0_14 = arith.constant 0 : index
      %c0_15 = arith.constant 0 : index
      %16 = vector.load %arg6[%c0_14, %c0_15] : memref<16x128xf32, #tpu.memory_space<vmem>>, vector<16x128xf32>
      tpu.vector_store %arg6[%c0_14, %c0_15], %15 {strides = array<i32>} : memref<16x128xf32, #tpu.memory_space<vmem>>, vector<16x128xf32>,
    } else {
    }
    return
  }
  func.func @transform_0(%arg0: i32, %arg1: i32, %arg2: i32) -> (i32, i32) {
    %c0_i32 = arith.constant 0 : i32
    return %arg0, %arg2 : i32, i32
  }
  func.func @transform_1(%arg0: i32, %arg1: i32, %arg2: i32) -> (i32, i32) {
    %c0_i32 = arith.constant 0 : i32
    return %arg2, %arg1 : i32, i32
  }
  func.func @transform_2(%arg0: i32, %arg1: i32, %arg2: i32) -> (i32, i32) {
    %c0_i32 = arith.constant 0 : i32
    %c0_i32_0 = arith.constant 0 : i32
    return %c0_i32, %arg1 : i32, i32
  }
  func.func @transform_3(%arg0: i32, %arg1: i32, %arg2: i32) -> (i32, i32) {
    %c0_i32 = arith.constant 0 : i32
    return %arg0, %arg1 : i32, i32
  }
}

</mosaic_0001>

<llo_original>
// kernel: encoder_decoder_forward.5
$region0: #{encoder_decoder_forward.5}
  #allocation0 [shape = 'u32[]', space=smem, size = 0x4, offset = 0x4, fixed_abs, tag = 'smem constant byte address 0x4 - core index']
  #allocation1 [shape = 'u32[72,128]{1,0:T(1,128)}', space=vmem, size = 0x9000, scoped, tag = 'internal scratch']
  %s0 = inlined_call_operand.vmem [shape: bf16[2,8,32], index: 0, kind: input, shape index: {}]
  %s1 = inlined_call_operand.vmem [shape: f32[2,1,8], index: 1, kind: input, shape index: {}]
  %s2 = inlined_call_operand.vmem [shape: bf16[32,96], index: 2, kind: input, shape index: {}]
  %s3 = inlined_call_operand.vmem [shape: f32[1,96], index: 3, kind: input, shape index: {}]
  %s4 = inlined_call_operand.vmem [shape: bf16[32,32], index: 4, kind: input, shape index: {}]
  %s5 = inlined_call_operand.vmem [shape: f32[1,32], index: 5, kind: input, shape index: {}]
  %s6 = inlined_call_operand.vmem [shape: f32[1,32], index: 6, kind: input, shape index: {}]
  %s7 = inlined_call_operand.vmem [shape: f32[1,32], index: 7, kind: input, shape index: {}]
  %s8 = inlined_call_operand.vmem [shape: bf16[32,64], index: 8, kind: input, shape index: {}]
  %s9 = inlined_call_operand.vmem [shape: f32[1,64], index: 9, kind: input, shape index: {}]
  %s10 = inlined_call_operand.vmem [shape: bf16[64,32], index: 10, kind: input, shape index: {}]
  %s11 = inlined_call_operand.vmem [shape: f32[1,32], index: 11, kind: input, shape index: {}]
  %s12 = inlined_call_operand.vmem [shape: f32[1,32], index: 12, kind: input, shape index: {}]
  %s13 = inlined_call_operand.vmem [shape: f32[1,32], index: 13, kind: input, shape index: {}]
  %s14 = inlined_call_operand.vmem [shape: bf16[2,8,32], index: 14, kind: output, shape index: {}]
  %s15 = sld [smem:[#allocation0]]
  $region89: #{encoder_decoder_forward.5} parent=0
    _
  %s17 = ssub.s32 1, %s15
  %s18 = scalar_select 0, %s17, %s15
  loop: start=0, step=1, limit=4
  $region2: #{encoder_decoder_forward.5} parent=0 // loop_pre_header
    _
  $region3: #{encoder_decoder_forward.5} parent=0 // loop_header
    %s20 = sphi 0, %s24
    %p21 = scmp.ge.s32.totalorder %s20, 4
    %s30 = sphi 0, %s32
    %s33 = sphi 0, %s30
    %s34 = sphi 0, %s33
    %s50 = sphi 0, %s34
    %s56 = sphi 0, %s58
    %s59 = sphi 0, %s56
    %s60 = sphi 0, %s59
    %s76 = sphi 0, %s60
    %s80 = sphi 0, %s80
    %s82 = sphi 0, %s80
    %s83 = sphi 0, %s82
    %s97 = sphi 0, %s83
    %s101 = sphi 0, %s101
    %s103 = sphi 0, %s101
    %s104 = sphi 0, %s103
    %s118 = sphi 0, %s104
    %s122 = sphi 0, %s122
    %s124 = sphi 0, %s122
    %s125 = sphi 0, %s124
    %s139 = sphi 0, %s125
    %s143 = sphi 0, %s143
    %s145 = sphi 0, %s143
    %s146 = sphi 0, %s145
    %s160 = sphi 0, %s146
    %s164 = sphi 0, %s164
    %s166 = sphi 0, %s164
    %s167 = sphi 0, %s166
    %s181 = sphi 0, %s167
    %s185 = sphi 0, %s185
    %s187 = sphi 0, %s185
    %s188 = sphi 0, %s187
    %s202 = sphi 0, %s188
    %s206 = sphi 0, %s206
    %s208 = sphi 0, %s206
    %s209 = sphi 0, %s208
    %s223 = sphi 0, %s209
    %s227 = sphi 0, %s227
    %s229 = sphi 0, %s227
    %s230 = sphi 0, %s229
    %s244 = sphi 0, %s230
    %s248 = sphi 0, %s248
    %s250 = sphi 0, %s248
    %s251 = sphi 0, %s250
    %s265 = sphi 0, %s251
    %s269 = sphi 0, %s269
    %s271 = sphi 0, %s269
    %s272 = sphi 0, %s271
    %s286 = sphi 0, %s272
    %s290 = sphi 0, %s290
    %s292 = sphi 0, %s290
    %s293 = sphi 0, %s292
    %s307 = sphi 0, %s293
    %s311 = sphi 0, %s311
    %s313 = sphi 0, %s311
    %s314 = sphi 0, %s313
    %s328 = sphi 0, %s314
    %s334 = sphi 0, %s336
    %s337 = sphi 0, %s334
    %s338 = sphi 0, %s337
    %s354 = sphi 0, %s338
  $region4: #{encoder_decoder_forward.5} parent=0 // loop_header_branch
    %23 = sbr.rel (%p21) target = $region8
  $region5: #{encoder_decoder_forward.5} parent=0 // loop_body
    %s25 = ssub.s32 %s20, 1
    %s26 = ssub.s32 %s20, 2
    %s27 = sadd.s32 %s20, 1
    %s28 = ssub.s32 %s20, %s27
    %p29 = scmp.eq.s32.totalorder %s28, 0
    %s31 = sadd.s32 %s30, 1
    %s32 = scalar_select %p29, %s30, %s31
    %p35 = pneg %p29
    %p36 = scmp.eq.s32.totalorder %s20, 1
    %p37 = por %p35, %p36
    %p38 = scmp.ne.s32.totalorder %s30, %s33
    %p39 = scmp.eq.s32.totalorder %s20, 0
    %p40 = por %p38, %p39
    %p41 = scmp.ne.s32.totalorder %s30, %s33
    %p42 = scmp.eq.s32.totalorder %s25, 1
    %p43 = por %p41, %p42
    %p44 = scmp.ne.s32.totalorder %s33, %s34
    %p45 = scmp.eq.s32.totalorder %s25, 0
    %p46 = por %p44, %p45
    %p47 = scmp.ne.s32.totalorder %s33, %s34
    %p48 = scmp.eq.s32.totalorder %s26, 1
    %p49 = por %p47, %p48
    %p51 = scmp.ne.s32.totalorder %s34, %s50
    %p52 = scmp.eq.s32.totalorder %s26, 0
    %p53 = por %p51, %p52
    %s54 = ssub.s32 %s20, %s27
    %p55 = scmp.eq.s32.totalorder %s54, 0
    %s57 = sadd.s32 %s56, 1
    %s58 = scalar_select %p55, %s56, %s57
    %p61 = pneg %p55
    %p62 = scmp.eq.s32.totalorder %s20, 1
    %p63 = por %p61, %p62
    %p64 = scmp.ne.s32.totalorder %s56, %s59
    %p65 = scmp.eq.s32.totalorder %s20, 0
    %p66 = por %p64, %p65
    %p67 = scmp.ne.s32.totalorder %s56, %s59
    %p68 = scmp.eq.s32.totalorder %s25, 1
    %p69 = por %p67, %p68
    %p70 = scmp.ne.s32.totalorder %s59, %s60
    %p71 = scmp.eq.s32.totalorder %s25, 0
    %p72 = por %p70, %p71
    %p73 = scmp.ne.s32.totalorder %s59, %s60
    %p74 = scmp.eq.s32.totalorder %s26, 1
    %p75 = por %p73, %p74
    %p77 = scmp.ne.s32.totalorder %s60, %s76
    %p78 = scmp.eq.s32.totalorder %s26, 0
    %p79 = por %p77, %p78
    %s81 = sadd.s32 %s80, 1
    %p84 = scmp.eq.s32.totalorder %s20, 1
    %p85 = scmp.ne.s32.totalorder %s80, %s82
    %p86 = scmp.eq.s32.totalorder %s20, 0
    %p87 = por %p85, %p86
    %p88 = scmp.ne.s32.totalorder %s80, %s82
    %p89 = scmp.eq.s32.totalorder %s25, 1
    %p90 = por %p88, %p89
    %p91 = scmp.ne.s32.totalorder %s82, %s83
    %p92 = scmp.eq.s32.totalorder %s25, 0
    %p93 = por %p91, %p92
    %p94 = scmp.ne.s32.totalorder %s82, %s83
    %p95 = scmp.eq.s32.totalorder %s26, 1
    %p96 = por %p94, %p95
    %p98 = scmp.ne.s32.totalorder %s83, %s97
    %p99 = scmp.eq.s32.totalorder %s26, 0
    %p100 = por %p98, %p99
    %s102 = sadd.s32 %s101, 1
    %p105 = scmp.eq.s32.totalorder %s20, 1
    %p106 = scmp.ne.s32.totalorder %s101, %s103
    %p107 = scmp.eq.s32.totalorder %s20, 0
    %p108 = por %p106, %p107
    %p109 = scmp.ne.s32.totalorder %s101, %s103
    %p110 = scmp.eq.s32.totalorder %s25, 1
    %p111 = por %p109, %p110
    %p112 = scmp.ne.s32.totalorder %s103, %s104
    %p113 = scmp.eq.s32.totalorder %s25, 0
    %p114 = por %p112, %p113
    %p115 = scmp.ne.s32.totalorder %s103, %s104
    %p116 = scmp.eq.s32.totalorder %s26, 1
    %p117 = por %p115, %p116
    %p119 = scmp.ne.s32.totalorder %s104, %s118
    %p120 = scmp.eq.s32.totalorder %s26, 0
    %p121 = por %p119, %p120
    %s123 = sadd.s32 %s122, 1
    %p126 = scmp.eq.s32.totalorder %s20, 1
    %p127 = scmp.ne.s32.totalorder %s122, %s124
    %p128 = scmp.eq.s32.totalorder %s20, 0
    %p129 = por %p127, %p128
    %p130 = scmp.ne.s32.totalorder %s122, %s124
    %p131 = scmp.eq.s32.totalorder %s25, 1
    %p132 = por %p130, %p131
    %p133 = scmp.ne.s32.totalorder %s124, %s125
    %p134 = scmp.eq.s32.totalorder %s25, 0
    %p135 = por %p133, %p134
    %p136 = scmp.ne.s32.totalorder %s124, %s125
    %p137 = scmp.eq.s32.totalorder %s26, 1
    %p138 = por %p136, %p137
    %p140 = scmp.ne.s32.totalorder %s125, %s139
    %p141 = scmp.eq.s32.totalorder %s26, 0
    %p142 = por %p140, %p141
    %s144 = sadd.s32 %s143, 1
    %p147 = scmp.eq.s32.totalorder %s20, 1
    %p148 = scmp.ne.s32.totalorder %s143, %s145
    %p149 = scmp.eq.s32.totalorder %s20, 0
    %p150 = por %p148, %p149
    %p151 = scmp.ne.s32.totalorder %s143, %s145
    %p152 = scmp.eq.s32.totalorder %s25, 1
    %p153 = por %p151, %p152
    %p154 = scmp.ne.s32.totalorder %s145, %s146
    %p155 = scmp.eq.s32.totalorder %s25, 0
    %p156 = por %p154, %p155
    %p157 = scmp.ne.s32.totalorder %s145, %s146
    %p158 = scmp.eq.s32.totalorder %s26, 1
    %p159 = por %p157, %p158
    %p161 = scmp.ne.s32.totalorder %s146, %s160
    %p162 = scmp.eq.s32.totalorder %s26, 0
    %p163 = por %p161, %p162
    %s165 = sadd.s32 %s164, 1
    %p168 = scmp.eq.s32.totalorder %s20, 1
    %p169 = scmp.ne.s32.totalorder %s164, %s166
    %p170 = scmp.eq.s32.totalorder %s20, 0
    %p171 = por %p169, %p170
    %p172 = scmp.ne.s32.totalorder %s164, %s166
    %p173 = scmp.eq.s32.totalorder %s25, 1
    %p174 = por %p172, %p173
    %p175 = scmp.ne.s32.totalorder %s166, %s167
    %p176 = scmp.eq.s32.totalorder %s25, 0
    %p177 = por %p175, %p176
    %p178 = scmp.ne.s32.totalorder %s166, %s167
    %p179 = scmp.eq.s32.totalorder %s26, 1
    %p180 = por %p178, %p179
    %p182 = scmp.ne.s32.totalorder %s167, %s181
    %p183 = scmp.eq.s32.totalorder %s26, 0
    %p184 = por %p182, %p183
    %s186 = sadd.s32 %s185, 1
    %p189 = scmp.eq.s32.totalorder %s20, 1
    %p190 = scmp.ne.s32.totalorder %s185, %s187
    %p191 = scmp.eq.s32.totalorder %s20, 0
    %p192 = por %p190, %p191
    %p193 = scmp.ne.s32.totalorder %s185, %s187
    %p194 = scmp.eq.s32.totalorder %s25, 1
    %p195 = por %p193, %p194
    %p196 = scmp.ne.s32.totalorder %s187, %s188
    %p197 = scmp.eq.s32.totalorder %s25, 0
    %p198 = por %p196, %p197
    %p199 = scmp.ne.s32.totalorder %s187, %s188
    %p200 = scmp.eq.s32.totalorder %s26, 1
    %p201 = por %p199, %p200
    %p203 = scmp.ne.s32.totalorder %s188, %s202
    %p204 = scmp.eq.s32.totalorder %s26, 0
    %p205 = por %p203, %p204
    %s207 = sadd.s32 %s206, 1
    %p210 = scmp.eq.s32.totalorder %s20, 1
    %p211 = scmp.ne.s32.totalorder %s206, %s208
    %p212 = scmp.eq.s32.totalorder %s20, 0
    %p213 = por %p211, %p212
    %p214 = scmp.ne.s32.totalorder %s206, %s208
    %p215 = scmp.eq.s32.totalorder %s25, 1
    %p216 = por %p214, %p215
    %p217 = scmp.ne.s32.totalorder %s208, %s209
    %p218 = scmp.eq.s32.totalorder %s25, 0
    %p219 = por %p217, %p218
    %p220 = scmp.ne.s32.totalorder %s208, %s209
    %p221 = scmp.eq.s32.totalorder %s26, 1
    %p222 = por %p220, %p221
    %p224 = scmp.ne.s32.totalorder %s209, %s223
    %p225 = scmp.eq.s32.totalorder %s26, 0
    %p226 = por %p224, %p225
    %s228 = sadd.s32 %s227, 1
    %p231 = scmp.eq.s32.totalorder %s20, 1
    %p232 = scmp.ne.s32.totalorder %s227, %s229
    %p233 = scmp.eq.s32.totalorder %s20, 0
    %p234 = por %p232, %p233
    %p235 = scmp.ne.s32.totalorder %s227, %s229
    %p236 = scmp.eq.s32.totalorder %s25, 1
    %p237 = por %p235, %p236
    %p238 = scmp.ne.s32.totalorder %s229, %s230
    %p239 = scmp.eq.s32.totalorder %s25, 0
    %p240 = por %p238, %p239
    %p241 = scmp.ne.s32.totalorder %s229, %s230
    %p242 = scmp.eq.s32.totalorder %s26, 1
    %p243 = por %p241, %p242
    %p245 = scmp.ne.s32.totalorder %s230, %s244
    %p246 = scmp.eq.s32.totalorder %s26, 0
    %p247 = por %p245, %p246
    %s249 = sadd.s32 %s248, 1
    %p252 = scmp.eq.s32.totalorder %s20, 1
    %p253 = scmp.ne.s32.totalorder %s248, %s250
    %p254 = scmp.eq.s32.totalorder %s20, 0
    %p255 = por %p253, %p254
    %p256 = scmp.ne.s32.totalorder %s248, %s250
    %p257 = scmp.eq.s32.totalorder %s25, 1
    %p258 = por %p256, %p257
    %p259 = scmp.ne.s32.totalorder %s250, %s251
    %p260 = scmp.eq.s32.totalorder %s25, 0
    %p261 = por %p259, %p260
    %p262 = scmp.ne.s32.totalorder %s250, %s251
    %p263 = scmp.eq.s32.totalorder %s26, 1
    %p264 = por %p262, %p263
    %p266 = scmp.ne.s32.totalorder %s251, %s265
    %p267 = scmp.eq.s32.totalorder %s26, 0
    %p268 = por %p266, %p267
    %s270 = sadd.s32 %s269, 1
    %p273 = scmp.eq.s32.totalorder %s20, 1
    %p274 = scmp.ne.s32.totalorder %s269, %s271
    %p275 = scmp.eq.s32.totalorder %s20, 0
    %p276 = por %p274, %p275
    %p277 = scmp.ne.s32.totalorder %s269, %s271
    %p278 = scmp.eq.s32.totalorder %s25, 1
    %p279 = por %p277, %p278
    %p280 = scmp.ne.s32.totalorder %s271, %s272
    %p281 = scmp.eq.s32.totalorder %s25, 0
    %p282 = por %p280, %p281
    %p283 = scmp.ne.s32.totalorder %s271, %s272
    %p284 = scmp.eq.s32.totalorder %s26, 1
    %p285 = por %p283, %p284
    %p287 = scmp.ne.s32.totalorder %s272, %s286
    %p288 = scmp.eq.s32.totalorder %s26, 0
    %p289 = por %p287, %p288
    %s291 = sadd.s32 %s290, 1
    %p294 = scmp.eq.s32.totalorder %s20, 1
    %p295 = scmp.ne.s32.totalorder %s290, %s292
    %p296 = scmp.eq.s32.totalorder %s20, 0
    %p297 = por %p295, %p296
    %p298 = scmp.ne.s32.totalorder %s290, %s292
    %p299 = scmp.eq.s32.totalorder %s25, 1
    %p300 = por %p298, %p299
    %p301 = scmp.ne.s32.totalorder %s292, %s293
    %p302 = scmp.eq.s32.totalorder %s25, 0
    %p303 = por %p301, %p302
    %p304 = scmp.ne.s32.totalorder %s292, %s293
    %p305 = scmp.eq.s32.totalorder %s26, 1
    %p306 = por %p304, %p305
    %p308 = scmp.ne.s32.totalorder %s293, %s307
    %p309 = scmp.eq.s32.totalorder %s26, 0
    %p310 = por %p308, %p309
    %s312 = sadd.s32 %s311, 1
    %p315 = scmp.eq.s32.totalorder %s20, 1
    %p316 = scmp.ne.s32.totalorder %s311, %s313
    %p317 = scmp.eq.s32.totalorder %s20, 0
    %p318 = por %p316, %p317
    %p319 = scmp.ne.s32.totalorder %s311, %s313
    %p320 = scmp.eq.s32.totalorder %s25, 1
    %p321 = por %p319, %p320
    %p322 = scmp.ne.s32.totalorder %s313, %s314
    %p323 = scmp.eq.s32.totalorder %s25, 0
    %p324 = por %p322, %p323
    %p325 = scmp.ne.s32.totalorder %s313, %s314
    %p326 = scmp.eq.s32.totalorder %s26, 1
    %p327 = por %p325, %p326
    %p329 = scmp.ne.s32.totalorder %s314, %s328
    %p330 = scmp.eq.s32.totalorder %s26, 0
    %p331 = por %p329, %p330
    %s332 = ssub.s32 %s20, %s27
    %p333 = scmp.eq.s32.totalorder %s332, 0
    %s335 = sadd.s32 %s334, 1
    %s336 = scalar_select %p333, %s334, %s335
    %p339 = pneg %p333
    %p340 = scmp.eq.s32.totalorder %s20, 1
    %p341 = por %p339, %p340
    %p342 = scmp.ne.s32.totalorder %s334, %s337
    %p343 = scmp.eq.s32.totalorder %s20, 0
    %p344 = por %p342, %p343
    %p345 = scmp.ne.s32.totalorder %s334, %s337
    %p346 = scmp.eq.s32.totalorder %s25, 1
    %p347 = por %p345, %p346
    %p348 = scmp.ne.s32.totalorder %s337, %s338
    %p349 = scmp.eq.s32.totalorder %s25, 0
    %p350 = por %p348, %p349
    %p351 = scmp.ne.s32.totalorder %s337, %s338
    %p352 = scmp.eq.s32.totalorder %s26, 1
    %p353 = por %p351, %p352
    %p355 = scmp.ne.s32.totalorder %s338, %s354
    %p356 = scmp.eq.s32.totalorder %s26, 0
    %p357 = por %p355, %p356
    %p358 = scmp.le.s32.totalorder 1, %s20
    %p359 = scmp.lt.s32.totalorder %s20, 3
    %p360 = pnand %p358, %p359
    %p361 = pneg %p360
    // Predicated region
    $region9: #{encoder_decoder_forward.5} parent=5 // pred_check
      _
    $region10: #{encoder_decoder_forward.5} parent=5 // pred_check_branch
      %363 = sbr.rel (%p360) target = $region12
    $region11: #{encoder_decoder_forward.5} parent=5 // pred_region
      %s364 = ssub.s32 %s20, 1
      // Predicated region
      $region13: #{encoder_decoder_forward.5} parent=11 // pred_check
        %p365 = pneg %p93
      $region14: #{encoder_decoder_forward.5} parent=11 // pred_check_branch
        %367 = sbr.rel (%p365) target = $region16
      $region15: #{encoder_decoder_forward.5} parent=11 // pred_region
        _
      $region16: #{encoder_decoder_forward.5} parent=11 // pred_fallthru
        _
      // Predicated region
      $region17: #{encoder_decoder_forward.5} parent=11 // pred_check
        %p368 = pneg %p114
      $region18: #{encoder_decoder_forward.5} parent=11 // pred_check_branch
        %370 = sbr.rel (%p368) target = $region20
      $region19: #{encoder_decoder_forward.5} parent=11 // pred_region
        _
      $region20: #{encoder_decoder_forward.5} parent=11 // pred_fallthru
        _
      // Predicated region
      $region21: #{encoder_decoder_forward.5} parent=11 // pred_check
        %p371 = pneg %p135
      $region22: #{encoder_decoder_forward.5} parent=11 // pred_check_branch
        %373 = sbr.rel (%p371) target = $region24
      $region23: #{encoder_decoder_forward.5} parent=11 // pred_region
        _
      $region24: #{encoder_decoder_forward.5} parent=11 // pred_fallthru
        _
      // Predicated region
      $region25: #{encoder_decoder_forward.5} parent=11 // pred_check
        %p374 = pneg %p156
      $region26: #{encoder_decoder_forward.5} parent=11 // pred_check_branch
        %376 = sbr.rel (%p374) target = $region28
      $region27: #{encoder_decoder_forward.5} parent=11 // pred_region
        _
      $region28: #{encoder_decoder_forward.5} parent=11 // pred_fallthru
        _
      // Predicated region
      $region29: #{encoder_decoder_forward.5} parent=11 // pred_check
        %p377 = pneg %p177
      $region30: #{encoder_decoder_forward.5} parent=11 // pred_check_branch
        %379 = sbr.rel (%p377) target = $region32
      $region31: #{encoder_decoder_forward.5} parent=11 // pred_region
        _
      $region32: #{encoder_decoder_forward.5} parent=11 // pred_fallthru
        _
      // Predicated region
      $region33: #{encoder_decoder_forward.5} parent=11 // pred_check
        %p380 = pneg %p198
      $region34: #{encoder_decoder_forward.5} parent=11 // pred_check_branch
        %382 = sbr.rel (%p380) target = $region36
      $region35: #{encoder_decoder_forward.5} parent=11 // pred_region
        _
      $region36: #{encoder_decoder_forward.5} parent=11 // pred_fallthru
        _
      // Predicated region
      $region37: #{encoder_decoder_forward.5} parent=11 // pred_check
        %p383 = pneg %p219
      $region38: #{encoder_decoder_forward.5} parent=11 // pred_check_branch
        %385 = sbr.rel (%p383) target = $region40
      $region39: #{encoder_decoder_forward.5} parent=11 // pred_region
        _
      $region40: #{encoder_decoder_forward.5} parent=11 // pred_fallthru
        _
      // Predicated region
      $region41: #{encoder_decoder_forward.5} parent=11 // pred_check
        %p386 = pneg %p240
      $region42: #{encoder_decoder_forward.5} parent=11 // pred_check_branch
        %388 = sbr.rel (%p386) target = $region44
      $region43: #{encoder_decoder_forward.5} parent=11 // pred_region
        _
      $region44: #{encoder_decoder_forward.5} parent=11 // pred_fallthru
        _
      // Predicated region
      $region45: #{encoder_decoder_forward.5} parent=11 // pred_check
        %p389 = pneg %p261
      $region46: #{encoder_decoder_forward.5} parent=11 // pred_check_branch
        %391 = sbr.rel (%p389) target = $region48
      $region47: #{encoder_decoder_forward.5} parent=11 // pred_region
        _
      $region48: #{encoder_decoder_forward.5} parent=11 // pred_fallthru
        _
      // Predicated region
      $region49: #{encoder_decoder_forward.5} parent=11 // pred_check
        %p392 = pneg %p282
      $region50: #{encoder_decoder_forward.5} parent=11 // pred_check_branch
        %394 = sbr.rel (%p392) target = $region52
      $region51: #{encoder_decoder_forward.5} parent=11 // pred_region
        _
      $region52: #{encoder_decoder_forward.5} parent=11 // pred_fallthru
        _
      // Predicated region
      $region53: #{encoder_decoder_forward.5} parent=11 // pred_check
        %p395 = pneg %p303
      $region54: #{encoder_decoder_forward.5} parent=11 // pred_check_branch
        %397 = sbr.rel (%p395) target = $region56
      $region55: #{encoder_decoder_forward.5} parent=11 // pred_region
        _
      $region56: #{encoder_decoder_forward.5} parent=11 // pred_fallthru
        _
      // Predicated region
      $region57: #{encoder_decoder_forward.5} parent=11 // pred_check
        %p398 = pneg %p324
      $region58: #{encoder_decoder_forward.5} parent=11 // pred_check_branch
        %400 = sbr.rel (%p398) target = $region60
      $region59: #{encoder_decoder_forward.5} parent=11 // pred_region
        _
      $region60: #{encoder_decoder_forward.5} parent=11 // pred_fallthru
        _
    $region12: #{encoder_decoder_forward.5} parent=5 // pred_fallthru
      _
    %p401 = scmp.lt.s32.totalorder %s20, 2
    // Predicated region
    $region61: #{encoder_decoder_forward.5} parent=5 // pred_check
      %p402 = pneg %p401
    $region62: #{encoder_decoder_forward.5} parent=5 // pred_check_branch
      %404 = sbr.rel (%p402) target = $region64
    $region63: #{encoder_decoder_forward.5} parent=5 // pred_region
      // Predicated region
      $region65: #{encoder_decoder_forward.5} parent=63 // pred_check
        %p405 = pneg %p40
      $region66: #{encoder_decoder_forward.5} parent=63 // pred_check_branch
        %407 = sbr.rel (%p405) target = $region68
      $region67: #{encoder_decoder_forward.5} parent=63 // pred_region
        %p408 = scmp.lt.s32.totalorder %s20, 1
        %s409 = scalar_select %p408, %s20, 1
        %s410 = smul.addr %s409, 4
        %s411 = scalar_lea.vmem %s0, %s410
      $region68: #{encoder_decoder_forward.5} parent=63 // pred_fallthru
        _
      // Predicated region
      $region69: #{encoder_decoder_forward.5} parent=63 // pred_check
        %p412 = pneg %p66
      $region70: #{encoder_decoder_forward.5} parent=63 // pred_check_branch
        %414 = sbr.rel (%p412) target = $region72
      $region71: #{encoder_decoder_forward.5} parent=63 // pred_region
        %p415 = scmp.lt.s32.totalorder %s20, 1
        %s416 = scalar_select %p415, %s20, 1
        %s417 = scalar_lea.vmem %s1, %s416
      $region72: #{encoder_decoder_forward.5} parent=63 // pred_fallthru
        _
    $region64: #{encoder_decoder_forward.5} parent=5 // pred_fallthru
      _
    %p418 = scmp.le.s32.totalorder 1, %s20
    %p419 = scmp.lt.s32.totalorder %s20, 3
    %p420 = pnand %p418, %p419
    %p421 = pneg %p420
    // Predicated region
    $region73: #{encoder_decoder_forward.5} parent=5 // pred_check
      _
    $region74: #{encoder_decoder_forward.5} parent=5 // pred_check_branch
      %423 = sbr.rel (%p420) target = $region76
    $region75: #{encoder_decoder_forward.5} parent=5 // pred_region
      %s424 = ssub.s32 %s20, 1
      %p425 = scmp.lt.s32.totalorder %s25, 1
      %s426 = scalar_select %p425, %s25, 1
      %s427 = smul.addr %s426, 4
      %s428 = scalar_lea.vmem %s0, %s427
      %p429 = pneg %p46
      %p430 = pneg %p43
      %p431 = scmp.lt.s32.totalorder %s25, 1
      %s432 = scalar_select %p431, %s25, 1
      %s433 = scalar_lea.vmem %s1, %s432
      %p434 = pneg %p72
      %p435 = pneg %p69
      %p436 = pneg %p93
      %p437 = pneg %p90
      %p438 = pneg %p114
      %p439 = pneg %p111
      %p440 = pneg %p135
      %p441 = pneg %p132
      %p442 = pneg %p156
      %p443 = pneg %p153
      %p444 = pneg %p177
      %p445 = pneg %p174
      %p446 = pneg %p198
      %p447 = pneg %p195
      %p448 = pneg %p219
      %p449 = pneg %p216
      %p450 = pneg %p240
      %p451 = pneg %p237
      %p452 = pneg %p261
      %p453 = pneg %p258
      %p454 = pneg %p282
      %p455 = pneg %p279
      %p456 = pneg %p303
      %p457 = pneg %p300
      %p458 = pneg %p324
      %p459 = pneg %p321
      %p460 = pneg %p350
      %p461 = pneg %p347
      %p462 = scmp.lt.s32.totalorder %s25, 1
      %s463 = scalar_select %p462, %s25, 1
      %s464 = smul.addr %s463, 4
      %s465 = scalar_lea.vmem %s14, %s464
      %p466 = scmp.lt.s32.totalorder %s25, 1
      %s467 = scalar_select %p466, %s25, 1
      %s468 = smul.addr %s467, 4
      %s469 = scalar_lea.vmem %s0, %s468
      %p470 = scmp.lt.s32.totalorder %s25, 1
      %s471 = scalar_select %p470, %s25, 1
      %s472 = scalar_lea.vmem %s1, %s471
      %p473 = scmp.lt.s32.totalorder %s25, 1
      %s474 = scalar_select %p473, %s25, 1
      %s475 = smul.addr %s474, 4
      %s476 = scalar_lea.vmem %s14, %s475
      %v478 = vld [vmem:[%s469] sm:$0xf]
      %v479 = vunpack.c.l.bf16 %v478
      %v480 = vld [vmem:[%s472] sm:$0x1]
      %vm481 = vcmp.eq.f32.partialorder %v480, 0.0
      %v482 = vsel %vm481, -10000.0, 0.0
      %v483 = vld [vmem:[%s2] sm:$0xf]
      %v484 = vld [vmem:[%s2 + $0x4] sm:$0xf]
      %v485 = vld [vmem:[%s2 + $0x8] sm:$0xf]
      %v486 = vld [vmem:[%s2 + $0xc] sm:$0xf]
      %v487 = vld [vmem:[%s3] sm:$0x1]
      %v489 = vperm.slane %v487, 0
      %v495 = vunpack.c.l.b16 %v483
      %v496 = vunpack.c.l.b16 %v484
      %v497 = vunpack.c.l.b16 %v485
      %v498 = vunpack.c.l.b16 %v486
      %v499 = vpack.c.b16 %v496, %v495
      %v500 = vpack.c.b16 %v498, %v497
      %vm503 = vcmask 261120
      %v505 = vsel %vm503, %v478, 0
      %507 = vmatpush.bf16.msra.mxu0 0
      %508 = vmatpush.bf16.msra.mxu0 0
      %509 = vmatpush.bf16.msra.mxu0 0
      %510 = vmatpush.bf16.msra.mxu0 0
      %511 = vmatpush.bf16.msra.mxu0 0
      %512 = vmatpush.bf16.msra.mxu0 0
      %513 = vmatpush.bf16.msra.mxu0 %v500
      %514 = vmatpush.bf16.msra.mxu0 %v499
      %515 = vmatmul.bf16.gmra.mxu0 %v505
      %v516 = vpop.f32.mrf.mxu0
      %v517 = vadd.f32 %v489, %v516
      %v518 = vpop.f32.mrf.mxu0
      %519 = vdwg.mxu0
      %v520 = vmul.f32 %v517, 0.35355338
      %v521 = vpack.c.bf16 %v520, %v520
      %v522 = vpack.c.bf16 %v517, %v517
      %v524 = vperm.slane %v482, 0
      %v527 = vunpack.c.l.b16 %v522
      %v528 = vpack.c.b16 %v527, %v527
      %529 = vrot.lane.b32.xlu0 %v528, 96
      %v530 = vpop.permute.xlu0 %529
      %vm531 = vcmask 64512
      %v533 = vsel %vm531, %v521, 0
      %v536 = vsel %vm531, %v530, 0
      %538 = vmatpush.bf16.xpose.msra.mxu0 0
      %539 = vmatpush.bf16.xpose.msra.mxu0 0
      %540 = vmatpush.bf16.xpose.msra.mxu0 0
      %541 = vmatpush.bf16.xpose.msra.mxu0 0
      %542 = vmatpush.bf16.xpose.msra.mxu0 0
      %543 = vmatpush.bf16.xpose.msra.mxu0 0
      %544 = vmatpush.bf16.xpose.msra.mxu0 0
      %545 = vmatpush.bf16.xpose.msra.mxu0 %v536
      %546 = vmatmul.bf16.gmra.mxu0 %v533
      %v547 = vpop.f32.mrf.mxu0
      %v548 = vadd.f32 %v524, %v547
      %v549 = vpop.f32.mrf.mxu0
      %550 = vdwg.mxu0
      %v551 = vsel %vm531, %v548, -inf
      %552 = vmax.xlane.f32.xlu0 %v551
      %v553 = vpop.xlane.xlu0 %552
      %v554 = vsub.f32 %v548, %v553
      %v555 = vmul.f32 %v554, 1.442695
      %v556 = vpow.pop %v555
      %v557 = vsel %vm531, %v556, 0.0
      %558 = vadd.xlane.f32.xlu0 %v557
      %v559 = vpop.xlane.xlu0 %558
      %v560 = vrcp.pop %v559
      %v561 = vmul.f32 %v556, %v560
      %v562 = vpack.c.bf16 %v561, %v561
      %563 = vrot.lane.b32.xlu0 %v528, 64
      %v564 = vpop.permute.xlu0 %563
      %v566 = vsel %vm531, %v562, 0
      %vm568 = vcmask 1043456
      %v570 = vsel %vm568, %v564, 0
      %572 = vmatpush.bf16.msra.mxu0 0
      %573 = vmatpush.bf16.msra.mxu0 0
      %574 = vmatpush.bf16.msra.mxu0 0
      %575 = vmatpush.bf16.msra.mxu0 0
      %576 = vmatpush.bf16.msra.mxu0 0
      %577 = vmatpush.bf16.msra.mxu0 0
      %578 = vmatpush.bf16.msra.mxu0 0
      %579 = vmatpush.bf16.msra.mxu0 %v570
      %580 = vmatmul.bf16.gmra.mxu0 %v566
      %v581 = vpop.f32.mrf.mxu0
      %v582 = vadd.f32 0.0, %v581
      %v583 = vpop.f32.mrf.mxu0
      %584 = vdwg.mxu0
      %v586 = vunpack.c.l.b16 %v521
      %v587 = vpack.c.b16 %v586, %v586
      %588 = vrot.lane.b32.xlu0 %v587, 120
      %v589 = vpop.permute.xlu0 %588
      %590 = vrot.lane.b32.xlu0 %v528, 88
      %v591 = vpop.permute.xlu0 %590
      %v593 = vsel %vm531, %v589, 0
      %v596 = vsel %vm531, %v591, 0
      %598 = vmatpush.bf16.xpose.msra.mxu0 0
      %599 = vmatpush.bf16.xpose.msra.mxu0 0
      %600 = vmatpush.bf16.xpose.msra.mxu0 0
      %601 = vmatpush.bf16.xpose.msra.mxu0 0
      %602 = vmatpush.bf16.xpose.msra.mxu0 0
      %603 = vmatpush.bf16.xpose.msra.mxu0 0
      %604 = vmatpush.bf16.xpose.msra.mxu0 0
      %605 = vmatpush.bf16.xpose.msra.mxu0 %v596
      %606 = vmatmul.bf16.gmra.mxu0 %v593
      %v607 = vpop.f32.mrf.mxu0
      %v608 = vadd.f32 %v524, %v607
      %v609 = vpop.f32.mrf.mxu0
      %610 = vdwg.mxu0
      %v611 = vsel %vm531, %v608, -inf
      %612 = vmax.xlane.f32.xlu0 %v611
      %v613 = vpop.xlane.xlu0 %612
      %v614 = vsub.f32 %v608, %v613
      %v615 = vmul.f32 %v614, 1.442695
      %v616 = vpow.pop %v615
      %v617 = vsel %vm531, %v616, 0.0
      %618 = vadd.xlane.f32.xlu0 %v617
      %v619 = vpop.xlane.xlu0 %618
      %v620 = vrcp.pop %v619
      %v621 = vmul.f32 %v616, %v620
      %v622 = vpack.c.bf16 %v621, %v621
      %623 = vrot.lane.b32.xlu0 %v528, 56
      %v624 = vpop.permute.xlu0 %623
      %v626 = vsel %vm531, %v622, 0
      %v629 = vsel %vm568, %v624, 0
      %631 = vmatpush.bf16.msra.mxu0 0
      %632 = vmatpush.bf16.msra.mxu0 0
      %633 = vmatpush.bf16.msra.mxu0 0
      %634 = vmatpush.bf16.msra.mxu0 0
      %635 = vmatpush.bf16.msra.mxu0 0
      %636 = vmatpush.bf16.msra.mxu0 0
      %637 = vmatpush.bf16.msra.mxu0 0
      %638 = vmatpush.bf16.msra.mxu0 %v629
      %639 = vmatmul.bf16.gmra.mxu0 %v626
      %v640 = vpop.f32.mrf.mxu0
      %v641 = vadd.f32 0.0, %v640
      %v642 = vpop.f32.mrf.mxu0
      %643 = vdwg.mxu0
      %644 = vrot.lane.b32.xlu0 %v587, 112
      %v645 = vpop.permute.xlu0 %644
      %646 = vrot.lane.b32.xlu0 %v528, 80
      %v647 = vpop.permute.xlu0 %646
      %v649 = vsel %vm531, %v645, 0
      %v652 = vsel %vm531, %v647, 0
      %654 = vmatpush.bf16.xpose.msra.mxu0 0
      %655 = vmatpush.bf16.xpose.msra.mxu0 0
      %656 = vmatpush.bf16.xpose.msra.mxu0 0
      %657 = vmatpush.bf16.xpose.msra.mxu0 0
      %658 = vmatpush.bf16.xpose.msra.mxu0 0
      %659 = vmatpush.bf16.xpose.msra.mxu0 0
      %660 = vmatpush.bf16.xpose.msra.mxu0 0
      %661 = vmatpush.bf16.xpose.msra.mxu0 %v652
      %662 = vmatmul.bf16.gmra.mxu0 %v649
      %v663 = vpop.f32.mrf.mxu0
      %v664 = vadd.f32 %v524, %v663
      %v665 = vpop.f32.mrf.mxu0
      %666 = vdwg.mxu0
      %v667 = vsel %vm531, %v664, -inf
      %668 = vmax.xlane.f32.xlu0 %v667
      %v669 = vpop.xlane.xlu0 %668
      %v670 = vsub.f32 %v664, %v669
      %v671 = vmul.f32 %v670, 1.442695
      %v672 = vpow.pop %v671
      %v673 = vsel %vm531, %v672, 0.0
      %674 = vadd.xlane.f32.xlu0 %v673
      %v675 = vpop.xlane.xlu0 %674
      %v676 = vrcp.pop %v675
      %v677 = vmul.f32 %v672, %v676
      %v678 = vpack.c.bf16 %v677, %v677
      %679 = vrot.lane.b32.xlu0 %v528, 48
      %v680 = vpop.permute.xlu0 %679
      %v682 = vsel %vm531, %v678, 0
      %v685 = vsel %vm568, %v680, 0
      %687 = vmatpush.bf16.msra.mxu0 0
      %688 = vmatpush.bf16.msra.mxu0 0
      %689 = vmatpush.bf16.msra.mxu0 0
      %690 = vmatpush.bf16.msra.mxu0 0
      %691 = vmatpush.bf16.msra.mxu0 0
      %692 = vmatpush.bf16.msra.mxu0 0
      %693 = vmatpush.bf16.msra.mxu0 0
      %694 = vmatpush.bf16.msra.mxu0 %v685
      %695 = vmatmul.bf16.gmra.mxu0 %v682
      %v696 = vpop.f32.mrf.mxu0
      %v697 = vadd.f32 0.0, %v696
      %v698 = vpop.f32.mrf.mxu0
      %699 = vdwg.mxu0
      %700 = vrot.lane.b32.xlu0 %v587, 104
      %v701 = vpop.permute.xlu0 %700
      %702 = vrot.lane.b32.xlu0 %v528, 72
      %v703 = vpop.permute.xlu0 %702
      %v705 = vsel %vm531, %v701, 0
      %v708 = vsel %vm531, %v703, 0
      %710 = vmatpush.bf16.xpose.msra.mxu0 0
      %711 = vmatpush.bf16.xpose.msra.mxu0 0
      %712 = vmatpush.bf16.xpose.msra.mxu0 0
      %713 = vmatpush.bf16.xpose.msra.mxu0 0
      %714 = vmatpush.bf16.xpose.msra.mxu0 0
      %715 = vmatpush.bf16.xpose.msra.mxu0 0
      %716 = vmatpush.bf16.xpose.msra.mxu0 0
      %717 = vmatpush.bf16.xpose.msra.mxu0 %v708
      %718 = vmatmul.bf16.gmra.mxu0 %v705
      %v719 = vpop.f32.mrf.mxu0
      %v720 = vadd.f32 %v524, %v719
      %v721 = vpop.f32.mrf.mxu0
      %722 = vdwg.mxu0
      %v723 = vsel %vm531, %v720, -inf
      %724 = vmax.xlane.f32.xlu0 %v723
      %v725 = vpop.xlane.xlu0 %724
      %v726 = vsub.f32 %v720, %v725
      %v727 = vmul.f32 %v726, 1.442695
      %v728 = vpow.pop %v727
      %v729 = vsel %vm531, %v728, 0.0
      %730 = vadd.xlane.f32.xlu0 %v729
      %v731 = vpop.xlane.xlu0 %730
      %v732 = vrcp.pop %v731
      %v733 = vmul.f32 %v728, %v732
      %v734 = vpack.c.bf16 %v733, %v733
      %735 = vrot.lane.b32.xlu0 %v528, 40
      %v736 = vpop.permute.xlu0 %735
      %v738 = vsel %vm531, %v734, 0
      %v741 = vsel %vm568, %v736, 0
      %743 = vmatpush.bf16.msra.mxu0 0
      %744 = vmatpush.bf16.msra.mxu0 0
      %745 = vmatpush.bf16.msra.mxu0 0
      %746 = vmatpush.bf16.msra.mxu0 0
      %747 = vmatpush.bf16.msra.mxu0 0
      %748 = vmatpush.bf16.msra.mxu0 0
      %749 = vmatpush.bf16.msra.mxu0 0
      %750 = vmatpush.bf16.msra.mxu0 %v741
      %751 = vmatmul.bf16.gmra.mxu0 %v738
      %v752 = vpop.f32.mrf.mxu0
      %v753 = vadd.f32 0.0, %v752
      %v754 = vpop.f32.mrf.mxu0
      %755 = vdwg.mxu0
      %757 = vrot.lane.b32.xlu0 %v641, 8
      %v758 = vpop.permute.xlu0 %757
      %761 = vrot.lane.b32.xlu0 %v697, 16
      %v762 = vpop.permute.xlu0 %761
      %765 = vrot.lane.b32.xlu0 %v753, 24
      %v766 = vpop.permute.xlu0 %765
      %v768 = vsel %vm531, %v582, %v758
      %vm769 = vcmask 130048
      %v770 = vsel %vm769, %v768, %v762
      %vm771 = vcmask 195584
      %v772 = vsel %vm771, %v770, %v766
      %v773 = vpack.c.bf16 %v772, %v772
      %v774 = vld [vmem:[%s4] sm:$0xf]
      %v775 = vld [vmem:[%s4 + $0x4] sm:$0xf]
      %v776 = vld [vmem:[%s4 + $0x8] sm:$0xf]
      %v777 = vld [vmem:[%s4 + $0xc] sm:$0xf]
      %v778 = vld [vmem:[%s5] sm:$0x1]
      %v780 = vperm.slane %v778, 0
      %v786 = vunpack.c.l.b16 %v774
      %v787 = vunpack.c.l.b16 %v775
      %v788 = vunpack.c.l.b16 %v776
      %v789 = vunpack.c.l.b16 %v777
      %v790 = vpack.c.b16 %v787, %v786
      %v791 = vpack.c.b16 %v789, %v788
      %v795 = vsel %vm503, %v773, 0
      %797 = vmatpush.bf16.msra.mxu0 0
      %798 = vmatpush.bf16.msra.mxu0 0
      %799 = vmatpush.bf16.msra.mxu0 0
      %800 = vmatpush.bf16.msra.mxu0 0
      %801 = vmatpush.bf16.msra.mxu0 0
      %802 = vmatpush.bf16.msra.mxu0 0
      %803 = vmatpush.bf16.msra.mxu0 %v791
      %804 = vmatpush.bf16.msra.mxu0 %v790
      %805 = vmatmul.bf16.gmra.mxu0 %v795
      %v806 = vpop.f32.mrf.mxu0
      %v807 = vadd.f32 %v780, %v806
      %v808 = vpop.f32.mrf.mxu0
      %809 = vdwg.mxu0
      %v810 = vadd.f32 %v807, %v479
      %v811 = vld [vmem:[%s6] sm:$0x1]
      %v812 = vld [vmem:[%s7] sm:$0x1]
      %v813 = vsel %vm503, %v810, 0.0
      %814 = vadd.xlane.f32.xlu0 %v813
      %v815 = vpop.xlane.xlu0 %814
      %v816 = vrcp.pop 32.0
      %v817 = vmul.f32 32.0, %v816
      %v818 = vsub.f32 1.0, %v817
      %v819 = vmul.f32 %v816, %v818
      %v820 = vadd.f32 %v816, %v819
      %vm821 = vweird.f32 %v816
      %v822 = vsel %vm821, %v816, %v820
      %v823 = vmul.f32 %v815, %v822
      %v824 = vsub.f32 %v810, %v823
      %v825 = vmul.f32 %v824, %v824
      %v826 = vsel %vm503, %v825, 0.0
      %827 = vadd.xlane.f32.xlu0 %v826
      %v828 = vpop.xlane.xlu0 %827
      %v829 = vmul.f32 %v828, %v822
      %v830 = vadd.f32 %v829, 1e-12
      %v831 = vrsqrt.pop %v830
      %v832 = vmul.f32 %v831, %v830
      %v833 = vmul.f32 %v832, %v831
      %v834 = vmul.f32 0.5, %v833
      %v835 = vsub.f32 1.5, %v834
      %v836 = vmul.f32 %v831, %v835
      %vm837 = vweird.f32 %v830
      %vm838 = vweird.f32 %v831
      %vm839 = vmor %vm837, %vm838
      %v840 = vsel %vm839, %v831, %v836
      %v841 = vmul.f32 %v824, %v840
      %v843 = vperm.slane %v811, 0
      %v845 = vmul.f32 %v841, %v843
      %v847 = vperm.slane %v812, 0
      %v849 = vadd.f32 %v845, %v847
      %v850 = vpack.c.bf16 %v849, %v849
      %v851 = vld [vmem:[%s8] sm:$0xf]
      %v852 = vld [vmem:[%s8 + $0x4] sm:$0xf]
      %v853 = vld [vmem:[%s8 + $0x8] sm:$0xf]
      %v854 = vld [vmem:[%s8 + $0xc] sm:$0xf]
      %v855 = vld [vmem:[%s9] sm:$0x1]
      %v857 = vperm.slane %v855, 0
      %v863 = vunpack.c.l.b16 %v851
      %v864 = vunpack.c.l.b16 %v852
      %v865 = vunpack.c.l.b16 %v853
      %v866 = vunpack.c.l.b16 %v854
      %v867 = vpack.c.b16 %v864, %v863
      %v868 = vpack.c.b16 %v866, %v865
      %v872 = vsel %vm503, %v850, 0
      %874 = vmatpush.bf16.msra.mxu0 0
      %875 = vmatpush.bf16.msra.mxu0 0
      %876 = vmatpush.bf16.msra.mxu0 0
      %877 = vmatpush.bf16.msra.mxu0 0
      %878 = vmatpush.bf16.msra.mxu0 0
      %879 = vmatpush.bf16.msra.mxu0 0
      %880 = vmatpush.bf16.msra.mxu0 %v868
      %881 = vmatpush.bf16.msra.mxu0 %v867
      %882 = vmatmul.bf16.gmra.mxu0 %v872
      %v883 = vpop.f32.mrf.mxu0
      %v884 = vadd.f32 %v857, %v883
      %v885 = vpop.f32.mrf.mxu0
      %886 = vdwg.mxu0
      %v887 = vmax.f32 %v884, 0.0
      %v888 = vpack.c.bf16 %v887, %v887
      %v889 = vld [vmem:[%s10] sm:$0xf]
      %v890 = vld [vmem:[%s10 + $0x4] sm:$0xf]
      %v891 = vld [vmem:[%s10 + $0x8] sm:$0xf]
      %v892 = vld [vmem:[%s10 + $0xc] sm:$0xf]
      %v893 = vld [vmem:[%s10 + $0x10] sm:$0xf]
      %v894 = vld [vmem:[%s10 + $0x14] sm:$0xf]
      %v895 = vld [vmem:[%s10 + $0x18] sm:$0xf]
      %v896 = vld [vmem:[%s10 + $0x1c] sm:$0xf]
      %v897 = vld [vmem:[%s11] sm:$0x1]
      %v899 = vperm.slane %v897, 0
      %v909 = vunpack.c.l.b16 %v889
      %v910 = vunpack.c.l.b16 %v890
      %v911 = vunpack.c.l.b16 %v891
      %v912 = vunpack.c.l.b16 %v892
      %v913 = vunpack.c.l.b16 %v893
      %v914 = vunpack.c.l.b16 %v894
      %v915 = vunpack.c.l.b16 %v895
      %v916 = vunpack.c.l.b16 %v896
      %v917 = vpack.c.b16 %v910, %v909
      %v918 = vpack.c.b16 %v912, %v911
      %v919 = vpack.c.b16 %v914, %v913
      %v920 = vpack.c.b16 %v916, %v915
      %vm925 = vcmask 523264
      %v927 = vsel %vm925, %v888, 0
      %929 = vmatpush.bf16.msra.mxu0 0
      %930 = vmatpush.bf16.msra.mxu0 0
      %931 = vmatpush.bf16.msra.mxu0 0
      %932 = vmatpush.bf16.msra.mxu0 0
      %933 = vmatpush.bf16.msra.mxu0 %v920
      %934 = vmatpush.bf16.msra.mxu0 %v919
      %935 = vmatpush.bf16.msra.mxu0 %v918
      %936 = vmatpush.bf16.msra.mxu0 %v917
      %937 = vmatmul.bf16.gmra.mxu0 %v927
      %v938 = vpop.f32.mrf.mxu0
      %v939 = vadd.f32 %v899, %v938
      %v940 = vpop.f32.mrf.mxu0
      %941 = vdwg.mxu0
      %v942 = vadd.f32 %v939, %v849
      %v943 = vld [vmem:[%s12] sm:$0x1]
      %v944 = vld [vmem:[%s13] sm:$0x1]
      %v945 = vsel %vm503, %v942, 0.0
      %946 = vadd.xlane.f32.xlu0 %v945
      %v947 = vpop.xlane.xlu0 %946
      %v948 = vmul.f32 %v947, %v822
      %v949 = vsub.f32 %v942, %v948
      %v950 = vmul.f32 %v949, %v949
      %v951 = vsel %vm503, %v950, 0.0
      %952 = vadd.xlane.f32.xlu0 %v951
      %v953 = vpop.xlane.xlu0 %952
      %v954 = vmul.f32 %v953, %v822
      %v955 = vadd.f32 %v954, 1e-12
      %v956 = vrsqrt.pop %v955
      %v957 = vmul.f32 %v956, %v955
      %v958 = vmul.f32 %v957, %v956
      %v959 = vmul.f32 0.5, %v958
      %v960 = vsub.f32 1.5, %v959
      %v961 = vmul.f32 %v956, %v960
      %vm962 = vweird.f32 %v955
      %vm963 = vweird.f32 %v956
      %vm964 = vmor %vm962, %vm963
      %v965 = vsel %vm964, %v956, %v961
      %v966 = vmul.f32 %v949, %v965
      %v968 = vperm.slane %v943, 0
      %v970 = vmul.f32 %v966, %v968
      %v972 = vperm.slane %v944, 0
      %v974 = vadd.f32 %v970, %v972
      %v975 = vpack.c.bf16 %v974, %v974
      %vm976 = vcmask 257024
      %977 = vst.msk [vmem:[%s476] sm:$0xf] %vm976, %v975
      %p978 = scmp.lt.s32.totalorder %s25, 1
      %s979 = scalar_select %p978, %s25, 1
      %s980 = smul.addr %s979, 4
      %s981 = scalar_lea.vmem %s14, %s980
      // Predicated region
      $region77: #{encoder_decoder_forward.5} parent=75 // pred_check
        %p982 = pneg %p347
      $region78: #{encoder_decoder_forward.5} parent=75 // pred_check_branch
        %984 = sbr.rel (%p982) target = $region80
      $region79: #{encoder_decoder_forward.5} parent=75 // pred_region
        _
      $region80: #{encoder_decoder_forward.5} parent=75 // pred_fallthru
        _
    $region76: #{encoder_decoder_forward.5} parent=5 // pred_fallthru
      _
    %p985 = scmp.le.s32.totalorder 2, %s20
    // Predicated region
    $region81: #{encoder_decoder_forward.5} parent=5 // pred_check
      %p986 = pneg %p985
    $region82: #{encoder_decoder_forward.5} parent=5 // pred_check_branch
      %988 = sbr.rel (%p986) target = $region84
    $region83: #{encoder_decoder_forward.5} parent=5 // pred_region
      %s989 = ssub.s32 %s20, 2
      // Predicated region
      $region85: #{encoder_decoder_forward.5} parent=83 // pred_check
        %p990 = pneg %p353
      $region86: #{encoder_decoder_forward.5} parent=83 // pred_check_branch
        %992 = sbr.rel (%p990) target = $region88
      $region87: #{encoder_decoder_forward.5} parent=83 // pred_region
        %p993 = scmp.lt.s32.totalorder %s26, 1
        %s994 = scalar_select %p993, %s26, 1
        %s995 = smul.addr %s994, 4
        %s996 = scalar_lea.vmem %s14, %s995
      $region88: #{encoder_decoder_forward.5} parent=83 // pred_fallthru
        _
    $region84: #{encoder_decoder_forward.5} parent=5 // pred_fallthru
      _
  $region6: #{encoder_decoder_forward.5} parent=0 // loop_footer
    %s24 = sadd.s32 1, %s20
  $region7: #{encoder_decoder_forward.5} parent=0 // loop_footer_branch
    %19 = sbr.rel target = $region3
  $region8: #{encoder_decoder_forward.5} parent=0 // loop_exit
    _

// kernel: encoder_decoder_forward.7
$region0: #{encoder_decoder_forward.7}
  #allocation0 [shape = 'u32[]', space=smem, size = 0x4, offset = 0x4, fixed_abs, tag = 'smem constant byte address 0x4 - core index']
  #allocation1 [shape = 'u32[72,128]{1,0:T(1,128)}', space=vmem, size = 0x9000, scoped, tag = 'internal scratch']
  %s0 = inlined_call_operand.vmem [shape: bf16[2,8,32], index: 0, kind: input, shape index: {}]
  %s1 = inlined_call_operand.vmem [shape: f32[2,1,8], index: 1, kind: input, shape index: {}]
  %s2 = inlined_call_operand.vmem [shape: bf16[32,96], index: 2, kind: input, shape index: {}]
  %s3 = inlined_call_operand.hbm [shape: f32[1,96], index: 3, kind: input, shape index: {}]
  %s4 = inlined_call_operand.vmem [shape: bf16[32,32], index: 4, kind: input, shape index: {}]
  %s5 = inlined_call_operand.hbm [shape: f32[1,32], index: 5, kind: input, shape index: {}]
  %s6 = inlined_call_operand.hbm [shape: f32[1,32], index: 6, kind: input, shape index: {}]
  %s7 = inlined_call_operand.hbm [shape: f32[1,32], index: 7, kind: input, shape index: {}]
  %s8 = inlined_call_operand.vmem [shape: bf16[32,64], index: 8, kind: input, shape index: {}]
  %s9 = inlined_call_operand.hbm [shape: f32[1,64], index: 9, kind: input, shape index: {}]
  %s10 = inlined_call_operand.vmem [shape: bf16[64,32], index: 10, kind: input, shape index: {}]
  %s11 = inlined_call_operand.hbm [shape: f32[1,32], index: 11, kind: input, shape index: {}]
  %s12 = inlined_call_operand.hbm [shape: f32[1,32], index: 12, kind: input, shape index: {}]
  %s13 = inlined_call_operand.hbm [shape: f32[1,32], index: 13, kind: input, shape index: {}]
  %s14 = inlined_call_operand.vmem [shape: bf16[2,8,32], index: 14, kind: output, shape index: {}]
  %s15 = sld [smem:[#allocation0]]
  $region121: #{encoder_decoder_forward.7} parent=0
    _
  %s17 = ssub.s32 1, %s15
  %s18 = scalar_select 0, %s17, %s15
  $region1: #{encoder_decoder_forward.7} parent=0
    #allocation2 [shape = 'u8[512]{0}', space=vmem, size = 0x400, scoped, tag = 'input window, operand 3, single buffered']
    #allocation3 [shape = 's32[2]{0}', space=sflag, size = 0x8, scoped, tag = 'scoped memory for encoder_decoder_forward.7']
    #allocation4 [shape = 'u8[512]{0}', space=vmem, size = 0x400, scoped, tag = 'input window, operand 5, single buffered']
    #allocation5 [shape = 's32[1]{0}', space=sflag, size = 0x4, scoped, tag = 'scoped memory for encoder_decoder_forward.7']
    #allocation6 [shape = 'u8[512]{0}', space=vmem, size = 0x400, scoped, tag = 'input window, operand 6, single buffered']
    #allocation7 [shape = 'u8[512]{0}', space=vmem, size = 0x400, scoped, tag = 'input window, operand 7, single buffered']
    #allocation8 [shape = 's32[1]{0}', space=sflag, size = 0x4, scoped, tag = 'scoped memory for encoder_decoder_forward.7']
    #allocation9 [shape = 'u8[512]{0}', space=vmem, size = 0x400, scoped, tag = 'input window, operand 9, single buffered']
    #allocation10 [shape = 'u8[512]{0}', space=vmem, size = 0x400, scoped, tag = 'input window, operand 11, single buffered']
    #allocation11 [shape = 's32[1]{0}', space=sflag, size = 0x4, scoped, tag = 'scoped memory for encoder_decoder_forward.7']
    #allocation12 [shape = 'u8[512]{0}', space=vmem, size = 0x400, scoped, tag = 'input window, operand 12, single buffered']
    #allocation13 [shape = 'u8[512]{0}', space=vmem, size = 0x400, scoped, tag = 'input window, operand 13, single buffered']
    #allocation14 [shape = 's32[1]{0}', space=sflag, size = 0x4, scoped, tag = 'scoped memory for encoder_decoder_forward.7']
    %19 = vsyncpa [#allocation3], 0
    %20 = vsyncpa [#allocation5], 0
    %21 = vsyncpa [#allocation8], 0
    %22 = vsyncpa [#allocation11], 0
    %23 = vsyncpa [#allocation14], 0
    loop: start=0, step=1, limit=4
    $region2: #{encoder_decoder_forward.7} parent=1 // loop_pre_header
      _
    $region3: #{encoder_decoder_forward.7} parent=1 // loop_header
      %s25 = sphi 0, %s29
      %p26 = scmp.ge.s32.totalorder %s25, 4
      %s35 = sphi 0, %s37
      %s38 = sphi 0, %s35
      %s39 = sphi 0, %s38
      %s55 = sphi 0, %s39
      %s61 = sphi 0, %s63
      %s64 = sphi 0, %s61
      %s65 = sphi 0, %s64
      %s81 = sphi 0, %s65
      %s85 = sphi 0, %s85
      %s87 = sphi 0, %s85
      %s88 = sphi 0, %s87
      %s102 = sphi 0, %s88
      %s106 = sphi 0, %s106
      %s108 = sphi 0, %s106
      %s109 = sphi 0, %s108
      %s123 = sphi 0, %s109
      %s127 = sphi 0, %s127
      %s129 = sphi 0, %s127
      %s130 = sphi 0, %s129
      %s144 = sphi 0, %s130
      %s148 = sphi 0, %s148
      %s150 = sphi 0, %s148
      %s151 = sphi 0, %s150
      %s165 = sphi 0, %s151
      %s169 = sphi 0, %s169
      %s171 = sphi 0, %s169
      %s172 = sphi 0, %s171
      %s186 = sphi 0, %s172
      %s190 = sphi 0, %s190
      %s192 = sphi 0, %s190
      %s193 = sphi 0, %s192
      %s207 = sphi 0, %s193
      %s211 = sphi 0, %s211
      %s213 = sphi 0, %s211
      %s214 = sphi 0, %s213
      %s228 = sphi 0, %s214
      %s232 = sphi 0, %s232
      %s234 = sphi 0, %s232
      %s235 = sphi 0, %s234
      %s249 = sphi 0, %s235
      %s253 = sphi 0, %s253
      %s255 = sphi 0, %s253
      %s256 = sphi 0, %s255
      %s270 = sphi 0, %s256
      %s274 = sphi 0, %s274
      %s276 = sphi 0, %s274
      %s277 = sphi 0, %s276
      %s291 = sphi 0, %s277
      %s295 = sphi 0, %s295
      %s297 = sphi 0, %s295
      %s298 = sphi 0, %s297
      %s312 = sphi 0, %s298
      %s316 = sphi 0, %s316
      %s318 = sphi 0, %s316
      %s319 = sphi 0, %s318
      %s333 = sphi 0, %s319
      %s339 = sphi 0, %s341
      %s342 = sphi 0, %s339
      %s343 = sphi 0, %s342
      %s359 = sphi 0, %s343
    $region4: #{encoder_decoder_forward.7} parent=1 // loop_header_branch
      %28 = sbr.rel (%p26) target = $region8
    $region5: #{encoder_decoder_forward.7} parent=1 // loop_body
      %s30 = ssub.s32 %s25, 1
      %s31 = ssub.s32 %s25, 2
      %s32 = sadd.s32 %s25, 1
      %s33 = ssub.s32 %s25, %s32
      %p34 = scmp.eq.s32.totalorder %s33, 0
      %s36 = sadd.s32 %s35, 1
      %s37 = scalar_select %p34, %s35, %s36
      %p40 = pneg %p34
      %p41 = scmp.eq.s32.totalorder %s25, 1
      %p42 = por %p40, %p41
      %p43 = scmp.ne.s32.totalorder %s35, %s38
      %p44 = scmp.eq.s32.totalorder %s25, 0
      %p45 = por %p43, %p44
      %p46 = scmp.ne.s32.totalorder %s35, %s38
      %p47 = scmp.eq.s32.totalorder %s30, 1
      %p48 = por %p46, %p47
      %p49 = scmp.ne.s32.totalorder %s38, %s39
      %p50 = scmp.eq.s32.totalorder %s30, 0
      %p51 = por %p49, %p50
      %p52 = scmp.ne.s32.totalorder %s38, %s39
      %p53 = scmp.eq.s32.totalorder %s31, 1
      %p54 = por %p52, %p53
      %p56 = scmp.ne.s32.totalorder %s39, %s55
      %p57 = scmp.eq.s32.totalorder %s31, 0
      %p58 = por %p56, %p57
      %s59 = ssub.s32 %s25, %s32
      %p60 = scmp.eq.s32.totalorder %s59, 0
      %s62 = sadd.s32 %s61, 1
      %s63 = scalar_select %p60, %s61, %s62
      %p66 = pneg %p60
      %p67 = scmp.eq.s32.totalorder %s25, 1
      %p68 = por %p66, %p67
      %p69 = scmp.ne.s32.totalorder %s61, %s64
      %p70 = scmp.eq.s32.totalorder %s25, 0
      %p71 = por %p69, %p70
      %p72 = scmp.ne.s32.totalorder %s61, %s64
      %p73 = scmp.eq.s32.totalorder %s30, 1
      %p74 = por %p72, %p73
      %p75 = scmp.ne.s32.totalorder %s64, %s65
      %p76 = scmp.eq.s32.totalorder %s30, 0
      %p77 = por %p75, %p76
      %p78 = scmp.ne.s32.totalorder %s64, %s65
      %p79 = scmp.eq.s32.totalorder %s31, 1
      %p80 = por %p78, %p79
      %p82 = scmp.ne.s32.totalorder %s65, %s81
      %p83 = scmp.eq.s32.totalorder %s31, 0
      %p84 = por %p82, %p83
      %s86 = sadd.s32 %s85, 1
      %p89 = scmp.eq.s32.totalorder %s25, 1
      %p90 = scmp.ne.s32.totalorder %s85, %s87
      %p91 = scmp.eq.s32.totalorder %s25, 0
      %p92 = por %p90, %p91
      %p93 = scmp.ne.s32.totalorder %s85, %s87
      %p94 = scmp.eq.s32.totalorder %s30, 1
      %p95 = por %p93, %p94
      %p96 = scmp.ne.s32.totalorder %s87, %s88
      %p97 = scmp.eq.s32.totalorder %s30, 0
      %p98 = por %p96, %p97
      %p99 = scmp.ne.s32.totalorder %s87, %s88
      %p100 = scmp.eq.s32.totalorder %s31, 1
      %p101 = por %p99, %p100
      %p103 = scmp.ne.s32.totalorder %s88, %s102
      %p104 = scmp.eq.s32.totalorder %s31, 0
      %p105 = por %p103, %p104
      %s107 = sadd.s32 %s106, 1
      %p110 = scmp.eq.s32.totalorder %s25, 1
      %p111 = scmp.ne.s32.totalorder %s106, %s108
      %p112 = scmp.eq.s32.totalorder %s25, 0
      %p113 = por %p111, %p112
      %p114 = scmp.ne.s32.totalorder %s106, %s108
      %p115 = scmp.eq.s32.totalorder %s30, 1
      %p116 = por %p114, %p115
      %p117 = scmp.ne.s32.totalorder %s108, %s109
      %p118 = scmp.eq.s32.totalorder %s30, 0
      %p119 = por %p117, %p118
      %p120 = scmp.ne.s32.totalorder %s108, %s109
      %p121 = scmp.eq.s32.totalorder %s31, 1
      %p122 = por %p120, %p121
      %p124 = scmp.ne.s32.totalorder %s109, %s123
      %p125 = scmp.eq.s32.totalorder %s31, 0
      %p126 = por %p124, %p125
      %s128 = sadd.s32 %s127, 1
      %p131 = scmp.eq.s32.totalorder %s25, 1
      %p132 = scmp.ne.s32.totalorder %s127, %s129
      %p133 = scmp.eq.s32.totalorder %s25, 0
      %p134 = por %p132, %p133
      %p135 = scmp.ne.s32.totalorder %s127, %s129
      %p136 = scmp.eq.s32.totalorder %s30, 1
      %p137 = por %p135, %p136
      %p138 = scmp.ne.s32.totalorder %s129, %s130
      %p139 = scmp.eq.s32.totalorder %s30, 0
      %p140 = por %p138, %p139
      %p141 = scmp.ne.s32.totalorder %s129, %s130
      %p142 = scmp.eq.s32.totalorder %s31, 1
      %p143 = por %p141, %p142
      %p145 = scmp.ne.s32.totalorder %s130, %s144
      %p146 = scmp.eq.s32.totalorder %s31, 0
      %p147 = por %p145, %p146
      %s149 = sadd.s32 %s148, 1
      %p152 = scmp.eq.s32.totalorder %s25, 1
      %p153 = scmp.ne.s32.totalorder %s148, %s150
      %p154 = scmp.eq.s32.totalorder %s25, 0
      %p155 = por %p153, %p154
      %p156 = scmp.ne.s32.totalorder %s148, %s150
      %p157 = scmp.eq.s32.totalorder %s30, 1
      %p158 = por %p156, %p157
      %p159 = scmp.ne.s32.totalorder %s150, %s151
      %p160 = scmp.eq.s32.totalorder %s30, 0
      %p161 = por %p159, %p160
      %p162 = scmp.ne.s32.totalorder %s150, %s151
      %p163 = scmp.eq.s32.totalorder %s31, 1
      %p164 = por %p162, %p163
      %p166 = scmp.ne.s32.totalorder %s151, %s165
      %p167 = scmp.eq.s32.totalorder %s31, 0
      %p168 = por %p166, %p167
      %s170 = sadd.s32 %s169, 1
      %p173 = scmp.eq.s32.totalorder %s25, 1
      %p174 = scmp.ne.s32.totalorder %s169, %s171
      %p175 = scmp.eq.s32.totalorder %s25, 0
      %p176 = por %p174, %p175
      %p177 = scmp.ne.s32.totalorder %s169, %s171
      %p178 = scmp.eq.s32.totalorder %s30, 1
      %p179 = por %p177, %p178
      %p180 = scmp.ne.s32.totalorder %s171, %s172
      %p181 = scmp.eq.s32.totalorder %s30, 0
      %p182 = por %p180, %p181
      %p183 = scmp.ne.s32.totalorder %s171, %s172
      %p184 = scmp.eq.s32.totalorder %s31, 1
      %p185 = por %p183, %p184
      %p187 = scmp.ne.s32.totalorder %s172, %s186
      %p188 = scmp.eq.s32.totalorder %s31, 0
      %p189 = por %p187, %p188
      %s191 = sadd.s32 %s190, 1
      %p194 = scmp.eq.s32.totalorder %s25, 1
      %p195 = scmp.ne.s32.totalorder %s190, %s192
      %p196 = scmp.eq.s32.totalorder %s25, 0
      %p197 = por %p195, %p196
      %p198 = scmp.ne.s32.totalorder %s190, %s192
      %p199 = scmp.eq.s32.totalorder %s30, 1
      %p200 = por %p198, %p199
      %p201 = scmp.ne.s32.totalorder %s192, %s193
      %p202 = scmp.eq.s32.totalorder %s30, 0
      %p203 = por %p201, %p202
      %p204 = scmp.ne.s32.totalorder %s192, %s193
      %p205 = scmp.eq.s32.totalorder %s31, 1
      %p206 = por %p204, %p205
      %p208 = scmp.ne.s32.totalorder %s193, %s207
      %p209 = scmp.eq.s32.totalorder %s31, 0
      %p210 = por %p208, %p209
      %s212 = sadd.s32 %s211, 1
      %p215 = scmp.eq.s32.totalorder %s25, 1
      %p216 = scmp.ne.s32.totalorder %s211, %s213
      %p217 = scmp.eq.s32.totalorder %s25, 0
      %p218 = por %p216, %p217
      %p219 = scmp.ne.s32.totalorder %s211, %s213
      %p220 = scmp.eq.s32.totalorder %s30, 1
      %p221 = por %p219, %p220
      %p222 = scmp.ne.s32.totalorder %s213, %s214
      %p223 = scmp.eq.s32.totalorder %s30, 0
      %p224 = por %p222, %p223
      %p225 = scmp.ne.s32.totalorder %s213, %s214
      %p226 = scmp.eq.s32.totalorder %s31, 1
      %p227 = por %p225, %p226
      %p229 = scmp.ne.s32.totalorder %s214, %s228
      %p230 = scmp.eq.s32.totalorder %s31, 0
      %p231 = por %p229, %p230
      %s233 = sadd.s32 %s232, 1
      %p236 = scmp.eq.s32.totalorder %s25, 1
      %p237 = scmp.ne.s32.totalorder %s232, %s234
      %p238 = scmp.eq.s32.totalorder %s25, 0
      %p239 = por %p237, %p238
      %p240 = scmp.ne.s32.totalorder %s232, %s234
      %p241 = scmp.eq.s32.totalorder %s30, 1
      %p242 = por %p240, %p241
      %p243 = scmp.ne.s32.totalorder %s234, %s235
      %p244 = scmp.eq.s32.totalorder %s30, 0
      %p245 = por %p243, %p244
      %p246 = scmp.ne.s32.totalorder %s234, %s235
      %p247 = scmp.eq.s32.totalorder %s31, 1
      %p248 = por %p246, %p247
      %p250 = scmp.ne.s32.totalorder %s235, %s249
      %p251 = scmp.eq.s32.totalorder %s31, 0
      %p252 = por %p250, %p251
      %s254 = sadd.s32 %s253, 1
      %p257 = scmp.eq.s32.totalorder %s25, 1
      %p258 = scmp.ne.s32.totalorder %s253, %s255
      %p259 = scmp.eq.s32.totalorder %s25, 0
      %p260 = por %p258, %p259
      %p261 = scmp.ne.s32.totalorder %s253, %s255
      %p262 = scmp.eq.s32.totalorder %s30, 1
      %p263 = por %p261, %p262
      %p264 = scmp.ne.s32.totalorder %s255, %s256
      %p265 = scmp.eq.s32.totalorder %s30, 0
      %p266 = por %p264, %p265
      %p267 = scmp.ne.s32.totalorder %s255, %s256
      %p268 = scmp.eq.s32.totalorder %s31, 1
      %p269 = por %p267, %p268
      %p271 = scmp.ne.s32.totalorder %s256, %s270
      %p272 = scmp.eq.s32.totalorder %s31, 0
      %p273 = por %p271, %p272
      %s275 = sadd.s32 %s274, 1
      %p278 = scmp.eq.s32.totalorder %s25, 1
      %p279 = scmp.ne.s32.totalorder %s274, %s276
      %p280 = scmp.eq.s32.totalorder %s25, 0
      %p281 = por %p279, %p280
      %p282 = scmp.ne.s32.totalorder %s274, %s276
      %p283 = scmp.eq.s32.totalorder %s30, 1
      %p284 = por %p282, %p283
      %p285 = scmp.ne.s32.totalorder %s276, %s277
      %p286 = scmp.eq.s32.totalorder %s30, 0
      %p287 = por %p285, %p286
      %p288 = scmp.ne.s32.totalorder %s276, %s277
      %p289 = scmp.eq.s32.totalorder %s31, 1
      %p290 = por %p288, %p289
      %p292 = scmp.ne.s32.totalorder %s277, %s291
      %p293 = scmp.eq.s32.totalorder %s31, 0
      %p294 = por %p292, %p293
      %s296 = sadd.s32 %s295, 1
      %p299 = scmp.eq.s32.totalorder %s25, 1
      %p300 = scmp.ne.s32.totalorder %s295, %s297
      %p301 = scmp.eq.s32.totalorder %s25, 0
      %p302 = por %p300, %p301
      %p303 = scmp.ne.s32.totalorder %s295, %s297
      %p304 = scmp.eq.s32.totalorder %s30, 1
      %p305 = por %p303, %p304
      %p306 = scmp.ne.s32.totalorder %s297, %s298
      %p307 = scmp.eq.s32.totalorder %s30, 0
      %p308 = por %p306, %p307
      %p309 = scmp.ne.s32.totalorder %s297, %s298
      %p310 = scmp.eq.s32.totalorder %s31, 1
      %p311 = por %p309, %p310
      %p313 = scmp.ne.s32.totalorder %s298, %s312
      %p314 = scmp.eq.s32.totalorder %s31, 0
      %p315 = por %p313, %p314
      %s317 = sadd.s32 %s316, 1
      %p320 = scmp.eq.s32.totalorder %s25, 1
      %p321 = scmp.ne.s32.totalorder %s316, %s318
      %p322 = scmp.eq.s32.totalorder %s25, 0
      %p323 = por %p321, %p322
      %p324 = scmp.ne.s32.totalorder %s316, %s318
      %p325 = scmp.eq.s32.totalorder %s30, 1
      %p326 = por %p324, %p325
      %p327 = scmp.ne.s32.totalorder %s318, %s319
      %p328 = scmp.eq.s32.totalorder %s30, 0
      %p329 = por %p327, %p328
      %p330 = scmp.ne.s32.totalorder %s318, %s319
      %p331 = scmp.eq.s32.totalorder %s31, 1
      %p332 = por %p330, %p331
      %p334 = scmp.ne.s32.totalorder %s319, %s333
      %p335 = scmp.eq.s32.totalorder %s31, 0
      %p336 = por %p334, %p335
      %s337 = ssub.s32 %s25, %s32
      %p338 = scmp.eq.s32.totalorder %s337, 0
      %s340 = sadd.s32 %s339, 1
      %s341 = scalar_select %p338, %s339, %s340
      %p344 = pneg %p338
      %p345 = scmp.eq.s32.totalorder %s25, 1
      %p346 = por %p344, %p345
      %p347 = scmp.ne.s32.totalorder %s339, %s342
      %p348 = scmp.eq.s32.totalorder %s25, 0
      %p349 = por %p347, %p348
      %p350 = scmp.ne.s32.totalorder %s339, %s342
      %p351 = scmp.eq.s32.totalorder %s30, 1
      %p352 = por %p350, %p351
      %p353 = scmp.ne.s32.totalorder %s342, %s343
      %p354 = scmp.eq.s32.totalorder %s30, 0
      %p355 = por %p353, %p354
      %p356 = scmp.ne.s32.totalorder %s342, %s343
      %p357 = scmp.eq.s32.totalorder %s31, 1
      %p358 = por %p356, %p357
      %p360 = scmp.ne.s32.totalorder %s343, %s359
      %p361 = scmp.eq.s32.totalorder %s31, 0
      %p362 = por %p360, %p361
      %p363 = scmp.le.s32.totalorder 1, %s25
      %p364 = scmp.lt.s32.totalorder %s25, 3
      %p365 = pnand %p363, %p364
      %p366 = pneg %p365
      // Predicated region
      $region9: #{encoder_decoder_forward.7} parent=5 // pred_check
        _
      $region10: #{encoder_decoder_forward.7} parent=5 // pred_check_branch
        %368 = sbr.rel (%p365) target = $region12
      $region11: #{encoder_decoder_forward.7} parent=5 // pred_region
        %s369 = ssub.s32 %s25, 1
        // Predicated region
        $region13: #{encoder_decoder_forward.7} parent=11 // pred_check
          %p370 = pneg %p98
        $region14: #{encoder_decoder_forward.7} parent=11 // pred_check_branch
          %372 = sbr.rel (%p370) target = $region16
        $region15: #{encoder_decoder_forward.7} parent=11 // pred_region
          _
        $region16: #{encoder_decoder_forward.7} parent=11 // pred_fallthru
          _
        // Predicated region
        $region17: #{encoder_decoder_forward.7} parent=11 // pred_check
          %p373 = pneg %p119
        $region18: #{encoder_decoder_forward.7} parent=11 // pred_check_branch
          %375 = sbr.rel (%p373) target = $region20
        $region19: #{encoder_decoder_forward.7} parent=11 // pred_region
          %377 = vsyncadd [#allocation3], 0
          %s379 = sshll.u32 %s3, 4
          %s380 = int_to_ptr.hbm [resolvable:$true] %s379
          %s381 = sshll.u32 [#allocation2], 4
          %s382 = int_to_ptr.vmem [resolvable:$true] %s381
          %384 = dma.hbm_to_vmem [thread:$0]  %s380, 16, %s382, [#allocation3]
        $region20: #{encoder_decoder_forward.7} parent=11 // pred_fallthru
          _
        // Predicated region
        $region21: #{encoder_decoder_forward.7} parent=11 // pred_check
          %p385 = pneg %p140
        $region22: #{encoder_decoder_forward.7} parent=11 // pred_check_branch
          %387 = sbr.rel (%p385) target = $region24
        $region23: #{encoder_decoder_forward.7} parent=11 // pred_region
          _
        $region24: #{encoder_decoder_forward.7} parent=11 // pred_fallthru
          _
        // Predicated region
        $region25: #{encoder_decoder_forward.7} parent=11 // pred_check
          %p388 = pneg %p161
        $region26: #{encoder_decoder_forward.7} parent=11 // pred_check_branch
          %390 = sbr.rel (%p388) target = $region28
        $region27: #{encoder_decoder_forward.7} parent=11 // pred_region
          %392 = vsyncadd [#allocation5], 0
          %s394 = sshll.u32 %s5, 4
          %s395 = int_to_ptr.hbm [resolvable:$true] %s394
          %s396 = sshll.u32 [#allocation4], 4
          %s397 = int_to_ptr.vmem [resolvable:$true] %s396
          %399 = dma.hbm_to_vmem [thread:$0]  %s395, 16, %s397, [#allocation5]
        $region28: #{encoder_decoder_forward.7} parent=11 // pred_fallthru
          _
        // Predicated region
        $region29: #{encoder_decoder_forward.7} parent=11 // pred_check
          %p400 = pneg %p182
        $region30: #{encoder_decoder_forward.7} parent=11 // pred_check_branch
          %402 = sbr.rel (%p400) target = $region32
        $region31: #{encoder_decoder_forward.7} parent=11 // pred_region
          %404 = vsyncadd [#allocation5], 0
          %s406 = sshll.u32 %s6, 4
          %s407 = int_to_ptr.hbm [resolvable:$true] %s406
          %s408 = sshll.u32 [#allocation6], 4
          %s409 = int_to_ptr.vmem [resolvable:$true] %s408
          %411 = dma.hbm_to_vmem [thread:$0]  %s407, 16, %s409, [#allocation5]
        $region32: #{encoder_decoder_forward.7} parent=11 // pred_fallthru
          _
        // Predicated region
        $region33: #{encoder_decoder_forward.7} parent=11 // pred_check
          %p412 = pneg %p203
        $region34: #{encoder_decoder_forward.7} parent=11 // pred_check_branch
          %414 = sbr.rel (%p412) target = $region36
        $region35: #{encoder_decoder_forward.7} parent=11 // pred_region
          %416 = vsyncadd [#allocation8], 0
          %s418 = sshll.u32 %s7, 4
          %s419 = int_to_ptr.hbm [resolvable:$true] %s418
          %s420 = sshll.u32 [#allocation7], 4
          %s421 = int_to_ptr.vmem [resolvable:$true] %s420
          %423 = dma.hbm_to_vmem [thread:$0]  %s419, 16, %s421, [#allocation8]
        $region36: #{encoder_decoder_forward.7} parent=11 // pred_fallthru
          _
        // Predicated region
        $region37: #{encoder_decoder_forward.7} parent=11 // pred_check
          %p424 = pneg %p224
        $region38: #{encoder_decoder_forward.7} parent=11 // pred_check_branch
          %426 = sbr.rel (%p424) target = $region40
        $region39: #{encoder_decoder_forward.7} parent=11 // pred_region
          _
        $region40: #{encoder_decoder_forward.7} parent=11 // pred_fallthru
          _
        // Predicated region
        $region41: #{encoder_decoder_forward.7} parent=11 // pred_check
          %p427 = pneg %p245
        $region42: #{encoder_decoder_forward.7} parent=11 // pred_check_branch
          %429 = sbr.rel (%p427) target = $region44
        $region43: #{encoder_decoder_forward.7} parent=11 // pred_region
          %431 = vsyncadd [#allocation8], 0
          %s433 = sshll.u32 %s9, 4
          %s434 = int_to_ptr.hbm [resolvable:$true] %s433
          %s435 = sshll.u32 [#allocation9], 4
          %s436 = int_to_ptr.vmem [resolvable:$true] %s435
          %438 = dma.hbm_to_vmem [thread:$0]  %s434, 16, %s436, [#allocation8]
        $region44: #{encoder_decoder_forward.7} parent=11 // pred_fallthru
          _
        // Predicated region
        $region45: #{encoder_decoder_forward.7} parent=11 // pred_check
          %p439 = pneg %p266
        $region46: #{encoder_decoder_forward.7} parent=11 // pred_check_branch
          %441 = sbr.rel (%p439) target = $region48
        $region47: #{encoder_decoder_forward.7} parent=11 // pred_region
          _
        $region48: #{encoder_decoder_forward.7} parent=11 // pred_fallthru
          _
        // Predicated region
        $region49: #{encoder_decoder_forward.7} parent=11 // pred_check
          %p442 = pneg %p287
        $region50: #{encoder_decoder_forward.7} parent=11 // pred_check_branch
          %444 = sbr.rel (%p442) target = $region52
        $region51: #{encoder_decoder_forward.7} parent=11 // pred_region
          %446 = vsyncadd [#allocation11], 0
          %s448 = sshll.u32 %s11, 4
          %s449 = int_to_ptr.hbm [resolvable:$true] %s448
          %s450 = sshll.u32 [#allocation10], 4
          %s451 = int_to_ptr.vmem [resolvable:$true] %s450
          %453 = dma.hbm_to_vmem [thread:$0]  %s449, 16, %s451, [#allocation11]
        $region52: #{encoder_decoder_forward.7} parent=11 // pred_fallthru
          _
        // Predicated region
        $region53: #{encoder_decoder_forward.7} parent=11 // pred_check
          %p454 = pneg %p308
        $region54: #{encoder_decoder_forward.7} parent=11 // pred_check_branch
          %456 = sbr.rel (%p454) target = $region56
        $region55: #{encoder_decoder_forward.7} parent=11 // pred_region
          %458 = vsyncadd [#allocation11], 0
          %s460 = sshll.u32 %s12, 4
          %s461 = int_to_ptr.hbm [resolvable:$true] %s460
          %s462 = sshll.u32 [#allocation12], 4
          %s463 = int_to_ptr.vmem [resolvable:$true] %s462
          %465 = dma.hbm_to_vmem [thread:$0]  %s461, 16, %s463, [#allocation11]
        $region56: #{encoder_decoder_forward.7} parent=11 // pred_fallthru
          _
        // Predicated region
        $region57: #{encoder_decoder_forward.7} parent=11 // pred_check
          %p466 = pneg %p329
        $region58: #{encoder_decoder_forward.7} parent=11 // pred_check_branch
          %468 = sbr.rel (%p466) target = $region60
        $region59: #{encoder_decoder_forward.7} parent=11 // pred_region
          %470 = vsyncadd [#allocation14], 0
          %s472 = sshll.u32 %s13, 4
          %s473 = int_to_ptr.hbm [resolvable:$true] %s472
          %s474 = sshll.u32 [#allocation13], 4
          %s475 = int_to_ptr.vmem [resolvable:$true] %s474
          %477 = dma.hbm_to_vmem [thread:$0]  %s473, 16, %s475, [#allocation14]
        $region60: #{encoder_decoder_forward.7} parent=11 // pred_fallthru
          _
      $region12: #{encoder_decoder_forward.7} parent=5 // pred_fallthru
        _
      %p478 = scmp.lt.s32.totalorder %s25, 2
      // Predicated region
      $region61: #{encoder_decoder_forward.7} parent=5 // pred_check
        %p479 = pneg %p478
      $region62: #{encoder_decoder_forward.7} parent=5 // pred_check_branch
        %481 = sbr.rel (%p479) target = $region64
      $region63: #{encoder_decoder_forward.7} parent=5 // pred_region
        // Predicated region
        $region65: #{encoder_decoder_forward.7} parent=63 // pred_check
          %p482 = pneg %p45
        $region66: #{encoder_decoder_forward.7} parent=63 // pred_check_branch
          %484 = sbr.rel (%p482) target = $region68
        $region67: #{encoder_decoder_forward.7} parent=63 // pred_region
          %p485 = scmp.lt.s32.totalorder %s25, 1
          %s486 = scalar_select %p485, %s25, 1
          %s487 = smul.addr %s486, 4
          %s488 = scalar_lea.vmem %s0, %s487
        $region68: #{encoder_decoder_forward.7} parent=63 // pred_fallthru
          _
        // Predicated region
        $region69: #{encoder_decoder_forward.7} parent=63 // pred_check
          %p489 = pneg %p71
        $region70: #{encoder_decoder_forward.7} parent=63 // pred_check_branch
          %491 = sbr.rel (%p489) target = $region72
        $region71: #{encoder_decoder_forward.7} parent=63 // pred_region
          %p492 = scmp.lt.s32.totalorder %s25, 1
          %s493 = scalar_select %p492, %s25, 1
          %s494 = scalar_lea.vmem %s1, %s493
        $region72: #{encoder_decoder_forward.7} parent=63 // pred_fallthru
          _
      $region64: #{encoder_decoder_forward.7} parent=5 // pred_fallthru
        _
      %p495 = scmp.le.s32.totalorder 1, %s25
      %p496 = scmp.lt.s32.totalorder %s25, 3
      %p497 = pnand %p495, %p496
      %p498 = pneg %p497
      // Predicated region
      $region73: #{encoder_decoder_forward.7} parent=5 // pred_check
        _
      $region74: #{encoder_decoder_forward.7} parent=5 // pred_check_branch
        %500 = sbr.rel (%p497) target = $region76
      $region75: #{encoder_decoder_forward.7} parent=5 // pred_region
        %s501 = ssub.s32 %s25, 1
        // Predicated region
        $region77: #{encoder_decoder_forward.7} parent=75 // pred_check
          %p502 = pneg %p119
        $region78: #{encoder_decoder_forward.7} parent=75 // pred_check_branch
          %504 = sbr.rel (%p502) target = $region80
        $region79: #{encoder_decoder_forward.7} parent=75 // pred_region
          %506 = dma.done [#allocation3], 16
        $region80: #{encoder_decoder_forward.7} parent=75 // pred_fallthru
          _
        // Predicated region
        $region81: #{encoder_decoder_forward.7} parent=75 // pred_check
          %p507 = pneg %p161
        $region82: #{encoder_decoder_forward.7} parent=75 // pred_check_branch
          %509 = sbr.rel (%p507) target = $region84
        $region83: #{encoder_decoder_forward.7} parent=75 // pred_region
          %511 = dma.done [#allocation5], 16
        $region84: #{encoder_decoder_forward.7} parent=75 // pred_fallthru
          _
        // Predicated region
        $region85: #{encoder_decoder_forward.7} parent=75 // pred_check
          %p512 = pneg %p182
        $region86: #{encoder_decoder_forward.7} parent=75 // pred_check_branch
          %514 = sbr.rel (%p512) target = $region88
        $region87: #{encoder_decoder_forward.7} parent=75 // pred_region
          %516 = dma.done [#allocation5], 16
        $region88: #{encoder_decoder_forward.7} parent=75 // pred_fallthru
          _
        // Predicated region
        $region89: #{encoder_decoder_forward.7} parent=75 // pred_check
          %p517 = pneg %p203
        $region90: #{encoder_decoder_forward.7} parent=75 // pred_check_branch
          %519 = sbr.rel (%p517) target = $region92
        $region91: #{encoder_decoder_forward.7} parent=75 // pred_region
          %521 = dma.done [#allocation8], 16
        $region92: #{encoder_decoder_forward.7} parent=75 // pred_fallthru
          _
        // Predicated region
        $region93: #{encoder_decoder_forward.7} parent=75 // pred_check
          %p522 = pneg %p245
        $region94: #{encoder_decoder_forward.7} parent=75 // pred_check_branch
          %524 = sbr.rel (%p522) target = $region96
        $region95: #{encoder_decoder_forward.7} parent=75 // pred_region
          %526 = dma.done [#allocation8], 16
        $region96: #{encoder_decoder_forward.7} parent=75 // pred_fallthru
          _
        // Predicated region
        $region97: #{encoder_decoder_forward.7} parent=75 // pred_check
          %p527 = pneg %p287
        $region98: #{encoder_decoder_forward.7} parent=75 // pred_check_branch
          %529 = sbr.rel (%p527) target = $region100
        $region99: #{encoder_decoder_forward.7} parent=75 // pred_region
          %531 = dma.done [#allocation11], 16
        $region100: #{encoder_decoder_forward.7} parent=75 // pred_fallthru
          _
        // Predicated region
        $region101: #{encoder_decoder_forward.7} parent=75 // pred_check
          %p532 = pneg %p308
        $region102: #{encoder_decoder_forward.7} parent=75 // pred_check_branch
          %534 = sbr.rel (%p532) target = $region104
        $region103: #{encoder_decoder_forward.7} parent=75 // pred_region
          %536 = dma.done [#allocation11], 16
        $region104: #{encoder_decoder_forward.7} parent=75 // pred_fallthru
          _
        // Predicated region
        $region105: #{encoder_decoder_forward.7} parent=75 // pred_check
          %p537 = pneg %p329
        $region106: #{encoder_decoder_forward.7} parent=75 // pred_check_branch
          %539 = sbr.rel (%p537) target = $region108
        $region107: #{encoder_decoder_forward.7} parent=75 // pred_region
          %541 = dma.done [#allocation14], 16
        $region108: #{encoder_decoder_forward.7} parent=75 // pred_fallthru
          _
        %p542 = scmp.lt.s32.totalorder %s30, 1
        %s543 = scalar_select %p542, %s30, 1
        %s544 = smul.addr %s543, 4
        %s545 = scalar_lea.vmem %s0, %s544
        %p546 = pneg %p51
        %p547 = pneg %p48
        %p548 = scmp.lt.s32.totalorder %s30, 1
        %s549 = scalar_select %p548, %s30, 1
        %s550 = scalar_lea.vmem %s1, %s549
        %p551 = pneg %p77
        %p552 = pneg %p74
        %p553 = pneg %p98
        %p554 = pneg %p95
        %p555 = pneg %p119
        %p556 = pneg %p116
        %p557 = pneg %p140
        %p558 = pneg %p137
        %p559 = pneg %p161
        %p560 = pneg %p158
        %p561 = pneg %p182
        %p562 = pneg %p179
        %p563 = pneg %p203
        %p564 = pneg %p200
        %p565 = pneg %p224
        %p566 = pneg %p221
        %p567 = pneg %p245
        %p568 = pneg %p242
        %p569 = pneg %p266
        %p570 = pneg %p263
        %p571 = pneg %p287
        %p572 = pneg %p284
        %p573 = pneg %p308
        %p574 = pneg %p305
        %p575 = pneg %p329
        %p576 = pneg %p326
        %p577 = pneg %p355
        %p578 = pneg %p352
        %p579 = scmp.lt.s32.totalorder %s30, 1
        %s580 = scalar_select %p579, %s30, 1
        %s581 = smul.addr %s580, 4
        %s582 = scalar_lea.vmem %s14, %s581
        %p583 = scmp.lt.s32.totalorder %s30, 1
        %s584 = scalar_select %p583, %s30, 1
        %s585 = smul.addr %s584, 4
        %s586 = scalar_lea.vmem %s0, %s585
        %p587 = scmp.lt.s32.totalorder %s30, 1
        %s588 = scalar_select %p587, %s30, 1
        %s589 = scalar_lea.vmem %s1, %s588
        %p590 = scmp.lt.s32.totalorder %s30, 1
        %s591 = scalar_select %p590, %s30, 1
        %s592 = smul.addr %s591, 4
        %s593 = scalar_lea.vmem %s14, %s592
        %v595 = vld [vmem:[%s586] sm:$0xf]
        %v596 = vunpack.c.l.bf16 %v595
        %v597 = vld [vmem:[%s589] sm:$0x1]
        %vm598 = vcmp.eq.f32.partialorder %v597, 0.0
        %v599 = vsel %vm598, -10000.0, 0.0
        %v600 = vld [vmem:[%s2] sm:$0xf]
        %v601 = vld [vmem:[%s2 + $0x4] sm:$0xf]
        %v602 = vld [vmem:[%s2 + $0x8] sm:$0xf]
        %v603 = vld [vmem:[%s2 + $0xc] sm:$0xf]
        %v604 = vld [vmem:[#allocation2] sm:$0x1]
        %v606 = vperm.slane %v604, 0
        %v612 = vunpack.c.l.b16 %v600
        %v613 = vunpack.c.l.b16 %v601
        %v614 = vunpack.c.l.b16 %v602
        %v615 = vunpack.c.l.b16 %v603
        %v616 = vpack.c.b16 %v613, %v612
        %v617 = vpack.c.b16 %v615, %v614
        %vm620 = vcmask 261120
        %v622 = vsel %vm620, %v595, 0
        %624 = vmatpush.bf16.msra.mxu0 0
        %625 = vmatpush.bf16.msra.mxu0 0
        %626 = vmatpush.bf16.msra.mxu0 0
        %627 = vmatpush.bf16.msra.mxu0 0
        %628 = vmatpush.bf16.msra.mxu0 0
        %629 = vmatpush.bf16.msra.mxu0 0
        %630 = vmatpush.bf16.msra.mxu0 %v617
        %631 = vmatpush.bf16.msra.mxu0 %v616
        %632 = vmatmul.bf16.gmra.mxu0 %v622
        %v633 = vpop.f32.mrf.mxu0
        %v634 = vadd.f32 %v606, %v633
        %v635 = vpop.f32.mrf.mxu0
        %636 = vdwg.mxu0
        %v637 = vmul.f32 %v634, 0.35355338
        %v638 = vpack.c.bf16 %v637, %v637
        %v639 = vpack.c.bf16 %v634, %v634
        %v641 = vperm.slane %v599, 0
        %v644 = vunpack.c.l.b16 %v639
        %v645 = vpack.c.b16 %v644, %v644
        %646 = vrot.lane.b32.xlu0 %v645, 96
        %v647 = vpop.permute.xlu0 %646
        %vm648 = vcmask 64512
        %v650 = vsel %vm648, %v638, 0
        %v653 = vsel %vm648, %v647, 0
        %655 = vmatpush.bf16.xpose.msra.mxu0 0
        %656 = vmatpush.bf16.xpose.msra.mxu0 0
        %657 = vmatpush.bf16.xpose.msra.mxu0 0
        %658 = vmatpush.bf16.xpose.msra.mxu0 0
        %659 = vmatpush.bf16.xpose.msra.mxu0 0
        %660 = vmatpush.bf16.xpose.msra.mxu0 0
        %661 = vmatpush.bf16.xpose.msra.mxu0 0
        %662 = vmatpush.bf16.xpose.msra.mxu0 %v653
        %663 = vmatmul.bf16.gmra.mxu0 %v650
        %v664 = vpop.f32.mrf.mxu0
        %v665 = vadd.f32 %v641, %v664
        %v666 = vpop.f32.mrf.mxu0
        %667 = vdwg.mxu0
        %v668 = vsel %vm648, %v665, -inf
        %669 = vmax.xlane.f32.xlu0 %v668
        %v670 = vpop.xlane.xlu0 %669
        %v671 = vsub.f32 %v665, %v670
        %v672 = vmul.f32 %v671, 1.442695
        %v673 = vpow.pop %v672
        %v674 = vsel %vm648, %v673, 0.0
        %675 = vadd.xlane.f32.xlu0 %v674
        %v676 = vpop.xlane.xlu0 %675
        %v677 = vrcp.pop %v676
        %v678 = vmul.f32 %v673, %v677
        %v679 = vpack.c.bf16 %v678, %v678
        %680 = vrot.lane.b32.xlu0 %v645, 64
        %v681 = vpop.permute.xlu0 %680
        %v683 = vsel %vm648, %v679, 0
        %vm685 = vcmask 1043456
        %v687 = vsel %vm685, %v681, 0
        %689 = vmatpush.bf16.msra.mxu0 0
        %690 = vmatpush.bf16.msra.mxu0 0
        %691 = vmatpush.bf16.msra.mxu0 0
        %692 = vmatpush.bf16.msra.mxu0 0
        %693 = vmatpush.bf16.msra.mxu0 0
        %694 = vmatpush.bf16.msra.mxu0 0
        %695 = vmatpush.bf16.msra.mxu0 0
        %696 = vmatpush.bf16.msra.mxu0 %v687
        %697 = vmatmul.bf16.gmra.mxu0 %v683
        %v698 = vpop.f32.mrf.mxu0
        %v699 = vadd.f32 0.0, %v698
        %v700 = vpop.f32.mrf.mxu0
        %701 = vdwg.mxu0
        %v703 = vunpack.c.l.b16 %v638
        %v704 = vpack.c.b16 %v703, %v703
        %705 = vrot.lane.b32.xlu0 %v704, 120
        %v706 = vpop.permute.xlu0 %705
        %707 = vrot.lane.b32.xlu0 %v645, 88
        %v708 = vpop.permute.xlu0 %707
        %v710 = vsel %vm648, %v706, 0
        %v713 = vsel %vm648, %v708, 0
        %715 = vmatpush.bf16.xpose.msra.mxu0 0
        %716 = vmatpush.bf16.xpose.msra.mxu0 0
        %717 = vmatpush.bf16.xpose.msra.mxu0 0
        %718 = vmatpush.bf16.xpose.msra.mxu0 0
        %719 = vmatpush.bf16.xpose.msra.mxu0 0
        %720 = vmatpush.bf16.xpose.msra.mxu0 0
        %721 = vmatpush.bf16.xpose.msra.mxu0 0
        %722 = vmatpush.bf16.xpose.msra.mxu0 %v713
        %723 = vmatmul.bf16.gmra.mxu0 %v710
        %v724 = vpop.f32.mrf.mxu0
        %v725 = vadd.f32 %v641, %v724
        %v726 = vpop.f32.mrf.mxu0
        %727 = vdwg.mxu0
        %v728 = vsel %vm648, %v725, -inf
        %729 = vmax.xlane.f32.xlu0 %v728
        %v730 = vpop.xlane.xlu0 %729
        %v731 = vsub.f32 %v725, %v730
        %v732 = vmul.f32 %v731, 1.442695
        %v733 = vpow.pop %v732
        %v734 = vsel %vm648, %v733, 0.0
        %735 = vadd.xlane.f32.xlu0 %v734
        %v736 = vpop.xlane.xlu0 %735
        %v737 = vrcp.pop %v736
        %v738 = vmul.f32 %v733, %v737
        %v739 = vpack.c.bf16 %v738, %v738
        %740 = vrot.lane.b32.xlu0 %v645, 56
        %v741 = vpop.permute.xlu0 %740
        %v743 = vsel %vm648, %v739, 0
        %v746 = vsel %vm685, %v741, 0
        %748 = vmatpush.bf16.msra.mxu0 0
        %749 = vmatpush.bf16.msra.mxu0 0
        %750 = vmatpush.bf16.msra.mxu0 0
        %751 = vmatpush.bf16.msra.mxu0 0
        %752 = vmatpush.bf16.msra.mxu0 0
        %753 = vmatpush.bf16.msra.mxu0 0
        %754 = vmatpush.bf16.msra.mxu0 0
        %755 = vmatpush.bf16.msra.mxu0 %v746
        %756 = vmatmul.bf16.gmra.mxu0 %v743
        %v757 = vpop.f32.mrf.mxu0
        %v758 = vadd.f32 0.0, %v757
        %v759 = vpop.f32.mrf.mxu0
        %760 = vdwg.mxu0
        %761 = vrot.lane.b32.xlu0 %v704, 112
        %v762 = vpop.permute.xlu0 %761
        %763 = vrot.lane.b32.xlu0 %v645, 80
        %v764 = vpop.permute.xlu0 %763
        %v766 = vsel %vm648, %v762, 0
        %v769 = vsel %vm648, %v764, 0
        %771 = vmatpush.bf16.xpose.msra.mxu0 0
        %772 = vmatpush.bf16.xpose.msra.mxu0 0
        %773 = vmatpush.bf16.xpose.msra.mxu0 0
        %774 = vmatpush.bf16.xpose.msra.mxu0 0
        %775 = vmatpush.bf16.xpose.msra.mxu0 0
        %776 = vmatpush.bf16.xpose.msra.mxu0 0
        %777 = vmatpush.bf16.xpose.msra.mxu0 0
        %778 = vmatpush.bf16.xpose.msra.mxu0 %v769
        %779 = vmatmul.bf16.gmra.mxu0 %v766
        %v780 = vpop.f32.mrf.mxu0
        %v781 = vadd.f32 %v641, %v780
        %v782 = vpop.f32.mrf.mxu0
        %783 = vdwg.mxu0
        %v784 = vsel %vm648, %v781, -inf
        %785 = vmax.xlane.f32.xlu0 %v784
        %v786 = vpop.xlane.xlu0 %785
        %v787 = vsub.f32 %v781, %v786
        %v788 = vmul.f32 %v787, 1.442695
        %v789 = vpow.pop %v788
        %v790 = vsel %vm648, %v789, 0.0
        %791 = vadd.xlane.f32.xlu0 %v790
        %v792 = vpop.xlane.xlu0 %791
        %v793 = vrcp.pop %v792
        %v794 = vmul.f32 %v789, %v793
        %v795 = vpack.c.bf16 %v794, %v794
        %796 = vrot.lane.b32.xlu0 %v645, 48
        %v797 = vpop.permute.xlu0 %796
        %v799 = vsel %vm648, %v795, 0
        %v802 = vsel %vm685, %v797, 0
        %804 = vmatpush.bf16.msra.mxu0 0
        %805 = vmatpush.bf16.msra.mxu0 0
        %806 = vmatpush.bf16.msra.mxu0 0
        %807 = vmatpush.bf16.msra.mxu0 0
        %808 = vmatpush.bf16.msra.mxu0 0
        %809 = vmatpush.bf16.msra.mxu0 0
        %810 = vmatpush.bf16.msra.mxu0 0
        %811 = vmatpush.bf16.msra.mxu0 %v802
        %812 = vmatmul.bf16.gmra.mxu0 %v799
        %v813 = vpop.f32.mrf.mxu0
        %v814 = vadd.f32 0.0, %v813
        %v815 = vpop.f32.mrf.mxu0
        %816 = vdwg.mxu0
        %817 = vrot.lane.b32.xlu0 %v704, 104
        %v818 = vpop.permute.xlu0 %817
        %819 = vrot.lane.b32.xlu0 %v645, 72
        %v820 = vpop.permute.xlu0 %819
        %v822 = vsel %vm648, %v818, 0
        %v825 = vsel %vm648, %v820, 0
        %827 = vmatpush.bf16.xpose.msra.mxu0 0
        %828 = vmatpush.bf16.xpose.msra.mxu0 0
        %829 = vmatpush.bf16.xpose.msra.mxu0 0
        %830 = vmatpush.bf16.xpose.msra.mxu0 0
        %831 = vmatpush.bf16.xpose.msra.mxu0 0
        %832 = vmatpush.bf16.xpose.msra.mxu0 0
        %833 = vmatpush.bf16.xpose.msra.mxu0 0
        %834 = vmatpush.bf16.xpose.msra.mxu0 %v825
        %835 = vmatmul.bf16.gmra.mxu0 %v822
        %v836 = vpop.f32.mrf.mxu0
        %v837 = vadd.f32 %v641, %v836
        %v838 = vpop.f32.mrf.mxu0
        %839 = vdwg.mxu0
        %v840 = vsel %vm648, %v837, -inf
        %841 = vmax.xlane.f32.xlu0 %v840
        %v842 = vpop.xlane.xlu0 %841
        %v843 = vsub.f32 %v837, %v842
        %v844 = vmul.f32 %v843, 1.442695
        %v845 = vpow.pop %v844
        %v846 = vsel %vm648, %v845, 0.0
        %847 = vadd.xlane.f32.xlu0 %v846
        %v848 = vpop.xlane.xlu0 %847
        %v849 = vrcp.pop %v848
        %v850 = vmul.f32 %v845, %v849
        %v851 = vpack.c.bf16 %v850, %v850
        %852 = vrot.lane.b32.xlu0 %v645, 40
        %v853 = vpop.permute.xlu0 %852
        %v855 = vsel %vm648, %v851, 0
        %v858 = vsel %vm685, %v853, 0
        %860 = vmatpush.bf16.msra.mxu0 0
        %861 = vmatpush.bf16.msra.mxu0 0
        %862 = vmatpush.bf16.msra.mxu0 0
        %863 = vmatpush.bf16.msra.mxu0 0
        %864 = vmatpush.bf16.msra.mxu0 0
        %865 = vmatpush.bf16.msra.mxu0 0
        %866 = vmatpush.bf16.msra.mxu0 0
        %867 = vmatpush.bf16.msra.mxu0 %v858
        %868 = vmatmul.bf16.gmra.mxu0 %v855
        %v869 = vpop.f32.mrf.mxu0
        %v870 = vadd.f32 0.0, %v869
        %v871 = vpop.f32.mrf.mxu0
        %872 = vdwg.mxu0
        %874 = vrot.lane.b32.xlu0 %v758, 8
        %v875 = vpop.permute.xlu0 %874
        %878 = vrot.lane.b32.xlu0 %v814, 16
        %v879 = vpop.permute.xlu0 %878
        %882 = vrot.lane.b32.xlu0 %v870, 24
        %v883 = vpop.permute.xlu0 %882
        %v885 = vsel %vm648, %v699, %v875
        %vm886 = vcmask 130048
        %v887 = vsel %vm886, %v885, %v879
        %vm888 = vcmask 195584
        %v889 = vsel %vm888, %v887, %v883
        %v890 = vpack.c.bf16 %v889, %v889
        %v891 = vld [vmem:[%s4] sm:$0xf]
        %v892 = vld [vmem:[%s4 + $0x4] sm:$0xf]
        %v893 = vld [vmem:[%s4 + $0x8] sm:$0xf]
        %v894 = vld [vmem:[%s4 + $0xc] sm:$0xf]
        %v895 = vld [vmem:[#allocation4] sm:$0x1]
        %v897 = vperm.slane %v895, 0
        %v903 = vunpack.c.l.b16 %v891
        %v904 = vunpack.c.l.b16 %v892
        %v905 = vunpack.c.l.b16 %v893
        %v906 = vunpack.c.l.b16 %v894
        %v907 = vpack.c.b16 %v904, %v903
        %v908 = vpack.c.b16 %v906, %v905
        %v912 = vsel %vm620, %v890, 0
        %914 = vmatpush.bf16.msra.mxu0 0
        %915 = vmatpush.bf16.msra.mxu0 0
        %916 = vmatpush.bf16.msra.mxu0 0
        %917 = vmatpush.bf16.msra.mxu0 0
        %918 = vmatpush.bf16.msra.mxu0 0
        %919 = vmatpush.bf16.msra.mxu0 0
        %920 = vmatpush.bf16.msra.mxu0 %v908
        %921 = vmatpush.bf16.msra.mxu0 %v907
        %922 = vmatmul.bf16.gmra.mxu0 %v912
        %v923 = vpop.f32.mrf.mxu0
        %v924 = vadd.f32 %v897, %v923
        %v925 = vpop.f32.mrf.mxu0
        %926 = vdwg.mxu0
        %v927 = vadd.f32 %v924, %v596
        %v928 = vld [vmem:[#allocation6] sm:$0x1]
        %v929 = vld [vmem:[#allocation7] sm:$0x1]
        %v930 = vsel %vm620, %v927, 0.0
        %931 = vadd.xlane.f32.xlu0 %v930
        %v932 = vpop.xlane.xlu0 %931
        %v933 = vrcp.pop 32.0
        %v934 = vmul.f32 32.0, %v933
        %v935 = vsub.f32 1.0, %v934
        %v936 = vmul.f32 %v933, %v935
        %v937 = vadd.f32 %v933, %v936
        %vm938 = vweird.f32 %v933
        %v939 = vsel %vm938, %v933, %v937
        %v940 = vmul.f32 %v932, %v939
        %v941 = vsub.f32 %v927, %v940
        %v942 = vmul.f32 %v941, %v941
        %v943 = vsel %vm620, %v942, 0.0
        %944 = vadd.xlane.f32.xlu0 %v943
        %v945 = vpop.xlane.xlu0 %944
        %v946 = vmul.f32 %v945, %v939
        %v947 = vadd.f32 %v946, 1e-12
        %v948 = vrsqrt.pop %v947
        %v949 = vmul.f32 %v948, %v947
        %v950 = vmul.f32 %v949, %v948
        %v951 = vmul.f32 0.5, %v950
        %v952 = vsub.f32 1.5, %v951
        %v953 = vmul.f32 %v948, %v952
        %vm954 = vweird.f32 %v947
        %vm955 = vweird.f32 %v948
        %vm956 = vmor %vm954, %vm955
        %v957 = vsel %vm956, %v948, %v953
        %v958 = vmul.f32 %v941, %v957
        %v960 = vperm.slane %v928, 0
        %v962 = vmul.f32 %v958, %v960
        %v964 = vperm.slane %v929, 0
        %v966 = vadd.f32 %v962, %v964
        %v967 = vpack.c.bf16 %v966, %v966
        %v968 = vld [vmem:[%s8] sm:$0xf]
        %v969 = vld [vmem:[%s8 + $0x4] sm:$0xf]
        %v970 = vld [vmem:[%s8 + $0x8] sm:$0xf]
        %v971 = vld [vmem:[%s8 + $0xc] sm:$0xf]
        %v972 = vld [vmem:[#allocation9] sm:$0x1]
        %v974 = vperm.slane %v972, 0
        %v980 = vunpack.c.l.b16 %v968
        %v981 = vunpack.c.l.b16 %v969
        %v982 = vunpack.c.l.b16 %v970
        %v983 = vunpack.c.l.b16 %v971
        %v984 = vpack.c.b16 %v981, %v980
        %v985 = vpack.c.b16 %v983, %v982
        %v989 = vsel %vm620, %v967, 0
        %991 = vmatpush.bf16.msra.mxu0 0
        %992 = vmatpush.bf16.msra.mxu0 0
        %993 = vmatpush.bf16.msra.mxu0 0
        %994 = vmatpush.bf16.msra.mxu0 0
        %995 = vmatpush.bf16.msra.mxu0 0
        %996 = vmatpush.bf16.msra.mxu0 0
        %997 = vmatpush.bf16.msra.mxu0 %v985
        %998 = vmatpush.bf16.msra.mxu0 %v984
        %999 = vmatmul.bf16.gmra.mxu0 %v989
        %v1000 = vpop.f32.mrf.mxu0
        %v1001 = vadd.f32 %v974, %v1000
        %v1002 = vpop.f32.mrf.mxu0
        %1003 = vdwg.mxu0
        %v1004 = vmax.f32 %v1001, 0.0
        %v1005 = vpack.c.bf16 %v1004, %v1004
        %v1006 = vld [vmem:[%s10] sm:$0xf]
        %v1007 = vld [vmem:[%s10 + $0x4] sm:$0xf]
        %v1008 = vld [vmem:[%s10 + $0x8] sm:$0xf]
        %v1009 = vld [vmem:[%s10 + $0xc] sm:$0xf]
        %v1010 = vld [vmem:[%s10 + $0x10] sm:$0xf]
        %v1011 = vld [vmem:[%s10 + $0x14] sm:$0xf]
        %v1012 = vld [vmem:[%s10 + $0x18] sm:$0xf]
        %v1013 = vld [vmem:[%s10 + $0x1c] sm:$0xf]
        %v1014 = vld [vmem:[#allocation10] sm:$0x1]
        %v1016 = vperm.slane %v1014, 0
        %v1026 = vunpack.c.l.b16 %v1006
        %v1027 = vunpack.c.l.b16 %v1007
        %v1028 = vunpack.c.l.b16 %v1008
        %v1029 = vunpack.c.l.b16 %v1009
        %v1030 = vunpack.c.l.b16 %v1010
        %v1031 = vunpack.c.l.b16 %v1011
        %v1032 = vunpack.c.l.b16 %v1012
        %v1033 = vunpack.c.l.b16 %v1013
        %v1034 = vpack.c.b16 %v1027, %v1026
        %v1035 = vpack.c.b16 %v1029, %v1028
        %v1036 = vpack.c.b16 %v1031, %v1030
        %v1037 = vpack.c.b16 %v1033, %v1032
        %vm1042 = vcmask 523264
        %v1044 = vsel %vm1042, %v1005, 0
        %1046 = vmatpush.bf16.msra.mxu0 0
        %1047 = vmatpush.bf16.msra.mxu0 0
        %1048 = vmatpush.bf16.msra.mxu0 0
        %1049 = vmatpush.bf16.msra.mxu0 0
        %1050 = vmatpush.bf16.msra.mxu0 %v1037
        %1051 = vmatpush.bf16.msra.mxu0 %v1036
        %1052 = vmatpush.bf16.msra.mxu0 %v1035
        %1053 = vmatpush.bf16.msra.mxu0 %v1034
        %1054 = vmatmul.bf16.gmra.mxu0 %v1044
        %v1055 = vpop.f32.mrf.mxu0
        %v1056 = vadd.f32 %v1016, %v1055
        %v1057 = vpop.f32.mrf.mxu0
        %1058 = vdwg.mxu0
        %v1059 = vadd.f32 %v1056, %v966
        %v1060 = vld [vmem:[#allocation12] sm:$0x1]
        %v1061 = vld [vmem:[#allocation13] sm:$0x1]
        %v1062 = vsel %vm620, %v1059, 0.0
        %1063 = vadd.xlane.f32.xlu0 %v1062
        %v1064 = vpop.xlane.xlu0 %1063
        %v1065 = vmul.f32 %v1064, %v939
        %v1066 = vsub.f32 %v1059, %v1065
        %v1067 = vmul.f32 %v1066, %v1066
        %v1068 = vsel %vm620, %v1067, 0.0
        %1069 = vadd.xlane.f32.xlu0 %v1068
        %v1070 = vpop.xlane.xlu0 %1069
        %v1071 = vmul.f32 %v1070, %v939
        %v1072 = vadd.f32 %v1071, 1e-12
        %v1073 = vrsqrt.pop %v1072
        %v1074 = vmul.f32 %v1073, %v1072
        %v1075 = vmul.f32 %v1074, %v1073
        %v1076 = vmul.f32 0.5, %v1075
        %v1077 = vsub.f32 1.5, %v1076
        %v1078 = vmul.f32 %v1073, %v1077
        %vm1079 = vweird.f32 %v1072
        %vm1080 = vweird.f32 %v1073
        %vm1081 = vmor %vm1079, %vm1080
        %v1082 = vsel %vm1081, %v1073, %v1078
        %v1083 = vmul.f32 %v1066, %v1082
        %v1085 = vperm.slane %v1060, 0
        %v1087 = vmul.f32 %v1083, %v1085
        %v1089 = vperm.slane %v1061, 0
        %v1091 = vadd.f32 %v1087, %v1089
        %v1092 = vpack.c.bf16 %v1091, %v1091
        %vm1093 = vcmask 257024
        %1094 = vst.msk [vmem:[%s593] sm:$0xf] %vm1093, %v1092
        %p1095 = scmp.lt.s32.totalorder %s30, 1
        %s1096 = scalar_select %p1095, %s30, 1
        %s1097 = smul.addr %s1096, 4
        %s1098 = scalar_lea.vmem %s14, %s1097
        // Predicated region
        $region109: #{encoder_decoder_forward.7} parent=75 // pred_check
          %p1099 = pneg %p352
        $region110: #{encoder_decoder_forward.7} parent=75 // pred_check_branch
          %1101 = sbr.rel (%p1099) target = $region112
        $region111: #{encoder_decoder_forward.7} parent=75 // pred_region
          _
        $region112: #{encoder_decoder_forward.7} parent=75 // pred_fallthru
          _
      $region76: #{encoder_decoder_forward.7} parent=5 // pred_fallthru
        _
      %p1102 = scmp.le.s32.totalorder 2, %s25
      // Predicated region
      $region113: #{encoder_decoder_forward.7} parent=5 // pred_check
        %p1103 = pneg %p1102
      $region114: #{encoder_decoder_forward.7} parent=5 // pred_check_branch
        %1105 = sbr.rel (%p1103) target = $region116
      $region115: #{encoder_decoder_forward.7} parent=5 // pred_region
        %s1106 = ssub.s32 %s25, 2
        // Predicated region
        $region117: #{encoder_decoder_forward.7} parent=115 // pred_check
          %p1107 = pneg %p358
        $region118: #{encoder_decoder_forward.7} parent=115 // pred_check_branch
          %1109 = sbr.rel (%p1107) target = $region120
        $region119: #{encoder_decoder_forward.7} parent=115 // pred_region
          %p1110 = scmp.lt.s32.totalorder %s31, 1
          %s1111 = scalar_select %p1110, %s31, 1
          %s1112 = smul.addr %s1111, 4
          %s1113 = scalar_lea.vmem %s14, %s1112
        $region120: #{encoder_decoder_forward.7} parent=115 // pred_fallthru
          _
      $region116: #{encoder_decoder_forward.7} parent=5 // pred_fallthru
        _
    $region6: #{encoder_decoder_forward.7} parent=1 // loop_footer
      %s29 = sadd.s32 1, %s25
    $region7: #{encoder_decoder_forward.7} parent=1 // loop_footer_branch
      %24 = sbr.rel target = $region3
    $region8: #{encoder_decoder_forward.7} parent=1 // loop_exit
      _
    %1114 = vsyncpa [#allocation3], 1
    %s1115 = scalar_lea.sflag [#allocation3], 1
    %1116 = vsyncpa %s1115, 1
    %1117 = vsyncpa [#allocation5], 1
    %1118 = vsyncpa [#allocation8], 1
    %1119 = vsyncpa [#allocation11], 1
    %1120 = vsyncpa [#allocation14], 1

// kernel: encoder_decoder_forward.6
$region0: #{encoder_decoder_forward.6}
  #allocation0 [shape = 'u32[]', space=smem, size = 0x4, offset = 0x4, fixed_abs, tag = 'smem constant byte address 0x4 - core index']
  #allocation1 [shape = 'u32[72,128]{1,0:T(1,128)}', space=vmem, size = 0x9000, scoped, tag = 'internal scratch']
  %s0 = inlined_call_operand.vmem [shape: bf16[2,8,32], index: 0, kind: input, shape index: {}]
  %s1 = inlined_call_operand.vmem [shape: bf16[2,8,32], index: 1, kind: input, shape index: {}]
  %s2 = inlined_call_operand.vmem [shape: f32[2,1,8], index: 2, kind: input, shape index: {}]
  %s3 = inlined_call_operand.vmem [shape: f32[2,1,8], index: 3, kind: input, shape index: {}]
  %s4 = inlined_call_operand.vmem [shape: bf16[32,96], index: 4, kind: input, shape index: {}]
  %s5 = inlined_call_operand.vmem [shape: f32[1,96], index: 5, kind: input, shape index: {}]
  %s6 = inlined_call_operand.vmem [shape: bf16[32,32], index: 6, kind: input, shape index: {}]
  %s7 = inlined_call_operand.vmem [shape: f32[1,32], index: 7, kind: input, shape index: {}]
  %s8 = inlined_call_operand.vmem [shape: f32[1,32], index: 8, kind: input, shape index: {}]
  %s9 = inlined_call_operand.vmem [shape: f32[1,32], index: 9, kind: input, shape index: {}]
  %s10 = inlined_call_operand.vmem [shape: bf16[32,32], index: 10, kind: input, shape index: {}]
  %s11 = inlined_call_operand.vmem [shape: f32[1,32], index: 11, kind: input, shape index: {}]
  %s12 = inlined_call_operand.vmem [shape: bf16[32,64], index: 12, kind: input, shape index: {}]
  %s13 = inlined_call_operand.vmem [shape: f32[1,64], index: 13, kind: input, shape index: {}]
  %s14 = inlined_call_operand.vmem [shape: bf16[32,32], index: 14, kind: input, shape index: {}]
  %s15 = inlined_call_operand.vmem [shape: f32[1,32], index: 15, kind: input, shape index: {}]
  %s16 = inlined_call_operand.vmem [shape: f32[1,32], index: 16, kind: input, shape index: {}]
  %s17 = inlined_call_operand.vmem [shape: f32[1,32], index: 17, kind: input, shape index: {}]
  %s18 = inlined_call_operand.vmem [shape: bf16[32,64], index: 18, kind: input, shape index: {}]
  %s19 = inlined_call_operand.vmem [shape: f32[1,64], index: 19, kind: input, shape index: {}]
  %s20 = inlined_call_operand.vmem [shape: bf16[64,32], index: 20, kind: input, shape index: {}]
  %s21 = inlined_call_operand.vmem [shape: f32[1,32], index: 21, kind: input, shape index: {}]
  %s22 = inlined_call_operand.hbm [shape: f32[1,32], index: 22, kind: input, shape index: {}]
  %s23 = inlined_call_operand.hbm [shape: f32[1,32], index: 23, kind: input, shape index: {}]
  %s24 = inlined_call_operand.vmem [shape: bf16[2,8,32], index: 24, kind: output, shape index: {}]
  %s25 = sld [smem:[#allocation0]]
  $region137: #{encoder_decoder_forward.6} parent=0
    _
  %s27 = ssub.s32 1, %s25
  %s28 = scalar_select 0, %s27, %s25
  $region1: #{encoder_decoder_forward.6} parent=0
    #allocation2 [shape = 'u8[512]{0}', space=vmem, size = 0x400, scoped, tag = 'input window, operand 22, single buffered']
    #allocation3 [shape = 's32[2]{0}', space=sflag, size = 0x8, scoped, tag = 'scoped memory for encoder_decoder_forward.6']
    #allocation4 [shape = 'u8[512]{0}', space=vmem, size = 0x400, scoped, tag = 'input window, operand 23, single buffered']
    #allocation5 [shape = 's32[1]{0}', space=sflag, size = 0x4, scoped, tag = 'scoped memory for encoder_decoder_forward.6']
    %29 = vsyncpa [#allocation3], 0
    %30 = vsyncpa [#allocation5], 0
    loop: start=0, step=1, limit=4
    $region2: #{encoder_decoder_forward.6} parent=1 // loop_pre_header
      _
    $region3: #{encoder_decoder_forward.6} parent=1 // loop_header
      %s32 = sphi 0, %s36
      %p33 = scmp.ge.s32.totalorder %s32, 4
      %s42 = sphi 0, %s44
      %s45 = sphi 0, %s42
      %s46 = sphi 0, %s45
      %s62 = sphi 0, %s46
      %s68 = sphi 0, %s70
      %s71 = sphi 0, %s68
      %s72 = sphi 0, %s71
      %s88 = sphi 0, %s72
      %s94 = sphi 0, %s96
      %s97 = sphi 0, %s94
      %s98 = sphi 0, %s97
      %s114 = sphi 0, %s98
      %s120 = sphi 0, %s122
      %s123 = sphi 0, %s120
      %s124 = sphi 0, %s123
      %s140 = sphi 0, %s124
      %s144 = sphi 0, %s144
      %s146 = sphi 0, %s144
      %s147 = sphi 0, %s146
      %s161 = sphi 0, %s147
      %s165 = sphi 0, %s165
      %s167 = sphi 0, %s165
      %s168 = sphi 0, %s167
      %s182 = sphi 0, %s168
      %s186 = sphi 0, %s186
      %s188 = sphi 0, %s186
      %s189 = sphi 0, %s188
      %s203 = sphi 0, %s189
      %s207 = sphi 0, %s207
      %s209 = sphi 0, %s207
      %s210 = sphi 0, %s209
      %s224 = sphi 0, %s210
      %s228 = sphi 0, %s228
      %s230 = sphi 0, %s228
      %s231 = sphi 0, %s230
      %s245 = sphi 0, %s231
      %s249 = sphi 0, %s249
      %s251 = sphi 0, %s249
      %s252 = sphi 0, %s251
      %s266 = sphi 0, %s252
      %s270 = sphi 0, %s270
      %s272 = sphi 0, %s270
      %s273 = sphi 0, %s272
      %s287 = sphi 0, %s273
      %s291 = sphi 0, %s291
      %s293 = sphi 0, %s291
      %s294 = sphi 0, %s293
      %s308 = sphi 0, %s294
      %s312 = sphi 0, %s312
      %s314 = sphi 0, %s312
      %s315 = sphi 0, %s314
      %s329 = sphi 0, %s315
      %s333 = sphi 0, %s333
      %s335 = sphi 0, %s333
      %s336 = sphi 0, %s335
      %s350 = sphi 0, %s336
      %s354 = sphi 0, %s354
      %s356 = sphi 0, %s354
      %s357 = sphi 0, %s356
      %s371 = sphi 0, %s357
      %s375 = sphi 0, %s375
      %s377 = sphi 0, %s375
      %s378 = sphi 0, %s377
      %s392 = sphi 0, %s378
      %s396 = sphi 0, %s396
      %s398 = sphi 0, %s396
      %s399 = sphi 0, %s398
      %s413 = sphi 0, %s399
      %s417 = sphi 0, %s417
      %s419 = sphi 0, %s417
      %s420 = sphi 0, %s419
      %s434 = sphi 0, %s420
      %s438 = sphi 0, %s438
      %s440 = sphi 0, %s438
      %s441 = sphi 0, %s440
      %s455 = sphi 0, %s441
      %s459 = sphi 0, %s459
      %s461 = sphi 0, %s459
      %s462 = sphi 0, %s461
      %s476 = sphi 0, %s462
      %s480 = sphi 0, %s480
      %s482 = sphi 0, %s480
      %s483 = sphi 0, %s482
      %s497 = sphi 0, %s483
      %s501 = sphi 0, %s501
      %s503 = sphi 0, %s501
      %s504 = sphi 0, %s503
      %s518 = sphi 0, %s504
      %s522 = sphi 0, %s522
      %s524 = sphi 0, %s522
      %s525 = sphi 0, %s524
      %s539 = sphi 0, %s525
      %s543 = sphi 0, %s543
      %s545 = sphi 0, %s543
      %s546 = sphi 0, %s545
      %s560 = sphi 0, %s546
      %s566 = sphi 0, %s568
      %s569 = sphi 0, %s566
      %s570 = sphi 0, %s569
      %s586 = sphi 0, %s570
    $region4: #{encoder_decoder_forward.6} parent=1 // loop_header_branch
      %35 = sbr.rel (%p33) target = $region8
    $region5: #{encoder_decoder_forward.6} parent=1 // loop_body
      %s37 = ssub.s32 %s32, 1
      %s38 = ssub.s32 %s32, 2
      %s39 = sadd.s32 %s32, 1
      %s40 = ssub.s32 %s32, %s39
      %p41 = scmp.eq.s32.totalorder %s40, 0
      %s43 = sadd.s32 %s42, 1
      %s44 = scalar_select %p41, %s42, %s43
      %p47 = pneg %p41
      %p48 = scmp.eq.s32.totalorder %s32, 1
      %p49 = por %p47, %p48
      %p50 = scmp.ne.s32.totalorder %s42, %s45
      %p51 = scmp.eq.s32.totalorder %s32, 0
      %p52 = por %p50, %p51
      %p53 = scmp.ne.s32.totalorder %s42, %s45
      %p54 = scmp.eq.s32.totalorder %s37, 1
      %p55 = por %p53, %p54
      %p56 = scmp.ne.s32.totalorder %s45, %s46
      %p57 = scmp.eq.s32.totalorder %s37, 0
      %p58 = por %p56, %p57
      %p59 = scmp.ne.s32.totalorder %s45, %s46
      %p60 = scmp.eq.s32.totalorder %s38, 1
      %p61 = por %p59, %p60
      %p63 = scmp.ne.s32.totalorder %s46, %s62
      %p64 = scmp.eq.s32.totalorder %s38, 0
      %p65 = por %p63, %p64
      %s66 = ssub.s32 %s32, %s39
      %p67 = scmp.eq.s32.totalorder %s66, 0
      %s69 = sadd.s32 %s68, 1
      %s70 = scalar_select %p67, %s68, %s69
      %p73 = pneg %p67
      %p74 = scmp.eq.s32.totalorder %s32, 1
      %p75 = por %p73, %p74
      %p76 = scmp.ne.s32.totalorder %s68, %s71
      %p77 = scmp.eq.s32.totalorder %s32, 0
      %p78 = por %p76, %p77
      %p79 = scmp.ne.s32.totalorder %s68, %s71
      %p80 = scmp.eq.s32.totalorder %s37, 1
      %p81 = por %p79, %p80
      %p82 = scmp.ne.s32.totalorder %s71, %s72
      %p83 = scmp.eq.s32.totalorder %s37, 0
      %p84 = por %p82, %p83
      %p85 = scmp.ne.s32.totalorder %s71, %s72
      %p86 = scmp.eq.s32.totalorder %s38, 1
      %p87 = por %p85, %p86
      %p89 = scmp.ne.s32.totalorder %s72, %s88
      %p90 = scmp.eq.s32.totalorder %s38, 0
      %p91 = por %p89, %p90
      %s92 = ssub.s32 %s32, %s39
      %p93 = scmp.eq.s32.totalorder %s92, 0
      %s95 = sadd.s32 %s94, 1
      %s96 = scalar_select %p93, %s94, %s95
      %p99 = pneg %p93
      %p100 = scmp.eq.s32.totalorder %s32, 1
      %p101 = por %p99, %p100
      %p102 = scmp.ne.s32.totalorder %s94, %s97
      %p103 = scmp.eq.s32.totalorder %s32, 0
      %p104 = por %p102, %p103
      %p105 = scmp.ne.s32.totalorder %s94, %s97
      %p106 = scmp.eq.s32.totalorder %s37, 1
      %p107 = por %p105, %p106
      %p108 = scmp.ne.s32.totalorder %s97, %s98
      %p109 = scmp.eq.s32.totalorder %s37, 0
      %p110 = por %p108, %p109
      %p111 = scmp.ne.s32.totalorder %s97, %s98
      %p112 = scmp.eq.s32.totalorder %s38, 1
      %p113 = por %p111, %p112
      %p115 = scmp.ne.s32.totalorder %s98, %s114
      %p116 = scmp.eq.s32.totalorder %s38, 0
      %p117 = por %p115, %p116
      %s118 = ssub.s32 %s32, %s39
      %p119 = scmp.eq.s32.totalorder %s118, 0
      %s121 = sadd.s32 %s120, 1
      %s122 = scalar_select %p119, %s120, %s121
      %p125 = pneg %p119
      %p126 = scmp.eq.s32.totalorder %s32, 1
      %p127 = por %p125, %p126
      %p128 = scmp.ne.s32.totalorder %s120, %s123
      %p129 = scmp.eq.s32.totalorder %s32, 0
      %p130 = por %p128, %p129
      %p131 = scmp.ne.s32.totalorder %s120, %s123
      %p132 = scmp.eq.s32.totalorder %s37, 1
      %p133 = por %p131, %p132
      %p134 = scmp.ne.s32.totalorder %s123, %s124
      %p135 = scmp.eq.s32.totalorder %s37, 0
      %p136 = por %p134, %p135
      %p137 = scmp.ne.s32.totalorder %s123, %s124
      %p138 = scmp.eq.s32.totalorder %s38, 1
      %p139 = por %p137, %p138
      %p141 = scmp.ne.s32.totalorder %s124, %s140
      %p142 = scmp.eq.s32.totalorder %s38, 0
      %p143 = por %p141, %p142
      %s145 = sadd.s32 %s144, 1
      %p148 = scmp.eq.s32.totalorder %s32, 1
      %p149 = scmp.ne.s32.totalorder %s144, %s146
      %p150 = scmp.eq.s32.totalorder %s32, 0
      %p151 = por %p149, %p150
      %p152 = scmp.ne.s32.totalorder %s144, %s146
      %p153 = scmp.eq.s32.totalorder %s37, 1
      %p154 = por %p152, %p153
      %p155 = scmp.ne.s32.totalorder %s146, %s147
      %p156 = scmp.eq.s32.totalorder %s37, 0
      %p157 = por %p155, %p156
      %p158 = scmp.ne.s32.totalorder %s146, %s147
      %p159 = scmp.eq.s32.totalorder %s38, 1
      %p160 = por %p158, %p159
      %p162 = scmp.ne.s32.totalorder %s147, %s161
      %p163 = scmp.eq.s32.totalorder %s38, 0
      %p164 = por %p162, %p163
      %s166 = sadd.s32 %s165, 1
      %p169 = scmp.eq.s32.totalorder %s32, 1
      %p170 = scmp.ne.s32.totalorder %s165, %s167
      %p171 = scmp.eq.s32.totalorder %s32, 0
      %p172 = por %p170, %p171
      %p173 = scmp.ne.s32.totalorder %s165, %s167
      %p174 = scmp.eq.s32.totalorder %s37, 1
      %p175 = por %p173, %p174
      %p176 = scmp.ne.s32.totalorder %s167, %s168
      %p177 = scmp.eq.s32.totalorder %s37, 0
      %p178 = por %p176, %p177
      %p179 = scmp.ne.s32.totalorder %s167, %s168
      %p180 = scmp.eq.s32.totalorder %s38, 1
      %p181 = por %p179, %p180
      %p183 = scmp.ne.s32.totalorder %s168, %s182
      %p184 = scmp.eq.s32.totalorder %s38, 0
      %p185 = por %p183, %p184
      %s187 = sadd.s32 %s186, 1
      %p190 = scmp.eq.s32.totalorder %s32, 1
      %p191 = scmp.ne.s32.totalorder %s186, %s188
      %p192 = scmp.eq.s32.totalorder %s32, 0
      %p193 = por %p191, %p192
      %p194 = scmp.ne.s32.totalorder %s186, %s188
      %p195 = scmp.eq.s32.totalorder %s37, 1
      %p196 = por %p194, %p195
      %p197 = scmp.ne.s32.totalorder %s188, %s189
      %p198 = scmp.eq.s32.totalorder %s37, 0
      %p199 = por %p197, %p198
      %p200 = scmp.ne.s32.totalorder %s188, %s189
      %p201 = scmp.eq.s32.totalorder %s38, 1
      %p202 = por %p200, %p201
      %p204 = scmp.ne.s32.totalorder %s189, %s203
      %p205 = scmp.eq.s32.totalorder %s38, 0
      %p206 = por %p204, %p205
      %s208 = sadd.s32 %s207, 1
      %p211 = scmp.eq.s32.totalorder %s32, 1
      %p212 = scmp.ne.s32.totalorder %s207, %s209
      %p213 = scmp.eq.s32.totalorder %s32, 0
      %p214 = por %p212, %p213
      %p215 = scmp.ne.s32.totalorder %s207, %s209
      %p216 = scmp.eq.s32.totalorder %s37, 1
      %p217 = por %p215, %p216
      %p218 = scmp.ne.s32.totalorder %s209, %s210
      %p219 = scmp.eq.s32.totalorder %s37, 0
      %p220 = por %p218, %p219
      %p221 = scmp.ne.s32.totalorder %s209, %s210
      %p222 = scmp.eq.s32.totalorder %s38, 1
      %p223 = por %p221, %p222
      %p225 = scmp.ne.s32.totalorder %s210, %s224
      %p226 = scmp.eq.s32.totalorder %s38, 0
      %p227 = por %p225, %p226
      %s229 = sadd.s32 %s228, 1
      %p232 = scmp.eq.s32.totalorder %s32, 1
      %p233 = scmp.ne.s32.totalorder %s228, %s230
      %p234 = scmp.eq.s32.totalorder %s32, 0
      %p235 = por %p233, %p234
      %p236 = scmp.ne.s32.totalorder %s228, %s230
      %p237 = scmp.eq.s32.totalorder %s37, 1
      %p238 = por %p236, %p237
      %p239 = scmp.ne.s32.totalorder %s230, %s231
      %p240 = scmp.eq.s32.totalorder %s37, 0
      %p241 = por %p239, %p240
      %p242 = scmp.ne.s32.totalorder %s230, %s231
      %p243 = scmp.eq.s32.totalorder %s38, 1
      %p244 = por %p242, %p243
      %p246 = scmp.ne.s32.totalorder %s231, %s245
      %p247 = scmp.eq.s32.totalorder %s38, 0
      %p248 = por %p246, %p247
      %s250 = sadd.s32 %s249, 1
      %p253 = scmp.eq.s32.totalorder %s32, 1
      %p254 = scmp.ne.s32.totalorder %s249, %s251
      %p255 = scmp.eq.s32.totalorder %s32, 0
      %p256 = por %p254, %p255
      %p257 = scmp.ne.s32.totalorder %s249, %s251
      %p258 = scmp.eq.s32.totalorder %s37, 1
      %p259 = por %p257, %p258
      %p260 = scmp.ne.s32.totalorder %s251, %s252
      %p261 = scmp.eq.s32.totalorder %s37, 0
      %p262 = por %p260, %p261
      %p263 = scmp.ne.s32.totalorder %s251, %s252
      %p264 = scmp.eq.s32.totalorder %s38, 1
      %p265 = por %p263, %p264
      %p267 = scmp.ne.s32.totalorder %s252, %s266
      %p268 = scmp.eq.s32.totalorder %s38, 0
      %p269 = por %p267, %p268
      %s271 = sadd.s32 %s270, 1
      %p274 = scmp.eq.s32.totalorder %s32, 1
      %p275 = scmp.ne.s32.totalorder %s270, %s272
      %p276 = scmp.eq.s32.totalorder %s32, 0
      %p277 = por %p275, %p276
      %p278 = scmp.ne.s32.totalorder %s270, %s272
      %p279 = scmp.eq.s32.totalorder %s37, 1
      %p280 = por %p278, %p279
      %p281 = scmp.ne.s32.totalorder %s272, %s273
      %p282 = scmp.eq.s32.totalorder %s37, 0
      %p283 = por %p281, %p282
      %p284 = scmp.ne.s32.totalorder %s272, %s273
      %p285 = scmp.eq.s32.totalorder %s38, 1
      %p286 = por %p284, %p285
      %p288 = scmp.ne.s32.totalorder %s273, %s287
      %p289 = scmp.eq.s32.totalorder %s38, 0
      %p290 = por %p288, %p289
      %s292 = sadd.s32 %s291, 1
      %p295 = scmp.eq.s32.totalorder %s32, 1
      %p296 = scmp.ne.s32.totalorder %s291, %s293
      %p297 = scmp.eq.s32.totalorder %s32, 0
      %p298 = por %p296, %p297
      %p299 = scmp.ne.s32.totalorder %s291, %s293
      %p300 = scmp.eq.s32.totalorder %s37, 1
      %p301 = por %p299, %p300
      %p302 = scmp.ne.s32.totalorder %s293, %s294
      %p303 = scmp.eq.s32.totalorder %s37, 0
      %p304 = por %p302, %p303
      %p305 = scmp.ne.s32.totalorder %s293, %s294
      %p306 = scmp.eq.s32.totalorder %s38, 1
      %p307 = por %p305, %p306
      %p309 = scmp.ne.s32.totalorder %s294, %s308
      %p310 = scmp.eq.s32.totalorder %s38, 0
      %p311 = por %p309, %p310
      %s313 = sadd.s32 %s312, 1
      %p316 = scmp.eq.s32.totalorder %s32, 1
      %p317 = scmp.ne.s32.totalorder %s312, %s314
      %p318 = scmp.eq.s32.totalorder %s32, 0
      %p319 = por %p317, %p318
      %p320 = scmp.ne.s32.totalorder %s312, %s314
      %p321 = scmp.eq.s32.totalorder %s37, 1
      %p322 = por %p320, %p321
      %p323 = scmp.ne.s32.totalorder %s314, %s315
      %p324 = scmp.eq.s32.totalorder %s37, 0
      %p325 = por %p323, %p324
      %p326 = scmp.ne.s32.totalorder %s314, %s315
      %p327 = scmp.eq.s32.totalorder %s38, 1
      %p328 = por %p326, %p327
      %p330 = scmp.ne.s32.totalorder %s315, %s329
      %p331 = scmp.eq.s32.totalorder %s38, 0
      %p332 = por %p330, %p331
      %s334 = sadd.s32 %s333, 1
      %p337 = scmp.eq.s32.totalorder %s32, 1
      %p338 = scmp.ne.s32.totalorder %s333, %s335
      %p339 = scmp.eq.s32.totalorder %s32, 0
      %p340 = por %p338, %p339
      %p341 = scmp.ne.s32.totalorder %s333, %s335
      %p342 = scmp.eq.s32.totalorder %s37, 1
      %p343 = por %p341, %p342
      %p344 = scmp.ne.s32.totalorder %s335, %s336
      %p345 = scmp.eq.s32.totalorder %s37, 0
      %p346 = por %p344, %p345
      %p347 = scmp.ne.s32.totalorder %s335, %s336
      %p348 = scmp.eq.s32.totalorder %s38, 1
      %p349 = por %p347, %p348
      %p351 = scmp.ne.s32.totalorder %s336, %s350
      %p352 = scmp.eq.s32.totalorder %s38, 0
      %p353 = por %p351, %p352
      %s355 = sadd.s32 %s354, 1
      %p358 = scmp.eq.s32.totalorder %s32, 1
      %p359 = scmp.ne.s32.totalorder %s354, %s356
      %p360 = scmp.eq.s32.totalorder %s32, 0
      %p361 = por %p359, %p360
      %p362 = scmp.ne.s32.totalorder %s354, %s356
      %p363 = scmp.eq.s32.totalorder %s37, 1
      %p364 = por %p362, %p363
      %p365 = scmp.ne.s32.totalorder %s356, %s357
      %p366 = scmp.eq.s32.totalorder %s37, 0
      %p367 = por %p365, %p366
      %p368 = scmp.ne.s32.totalorder %s356, %s357
      %p369 = scmp.eq.s32.totalorder %s38, 1
      %p370 = por %p368, %p369
      %p372 = scmp.ne.s32.totalorder %s357, %s371
      %p373 = scmp.eq.s32.totalorder %s38, 0
      %p374 = por %p372, %p373
      %s376 = sadd.s32 %s375, 1
      %p379 = scmp.eq.s32.totalorder %s32, 1
      %p380 = scmp.ne.s32.totalorder %s375, %s377
      %p381 = scmp.eq.s32.totalorder %s32, 0
      %p382 = por %p380, %p381
      %p383 = scmp.ne.s32.totalorder %s375, %s377
      %p384 = scmp.eq.s32.totalorder %s37, 1
      %p385 = por %p383, %p384
      %p386 = scmp.ne.s32.totalorder %s377, %s378
      %p387 = scmp.eq.s32.totalorder %s37, 0
      %p388 = por %p386, %p387
      %p389 = scmp.ne.s32.totalorder %s377, %s378
      %p390 = scmp.eq.s32.totalorder %s38, 1
      %p391 = por %p389, %p390
      %p393 = scmp.ne.s32.totalorder %s378, %s392
      %p394 = scmp.eq.s32.totalorder %s38, 0
      %p395 = por %p393, %p394
      %s397 = sadd.s32 %s396, 1
      %p400 = scmp.eq.s32.totalorder %s32, 1
      %p401 = scmp.ne.s32.totalorder %s396, %s398
      %p402 = scmp.eq.s32.totalorder %s32, 0
      %p403 = por %p401, %p402
      %p404 = scmp.ne.s32.totalorder %s396, %s398
      %p405 = scmp.eq.s32.totalorder %s37, 1
      %p406 = por %p404, %p405
      %p407 = scmp.ne.s32.totalorder %s398, %s399
      %p408 = scmp.eq.s32.totalorder %s37, 0
      %p409 = por %p407, %p408
      %p410 = scmp.ne.s32.totalorder %s398, %s399
      %p411 = scmp.eq.s32.totalorder %s38, 1
      %p412 = por %p410, %p411
      %p414 = scmp.ne.s32.totalorder %s399, %s413
      %p415 = scmp.eq.s32.totalorder %s38, 0
      %p416 = por %p414, %p415
      %s418 = sadd.s32 %s417, 1
      %p421 = scmp.eq.s32.totalorder %s32, 1
      %p422 = scmp.ne.s32.totalorder %s417, %s419
      %p423 = scmp.eq.s32.totalorder %s32, 0
      %p424 = por %p422, %p423
      %p425 = scmp.ne.s32.totalorder %s417, %s419
      %p426 = scmp.eq.s32.totalorder %s37, 1
      %p427 = por %p425, %p426
      %p428 = scmp.ne.s32.totalorder %s419, %s420
      %p429 = scmp.eq.s32.totalorder %s37, 0
      %p430 = por %p428, %p429
      %p431 = scmp.ne.s32.totalorder %s419, %s420
      %p432 = scmp.eq.s32.totalorder %s38, 1
      %p433 = por %p431, %p432
      %p435 = scmp.ne.s32.totalorder %s420, %s434
      %p436 = scmp.eq.s32.totalorder %s38, 0
      %p437 = por %p435, %p436
      %s439 = sadd.s32 %s438, 1
      %p442 = scmp.eq.s32.totalorder %s32, 1
      %p443 = scmp.ne.s32.totalorder %s438, %s440
      %p444 = scmp.eq.s32.totalorder %s32, 0
      %p445 = por %p443, %p444
      %p446 = scmp.ne.s32.totalorder %s438, %s440
      %p447 = scmp.eq.s32.totalorder %s37, 1
      %p448 = por %p446, %p447
      %p449 = scmp.ne.s32.totalorder %s440, %s441
      %p450 = scmp.eq.s32.totalorder %s37, 0
      %p451 = por %p449, %p450
      %p452 = scmp.ne.s32.totalorder %s440, %s441
      %p453 = scmp.eq.s32.totalorder %s38, 1
      %p454 = por %p452, %p453
      %p456 = scmp.ne.s32.totalorder %s441, %s455
      %p457 = scmp.eq.s32.totalorder %s38, 0
      %p458 = por %p456, %p457
      %s460 = sadd.s32 %s459, 1
      %p463 = scmp.eq.s32.totalorder %s32, 1
      %p464 = scmp.ne.s32.totalorder %s459, %s461
      %p465 = scmp.eq.s32.totalorder %s32, 0
      %p466 = por %p464, %p465
      %p467 = scmp.ne.s32.totalorder %s459, %s461
      %p468 = scmp.eq.s32.totalorder %s37, 1
      %p469 = por %p467, %p468
      %p470 = scmp.ne.s32.totalorder %s461, %s462
      %p471 = scmp.eq.s32.totalorder %s37, 0
      %p472 = por %p470, %p471
      %p473 = scmp.ne.s32.totalorder %s461, %s462
      %p474 = scmp.eq.s32.totalorder %s38, 1
      %p475 = por %p473, %p474
      %p477 = scmp.ne.s32.totalorder %s462, %s476
      %p478 = scmp.eq.s32.totalorder %s38, 0
      %p479 = por %p477, %p478
      %s481 = sadd.s32 %s480, 1
      %p484 = scmp.eq.s32.totalorder %s32, 1
      %p485 = scmp.ne.s32.totalorder %s480, %s482
      %p486 = scmp.eq.s32.totalorder %s32, 0
      %p487 = por %p485, %p486
      %p488 = scmp.ne.s32.totalorder %s480, %s482
      %p489 = scmp.eq.s32.totalorder %s37, 1
      %p490 = por %p488, %p489
      %p491 = scmp.ne.s32.totalorder %s482, %s483
      %p492 = scmp.eq.s32.totalorder %s37, 0
      %p493 = por %p491, %p492
      %p494 = scmp.ne.s32.totalorder %s482, %s483
      %p495 = scmp.eq.s32.totalorder %s38, 1
      %p496 = por %p494, %p495
      %p498 = scmp.ne.s32.totalorder %s483, %s497
      %p499 = scmp.eq.s32.totalorder %s38, 0
      %p500 = por %p498, %p499
      %s502 = sadd.s32 %s501, 1
      %p505 = scmp.eq.s32.totalorder %s32, 1
      %p506 = scmp.ne.s32.totalorder %s501, %s503
      %p507 = scmp.eq.s32.totalorder %s32, 0
      %p508 = por %p506, %p507
      %p509 = scmp.ne.s32.totalorder %s501, %s503
      %p510 = scmp.eq.s32.totalorder %s37, 1
      %p511 = por %p509, %p510
      %p512 = scmp.ne.s32.totalorder %s503, %s504
      %p513 = scmp.eq.s32.totalorder %s37, 0
      %p514 = por %p512, %p513
      %p515 = scmp.ne.s32.totalorder %s503, %s504
      %p516 = scmp.eq.s32.totalorder %s38, 1
      %p517 = por %p515, %p516
      %p519 = scmp.ne.s32.totalorder %s504, %s518
      %p520 = scmp.eq.s32.totalorder %s38, 0
      %p521 = por %p519, %p520
      %s523 = sadd.s32 %s522, 1
      %p526 = scmp.eq.s32.totalorder %s32, 1
      %p527 = scmp.ne.s32.totalorder %s522, %s524
      %p528 = scmp.eq.s32.totalorder %s32, 0
      %p529 = por %p527, %p528
      %p530 = scmp.ne.s32.totalorder %s522, %s524
      %p531 = scmp.eq.s32.totalorder %s37, 1
      %p532 = por %p530, %p531
      %p533 = scmp.ne.s32.totalorder %s524, %s525
      %p534 = scmp.eq.s32.totalorder %s37, 0
      %p535 = por %p533, %p534
      %p536 = scmp.ne.s32.totalorder %s524, %s525
      %p537 = scmp.eq.s32.totalorder %s38, 1
      %p538 = por %p536, %p537
      %p540 = scmp.ne.s32.totalorder %s525, %s539
      %p541 = scmp.eq.s32.totalorder %s38, 0
      %p542 = por %p540, %p541
      %s544 = sadd.s32 %s543, 1
      %p547 = scmp.eq.s32.totalorder %s32, 1
      %p548 = scmp.ne.s32.totalorder %s543, %s545
      %p549 = scmp.eq.s32.totalorder %s32, 0
      %p550 = por %p548, %p549
      %p551 = scmp.ne.s32.totalorder %s543, %s545
      %p552 = scmp.eq.s32.totalorder %s37, 1
      %p553 = por %p551, %p552
      %p554 = scmp.ne.s32.totalorder %s545, %s546
      %p555 = scmp.eq.s32.totalorder %s37, 0
      %p556 = por %p554, %p555
      %p557 = scmp.ne.s32.totalorder %s545, %s546
      %p558 = scmp.eq.s32.totalorder %s38, 1
      %p559 = por %p557, %p558
      %p561 = scmp.ne.s32.totalorder %s546, %s560
      %p562 = scmp.eq.s32.totalorder %s38, 0
      %p563 = por %p561, %p562
      %s564 = ssub.s32 %s32, %s39
      %p565 = scmp.eq.s32.totalorder %s564, 0
      %s567 = sadd.s32 %s566, 1
      %s568 = scalar_select %p565, %s566, %s567
      %p571 = pneg %p565
      %p572 = scmp.eq.s32.totalorder %s32, 1
      %p573 = por %p571, %p572
      %p574 = scmp.ne.s32.totalorder %s566, %s569
      %p575 = scmp.eq.s32.totalorder %s32, 0
      %p576 = por %p574, %p575
      %p577 = scmp.ne.s32.totalorder %s566, %s569
      %p578 = scmp.eq.s32.totalorder %s37, 1
      %p579 = por %p577, %p578
      %p580 = scmp.ne.s32.totalorder %s569, %s570
      %p581 = scmp.eq.s32.totalorder %s37, 0
      %p582 = por %p580, %p581
      %p583 = scmp.ne.s32.totalorder %s569, %s570
      %p584 = scmp.eq.s32.totalorder %s38, 1
      %p585 = por %p583, %p584
      %p587 = scmp.ne.s32.totalorder %s570, %s586
      %p588 = scmp.eq.s32.totalorder %s38, 0
      %p589 = por %p587, %p588
      %p590 = scmp.le.s32.totalorder 1, %s32
      %p591 = scmp.lt.s32.totalorder %s32, 3
      %p592 = pnand %p590, %p591
      %p593 = pneg %p592
      // Predicated region
      $region9: #{encoder_decoder_forward.6} parent=5 // pred_check
        _
      $region10: #{encoder_decoder_forward.6} parent=5 // pred_check_branch
        %595 = sbr.rel (%p592) target = $region12
      $region11: #{encoder_decoder_forward.6} parent=5 // pred_region
        %s596 = ssub.s32 %s32, 1
        // Predicated region
        $region13: #{encoder_decoder_forward.6} parent=11 // pred_check
          %p597 = pneg %p157
        $region14: #{encoder_decoder_forward.6} parent=11 // pred_check_branch
          %599 = sbr.rel (%p597) target = $region16
        $region15: #{encoder_decoder_forward.6} parent=11 // pred_region
          _
        $region16: #{encoder_decoder_forward.6} parent=11 // pred_fallthru
          _
        // Predicated region
        $region17: #{encoder_decoder_forward.6} parent=11 // pred_check
          %p600 = pneg %p178
        $region18: #{encoder_decoder_forward.6} parent=11 // pred_check_branch
          %602 = sbr.rel (%p600) target = $region20
        $region19: #{encoder_decoder_forward.6} parent=11 // pred_region
          _
        $region20: #{encoder_decoder_forward.6} parent=11 // pred_fallthru
          _
        // Predicated region
        $region21: #{encoder_decoder_forward.6} parent=11 // pred_check
          %p603 = pneg %p199
        $region22: #{encoder_decoder_forward.6} parent=11 // pred_check_branch
          %605 = sbr.rel (%p603) target = $region24
        $region23: #{encoder_decoder_forward.6} parent=11 // pred_region
          _
        $region24: #{encoder_decoder_forward.6} parent=11 // pred_fallthru
          _
        // Predicated region
        $region25: #{encoder_decoder_forward.6} parent=11 // pred_check
          %p606 = pneg %p220
        $region26: #{encoder_decoder_forward.6} parent=11 // pred_check_branch
          %608 = sbr.rel (%p606) target = $region28
        $region27: #{encoder_decoder_forward.6} parent=11 // pred_region
          _
        $region28: #{encoder_decoder_forward.6} parent=11 // pred_fallthru
          _
        // Predicated region
        $region29: #{encoder_decoder_forward.6} parent=11 // pred_check
          %p609 = pneg %p241
        $region30: #{encoder_decoder_forward.6} parent=11 // pred_check_branch
          %611 = sbr.rel (%p609) target = $region32
        $region31: #{encoder_decoder_forward.6} parent=11 // pred_region
          _
        $region32: #{encoder_decoder_forward.6} parent=11 // pred_fallthru
          _
        // Predicated region
        $region33: #{encoder_decoder_forward.6} parent=11 // pred_check
          %p612 = pneg %p262
        $region34: #{encoder_decoder_forward.6} parent=11 // pred_check_branch
          %614 = sbr.rel (%p612) target = $region36
        $region35: #{encoder_decoder_forward.6} parent=11 // pred_region
          _
        $region36: #{encoder_decoder_forward.6} parent=11 // pred_fallthru
          _
        // Predicated region
        $region37: #{encoder_decoder_forward.6} parent=11 // pred_check
          %p615 = pneg %p283
        $region38: #{encoder_decoder_forward.6} parent=11 // pred_check_branch
          %617 = sbr.rel (%p615) target = $region40
        $region39: #{encoder_decoder_forward.6} parent=11 // pred_region
          _
        $region40: #{encoder_decoder_forward.6} parent=11 // pred_fallthru
          _
        // Predicated region
        $region41: #{encoder_decoder_forward.6} parent=11 // pred_check
          %p618 = pneg %p304
        $region42: #{encoder_decoder_forward.6} parent=11 // pred_check_branch
          %620 = sbr.rel (%p618) target = $region44
        $region43: #{encoder_decoder_forward.6} parent=11 // pred_region
          _
        $region44: #{encoder_decoder_forward.6} parent=11 // pred_fallthru
          _
        // Predicated region
        $region45: #{encoder_decoder_forward.6} parent=11 // pred_check
          %p621 = pneg %p325
        $region46: #{encoder_decoder_forward.6} parent=11 // pred_check_branch
          %623 = sbr.rel (%p621) target = $region48
        $region47: #{encoder_decoder_forward.6} parent=11 // pred_region
          _
        $region48: #{encoder_decoder_forward.6} parent=11 // pred_fallthru
          _
        // Predicated region
        $region49: #{encoder_decoder_forward.6} parent=11 // pred_check
          %p624 = pneg %p346
        $region50: #{encoder_decoder_forward.6} parent=11 // pred_check_branch
          %626 = sbr.rel (%p624) target = $region52
        $region51: #{encoder_decoder_forward.6} parent=11 // pred_region
          _
        $region52: #{encoder_decoder_forward.6} parent=11 // pred_fallthru
          _
        // Predicated region
        $region53: #{encoder_decoder_forward.6} parent=11 // pred_check
          %p627 = pneg %p367
        $region54: #{encoder_decoder_forward.6} parent=11 // pred_check_branch
          %629 = sbr.rel (%p627) target = $region56
        $region55: #{encoder_decoder_forward.6} parent=11 // pred_region
          _
        $region56: #{encoder_decoder_forward.6} parent=11 // pred_fallthru
          _
        // Predicated region
        $region57: #{encoder_decoder_forward.6} parent=11 // pred_check
          %p630 = pneg %p388
        $region58: #{encoder_decoder_forward.6} parent=11 // pred_check_branch
          %632 = sbr.rel (%p630) target = $region60
        $region59: #{encoder_decoder_forward.6} parent=11 // pred_region
          _
        $region60: #{encoder_decoder_forward.6} parent=11 // pred_fallthru
          _
        // Predicated region
        $region61: #{encoder_decoder_forward.6} parent=11 // pred_check
          %p633 = pneg %p409
        $region62: #{encoder_decoder_forward.6} parent=11 // pred_check_branch
          %635 = sbr.rel (%p633) target = $region64
        $region63: #{encoder_decoder_forward.6} parent=11 // pred_region
          _
        $region64: #{encoder_decoder_forward.6} parent=11 // pred_fallthru
          _
        // Predicated region
        $region65: #{encoder_decoder_forward.6} parent=11 // pred_check
          %p636 = pneg %p430
        $region66: #{encoder_decoder_forward.6} parent=11 // pred_check_branch
          %638 = sbr.rel (%p636) target = $region68
        $region67: #{encoder_decoder_forward.6} parent=11 // pred_region
          _
        $region68: #{encoder_decoder_forward.6} parent=11 // pred_fallthru
          _
        // Predicated region
        $region69: #{encoder_decoder_forward.6} parent=11 // pred_check
          %p639 = pneg %p451
        $region70: #{encoder_decoder_forward.6} parent=11 // pred_check_branch
          %641 = sbr.rel (%p639) target = $region72
        $region71: #{encoder_decoder_forward.6} parent=11 // pred_region
          _
        $region72: #{encoder_decoder_forward.6} parent=11 // pred_fallthru
          _
        // Predicated region
        $region73: #{encoder_decoder_forward.6} parent=11 // pred_check
          %p642 = pneg %p472
        $region74: #{encoder_decoder_forward.6} parent=11 // pred_check_branch
          %644 = sbr.rel (%p642) target = $region76
        $region75: #{encoder_decoder_forward.6} parent=11 // pred_region
          _
        $region76: #{encoder_decoder_forward.6} parent=11 // pred_fallthru
          _
        // Predicated region
        $region77: #{encoder_decoder_forward.6} parent=11 // pred_check
          %p645 = pneg %p493
        $region78: #{encoder_decoder_forward.6} parent=11 // pred_check_branch
          %647 = sbr.rel (%p645) target = $region80
        $region79: #{encoder_decoder_forward.6} parent=11 // pred_region
          _
        $region80: #{encoder_decoder_forward.6} parent=11 // pred_fallthru
          _
        // Predicated region
        $region81: #{encoder_decoder_forward.6} parent=11 // pred_check
          %p648 = pneg %p514
        $region82: #{encoder_decoder_forward.6} parent=11 // pred_check_branch
          %650 = sbr.rel (%p648) target = $region84
        $region83: #{encoder_decoder_forward.6} parent=11 // pred_region
          _
        $region84: #{encoder_decoder_forward.6} parent=11 // pred_fallthru
          _
        // Predicated region
        $region85: #{encoder_decoder_forward.6} parent=11 // pred_check
          %p651 = pneg %p535
        $region86: #{encoder_decoder_forward.6} parent=11 // pred_check_branch
          %653 = sbr.rel (%p651) target = $region88
        $region87: #{encoder_decoder_forward.6} parent=11 // pred_region
          %655 = vsyncadd [#allocation3], 0
          %s657 = sshll.u32 %s22, 4
          %s658 = int_to_ptr.hbm [resolvable:$true] %s657
          %s659 = sshll.u32 [#allocation2], 4
          %s660 = int_to_ptr.vmem [resolvable:$true] %s659
          %662 = dma.hbm_to_vmem [thread:$0]  %s658, 16, %s660, [#allocation3]
        $region88: #{encoder_decoder_forward.6} parent=11 // pred_fallthru
          _
        // Predicated region
        $region89: #{encoder_decoder_forward.6} parent=11 // pred_check
          %p663 = pneg %p556
        $region90: #{encoder_decoder_forward.6} parent=11 // pred_check_branch
          %665 = sbr.rel (%p663) target = $region92
        $region91: #{encoder_decoder_forward.6} parent=11 // pred_region
          %667 = vsyncadd [#allocation5], 0
          %s669 = sshll.u32 %s23, 4
          %s670 = int_to_ptr.hbm [resolvable:$true] %s669
          %s671 = sshll.u32 [#allocation4], 4
          %s672 = int_to_ptr.vmem [resolvable:$true] %s671
          %674 = dma.hbm_to_vmem [thread:$0]  %s670, 16, %s672, [#allocation5]
        $region92: #{encoder_decoder_forward.6} parent=11 // pred_fallthru
          _
      $region12: #{encoder_decoder_forward.6} parent=5 // pred_fallthru
        _
      %p675 = scmp.lt.s32.totalorder %s32, 2
      // Predicated region
      $region93: #{encoder_decoder_forward.6} parent=5 // pred_check
        %p676 = pneg %p675
      $region94: #{encoder_decoder_forward.6} parent=5 // pred_check_branch
        %678 = sbr.rel (%p676) target = $region96
      $region95: #{encoder_decoder_forward.6} parent=5 // pred_region
        // Predicated region
        $region97: #{encoder_decoder_forward.6} parent=95 // pred_check
          %p679 = pneg %p52
        $region98: #{encoder_decoder_forward.6} parent=95 // pred_check_branch
          %681 = sbr.rel (%p679) target = $region100
        $region99: #{encoder_decoder_forward.6} parent=95 // pred_region
          %p682 = scmp.lt.s32.totalorder %s32, 1
          %s683 = scalar_select %p682, %s32, 1
          %s684 = smul.addr %s683, 4
          %s685 = scalar_lea.vmem %s0, %s684
        $region100: #{encoder_decoder_forward.6} parent=95 // pred_fallthru
          _
        // Predicated region
        $region101: #{encoder_decoder_forward.6} parent=95 // pred_check
          %p686 = pneg %p78
        $region102: #{encoder_decoder_forward.6} parent=95 // pred_check_branch
          %688 = sbr.rel (%p686) target = $region104
        $region103: #{encoder_decoder_forward.6} parent=95 // pred_region
          %p689 = scmp.lt.s32.totalorder %s32, 1
          %s690 = scalar_select %p689, %s32, 1
          %s691 = smul.addr %s690, 4
          %s692 = scalar_lea.vmem %s1, %s691
        $region104: #{encoder_decoder_forward.6} parent=95 // pred_fallthru
          _
        // Predicated region
        $region105: #{encoder_decoder_forward.6} parent=95 // pred_check
          %p693 = pneg %p104
        $region106: #{encoder_decoder_forward.6} parent=95 // pred_check_branch
          %695 = sbr.rel (%p693) target = $region108
        $region107: #{encoder_decoder_forward.6} parent=95 // pred_region
          %p696 = scmp.lt.s32.totalorder %s32, 1
          %s697 = scalar_select %p696, %s32, 1
          %s698 = scalar_lea.vmem %s2, %s697
        $region108: #{encoder_decoder_forward.6} parent=95 // pred_fallthru
          _
        // Predicated region
        $region109: #{encoder_decoder_forward.6} parent=95 // pred_check
          %p699 = pneg %p130
        $region110: #{encoder_decoder_forward.6} parent=95 // pred_check_branch
          %701 = sbr.rel (%p699) target = $region112
        $region111: #{encoder_decoder_forward.6} parent=95 // pred_region
          %p702 = scmp.lt.s32.totalorder %s32, 1
          %s703 = scalar_select %p702, %s32, 1
          %s704 = scalar_lea.vmem %s3, %s703
        $region112: #{encoder_decoder_forward.6} parent=95 // pred_fallthru
          _
      $region96: #{encoder_decoder_forward.6} parent=5 // pred_fallthru
        _
      %p705 = scmp.le.s32.totalorder 1, %s32
      %p706 = scmp.lt.s32.totalorder %s32, 3
      %p707 = pnand %p705, %p706
      %p708 = pneg %p707
      // Predicated region
      $region113: #{encoder_decoder_forward.6} parent=5 // pred_check
        _
      $region114: #{encoder_decoder_forward.6} parent=5 // pred_check_branch
        %710 = sbr.rel (%p707) target = $region116
      $region115: #{encoder_decoder_forward.6} parent=5 // pred_region
        %s711 = ssub.s32 %s32, 1
        // Predicated region
        $region117: #{encoder_decoder_forward.6} parent=115 // pred_check
          %p712 = pneg %p535
        $region118: #{encoder_decoder_forward.6} parent=115 // pred_check_branch
          %714 = sbr.rel (%p712) target = $region120
        $region119: #{encoder_decoder_forward.6} parent=115 // pred_region
          %716 = dma.done [#allocation3], 16
        $region120: #{encoder_decoder_forward.6} parent=115 // pred_fallthru
          _
        // Predicated region
        $region121: #{encoder_decoder_forward.6} parent=115 // pred_check
          %p717 = pneg %p556
        $region122: #{encoder_decoder_forward.6} parent=115 // pred_check_branch
          %719 = sbr.rel (%p717) target = $region124
        $region123: #{encoder_decoder_forward.6} parent=115 // pred_region
          %721 = dma.done [#allocation5], 16
        $region124: #{encoder_decoder_forward.6} parent=115 // pred_fallthru
          _
        %p722 = scmp.lt.s32.totalorder %s37, 1
        %s723 = scalar_select %p722, %s37, 1
        %s724 = smul.addr %s723, 4
        %s725 = scalar_lea.vmem %s0, %s724
        %p726 = pneg %p58
        %p727 = pneg %p55
        %p728 = scmp.lt.s32.totalorder %s37, 1
        %s729 = scalar_select %p728, %s37, 1
        %s730 = smul.addr %s729, 4
        %s731 = scalar_lea.vmem %s1, %s730
        %p732 = pneg %p84
        %p733 = pneg %p81
        %p734 = scmp.lt.s32.totalorder %s37, 1
        %s735 = scalar_select %p734, %s37, 1
        %s736 = scalar_lea.vmem %s2, %s735
        %p737 = pneg %p110
        %p738 = pneg %p107
        %p739 = scmp.lt.s32.totalorder %s37, 1
        %s740 = scalar_select %p739, %s37, 1
        %s741 = scalar_lea.vmem %s3, %s740
        %p742 = pneg %p136
        %p743 = pneg %p133
        %p744 = pneg %p157
        %p745 = pneg %p154
        %p746 = pneg %p178
        %p747 = pneg %p175
        %p748 = pneg %p199
        %p749 = pneg %p196
        %p750 = pneg %p220
        %p751 = pneg %p217
        %p752 = pneg %p241
        %p753 = pneg %p238
        %p754 = pneg %p262
        %p755 = pneg %p259
        %p756 = pneg %p283
        %p757 = pneg %p280
        %p758 = pneg %p304
        %p759 = pneg %p301
        %p760 = pneg %p325
        %p761 = pneg %p322
        %p762 = pneg %p346
        %p763 = pneg %p343
        %p764 = pneg %p367
        %p765 = pneg %p364
        %p766 = pneg %p388
        %p767 = pneg %p385
        %p768 = pneg %p409
        %p769 = pneg %p406
        %p770 = pneg %p430
        %p771 = pneg %p427
        %p772 = pneg %p451
        %p773 = pneg %p448
        %p774 = pneg %p472
        %p775 = pneg %p469
        %p776 = pneg %p493
        %p777 = pneg %p490
        %p778 = pneg %p514
        %p779 = pneg %p511
        %p780 = pneg %p535
        %p781 = pneg %p532
        %p782 = pneg %p556
        %p783 = pneg %p553
        %p784 = pneg %p582
        %p785 = pneg %p579
        %p786 = scmp.lt.s32.totalorder %s37, 1
        %s787 = scalar_select %p786, %s37, 1
        %s788 = smul.addr %s787, 4
        %s789 = scalar_lea.vmem %s24, %s788
        %p790 = scmp.lt.s32.totalorder %s37, 1
        %s791 = scalar_select %p790, %s37, 1
        %s792 = smul.addr %s791, 4
        %s793 = scalar_lea.vmem %s0, %s792
        %p794 = scmp.lt.s32.totalorder %s37, 1
        %s795 = scalar_select %p794, %s37, 1
        %s796 = smul.addr %s795, 4
        %s797 = scalar_lea.vmem %s1, %s796
        %p798 = scmp.lt.s32.totalorder %s37, 1
        %s799 = scalar_select %p798, %s37, 1
        %s800 = scalar_lea.vmem %s2, %s799
        %p801 = scmp.lt.s32.totalorder %s37, 1
        %s802 = scalar_select %p801, %s37, 1
        %s803 = scalar_lea.vmem %s3, %s802
        %p804 = scmp.lt.s32.totalorder %s37, 1
        %s805 = scalar_select %p804, %s37, 1
        %s806 = smul.addr %s805, 4
        %s807 = scalar_lea.vmem %s24, %s806
        %v809 = vld [vmem:[%s793] sm:$0xf]
        %v810 = vld [vmem:[%s797] sm:$0xf]
        %v811 = vunpack.c.l.bf16 %v809
        %v812 = vlaneseq
        %v813 = vshrl.u32 %v812, 7
        %v814 = vlaneseq
        %v815 = vand.u32 %v814, 127
        %vm816 = vcmp.gt.s32.totalorder %v815, %v813
        %v817 = vsel %vm816, -10000.0, 0.0
        %v818 = vld [vmem:[%s800] sm:$0x1]
        %vm819 = vcmp.eq.f32.partialorder %v818, 0.0
        %v820 = vsel %vm819, -10000.0, 0.0
        %v822 = vperm.slane %v820, 0
        %v824 = vadd.f32 %v817, %v822
        %v825 = vld [vmem:[%s803] sm:$0x1]
        %vm826 = vcmp.eq.f32.partialorder %v825, 0.0
        %v827 = vsel %vm826, -10000.0, 0.0
        %v828 = vld [vmem:[%s4] sm:$0xf]
        %v829 = vld [vmem:[%s4 + $0x4] sm:$0xf]
        %v830 = vld [vmem:[%s4 + $0x8] sm:$0xf]
        %v831 = vld [vmem:[%s4 + $0xc] sm:$0xf]
        %v832 = vld [vmem:[%s5] sm:$0x1]
        %v834 = vperm.slane %v832, 0
        %v840 = vunpack.c.l.b16 %v828
        %v841 = vunpack.c.l.b16 %v829
        %v842 = vunpack.c.l.b16 %v830
        %v843 = vunpack.c.l.b16 %v831
        %v844 = vpack.c.b16 %v841, %v840
        %v845 = vpack.c.b16 %v843, %v842
        %vm848 = vcmask 261120
        %v850 = vsel %vm848, %v809, 0
        %852 = vmatpush.bf16.msra.mxu0 0
        %853 = vmatpush.bf16.msra.mxu0 0
        %854 = vmatpush.bf16.msra.mxu0 0
        %855 = vmatpush.bf16.msra.mxu0 0
        %856 = vmatpush.bf16.msra.mxu0 0
        %857 = vmatpush.bf16.msra.mxu0 0
        %858 = vmatpush.bf16.msra.mxu0 %v845
        %859 = vmatpush.bf16.msra.mxu0 %v844
        %860 = vmatmul.bf16.gmra.mxu0 %v850
        %v861 = vpop.f32.mrf.mxu0
        %v862 = vadd.f32 %v834, %v861
        %v863 = vpop.f32.mrf.mxu0
        %864 = vdwg.mxu0
        %v865 = vmul.f32 %v862, 0.35355338
        %v866 = vpack.c.bf16 %v865, %v865
        %v867 = vpack.c.bf16 %v862, %v862
        %v869 = vunpack.c.l.b16 %v867
        %v870 = vpack.c.b16 %v869, %v869
        %871 = vrot.lane.b32.xlu0 %v870, 96
        %v872 = vpop.permute.xlu0 %871
        %vm873 = vcmask 64512
        %v875 = vsel %vm873, %v866, 0
        %v878 = vsel %vm873, %v872, 0
        %880 = vmatpush.bf16.xpose.msra.mxu0 0
        %881 = vmatpush.bf16.xpose.msra.mxu0 0
        %882 = vmatpush.bf16.xpose.msra.mxu0 0
        %883 = vmatpush.bf16.xpose.msra.mxu0 0
        %884 = vmatpush.bf16.xpose.msra.mxu0 0
        %885 = vmatpush.bf16.xpose.msra.mxu0 0
        %886 = vmatpush.bf16.xpose.msra.mxu0 0
        %887 = vmatpush.bf16.xpose.msra.mxu0 %v878
        %888 = vmatmul.bf16.gmra.mxu0 %v875
        %v889 = vpop.f32.mrf.mxu0
        %v890 = vadd.f32 %v824, %v889
        %v891 = vpop.f32.mrf.mxu0
        %892 = vdwg.mxu0
        %v893 = vsel %vm873, %v890, -inf
        %894 = vmax.xlane.f32.xlu0 %v893
        %v895 = vpop.xlane.xlu0 %894
        %v896 = vsub.f32 %v890, %v895
        %v897 = vmul.f32 %v896, 1.442695
        %v898 = vpow.pop %v897
        %v899 = vsel %vm873, %v898, 0.0
        %900 = vadd.xlane.f32.xlu0 %v899
        %v901 = vpop.xlane.xlu0 %900
        %v902 = vrcp.pop %v901
        %v903 = vmul.f32 %v898, %v902
        %v904 = vpack.c.bf16 %v903, %v903
        %905 = vrot.lane.b32.xlu0 %v870, 64
        %v906 = vpop.permute.xlu0 %905
        %v908 = vsel %vm873, %v904, 0
        %vm910 = vcmask 1043456
        %v912 = vsel %vm910, %v906, 0
        %914 = vmatpush.bf16.msra.mxu0 0
        %915 = vmatpush.bf16.msra.mxu0 0
        %916 = vmatpush.bf16.msra.mxu0 0
        %917 = vmatpush.bf16.msra.mxu0 0
        %918 = vmatpush.bf16.msra.mxu0 0
        %919 = vmatpush.bf16.msra.mxu0 0
        %920 = vmatpush.bf16.msra.mxu0 0
        %921 = vmatpush.bf16.msra.mxu0 %v912
        %922 = vmatmul.bf16.gmra.mxu0 %v908
        %v923 = vpop.f32.mrf.mxu0
        %v924 = vadd.f32 0.0, %v923
        %v925 = vpop.f32.mrf.mxu0
        %926 = vdwg.mxu0
        %v928 = vunpack.c.l.b16 %v866
        %v929 = vpack.c.b16 %v928, %v928
        %930 = vrot.lane.b32.xlu0 %v929, 120
        %v931 = vpop.permute.xlu0 %930
        %932 = vrot.lane.b32.xlu0 %v870, 88
        %v933 = vpop.permute.xlu0 %932
        %v935 = vsel %vm873, %v931, 0
        %v938 = vsel %vm873, %v933, 0
        %940 = vmatpush.bf16.xpose.msra.mxu0 0
        %941 = vmatpush.bf16.xpose.msra.mxu0 0
        %942 = vmatpush.bf16.xpose.msra.mxu0 0
        %943 = vmatpush.bf16.xpose.msra.mxu0 0
        %944 = vmatpush.bf16.xpose.msra.mxu0 0
        %945 = vmatpush.bf16.xpose.msra.mxu0 0
        %946 = vmatpush.bf16.xpose.msra.mxu0 0
        %947 = vmatpush.bf16.xpose.msra.mxu0 %v938
        %948 = vmatmul.bf16.gmra.mxu0 %v935
        %v949 = vpop.f32.mrf.mxu0
        %v950 = vadd.f32 %v824, %v949
        %v951 = vpop.f32.mrf.mxu0
        %952 = vdwg.mxu0
        %v953 = vsel %vm873, %v950, -inf
        %954 = vmax.xlane.f32.xlu0 %v953
        %v955 = vpop.xlane.xlu0 %954
        %v956 = vsub.f32 %v950, %v955
        %v957 = vmul.f32 %v956, 1.442695
        %v958 = vpow.pop %v957
        %v959 = vsel %vm873, %v958, 0.0
        %960 = vadd.xlane.f32.xlu0 %v959
        %v961 = vpop.xlane.xlu0 %960
        %v962 = vrcp.pop %v961
        %v963 = vmul.f32 %v958, %v962
        %v964 = vpack.c.bf16 %v963, %v963
        %965 = vrot.lane.b32.xlu0 %v870, 56
        %v966 = vpop.permute.xlu0 %965
        %v968 = vsel %vm873, %v964, 0
        %v971 = vsel %vm910, %v966, 0
        %973 = vmatpush.bf16.msra.mxu0 0
        %974 = vmatpush.bf16.msra.mxu0 0
        %975 = vmatpush.bf16.msra.mxu0 0
        %976 = vmatpush.bf16.msra.mxu0 0
        %977 = vmatpush.bf16.msra.mxu0 0
        %978 = vmatpush.bf16.msra.mxu0 0
        %979 = vmatpush.bf16.msra.mxu0 0
        %980 = vmatpush.bf16.msra.mxu0 %v971
        %981 = vmatmul.bf16.gmra.mxu0 %v968
        %v982 = vpop.f32.mrf.mxu0
        %v983 = vadd.f32 0.0, %v982
        %v984 = vpop.f32.mrf.mxu0
        %985 = vdwg.mxu0
        %986 = vrot.lane.b32.xlu0 %v929, 112
        %v987 = vpop.permute.xlu0 %986
        %988 = vrot.lane.b32.xlu0 %v870, 80
        %v989 = vpop.permute.xlu0 %988
        %v991 = vsel %vm873, %v987, 0
        %v994 = vsel %vm873, %v989, 0
        %996 = vmatpush.bf16.xpose.msra.mxu0 0
        %997 = vmatpush.bf16.xpose.msra.mxu0 0
        %998 = vmatpush.bf16.xpose.msra.mxu0 0
        %999 = vmatpush.bf16.xpose.msra.mxu0 0
        %1000 = vmatpush.bf16.xpose.msra.mxu0 0
        %1001 = vmatpush.bf16.xpose.msra.mxu0 0
        %1002 = vmatpush.bf16.xpose.msra.mxu0 0
        %1003 = vmatpush.bf16.xpose.msra.mxu0 %v994
        %1004 = vmatmul.bf16.gmra.mxu0 %v991
        %v1005 = vpop.f32.mrf.mxu0
        %v1006 = vadd.f32 %v824, %v1005
        %v1007 = vpop.f32.mrf.mxu0
        %1008 = vdwg.mxu0
        %v1009 = vsel %vm873, %v1006, -inf
        %1010 = vmax.xlane.f32.xlu0 %v1009
        %v1011 = vpop.xlane.xlu0 %1010
        %v1012 = vsub.f32 %v1006, %v1011
        %v1013 = vmul.f32 %v1012, 1.442695
        %v1014 = vpow.pop %v1013
        %v1015 = vsel %vm873, %v1014, 0.0
        %1016 = vadd.xlane.f32.xlu0 %v1015
        %v1017 = vpop.xlane.xlu0 %1016
        %v1018 = vrcp.pop %v1017
        %v1019 = vmul.f32 %v1014, %v1018
        %v1020 = vpack.c.bf16 %v1019, %v1019
        %1021 = vrot.lane.b32.xlu0 %v870, 48
        %v1022 = vpop.permute.xlu0 %1021
        %v1024 = vsel %vm873, %v1020, 0
        %v1027 = vsel %vm910, %v1022, 0
        %1029 = vmatpush.bf16.msra.mxu0 0
        %1030 = vmatpush.bf16.msra.mxu0 0
        %1031 = vmatpush.bf16.msra.mxu0 0
        %1032 = vmatpush.bf16.msra.mxu0 0
        %1033 = vmatpush.bf16.msra.mxu0 0
        %1034 = vmatpush.bf16.msra.mxu0 0
        %1035 = vmatpush.bf16.msra.mxu0 0
        %1036 = vmatpush.bf16.msra.mxu0 %v1027
        %1037 = vmatmul.bf16.gmra.mxu0 %v1024
        %v1038 = vpop.f32.mrf.mxu0
        %v1039 = vadd.f32 0.0, %v1038
        %v1040 = vpop.f32.mrf.mxu0
        %1041 = vdwg.mxu0
        %1042 = vrot.lane.b32.xlu0 %v929, 104
        %v1043 = vpop.permute.xlu0 %1042
        %1044 = vrot.lane.b32.xlu0 %v870, 72
        %v1045 = vpop.permute.xlu0 %1044
        %v1047 = vsel %vm873, %v1043, 0
        %v1050 = vsel %vm873, %v1045, 0
        %1052 = vmatpush.bf16.xpose.msra.mxu0 0
        %1053 = vmatpush.bf16.xpose.msra.mxu0 0
        %1054 = vmatpush.bf16.xpose.msra.mxu0 0
        %1055 = vmatpush.bf16.xpose.msra.mxu0 0
        %1056 = vmatpush.bf16.xpose.msra.mxu0 0
        %1057 = vmatpush.bf16.xpose.msra.mxu0 0
        %1058 = vmatpush.bf16.xpose.msra.mxu0 0
        %1059 = vmatpush.bf16.xpose.msra.mxu0 %v1050
        %1060 = vmatmul.bf16.gmra.mxu0 %v1047
        %v1061 = vpop.f32.mrf.mxu0
        %v1062 = vadd.f32 %v824, %v1061
        %v1063 = vpop.f32.mrf.mxu0
        %1064 = vdwg.mxu0
        %v1065 = vsel %vm873, %v1062, -inf
        %1066 = vmax.xlane.f32.xlu0 %v1065
        %v1067 = vpop.xlane.xlu0 %1066
        %v1068 = vsub.f32 %v1062, %v1067
        %v1069 = vmul.f32 %v1068, 1.442695
        %v1070 = vpow.pop %v1069
        %v1071 = vsel %vm873, %v1070, 0.0
        %1072 = vadd.xlane.f32.xlu0 %v1071
        %v1073 = vpop.xlane.xlu0 %1072
        %v1074 = vrcp.pop %v1073
        %v1075 = vmul.f32 %v1070, %v1074
        %v1076 = vpack.c.bf16 %v1075, %v1075
        %1077 = vrot.lane.b32.xlu0 %v870, 40
        %v1078 = vpop.permute.xlu0 %1077
        %v1080 = vsel %vm873, %v1076, 0
        %v1083 = vsel %vm910, %v1078, 0
        %1085 = vmatpush.bf16.msra.mxu0 0
        %1086 = vmatpush.bf16.msra.mxu0 0
        %1087 = vmatpush.bf16.msra.mxu0 0
        %1088 = vmatpush.bf16.msra.mxu0 0
        %1089 = vmatpush.bf16.msra.mxu0 0
        %1090 = vmatpush.bf16.msra.mxu0 0
        %1091 = vmatpush.bf16.msra.mxu0 0
        %1092 = vmatpush.bf16.msra.mxu0 %v1083
        %1093 = vmatmul.bf16.gmra.mxu0 %v1080
        %v1094 = vpop.f32.mrf.mxu0
        %v1095 = vadd.f32 0.0, %v1094
        %v1096 = vpop.f32.mrf.mxu0
        %1097 = vdwg.mxu0
        %1099 = vrot.lane.b32.xlu0 %v983, 8
        %v1100 = vpop.permute.xlu0 %1099
        %1103 = vrot.lane.b32.xlu0 %v1039, 16
        %v1104 = vpop.permute.xlu0 %1103
        %1107 = vrot.lane.b32.xlu0 %v1095, 24
        %v1108 = vpop.permute.xlu0 %1107
        %v1110 = vsel %vm873, %v924, %v1100
        %vm1111 = vcmask 130048
        %v1112 = vsel %vm1111, %v1110, %v1104
        %vm1113 = vcmask 195584
        %v1114 = vsel %vm1113, %v1112, %v1108
        %v1115 = vpack.c.bf16 %v1114, %v1114
        %v1116 = vld [vmem:[%s6] sm:$0xf]
        %v1117 = vld [vmem:[%s6 + $0x4] sm:$0xf]
        %v1118 = vld [vmem:[%s6 + $0x8] sm:$0xf]
        %v1119 = vld [vmem:[%s6 + $0xc] sm:$0xf]
        %v1120 = vld [vmem:[%s7] sm:$0x1]
        %v1122 = vperm.slane %v1120, 0
        %v1128 = vunpack.c.l.b16 %v1116
        %v1129 = vunpack.c.l.b16 %v1117
        %v1130 = vunpack.c.l.b16 %v1118
        %v1131 = vunpack.c.l.b16 %v1119
        %v1132 = vpack.c.b16 %v1129, %v1128
        %v1133 = vpack.c.b16 %v1131, %v1130
        %v1137 = vsel %vm848, %v1115, 0
        %1139 = vmatpush.bf16.msra.mxu0 0
        %1140 = vmatpush.bf16.msra.mxu0 0
        %1141 = vmatpush.bf16.msra.mxu0 0
        %1142 = vmatpush.bf16.msra.mxu0 0
        %1143 = vmatpush.bf16.msra.mxu0 0
        %1144 = vmatpush.bf16.msra.mxu0 0
        %1145 = vmatpush.bf16.msra.mxu0 %v1133
        %1146 = vmatpush.bf16.msra.mxu0 %v1132
        %1147 = vmatmul.bf16.gmra.mxu0 %v1137
        %v1148 = vpop.f32.mrf.mxu0
        %v1149 = vadd.f32 %v1122, %v1148
        %v1150 = vpop.f32.mrf.mxu0
        %1151 = vdwg.mxu0
        %v1152 = vadd.f32 %v1149, %v811
        %v1153 = vld [vmem:[%s8] sm:$0x1]
        %v1154 = vld [vmem:[%s9] sm:$0x1]
        %v1155 = vsel %vm848, %v1152, 0.0
        %1156 = vadd.xlane.f32.xlu0 %v1155
        %v1157 = vpop.xlane.xlu0 %1156
        %v1158 = vrcp.pop 32.0
        %v1159 = vmul.f32 32.0, %v1158
        %v1160 = vsub.f32 1.0, %v1159
        %v1161 = vmul.f32 %v1158, %v1160
        %v1162 = vadd.f32 %v1158, %v1161
        %vm1163 = vweird.f32 %v1158
        %v1164 = vsel %vm1163, %v1158, %v1162
        %v1165 = vmul.f32 %v1157, %v1164
        %v1166 = vsub.f32 %v1152, %v1165
        %v1167 = vmul.f32 %v1166, %v1166
        %v1168 = vsel %vm848, %v1167, 0.0
        %1169 = vadd.xlane.f32.xlu0 %v1168
        %v1170 = vpop.xlane.xlu0 %1169
        %v1171 = vmul.f32 %v1170, %v1164
        %v1172 = vadd.f32 %v1171, 1e-12
        %v1173 = vrsqrt.pop %v1172
        %v1174 = vmul.f32 %v1173, %v1172
        %v1175 = vmul.f32 %v1174, %v1173
        %v1176 = vmul.f32 0.5, %v1175
        %v1177 = vsub.f32 1.5, %v1176
        %v1178 = vmul.f32 %v1173, %v1177
        %vm1179 = vweird.f32 %v1172
        %vm1180 = vweird.f32 %v1173
        %vm1181 = vmor %vm1179, %vm1180
        %v1182 = vsel %vm1181, %v1173, %v1178
        %v1183 = vmul.f32 %v1166, %v1182
        %v1185 = vperm.slane %v1153, 0
        %v1187 = vmul.f32 %v1183, %v1185
        %v1189 = vperm.slane %v1154, 0
        %v1191 = vadd.f32 %v1187, %v1189
        %v1192 = vpack.c.bf16 %v1191, %v1191
        %v1193 = vld [vmem:[%s10] sm:$0xf]
        %v1194 = vld [vmem:[%s10 + $0x4] sm:$0xf]
        %v1195 = vld [vmem:[%s10 + $0x8] sm:$0xf]
        %v1196 = vld [vmem:[%s10 + $0xc] sm:$0xf]
        %v1197 = vld [vmem:[%s11] sm:$0x1]
        %v1199 = vperm.slane %v1197, 0
        %v1205 = vunpack.c.l.b16 %v1193
        %v1206 = vunpack.c.l.b16 %v1194
        %v1207 = vunpack.c.l.b16 %v1195
        %v1208 = vunpack.c.l.b16 %v1196
        %v1209 = vpack.c.b16 %v1206, %v1205
        %v1210 = vpack.c.b16 %v1208, %v1207
        %v1214 = vsel %vm848, %v1192, 0
        %1216 = vmatpush.bf16.msra.mxu0 0
        %1217 = vmatpush.bf16.msra.mxu0 0
        %1218 = vmatpush.bf16.msra.mxu0 0
        %1219 = vmatpush.bf16.msra.mxu0 0
        %1220 = vmatpush.bf16.msra.mxu0 0
        %1221 = vmatpush.bf16.msra.mxu0 0
        %1222 = vmatpush.bf16.msra.mxu0 %v1210
        %1223 = vmatpush.bf16.msra.mxu0 %v1209
        %1224 = vmatmul.bf16.gmra.mxu0 %v1214
        %v1225 = vpop.f32.mrf.mxu0
        %v1226 = vadd.f32 %v1199, %v1225
        %v1227 = vpop.f32.mrf.mxu0
        %1228 = vdwg.mxu0
        %v1229 = vmul.f32 %v1226, 0.35355338
        %v1230 = vpack.c.bf16 %v1229, %v1229
        %v1231 = vld [vmem:[%s12] sm:$0xf]
        %v1232 = vld [vmem:[%s12 + $0x4] sm:$0xf]
        %v1233 = vld [vmem:[%s12 + $0x8] sm:$0xf]
        %v1234 = vld [vmem:[%s12 + $0xc] sm:$0xf]
        %v1235 = vld [vmem:[%s13] sm:$0x1]
        %v1237 = vperm.slane %v1235, 0
        %v1243 = vunpack.c.l.b16 %v1231
        %v1244 = vunpack.c.l.b16 %v1232
        %v1245 = vunpack.c.l.b16 %v1233
        %v1246 = vunpack.c.l.b16 %v1234
        %v1247 = vpack.c.b16 %v1244, %v1243
        %v1248 = vpack.c.b16 %v1246, %v1245
        %v1252 = vsel %vm848, %v810, 0
        %1254 = vmatpush.bf16.msra.mxu0 0
        %1255 = vmatpush.bf16.msra.mxu0 0
        %1256 = vmatpush.bf16.msra.mxu0 0
        %1257 = vmatpush.bf16.msra.mxu0 0
        %1258 = vmatpush.bf16.msra.mxu0 0
        %1259 = vmatpush.bf16.msra.mxu0 0
        %1260 = vmatpush.bf16.msra.mxu0 %v1248
        %1261 = vmatpush.bf16.msra.mxu0 %v1247
        %1262 = vmatmul.bf16.gmra.mxu0 %v1252
        %v1263 = vpop.f32.mrf.mxu0
        %v1264 = vadd.f32 %v1237, %v1263
        %v1265 = vpop.f32.mrf.mxu0
        %1266 = vdwg.mxu0
        %v1267 = vpack.c.bf16 %v1264, %v1264
        %v1269 = vperm.slane %v827, 0
        %v1272 = vsel %vm873, %v1230, 0
        %v1275 = vsel %vm873, %v1267, 0
        %1277 = vmatpush.bf16.xpose.msra.mxu0 0
        %1278 = vmatpush.bf16.xpose.msra.mxu0 0
        %1279 = vmatpush.bf16.xpose.msra.mxu0 0
        %1280 = vmatpush.bf16.xpose.msra.mxu0 0
        %1281 = vmatpush.bf16.xpose.msra.mxu0 0
        %1282 = vmatpush.bf16.xpose.msra.mxu0 0
        %1283 = vmatpush.bf16.xpose.msra.mxu0 0
        %1284 = vmatpush.bf16.xpose.msra.mxu0 %v1275
        %1285 = vmatmul.bf16.gmra.mxu0 %v1272
        %v1286 = vpop.f32.mrf.mxu0
        %v1287 = vadd.f32 %v1269, %v1286
        %v1288 = vpop.f32.mrf.mxu0
        %1289 = vdwg.mxu0
        %v1290 = vsel %vm873, %v1287, -inf
        %1291 = vmax.xlane.f32.xlu0 %v1290
        %v1292 = vpop.xlane.xlu0 %1291
        %v1293 = vsub.f32 %v1287, %v1292
        %v1294 = vmul.f32 %v1293, 1.442695
        %v1295 = vpow.pop %v1294
        %v1296 = vsel %vm873, %v1295, 0.0
        %1297 = vadd.xlane.f32.xlu0 %v1296
        %v1298 = vpop.xlane.xlu0 %1297
        %v1299 = vrcp.pop %v1298
        %v1300 = vmul.f32 %v1295, %v1299
        %v1301 = vpack.c.bf16 %v1300, %v1300
        %v1303 = vunpack.c.l.b16 %v1267
        %v1304 = vpack.c.b16 %v1303, %v1303
        %1305 = vrot.lane.b32.xlu0 %v1304, 96
        %v1306 = vpop.permute.xlu0 %1305
        %v1308 = vsel %vm873, %v1301, 0
        %v1311 = vsel %vm910, %v1306, 0
        %1313 = vmatpush.bf16.msra.mxu0 0
        %1314 = vmatpush.bf16.msra.mxu0 0
        %1315 = vmatpush.bf16.msra.mxu0 0
        %1316 = vmatpush.bf16.msra.mxu0 0
        %1317 = vmatpush.bf16.msra.mxu0 0
        %1318 = vmatpush.bf16.msra.mxu0 0
        %1319 = vmatpush.bf16.msra.mxu0 0
        %1320 = vmatpush.bf16.msra.mxu0 %v1311
        %1321 = vmatmul.bf16.gmra.mxu0 %v1308
        %v1322 = vpop.f32.mrf.mxu0
        %v1323 = vadd.f32 0.0, %v1322
        %v1324 = vpop.f32.mrf.mxu0
        %1325 = vdwg.mxu0
        %v1327 = vunpack.c.l.b16 %v1230
        %v1328 = vpack.c.b16 %v1327, %v1327
        %1329 = vrot.lane.b32.xlu0 %v1328, 120
        %v1330 = vpop.permute.xlu0 %1329
        %1331 = vrot.lane.b32.xlu0 %v1304, 120
        %v1332 = vpop.permute.xlu0 %1331
        %v1334 = vsel %vm873, %v1330, 0
        %v1337 = vsel %vm873, %v1332, 0
        %1339 = vmatpush.bf16.xpose.msra.mxu0 0
        %1340 = vmatpush.bf16.xpose.msra.mxu0 0
        %1341 = vmatpush.bf16.xpose.msra.mxu0 0
        %1342 = vmatpush.bf16.xpose.msra.mxu0 0
        %1343 = vmatpush.bf16.xpose.msra.mxu0 0
        %1344 = vmatpush.bf16.xpose.msra.mxu0 0
        %1345 = vmatpush.bf16.xpose.msra.mxu0 0
        %1346 = vmatpush.bf16.xpose.msra.mxu0 %v1337
        %1347 = vmatmul.bf16.gmra.mxu0 %v1334
        %v1348 = vpop.f32.mrf.mxu0
        %v1349 = vadd.f32 %v1269, %v1348
        %v1350 = vpop.f32.mrf.mxu0
        %1351 = vdwg.mxu0
        %v1352 = vsel %vm873, %v1349, -inf
        %1353 = vmax.xlane.f32.xlu0 %v1352
        %v1354 = vpop.xlane.xlu0 %1353
        %v1355 = vsub.f32 %v1349, %v1354
        %v1356 = vmul.f32 %v1355, 1.442695
        %v1357 = vpow.pop %v1356
        %v1358 = vsel %vm873, %v1357, 0.0
        %1359 = vadd.xlane.f32.xlu0 %v1358
        %v1360 = vpop.xlane.xlu0 %1359
        %v1361 = vrcp.pop %v1360
        %v1362 = vmul.f32 %v1357, %v1361
        %v1363 = vpack.c.bf16 %v1362, %v1362
        %1364 = vrot.lane.b32.xlu0 %v1304, 88
        %v1365 = vpop.permute.xlu0 %1364
        %v1367 = vsel %vm873, %v1363, 0
        %v1370 = vsel %vm910, %v1365, 0
        %1372 = vmatpush.bf16.msra.mxu0 0
        %1373 = vmatpush.bf16.msra.mxu0 0
        %1374 = vmatpush.bf16.msra.mxu0 0
        %1375 = vmatpush.bf16.msra.mxu0 0
        %1376 = vmatpush.bf16.msra.mxu0 0
        %1377 = vmatpush.bf16.msra.mxu0 0
        %1378 = vmatpush.bf16.msra.mxu0 0
        %1379 = vmatpush.bf16.msra.mxu0 %v1370
        %1380 = vmatmul.bf16.gmra.mxu0 %v1367
        %v1381 = vpop.f32.mrf.mxu0
        %v1382 = vadd.f32 0.0, %v1381
        %v1383 = vpop.f32.mrf.mxu0
        %1384 = vdwg.mxu0
        %1385 = vrot.lane.b32.xlu0 %v1328, 112
        %v1386 = vpop.permute.xlu0 %1385
        %1387 = vrot.lane.b32.xlu0 %v1304, 112
        %v1388 = vpop.permute.xlu0 %1387
        %v1390 = vsel %vm873, %v1386, 0
        %v1393 = vsel %vm873, %v1388, 0
        %1395 = vmatpush.bf16.xpose.msra.mxu0 0
        %1396 = vmatpush.bf16.xpose.msra.mxu0 0
        %1397 = vmatpush.bf16.xpose.msra.mxu0 0
        %1398 = vmatpush.bf16.xpose.msra.mxu0 0
        %1399 = vmatpush.bf16.xpose.msra.mxu0 0
        %1400 = vmatpush.bf16.xpose.msra.mxu0 0
        %1401 = vmatpush.bf16.xpose.msra.mxu0 0
        %1402 = vmatpush.bf16.xpose.msra.mxu0 %v1393
        %1403 = vmatmul.bf16.gmra.mxu0 %v1390
        %v1404 = vpop.f32.mrf.mxu0
        %v1405 = vadd.f32 %v1269, %v1404
        %v1406 = vpop.f32.mrf.mxu0
        %1407 = vdwg.mxu0
        %v1408 = vsel %vm873, %v1405, -inf
        %1409 = vmax.xlane.f32.xlu0 %v1408
        %v1410 = vpop.xlane.xlu0 %1409
        %v1411 = vsub.f32 %v1405, %v1410
        %v1412 = vmul.f32 %v1411, 1.442695
        %v1413 = vpow.pop %v1412
        %v1414 = vsel %vm873, %v1413, 0.0
        %1415 = vadd.xlane.f32.xlu0 %v1414
        %v1416 = vpop.xlane.xlu0 %1415
        %v1417 = vrcp.pop %v1416
        %v1418 = vmul.f32 %v1413, %v1417
        %v1419 = vpack.c.bf16 %v1418, %v1418
        %1420 = vrot.lane.b32.xlu0 %v1304, 80
        %v1421 = vpop.permute.xlu0 %1420
        %v1423 = vsel %vm873, %v1419, 0
        %v1426 = vsel %vm910, %v1421, 0
        %1428 = vmatpush.bf16.msra.mxu0 0
        %1429 = vmatpush.bf16.msra.mxu0 0
        %1430 = vmatpush.bf16.msra.mxu0 0
        %1431 = vmatpush.bf16.msra.mxu0 0
        %1432 = vmatpush.bf16.msra.mxu0 0
        %1433 = vmatpush.bf16.msra.mxu0 0
        %1434 = vmatpush.bf16.msra.mxu0 0
        %1435 = vmatpush.bf16.msra.mxu0 %v1426
        %1436 = vmatmul.bf16.gmra.mxu0 %v1423
        %v1437 = vpop.f32.mrf.mxu0
        %v1438 = vadd.f32 0.0, %v1437
        %v1439 = vpop.f32.mrf.mxu0
        %1440 = vdwg.mxu0
        %1441 = vrot.lane.b32.xlu0 %v1328, 104
        %v1442 = vpop.permute.xlu0 %1441
        %1443 = vrot.lane.b32.xlu0 %v1304, 104
        %v1444 = vpop.permute.xlu0 %1443
        %v1446 = vsel %vm873, %v1442, 0
        %v1449 = vsel %vm873, %v1444, 0
        %1451 = vmatpush.bf16.xpose.msra.mxu0 0
        %1452 = vmatpush.bf16.xpose.msra.mxu0 0
        %1453 = vmatpush.bf16.xpose.msra.mxu0 0
        %1454 = vmatpush.bf16.xpose.msra.mxu0 0
        %1455 = vmatpush.bf16.xpose.msra.mxu0 0
        %1456 = vmatpush.bf16.xpose.msra.mxu0 0
        %1457 = vmatpush.bf16.xpose.msra.mxu0 0
        %1458 = vmatpush.bf16.xpose.msra.mxu0 %v1449
        %1459 = vmatmul.bf16.gmra.mxu0 %v1446
        %v1460 = vpop.f32.mrf.mxu0
        %v1461 = vadd.f32 %v1269, %v1460
        %v1462 = vpop.f32.mrf.mxu0
        %1463 = vdwg.mxu0
        %v1464 = vsel %vm873, %v1461, -inf
        %1465 = vmax.xlane.f32.xlu0 %v1464
        %v1466 = vpop.xlane.xlu0 %1465
        %v1467 = vsub.f32 %v1461, %v1466
        %v1468 = vmul.f32 %v1467, 1.442695
        %v1469 = vpow.pop %v1468
        %v1470 = vsel %vm873, %v1469, 0.0
        %1471 = vadd.xlane.f32.xlu0 %v1470
        %v1472 = vpop.xlane.xlu0 %1471
        %v1473 = vrcp.pop %v1472
        %v1474 = vmul.f32 %v1469, %v1473
        %v1475 = vpack.c.bf16 %v1474, %v1474
        %1476 = vrot.lane.b32.xlu0 %v1304, 72
        %v1477 = vpop.permute.xlu0 %1476
        %v1479 = vsel %vm873, %v1475, 0
        %v1482 = vsel %vm910, %v1477, 0
        %1484 = vmatpush.bf16.msra.mxu0 0
        %1485 = vmatpush.bf16.msra.mxu0 0
        %1486 = vmatpush.bf16.msra.mxu0 0
        %1487 = vmatpush.bf16.msra.mxu0 0
        %1488 = vmatpush.bf16.msra.mxu0 0
        %1489 = vmatpush.bf16.msra.mxu0 0
        %1490 = vmatpush.bf16.msra.mxu0 0
        %1491 = vmatpush.bf16.msra.mxu0 %v1482
        %1492 = vmatmul.bf16.gmra.mxu0 %v1479
        %v1493 = vpop.f32.mrf.mxu0
        %v1494 = vadd.f32 0.0, %v1493
        %v1495 = vpop.f32.mrf.mxu0
        %1496 = vdwg.mxu0
        %1498 = vrot.lane.b32.xlu0 %v1382, 8
        %v1499 = vpop.permute.xlu0 %1498
        %1502 = vrot.lane.b32.xlu0 %v1438, 16
        %v1503 = vpop.permute.xlu0 %1502
        %1506 = vrot.lane.b32.xlu0 %v1494, 24
        %v1507 = vpop.permute.xlu0 %1506
        %v1509 = vsel %vm873, %v1323, %v1499
        %v1510 = vsel %vm1111, %v1509, %v1503
        %v1511 = vsel %vm1113, %v1510, %v1507
        %v1512 = vpack.c.bf16 %v1511, %v1511
        %v1513 = vld [vmem:[%s14] sm:$0xf]
        %v1514 = vld [vmem:[%s14 + $0x4] sm:$0xf]
        %v1515 = vld [vmem:[%s14 + $0x8] sm:$0xf]
        %v1516 = vld [vmem:[%s14 + $0xc] sm:$0xf]
        %v1517 = vld [vmem:[%s15] sm:$0x1]
        %v1519 = vperm.slane %v1517, 0
        %v1525 = vunpack.c.l.b16 %v1513
        %v1526 = vunpack.c.l.b16 %v1514
        %v1527 = vunpack.c.l.b16 %v1515
        %v1528 = vunpack.c.l.b16 %v1516
        %v1529 = vpack.c.b16 %v1526, %v1525
        %v1530 = vpack.c.b16 %v1528, %v1527
        %v1534 = vsel %vm848, %v1512, 0
        %1536 = vmatpush.bf16.msra.mxu0 0
        %1537 = vmatpush.bf16.msra.mxu0 0
        %1538 = vmatpush.bf16.msra.mxu0 0
        %1539 = vmatpush.bf16.msra.mxu0 0
        %1540 = vmatpush.bf16.msra.mxu0 0
        %1541 = vmatpush.bf16.msra.mxu0 0
        %1542 = vmatpush.bf16.msra.mxu0 %v1530
        %1543 = vmatpush.bf16.msra.mxu0 %v1529
        %1544 = vmatmul.bf16.gmra.mxu0 %v1534
        %v1545 = vpop.f32.mrf.mxu0
        %v1546 = vadd.f32 %v1519, %v1545
        %v1547 = vpop.f32.mrf.mxu0
        %1548 = vdwg.mxu0
        %v1549 = vadd.f32 %v1546, %v1191
        %v1550 = vld [vmem:[%s16] sm:$0x1]
        %v1551 = vld [vmem:[%s17] sm:$0x1]
        %v1552 = vsel %vm848, %v1549, 0.0
        %1553 = vadd.xlane.f32.xlu0 %v1552
        %v1554 = vpop.xlane.xlu0 %1553
        %v1555 = vmul.f32 %v1554, %v1164
        %v1556 = vsub.f32 %v1549, %v1555
        %v1557 = vmul.f32 %v1556, %v1556
        %v1558 = vsel %vm848, %v1557, 0.0
        %1559 = vadd.xlane.f32.xlu0 %v1558
        %v1560 = vpop.xlane.xlu0 %1559
        %v1561 = vmul.f32 %v1560, %v1164
        %v1562 = vadd.f32 %v1561, 1e-12
        %v1563 = vrsqrt.pop %v1562
        %v1564 = vmul.f32 %v1563, %v1562
        %v1565 = vmul.f32 %v1564, %v1563
        %v1566 = vmul.f32 0.5, %v1565
        %v1567 = vsub.f32 1.5, %v1566
        %v1568 = vmul.f32 %v1563, %v1567
        %vm1569 = vweird.f32 %v1562
        %vm1570 = vweird.f32 %v1563
        %vm1571 = vmor %vm1569, %vm1570
        %v1572 = vsel %vm1571, %v1563, %v1568
        %v1573 = vmul.f32 %v1556, %v1572
        %v1575 = vperm.slane %v1550, 0
        %v1577 = vmul.f32 %v1573, %v1575
        %v1579 = vperm.slane %v1551, 0
        %v1581 = vadd.f32 %v1577, %v1579
        %v1582 = vpack.c.bf16 %v1581, %v1581
        %v1583 = vld [vmem:[%s18] sm:$0xf]
        %v1584 = vld [vmem:[%s18 + $0x4] sm:$0xf]
        %v1585 = vld [vmem:[%s18 + $0x8] sm:$0xf]
        %v1586 = vld [vmem:[%s18 + $0xc] sm:$0xf]
        %v1587 = vld [vmem:[%s19] sm:$0x1]
        %v1589 = vperm.slane %v1587, 0
        %v1595 = vunpack.c.l.b16 %v1583
        %v1596 = vunpack.c.l.b16 %v1584
        %v1597 = vunpack.c.l.b16 %v1585
        %v1598 = vunpack.c.l.b16 %v1586
        %v1599 = vpack.c.b16 %v1596, %v1595
        %v1600 = vpack.c.b16 %v1598, %v1597
        %v1604 = vsel %vm848, %v1582, 0
        %1606 = vmatpush.bf16.msra.mxu0 0
        %1607 = vmatpush.bf16.msra.mxu0 0
        %1608 = vmatpush.bf16.msra.mxu0 0
        %1609 = vmatpush.bf16.msra.mxu0 0
        %1610 = vmatpush.bf16.msra.mxu0 0
        %1611 = vmatpush.bf16.msra.mxu0 0
        %1612 = vmatpush.bf16.msra.mxu0 %v1600
        %1613 = vmatpush.bf16.msra.mxu0 %v1599
        %1614 = vmatmul.bf16.gmra.mxu0 %v1604
        %v1615 = vpop.f32.mrf.mxu0
        %v1616 = vadd.f32 %v1589, %v1615
        %v1617 = vpop.f32.mrf.mxu0
        %1618 = vdwg.mxu0
        %v1619 = vmax.f32 %v1616, 0.0
        %v1620 = vpack.c.bf16 %v1619, %v1619
        %v1621 = vld [vmem:[%s20] sm:$0xf]
        %v1622 = vld [vmem:[%s20 + $0x4] sm:$0xf]
        %v1623 = vld [vmem:[%s20 + $0x8] sm:$0xf]
        %v1624 = vld [vmem:[%s20 + $0xc] sm:$0xf]
        %v1625 = vld [vmem:[%s20 + $0x10] sm:$0xf]
        %v1626 = vld [vmem:[%s20 + $0x14] sm:$0xf]
        %v1627 = vld [vmem:[%s20 + $0x18] sm:$0xf]
        %v1628 = vld [vmem:[%s20 + $0x1c] sm:$0xf]
        %v1629 = vld [vmem:[%s21] sm:$0x1]
        %v1631 = vperm.slane %v1629, 0
        %v1641 = vunpack.c.l.b16 %v1621
        %v1642 = vunpack.c.l.b16 %v1622
        %v1643 = vunpack.c.l.b16 %v1623
        %v1644 = vunpack.c.l.b16 %v1624
        %v1645 = vunpack.c.l.b16 %v1625
        %v1646 = vunpack.c.l.b16 %v1626
        %v1647 = vunpack.c.l.b16 %v1627
        %v1648 = vunpack.c.l.b16 %v1628
        %v1649 = vpack.c.b16 %v1642, %v1641
        %v1650 = vpack.c.b16 %v1644, %v1643
        %v1651 = vpack.c.b16 %v1646, %v1645
        %v1652 = vpack.c.b16 %v1648, %v1647
        %vm1657 = vcmask 523264
        %v1659 = vsel %vm1657, %v1620, 0
        %1661 = vmatpush.bf16.msra.mxu0 0
        %1662 = vmatpush.bf16.msra.mxu0 0
        %1663 = vmatpush.bf16.msra.mxu0 0
        %1664 = vmatpush.bf16.msra.mxu0 0
        %1665 = vmatpush.bf16.msra.mxu0 %v1652
        %1666 = vmatpush.bf16.msra.mxu0 %v1651
        %1667 = vmatpush.bf16.msra.mxu0 %v1650
        %1668 = vmatpush.bf16.msra.mxu0 %v1649
        %1669 = vmatmul.bf16.gmra.mxu0 %v1659
        %v1670 = vpop.f32.mrf.mxu0
        %v1671 = vadd.f32 %v1631, %v1670
        %v1672 = vpop.f32.mrf.mxu0
        %1673 = vdwg.mxu0
        %v1674 = vadd.f32 %v1671, %v1581
        %v1675 = vld [vmem:[#allocation2] sm:$0x1]
        %v1676 = vld [vmem:[#allocation4] sm:$0x1]
        %v1677 = vsel %vm848, %v1674, 0.0
        %1678 = vadd.xlane.f32.xlu0 %v1677
        %v1679 = vpop.xlane.xlu0 %1678
        %v1680 = vmul.f32 %v1679, %v1164
        %v1681 = vsub.f32 %v1674, %v1680
        %v1682 = vmul.f32 %v1681, %v1681
        %v1683 = vsel %vm848, %v1682, 0.0
        %1684 = vadd.xlane.f32.xlu0 %v1683
        %v1685 = vpop.xlane.xlu0 %1684
        %v1686 = vmul.f32 %v1685, %v1164
        %v1687 = vadd.f32 %v1686, 1e-12
        %v1688 = vrsqrt.pop %v1687
        %v1689 = vmul.f32 %v1688, %v1687
        %v1690 = vmul.f32 %v1689, %v1688
        %v1691 = vmul.f32 0.5, %v1690
        %v1692 = vsub.f32 1.5, %v1691
        %v1693 = vmul.f32 %v1688, %v1692
        %vm1694 = vweird.f32 %v1687
        %vm1695 = vweird.f32 %v1688
        %vm1696 = vmor %vm1694, %vm1695
        %v1697 = vsel %vm1696, %v1688, %v1693
        %v1698 = vmul.f32 %v1681, %v1697
        %v1700 = vperm.slane %v1675, 0
        %v1702 = vmul.f32 %v1698, %v1700
        %v1704 = vperm.slane %v1676, 0
        %v1706 = vadd.f32 %v1702, %v1704
        %v1707 = vpack.c.bf16 %v1706, %v1706
        %vm1708 = vcmask 257024
        %1709 = vst.msk [vmem:[%s807] sm:$0xf] %vm1708, %v1707
        %p1710 = scmp.lt.s32.totalorder %s37, 1
        %s1711 = scalar_select %p1710, %s37, 1
        %s1712 = smul.addr %s1711, 4
        %s1713 = scalar_lea.vmem %s24, %s1712
        // Predicated region
        $region125: #{encoder_decoder_forward.6} parent=115 // pred_check
          %p1714 = pneg %p579
        $region126: #{encoder_decoder_forward.6} parent=115 // pred_check_branch
          %1716 = sbr.rel (%p1714) target = $region128
        $region127: #{encoder_decoder_forward.6} parent=115 // pred_region
          _
        $region128: #{encoder_decoder_forward.6} parent=115 // pred_fallthru
          _
      $region116: #{encoder_decoder_forward.6} parent=5 // pred_fallthru
        _
      %p1717 = scmp.le.s32.totalorder 2, %s32
      // Predicated region
      $region129: #{encoder_decoder_forward.6} parent=5 // pred_check
        %p1718 = pneg %p1717
      $region130: #{encoder_decoder_forward.6} parent=5 // pred_check_branch
        %1720 = sbr.rel (%p1718) target = $region132
      $region131: #{encoder_decoder_forward.6} parent=5 // pred_region
        %s1721 = ssub.s32 %s32, 2
        // Predicated region
        $region133: #{encoder_decoder_forward.6} parent=131 // pred_check
          %p1722 = pneg %p585
        $region134: #{encoder_decoder_forward.6} parent=131 // pred_check_branch
          %1724 = sbr.rel (%p1722) target = $region136
        $region135: #{encoder_decoder_forward.6} parent=131 // pred_region
          %p1725 = scmp.lt.s32.totalorder %s38, 1
          %s1726 = scalar_select %p1725, %s38, 1
          %s1727 = smul.addr %s1726, 4
          %s1728 = scalar_lea.vmem %s24, %s1727
        $region136: #{encoder_decoder_forward.6} parent=131 // pred_fallthru
          _
      $region132: #{encoder_decoder_forward.6} parent=5 // pred_fallthru
        _
    $region6: #{encoder_decoder_forward.6} parent=1 // loop_footer
      %s36 = sadd.s32 1, %s32
    $region7: #{encoder_decoder_forward.6} parent=1 // loop_footer_branch
      %31 = sbr.rel target = $region3
    $region8: #{encoder_decoder_forward.6} parent=1 // loop_exit
      _
    %1729 = vsyncpa [#allocation3], 1
    %s1730 = scalar_lea.sflag [#allocation3], 1
    %1731 = vsyncpa %s1730, 1
    %1732 = vsyncpa [#allocation5], 1

// kernel: encoder_decoder_forward.8
$region0: #{encoder_decoder_forward.8}
  #allocation0 [shape = 'u32[]', space=smem, size = 0x4, offset = 0x4, fixed_abs, tag = 'smem constant byte address 0x4 - core index']
  #allocation1 [shape = 'u32[72,128]{1,0:T(1,128)}', space=vmem, size = 0x9000, scoped, tag = 'internal scratch']
  %s0 = inlined_call_operand.vmem [shape: bf16[2,8,32], index: 0, kind: input, shape index: {}]
  %s1 = inlined_call_operand.vmem [shape: bf16[2,8,32], index: 1, kind: input, shape index: {}]
  %s2 = inlined_call_operand.vmem [shape: f32[2,1,8], index: 2, kind: input, shape index: {}]
  %s3 = inlined_call_operand.vmem [shape: f32[2,1,8], index: 3, kind: input, shape index: {}]
  %s4 = inlined_call_operand.vmem [shape: bf16[32,96], index: 4, kind: input, shape index: {}]
  %s5 = inlined_call_operand.hbm [shape: f32[1,96], index: 5, kind: input, shape index: {}]
  %s6 = inlined_call_operand.vmem [shape: bf16[32,32], index: 6, kind: input, shape index: {}]
  %s7 = inlined_call_operand.hbm [shape: f32[1,32], index: 7, kind: input, shape index: {}]
  %s8 = inlined_call_operand.hbm [shape: f32[1,32], index: 8, kind: input, shape index: {}]
  %s9 = inlined_call_operand.hbm [shape: f32[1,32], index: 9, kind: input, shape index: {}]
  %s10 = inlined_call_operand.vmem [shape: bf16[32,32], index: 10, kind: input, shape index: {}]
  %s11 = inlined_call_operand.hbm [shape: f32[1,32], index: 11, kind: input, shape index: {}]
  %s12 = inlined_call_operand.vmem [shape: bf16[32,64], index: 12, kind: input, shape index: {}]
  %s13 = inlined_call_operand.hbm [shape: f32[1,64], index: 13, kind: input, shape index: {}]
  %s14 = inlined_call_operand.vmem [shape: bf16[32,32], index: 14, kind: input, shape index: {}]
  %s15 = inlined_call_operand.hbm [shape: f32[1,32], index: 15, kind: input, shape index: {}]
  %s16 = inlined_call_operand.hbm [shape: f32[1,32], index: 16, kind: input, shape index: {}]
  %s17 = inlined_call_operand.hbm [shape: f32[1,32], index: 17, kind: input, shape index: {}]
  %s18 = inlined_call_operand.vmem [shape: bf16[32,64], index: 18, kind: input, shape index: {}]
  %s19 = inlined_call_operand.hbm [shape: f32[1,64], index: 19, kind: input, shape index: {}]
  %s20 = inlined_call_operand.vmem [shape: bf16[64,32], index: 20, kind: input, shape index: {}]
  %s21 = inlined_call_operand.hbm [shape: f32[1,32], index: 21, kind: input, shape index: {}]
  %s22 = inlined_call_operand.hbm [shape: f32[1,32], index: 22, kind: input, shape index: {}]
  %s23 = inlined_call_operand.hbm [shape: f32[1,32], index: 23, kind: input, shape index: {}]
  %s24 = inlined_call_operand.vmem [shape: bf16[2,8,32], index: 24, kind: output, shape index: {}]
  %s25 = sld [smem:[#allocation0]]
  $region181: #{encoder_decoder_forward.8} parent=0
    _
  %s27 = ssub.s32 1, %s25
  %s28 = scalar_select 0, %s27, %s25
  $region1: #{encoder_decoder_forward.8} parent=0
    #allocation2 [shape = 'u8[512]{0}', space=vmem, size = 0x400, scoped, tag = 'input window, operand 5, single buffered']
    #allocation3 [shape = 's32[2]{0}', space=sflag, size = 0x8, scoped, tag = 'scoped memory for encoder_decoder_forward.8']
    #allocation4 [shape = 'u8[512]{0}', space=vmem, size = 0x400, scoped, tag = 'input window, operand 7, single buffered']
    #allocation5 [shape = 's32[1]{0}', space=sflag, size = 0x4, scoped, tag = 'scoped memory for encoder_decoder_forward.8']
    #allocation6 [shape = 'u8[512]{0}', space=vmem, size = 0x400, scoped, tag = 'input window, operand 8, single buffered']
    #allocation7 [shape = 'u8[512]{0}', space=vmem, size = 0x400, scoped, tag = 'input window, operand 9, single buffered']
    #allocation8 [shape = 's32[1]{0}', space=sflag, size = 0x4, scoped, tag = 'scoped memory for encoder_decoder_forward.8']
    #allocation9 [shape = 'u8[512]{0}', space=vmem, size = 0x400, scoped, tag = 'input window, operand 11, single buffered']
    #allocation10 [shape = 'u8[512]{0}', space=vmem, size = 0x400, scoped, tag = 'input window, operand 13, single buffered']
    #allocation11 [shape = 's32[1]{0}', space=sflag, size = 0x4, scoped, tag = 'scoped memory for encoder_decoder_forward.8']
    #allocation12 [shape = 'u8[512]{0}', space=vmem, size = 0x400, scoped, tag = 'input window, operand 15, single buffered']
    #allocation13 [shape = 'u8[512]{0}', space=vmem, size = 0x400, scoped, tag = 'input window, operand 16, single buffered']
    #allocation14 [shape = 's32[1]{0}', space=sflag, size = 0x4, scoped, tag = 'scoped memory for encoder_decoder_forward.8']
    #allocation15 [shape = 'u8[512]{0}', space=vmem, size = 0x400, scoped, tag = 'input window, operand 17, single buffered']
    #allocation16 [shape = 'u8[512]{0}', space=vmem, size = 0x400, scoped, tag = 'input window, operand 19, single buffered']
    #allocation17 [shape = 's32[1]{0}', space=sflag, size = 0x4, scoped, tag = 'scoped memory for encoder_decoder_forward.8']
    #allocation18 [shape = 'u8[512]{0}', space=vmem, size = 0x400, scoped, tag = 'input window, operand 21, single buffered']
    #allocation19 [shape = 'u8[512]{0}', space=vmem, size = 0x400, scoped, tag = 'input window, operand 22, single buffered']
    #allocation20 [shape = 's32[1]{0}', space=sflag, size = 0x4, scoped, tag = 'scoped memory for encoder_decoder_forward.8']
    #allocation21 [shape = 'u8[512]{0}', space=vmem, size = 0x400, scoped, tag = 'input window, operand 23, single buffered']
    %29 = vsyncpa [#allocation3], 0
    %30 = vsyncpa [#allocation5], 0
    %31 = vsyncpa [#allocation8], 0
    %32 = vsyncpa [#allocation11], 0
    %33 = vsyncpa [#allocation14], 0
    %34 = vsyncpa [#allocation17], 0
    %35 = vsyncpa [#allocation20], 0
    loop: start=0, step=1, limit=4
    $region2: #{encoder_decoder_forward.8} parent=1 // loop_pre_header
      _
    $region3: #{encoder_decoder_forward.8} parent=1 // loop_header
      %s37 = sphi 0, %s41
      %p38 = scmp.ge.s32.totalorder %s37, 4
      %s47 = sphi 0, %s49
      %s50 = sphi 0, %s47
      %s51 = sphi 0, %s50
      %s67 = sphi 0, %s51
      %s73 = sphi 0, %s75
      %s76 = sphi 0, %s73
      %s77 = sphi 0, %s76
      %s93 = sphi 0, %s77
      %s99 = sphi 0, %s101
      %s102 = sphi 0, %s99
      %s103 = sphi 0, %s102
      %s119 = sphi 0, %s103
      %s125 = sphi 0, %s127
      %s128 = sphi 0, %s125
      %s129 = sphi 0, %s128
      %s145 = sphi 0, %s129
      %s149 = sphi 0, %s149
      %s151 = sphi 0, %s149
      %s152 = sphi 0, %s151
      %s166 = sphi 0, %s152
      %s170 = sphi 0, %s170
      %s172 = sphi 0, %s170
      %s173 = sphi 0, %s172
      %s187 = sphi 0, %s173
      %s191 = sphi 0, %s191
      %s193 = sphi 0, %s191
      %s194 = sphi 0, %s193
      %s208 = sphi 0, %s194
      %s212 = sphi 0, %s212
      %s214 = sphi 0, %s212
      %s215 = sphi 0, %s214
      %s229 = sphi 0, %s215
      %s233 = sphi 0, %s233
      %s235 = sphi 0, %s233
      %s236 = sphi 0, %s235
      %s250 = sphi 0, %s236
      %s254 = sphi 0, %s254
      %s256 = sphi 0, %s254
      %s257 = sphi 0, %s256
      %s271 = sphi 0, %s257
      %s275 = sphi 0, %s275
      %s277 = sphi 0, %s275
      %s278 = sphi 0, %s277
      %s292 = sphi 0, %s278
      %s296 = sphi 0, %s296
      %s298 = sphi 0, %s296
      %s299 = sphi 0, %s298
      %s313 = sphi 0, %s299
      %s317 = sphi 0, %s317
      %s319 = sphi 0, %s317
      %s320 = sphi 0, %s319
      %s334 = sphi 0, %s320
      %s338 = sphi 0, %s338
      %s340 = sphi 0, %s338
      %s341 = sphi 0, %s340
      %s355 = sphi 0, %s341
      %s359 = sphi 0, %s359
      %s361 = sphi 0, %s359
      %s362 = sphi 0, %s361
      %s376 = sphi 0, %s362
      %s380 = sphi 0, %s380
      %s382 = sphi 0, %s380
      %s383 = sphi 0, %s382
      %s397 = sphi 0, %s383
      %s401 = sphi 0, %s401
      %s403 = sphi 0, %s401
      %s404 = sphi 0, %s403
      %s418 = sphi 0, %s404
      %s422 = sphi 0, %s422
      %s424 = sphi 0, %s422
      %s425 = sphi 0, %s424
      %s439 = sphi 0, %s425
      %s443 = sphi 0, %s443
      %s445 = sphi 0, %s443
      %s446 = sphi 0, %s445
      %s460 = sphi 0, %s446
      %s464 = sphi 0, %s464
      %s466 = sphi 0, %s464
      %s467 = sphi 0, %s466
      %s481 = sphi 0, %s467
      %s485 = sphi 0, %s485
      %s487 = sphi 0, %s485
      %s488 = sphi 0, %s487
      %s502 = sphi 0, %s488
      %s506 = sphi 0, %s506
      %s508 = sphi 0, %s506
      %s509 = sphi 0, %s508
      %s523 = sphi 0, %s509
      %s527 = sphi 0, %s527
      %s529 = sphi 0, %s527
      %s530 = sphi 0, %s529
      %s544 = sphi 0, %s530
      %s548 = sphi 0, %s548
      %s550 = sphi 0, %s548
      %s551 = sphi 0, %s550
      %s565 = sphi 0, %s551
      %s571 = sphi 0, %s573
      %s574 = sphi 0, %s571
      %s575 = sphi 0, %s574
      %s591 = sphi 0, %s575
    $region4: #{encoder_decoder_forward.8} parent=1 // loop_header_branch
      %40 = sbr.rel (%p38) target = $region8
    $region5: #{encoder_decoder_forward.8} parent=1 // loop_body
      %s42 = ssub.s32 %s37, 1
      %s43 = ssub.s32 %s37, 2
      %s44 = sadd.s32 %s37, 1
      %s45 = ssub.s32 %s37, %s44
      %p46 = scmp.eq.s32.totalorder %s45, 0
      %s48 = sadd.s32 %s47, 1
      %s49 = scalar_select %p46, %s47, %s48
      %p52 = pneg %p46
      %p53 = scmp.eq.s32.totalorder %s37, 1
      %p54 = por %p52, %p53
      %p55 = scmp.ne.s32.totalorder %s47, %s50
      %p56 = scmp.eq.s32.totalorder %s37, 0
      %p57 = por %p55, %p56
      %p58 = scmp.ne.s32.totalorder %s47, %s50
      %p59 = scmp.eq.s32.totalorder %s42, 1
      %p60 = por %p58, %p59
      %p61 = scmp.ne.s32.totalorder %s50, %s51
      %p62 = scmp.eq.s32.totalorder %s42, 0
      %p63 = por %p61, %p62
      %p64 = scmp.ne.s32.totalorder %s50, %s51
      %p65 = scmp.eq.s32.totalorder %s43, 1
      %p66 = por %p64, %p65
      %p68 = scmp.ne.s32.totalorder %s51, %s67
      %p69 = scmp.eq.s32.totalorder %s43, 0
      %p70 = por %p68, %p69
      %s71 = ssub.s32 %s37, %s44
      %p72 = scmp.eq.s32.totalorder %s71, 0
      %s74 = sadd.s32 %s73, 1
      %s75 = scalar_select %p72, %s73, %s74
      %p78 = pneg %p72
      %p79 = scmp.eq.s32.totalorder %s37, 1
      %p80 = por %p78, %p79
      %p81 = scmp.ne.s32.totalorder %s73, %s76
      %p82 = scmp.eq.s32.totalorder %s37, 0
      %p83 = por %p81, %p82
      %p84 = scmp.ne.s32.totalorder %s73, %s76
      %p85 = scmp.eq.s32.totalorder %s42, 1
      %p86 = por %p84, %p85
      %p87 = scmp.ne.s32.totalorder %s76, %s77
      %p88 = scmp.eq.s32.totalorder %s42, 0
      %p89 = por %p87, %p88
      %p90 = scmp.ne.s32.totalorder %s76, %s77
      %p91 = scmp.eq.s32.totalorder %s43, 1
      %p92 = por %p90, %p91
      %p94 = scmp.ne.s32.totalorder %s77, %s93
      %p95 = scmp.eq.s32.totalorder %s43, 0
      %p96 = por %p94, %p95
      %s97 = ssub.s32 %s37, %s44
      %p98 = scmp.eq.s32.totalorder %s97, 0
      %s100 = sadd.s32 %s99, 1
      %s101 = scalar_select %p98, %s99, %s100
      %p104 = pneg %p98
      %p105 = scmp.eq.s32.totalorder %s37, 1
      %p106 = por %p104, %p105
      %p107 = scmp.ne.s32.totalorder %s99, %s102
      %p108 = scmp.eq.s32.totalorder %s37, 0
      %p109 = por %p107, %p108
      %p110 = scmp.ne.s32.totalorder %s99, %s102
      %p111 = scmp.eq.s32.totalorder %s42, 1
      %p112 = por %p110, %p111
      %p113 = scmp.ne.s32.totalorder %s102, %s103
      %p114 = scmp.eq.s32.totalorder %s42, 0
      %p115 = por %p113, %p114
      %p116 = scmp.ne.s32.totalorder %s102, %s103
      %p117 = scmp.eq.s32.totalorder %s43, 1
      %p118 = por %p116, %p117
      %p120 = scmp.ne.s32.totalorder %s103, %s119
      %p121 = scmp.eq.s32.totalorder %s43, 0
      %p122 = por %p120, %p121
      %s123 = ssub.s32 %s37, %s44
      %p124 = scmp.eq.s32.totalorder %s123, 0
      %s126 = sadd.s32 %s125, 1
      %s127 = scalar_select %p124, %s125, %s126
      %p130 = pneg %p124
      %p131 = scmp.eq.s32.totalorder %s37, 1
      %p132 = por %p130, %p131
      %p133 = scmp.ne.s32.totalorder %s125, %s128
      %p134 = scmp.eq.s32.totalorder %s37, 0
      %p135 = por %p133, %p134
      %p136 = scmp.ne.s32.totalorder %s125, %s128
      %p137 = scmp.eq.s32.totalorder %s42, 1
      %p138 = por %p136, %p137
      %p139 = scmp.ne.s32.totalorder %s128, %s129
      %p140 = scmp.eq.s32.totalorder %s42, 0
      %p141 = por %p139, %p140
      %p142 = scmp.ne.s32.totalorder %s128, %s129
      %p143 = scmp.eq.s32.totalorder %s43, 1
      %p144 = por %p142, %p143
      %p146 = scmp.ne.s32.totalorder %s129, %s145
      %p147 = scmp.eq.s32.totalorder %s43, 0
      %p148 = por %p146, %p147
      %s150 = sadd.s32 %s149, 1
      %p153 = scmp.eq.s32.totalorder %s37, 1
      %p154 = scmp.ne.s32.totalorder %s149, %s151
      %p155 = scmp.eq.s32.totalorder %s37, 0
      %p156 = por %p154, %p155
      %p157 = scmp.ne.s32.totalorder %s149, %s151
      %p158 = scmp.eq.s32.totalorder %s42, 1
      %p159 = por %p157, %p158
      %p160 = scmp.ne.s32.totalorder %s151, %s152
      %p161 = scmp.eq.s32.totalorder %s42, 0
      %p162 = por %p160, %p161
      %p163 = scmp.ne.s32.totalorder %s151, %s152
      %p164 = scmp.eq.s32.totalorder %s43, 1
      %p165 = por %p163, %p164
      %p167 = scmp.ne.s32.totalorder %s152, %s166
      %p168 = scmp.eq.s32.totalorder %s43, 0
      %p169 = por %p167, %p168
      %s171 = sadd.s32 %s170, 1
      %p174 = scmp.eq.s32.totalorder %s37, 1
      %p175 = scmp.ne.s32.totalorder %s170, %s172
      %p176 = scmp.eq.s32.totalorder %s37, 0
      %p177 = por %p175, %p176
      %p178 = scmp.ne.s32.totalorder %s170, %s172
      %p179 = scmp.eq.s32.totalorder %s42, 1
      %p180 = por %p178, %p179
      %p181 = scmp.ne.s32.totalorder %s172, %s173
      %p182 = scmp.eq.s32.totalorder %s42, 0
      %p183 = por %p181, %p182
      %p184 = scmp.ne.s32.totalorder %s172, %s173
      %p185 = scmp.eq.s32.totalorder %s43, 1
      %p186 = por %p184, %p185
      %p188 = scmp.ne.s32.totalorder %s173, %s187
      %p189 = scmp.eq.s32.totalorder %s43, 0
      %p190 = por %p188, %p189
      %s192 = sadd.s32 %s191, 1
      %p195 = scmp.eq.s32.totalorder %s37, 1
      %p196 = scmp.ne.s32.totalorder %s191, %s193
      %p197 = scmp.eq.s32.totalorder %s37, 0
      %p198 = por %p196, %p197
      %p199 = scmp.ne.s32.totalorder %s191, %s193
      %p200 = scmp.eq.s32.totalorder %s42, 1
      %p201 = por %p199, %p200
      %p202 = scmp.ne.s32.totalorder %s193, %s194
      %p203 = scmp.eq.s32.totalorder %s42, 0
      %p204 = por %p202, %p203
      %p205 = scmp.ne.s32.totalorder %s193, %s194
      %p206 = scmp.eq.s32.totalorder %s43, 1
      %p207 = por %p205, %p206
      %p209 = scmp.ne.s32.totalorder %s194, %s208
      %p210 = scmp.eq.s32.totalorder %s43, 0
      %p211 = por %p209, %p210
      %s213 = sadd.s32 %s212, 1
      %p216 = scmp.eq.s32.totalorder %s37, 1
      %p217 = scmp.ne.s32.totalorder %s212, %s214
      %p218 = scmp.eq.s32.totalorder %s37, 0
      %p219 = por %p217, %p218
      %p220 = scmp.ne.s32.totalorder %s212, %s214
      %p221 = scmp.eq.s32.totalorder %s42, 1
      %p222 = por %p220, %p221
      %p223 = scmp.ne.s32.totalorder %s214, %s215
      %p224 = scmp.eq.s32.totalorder %s42, 0
      %p225 = por %p223, %p224
      %p226 = scmp.ne.s32.totalorder %s214, %s215
      %p227 = scmp.eq.s32.totalorder %s43, 1
      %p228 = por %p226, %p227
      %p230 = scmp.ne.s32.totalorder %s215, %s229
      %p231 = scmp.eq.s32.totalorder %s43, 0
      %p232 = por %p230, %p231
      %s234 = sadd.s32 %s233, 1
      %p237 = scmp.eq.s32.totalorder %s37, 1
      %p238 = scmp.ne.s32.totalorder %s233, %s235
      %p239 = scmp.eq.s32.totalorder %s37, 0
      %p240 = por %p238, %p239
      %p241 = scmp.ne.s32.totalorder %s233, %s235
      %p242 = scmp.eq.s32.totalorder %s42, 1
      %p243 = por %p241, %p242
      %p244 = scmp.ne.s32.totalorder %s235, %s236
      %p245 = scmp.eq.s32.totalorder %s42, 0
      %p246 = por %p244, %p245
      %p247 = scmp.ne.s32.totalorder %s235, %s236
      %p248 = scmp.eq.s32.totalorder %s43, 1
      %p249 = por %p247, %p248
      %p251 = scmp.ne.s32.totalorder %s236, %s250
      %p252 = scmp.eq.s32.totalorder %s43, 0
      %p253 = por %p251, %p252
      %s255 = sadd.s32 %s254, 1
      %p258 = scmp.eq.s32.totalorder %s37, 1
      %p259 = scmp.ne.s32.totalorder %s254, %s256
      %p260 = scmp.eq.s32.totalorder %s37, 0
      %p261 = por %p259, %p260
      %p262 = scmp.ne.s32.totalorder %s254, %s256
      %p263 = scmp.eq.s32.totalorder %s42, 1
      %p264 = por %p262, %p263
      %p265 = scmp.ne.s32.totalorder %s256, %s257
      %p266 = scmp.eq.s32.totalorder %s42, 0
      %p267 = por %p265, %p266
      %p268 = scmp.ne.s32.totalorder %s256, %s257
      %p269 = scmp.eq.s32.totalorder %s43, 1
      %p270 = por %p268, %p269
      %p272 = scmp.ne.s32.totalorder %s257, %s271
      %p273 = scmp.eq.s32.totalorder %s43, 0
      %p274 = por %p272, %p273
      %s276 = sadd.s32 %s275, 1
      %p279 = scmp.eq.s32.totalorder %s37, 1
      %p280 = scmp.ne.s32.totalorder %s275, %s277
      %p281 = scmp.eq.s32.totalorder %s37, 0
      %p282 = por %p280, %p281
      %p283 = scmp.ne.s32.totalorder %s275, %s277
      %p284 = scmp.eq.s32.totalorder %s42, 1
      %p285 = por %p283, %p284
      %p286 = scmp.ne.s32.totalorder %s277, %s278
      %p287 = scmp.eq.s32.totalorder %s42, 0
      %p288 = por %p286, %p287
      %p289 = scmp.ne.s32.totalorder %s277, %s278
      %p290 = scmp.eq.s32.totalorder %s43, 1
      %p291 = por %p289, %p290
      %p293 = scmp.ne.s32.totalorder %s278, %s292
      %p294 = scmp.eq.s32.totalorder %s43, 0
      %p295 = por %p293, %p294
      %s297 = sadd.s32 %s296, 1
      %p300 = scmp.eq.s32.totalorder %s37, 1
      %p301 = scmp.ne.s32.totalorder %s296, %s298
      %p302 = scmp.eq.s32.totalorder %s37, 0
      %p303 = por %p301, %p302
      %p304 = scmp.ne.s32.totalorder %s296, %s298
      %p305 = scmp.eq.s32.totalorder %s42, 1
      %p306 = por %p304, %p305
      %p307 = scmp.ne.s32.totalorder %s298, %s299
      %p308 = scmp.eq.s32.totalorder %s42, 0
      %p309 = por %p307, %p308
      %p310 = scmp.ne.s32.totalorder %s298, %s299
      %p311 = scmp.eq.s32.totalorder %s43, 1
      %p312 = por %p310, %p311
      %p314 = scmp.ne.s32.totalorder %s299, %s313
      %p315 = scmp.eq.s32.totalorder %s43, 0
      %p316 = por %p314, %p315
      %s318 = sadd.s32 %s317, 1
      %p321 = scmp.eq.s32.totalorder %s37, 1
      %p322 = scmp.ne.s32.totalorder %s317, %s319
      %p323 = scmp.eq.s32.totalorder %s37, 0
      %p324 = por %p322, %p323
      %p325 = scmp.ne.s32.totalorder %s317, %s319
      %p326 = scmp.eq.s32.totalorder %s42, 1
      %p327 = por %p325, %p326
      %p328 = scmp.ne.s32.totalorder %s319, %s320
      %p329 = scmp.eq.s32.totalorder %s42, 0
      %p330 = por %p328, %p329
      %p331 = scmp.ne.s32.totalorder %s319, %s320
      %p332 = scmp.eq.s32.totalorder %s43, 1
      %p333 = por %p331, %p332
      %p335 = scmp.ne.s32.totalorder %s320, %s334
      %p336 = scmp.eq.s32.totalorder %s43, 0
      %p337 = por %p335, %p336
      %s339 = sadd.s32 %s338, 1
      %p342 = scmp.eq.s32.totalorder %s37, 1
      %p343 = scmp.ne.s32.totalorder %s338, %s340
      %p344 = scmp.eq.s32.totalorder %s37, 0
      %p345 = por %p343, %p344
      %p346 = scmp.ne.s32.totalorder %s338, %s340
      %p347 = scmp.eq.s32.totalorder %s42, 1
      %p348 = por %p346, %p347
      %p349 = scmp.ne.s32.totalorder %s340, %s341
      %p350 = scmp.eq.s32.totalorder %s42, 0
      %p351 = por %p349, %p350
      %p352 = scmp.ne.s32.totalorder %s340, %s341
      %p353 = scmp.eq.s32.totalorder %s43, 1
      %p354 = por %p352, %p353
      %p356 = scmp.ne.s32.totalorder %s341, %s355
      %p357 = scmp.eq.s32.totalorder %s43, 0
      %p358 = por %p356, %p357
      %s360 = sadd.s32 %s359, 1
      %p363 = scmp.eq.s32.totalorder %s37, 1
      %p364 = scmp.ne.s32.totalorder %s359, %s361
      %p365 = scmp.eq.s32.totalorder %s37, 0
      %p366 = por %p364, %p365
      %p367 = scmp.ne.s32.totalorder %s359, %s361
      %p368 = scmp.eq.s32.totalorder %s42, 1
      %p369 = por %p367, %p368
      %p370 = scmp.ne.s32.totalorder %s361, %s362
      %p371 = scmp.eq.s32.totalorder %s42, 0
      %p372 = por %p370, %p371
      %p373 = scmp.ne.s32.totalorder %s361, %s362
      %p374 = scmp.eq.s32.totalorder %s43, 1
      %p375 = por %p373, %p374
      %p377 = scmp.ne.s32.totalorder %s362, %s376
      %p378 = scmp.eq.s32.totalorder %s43, 0
      %p379 = por %p377, %p378
      %s381 = sadd.s32 %s380, 1
      %p384 = scmp.eq.s32.totalorder %s37, 1
      %p385 = scmp.ne.s32.totalorder %s380, %s382
      %p386 = scmp.eq.s32.totalorder %s37, 0
      %p387 = por %p385, %p386
      %p388 = scmp.ne.s32.totalorder %s380, %s382
      %p389 = scmp.eq.s32.totalorder %s42, 1
      %p390 = por %p388, %p389
      %p391 = scmp.ne.s32.totalorder %s382, %s383
      %p392 = scmp.eq.s32.totalorder %s42, 0
      %p393 = por %p391, %p392
      %p394 = scmp.ne.s32.totalorder %s382, %s383
      %p395 = scmp.eq.s32.totalorder %s43, 1
      %p396 = por %p394, %p395
      %p398 = scmp.ne.s32.totalorder %s383, %s397
      %p399 = scmp.eq.s32.totalorder %s43, 0
      %p400 = por %p398, %p399
      %s402 = sadd.s32 %s401, 1
      %p405 = scmp.eq.s32.totalorder %s37, 1
      %p406 = scmp.ne.s32.totalorder %s401, %s403
      %p407 = scmp.eq.s32.totalorder %s37, 0
      %p408 = por %p406, %p407
      %p409 = scmp.ne.s32.totalorder %s401, %s403
      %p410 = scmp.eq.s32.totalorder %s42, 1
      %p411 = por %p409, %p410
      %p412 = scmp.ne.s32.totalorder %s403, %s404
      %p413 = scmp.eq.s32.totalorder %s42, 0
      %p414 = por %p412, %p413
      %p415 = scmp.ne.s32.totalorder %s403, %s404
      %p416 = scmp.eq.s32.totalorder %s43, 1
      %p417 = por %p415, %p416
      %p419 = scmp.ne.s32.totalorder %s404, %s418
      %p420 = scmp.eq.s32.totalorder %s43, 0
      %p421 = por %p419, %p420
      %s423 = sadd.s32 %s422, 1
      %p426 = scmp.eq.s32.totalorder %s37, 1
      %p427 = scmp.ne.s32.totalorder %s422, %s424
      %p428 = scmp.eq.s32.totalorder %s37, 0
      %p429 = por %p427, %p428
      %p430 = scmp.ne.s32.totalorder %s422, %s424
      %p431 = scmp.eq.s32.totalorder %s42, 1
      %p432 = por %p430, %p431
      %p433 = scmp.ne.s32.totalorder %s424, %s425
      %p434 = scmp.eq.s32.totalorder %s42, 0
      %p435 = por %p433, %p434
      %p436 = scmp.ne.s32.totalorder %s424, %s425
      %p437 = scmp.eq.s32.totalorder %s43, 1
      %p438 = por %p436, %p437
      %p440 = scmp.ne.s32.totalorder %s425, %s439
      %p441 = scmp.eq.s32.totalorder %s43, 0
      %p442 = por %p440, %p441
      %s444 = sadd.s32 %s443, 1
      %p447 = scmp.eq.s32.totalorder %s37, 1
      %p448 = scmp.ne.s32.totalorder %s443, %s445
      %p449 = scmp.eq.s32.totalorder %s37, 0
      %p450 = por %p448, %p449
      %p451 = scmp.ne.s32.totalorder %s443, %s445
      %p452 = scmp.eq.s32.totalorder %s42, 1
      %p453 = por %p451, %p452
      %p454 = scmp.ne.s32.totalorder %s445, %s446
      %p455 = scmp.eq.s32.totalorder %s42, 0
      %p456 = por %p454, %p455
      %p457 = scmp.ne.s32.totalorder %s445, %s446
      %p458 = scmp.eq.s32.totalorder %s43, 1
      %p459 = por %p457, %p458
      %p461 = scmp.ne.s32.totalorder %s446, %s460
      %p462 = scmp.eq.s32.totalorder %s43, 0
      %p463 = por %p461, %p462
      %s465 = sadd.s32 %s464, 1
      %p468 = scmp.eq.s32.totalorder %s37, 1
      %p469 = scmp.ne.s32.totalorder %s464, %s466
      %p470 = scmp.eq.s32.totalorder %s37, 0
      %p471 = por %p469, %p470
      %p472 = scmp.ne.s32.totalorder %s464, %s466
      %p473 = scmp.eq.s32.totalorder %s42, 1
      %p474 = por %p472, %p473
      %p475 = scmp.ne.s32.totalorder %s466, %s467
      %p476 = scmp.eq.s32.totalorder %s42, 0
      %p477 = por %p475, %p476
      %p478 = scmp.ne.s32.totalorder %s466, %s467
      %p479 = scmp.eq.s32.totalorder %s43, 1
      %p480 = por %p478, %p479
      %p482 = scmp.ne.s32.totalorder %s467, %s481
      %p483 = scmp.eq.s32.totalorder %s43, 0
      %p484 = por %p482, %p483
      %s486 = sadd.s32 %s485, 1
      %p489 = scmp.eq.s32.totalorder %s37, 1
      %p490 = scmp.ne.s32.totalorder %s485, %s487
      %p491 = scmp.eq.s32.totalorder %s37, 0
      %p492 = por %p490, %p491
      %p493 = scmp.ne.s32.totalorder %s485, %s487
      %p494 = scmp.eq.s32.totalorder %s42, 1
      %p495 = por %p493, %p494
      %p496 = scmp.ne.s32.totalorder %s487, %s488
      %p497 = scmp.eq.s32.totalorder %s42, 0
      %p498 = por %p496, %p497
      %p499 = scmp.ne.s32.totalorder %s487, %s488
      %p500 = scmp.eq.s32.totalorder %s43, 1
      %p501 = por %p499, %p500
      %p503 = scmp.ne.s32.totalorder %s488, %s502
      %p504 = scmp.eq.s32.totalorder %s43, 0
      %p505 = por %p503, %p504
      %s507 = sadd.s32 %s506, 1
      %p510 = scmp.eq.s32.totalorder %s37, 1
      %p511 = scmp.ne.s32.totalorder %s506, %s508
      %p512 = scmp.eq.s32.totalorder %s37, 0
      %p513 = por %p511, %p512
      %p514 = scmp.ne.s32.totalorder %s506, %s508
      %p515 = scmp.eq.s32.totalorder %s42, 1
      %p516 = por %p514, %p515
      %p517 = scmp.ne.s32.totalorder %s508, %s509
      %p518 = scmp.eq.s32.totalorder %s42, 0
      %p519 = por %p517, %p518
      %p520 = scmp.ne.s32.totalorder %s508, %s509
      %p521 = scmp.eq.s32.totalorder %s43, 1
      %p522 = por %p520, %p521
      %p524 = scmp.ne.s32.totalorder %s509, %s523
      %p525 = scmp.eq.s32.totalorder %s43, 0
      %p526 = por %p524, %p525
      %s528 = sadd.s32 %s527, 1
      %p531 = scmp.eq.s32.totalorder %s37, 1
      %p532 = scmp.ne.s32.totalorder %s527, %s529
      %p533 = scmp.eq.s32.totalorder %s37, 0
      %p534 = por %p532, %p533
      %p535 = scmp.ne.s32.totalorder %s527, %s529
      %p536 = scmp.eq.s32.totalorder %s42, 1
      %p537 = por %p535, %p536
      %p538 = scmp.ne.s32.totalorder %s529, %s530
      %p539 = scmp.eq.s32.totalorder %s42, 0
      %p540 = por %p538, %p539
      %p541 = scmp.ne.s32.totalorder %s529, %s530
      %p542 = scmp.eq.s32.totalorder %s43, 1
      %p543 = por %p541, %p542
      %p545 = scmp.ne.s32.totalorder %s530, %s544
      %p546 = scmp.eq.s32.totalorder %s43, 0
      %p547 = por %p545, %p546
      %s549 = sadd.s32 %s548, 1
      %p552 = scmp.eq.s32.totalorder %s37, 1
      %p553 = scmp.ne.s32.totalorder %s548, %s550
      %p554 = scmp.eq.s32.totalorder %s37, 0
      %p555 = por %p553, %p554
      %p556 = scmp.ne.s32.totalorder %s548, %s550
      %p557 = scmp.eq.s32.totalorder %s42, 1
      %p558 = por %p556, %p557
      %p559 = scmp.ne.s32.totalorder %s550, %s551
      %p560 = scmp.eq.s32.totalorder %s42, 0
      %p561 = por %p559, %p560
      %p562 = scmp.ne.s32.totalorder %s550, %s551
      %p563 = scmp.eq.s32.totalorder %s43, 1
      %p564 = por %p562, %p563
      %p566 = scmp.ne.s32.totalorder %s551, %s565
      %p567 = scmp.eq.s32.totalorder %s43, 0
      %p568 = por %p566, %p567
      %s569 = ssub.s32 %s37, %s44
      %p570 = scmp.eq.s32.totalorder %s569, 0
      %s572 = sadd.s32 %s571, 1
      %s573 = scalar_select %p570, %s571, %s572
      %p576 = pneg %p570
      %p577 = scmp.eq.s32.totalorder %s37, 1
      %p578 = por %p576, %p577
      %p579 = scmp.ne.s32.totalorder %s571, %s574
      %p580 = scmp.eq.s32.totalorder %s37, 0
      %p581 = por %p579, %p580
      %p582 = scmp.ne.s32.totalorder %s571, %s574
      %p583 = scmp.eq.s32.totalorder %s42, 1
      %p584 = por %p582, %p583
      %p585 = scmp.ne.s32.totalorder %s574, %s575
      %p586 = scmp.eq.s32.totalorder %s42, 0
      %p587 = por %p585, %p586
      %p588 = scmp.ne.s32.totalorder %s574, %s575
      %p589 = scmp.eq.s32.totalorder %s43, 1
      %p590 = por %p588, %p589
      %p592 = scmp.ne.s32.totalorder %s575, %s591
      %p593 = scmp.eq.s32.totalorder %s43, 0
      %p594 = por %p592, %p593
      %p595 = scmp.le.s32.totalorder 1, %s37
      %p596 = scmp.lt.s32.totalorder %s37, 3
      %p597 = pnand %p595, %p596
      %p598 = pneg %p597
      // Predicated region
      $region9: #{encoder_decoder_forward.8} parent=5 // pred_check
        _
      $region10: #{encoder_decoder_forward.8} parent=5 // pred_check_branch
        %600 = sbr.rel (%p597) target = $region12
      $region11: #{encoder_decoder_forward.8} parent=5 // pred_region
        %s601 = ssub.s32 %s37, 1
        // Predicated region
        $region13: #{encoder_decoder_forward.8} parent=11 // pred_check
          %p602 = pneg %p162
        $region14: #{encoder_decoder_forward.8} parent=11 // pred_check_branch
          %604 = sbr.rel (%p602) target = $region16
        $region15: #{encoder_decoder_forward.8} parent=11 // pred_region
          _
        $region16: #{encoder_decoder_forward.8} parent=11 // pred_fallthru
          _
        // Predicated region
        $region17: #{encoder_decoder_forward.8} parent=11 // pred_check
          %p605 = pneg %p183
        $region18: #{encoder_decoder_forward.8} parent=11 // pred_check_branch
          %607 = sbr.rel (%p605) target = $region20
        $region19: #{encoder_decoder_forward.8} parent=11 // pred_region
          %609 = vsyncadd [#allocation3], 0
          %s611 = sshll.u32 %s5, 4
          %s612 = int_to_ptr.hbm [resolvable:$true] %s611
          %s613 = sshll.u32 [#allocation2], 4
          %s614 = int_to_ptr.vmem [resolvable:$true] %s613
          %616 = dma.hbm_to_vmem [thread:$0]  %s612, 16, %s614, [#allocation3]
        $region20: #{encoder_decoder_forward.8} parent=11 // pred_fallthru
          _
        // Predicated region
        $region21: #{encoder_decoder_forward.8} parent=11 // pred_check
          %p617 = pneg %p204
        $region22: #{encoder_decoder_forward.8} parent=11 // pred_check_branch
          %619 = sbr.rel (%p617) target = $region24
        $region23: #{encoder_decoder_forward.8} parent=11 // pred_region
          _
        $region24: #{encoder_decoder_forward.8} parent=11 // pred_fallthru
          _
        // Predicated region
        $region25: #{encoder_decoder_forward.8} parent=11 // pred_check
          %p620 = pneg %p225
        $region26: #{encoder_decoder_forward.8} parent=11 // pred_check_branch
          %622 = sbr.rel (%p620) target = $region28
        $region27: #{encoder_decoder_forward.8} parent=11 // pred_region
          %624 = vsyncadd [#allocation5], 0
          %s626 = sshll.u32 %s7, 4
          %s627 = int_to_ptr.hbm [resolvable:$true] %s626
          %s628 = sshll.u32 [#allocation4], 4
          %s629 = int_to_ptr.vmem [resolvable:$true] %s628
          %631 = dma.hbm_to_vmem [thread:$0]  %s627, 16, %s629, [#allocation5]
        $region28: #{encoder_decoder_forward.8} parent=11 // pred_fallthru
          _
        // Predicated region
        $region29: #{encoder_decoder_forward.8} parent=11 // pred_check
          %p632 = pneg %p246
        $region30: #{encoder_decoder_forward.8} parent=11 // pred_check_branch
          %634 = sbr.rel (%p632) target = $region32
        $region31: #{encoder_decoder_forward.8} parent=11 // pred_region
          %636 = vsyncadd [#allocation5], 0
          %s638 = sshll.u32 %s8, 4
          %s639 = int_to_ptr.hbm [resolvable:$true] %s638
          %s640 = sshll.u32 [#allocation6], 4
          %s641 = int_to_ptr.vmem [resolvable:$true] %s640
          %643 = dma.hbm_to_vmem [thread:$0]  %s639, 16, %s641, [#allocation5]
        $region32: #{encoder_decoder_forward.8} parent=11 // pred_fallthru
          _
        // Predicated region
        $region33: #{encoder_decoder_forward.8} parent=11 // pred_check
          %p644 = pneg %p267
        $region34: #{encoder_decoder_forward.8} parent=11 // pred_check_branch
          %646 = sbr.rel (%p644) target = $region36
        $region35: #{encoder_decoder_forward.8} parent=11 // pred_region
          %648 = vsyncadd [#allocation8], 0
          %s650 = sshll.u32 %s9, 4
          %s651 = int_to_ptr.hbm [resolvable:$true] %s650
          %s652 = sshll.u32 [#allocation7], 4
          %s653 = int_to_ptr.vmem [resolvable:$true] %s652
          %655 = dma.hbm_to_vmem [thread:$0]  %s651, 16, %s653, [#allocation8]
        $region36: #{encoder_decoder_forward.8} parent=11 // pred_fallthru
          _
        // Predicated region
        $region37: #{encoder_decoder_forward.8} parent=11 // pred_check
          %p656 = pneg %p288
        $region38: #{encoder_decoder_forward.8} parent=11 // pred_check_branch
          %658 = sbr.rel (%p656) target = $region40
        $region39: #{encoder_decoder_forward.8} parent=11 // pred_region
          _
        $region40: #{encoder_decoder_forward.8} parent=11 // pred_fallthru
          _
        // Predicated region
        $region41: #{encoder_decoder_forward.8} parent=11 // pred_check
          %p659 = pneg %p309
        $region42: #{encoder_decoder_forward.8} parent=11 // pred_check_branch
          %661 = sbr.rel (%p659) target = $region44
        $region43: #{encoder_decoder_forward.8} parent=11 // pred_region
          %663 = vsyncadd [#allocation8], 0
          %s665 = sshll.u32 %s11, 4
          %s666 = int_to_ptr.hbm [resolvable:$true] %s665
          %s667 = sshll.u32 [#allocation9], 4
          %s668 = int_to_ptr.vmem [resolvable:$true] %s667
          %670 = dma.hbm_to_vmem [thread:$0]  %s666, 16, %s668, [#allocation8]
        $region44: #{encoder_decoder_forward.8} parent=11 // pred_fallthru
          _
        // Predicated region
        $region45: #{encoder_decoder_forward.8} parent=11 // pred_check
          %p671 = pneg %p330
        $region46: #{encoder_decoder_forward.8} parent=11 // pred_check_branch
          %673 = sbr.rel (%p671) target = $region48
        $region47: #{encoder_decoder_forward.8} parent=11 // pred_region
          _
        $region48: #{encoder_decoder_forward.8} parent=11 // pred_fallthru
          _
        // Predicated region
        $region49: #{encoder_decoder_forward.8} parent=11 // pred_check
          %p674 = pneg %p351
        $region50: #{encoder_decoder_forward.8} parent=11 // pred_check_branch
          %676 = sbr.rel (%p674) target = $region52
        $region51: #{encoder_decoder_forward.8} parent=11 // pred_region
          %678 = vsyncadd [#allocation11], 0
          %s680 = sshll.u32 %s13, 4
          %s681 = int_to_ptr.hbm [resolvable:$true] %s680
          %s682 = sshll.u32 [#allocation10], 4
          %s683 = int_to_ptr.vmem [resolvable:$true] %s682
          %685 = dma.hbm_to_vmem [thread:$0]  %s681, 16, %s683, [#allocation11]
        $region52: #{encoder_decoder_forward.8} parent=11 // pred_fallthru
          _
        // Predicated region
        $region53: #{encoder_decoder_forward.8} parent=11 // pred_check
          %p686 = pneg %p372
        $region54: #{encoder_decoder_forward.8} parent=11 // pred_check_branch
          %688 = sbr.rel (%p686) target = $region56
        $region55: #{encoder_decoder_forward.8} parent=11 // pred_region
          _
        $region56: #{encoder_decoder_forward.8} parent=11 // pred_fallthru
          _
        // Predicated region
        $region57: #{encoder_decoder_forward.8} parent=11 // pred_check
          %p689 = pneg %p393
        $region58: #{encoder_decoder_forward.8} parent=11 // pred_check_branch
          %691 = sbr.rel (%p689) target = $region60
        $region59: #{encoder_decoder_forward.8} parent=11 // pred_region
          %693 = vsyncadd [#allocation11], 0
          %s695 = sshll.u32 %s15, 4
          %s696 = int_to_ptr.hbm [resolvable:$true] %s695
          %s697 = sshll.u32 [#allocation12], 4
          %s698 = int_to_ptr.vmem [resolvable:$true] %s697
          %700 = dma.hbm_to_vmem [thread:$0]  %s696, 16, %s698, [#allocation11]
        $region60: #{encoder_decoder_forward.8} parent=11 // pred_fallthru
          _
        // Predicated region
        $region61: #{encoder_decoder_forward.8} parent=11 // pred_check
          %p701 = pneg %p414
        $region62: #{encoder_decoder_forward.8} parent=11 // pred_check_branch
          %703 = sbr.rel (%p701) target = $region64
        $region63: #{encoder_decoder_forward.8} parent=11 // pred_region
          %705 = vsyncadd [#allocation14], 0
          %s707 = sshll.u32 %s16, 4
          %s708 = int_to_ptr.hbm [resolvable:$true] %s707
          %s709 = sshll.u32 [#allocation13], 4
          %s710 = int_to_ptr.vmem [resolvable:$true] %s709
          %712 = dma.hbm_to_vmem [thread:$0]  %s708, 16, %s710, [#allocation14]
        $region64: #{encoder_decoder_forward.8} parent=11 // pred_fallthru
          _
        // Predicated region
        $region65: #{encoder_decoder_forward.8} parent=11 // pred_check
          %p713 = pneg %p435
        $region66: #{encoder_decoder_forward.8} parent=11 // pred_check_branch
          %715 = sbr.rel (%p713) target = $region68
        $region67: #{encoder_decoder_forward.8} parent=11 // pred_region
          %717 = vsyncadd [#allocation14], 0
          %s719 = sshll.u32 %s17, 4
          %s720 = int_to_ptr.hbm [resolvable:$true] %s719
          %s721 = sshll.u32 [#allocation15], 4
          %s722 = int_to_ptr.vmem [resolvable:$true] %s721
          %724 = dma.hbm_to_vmem [thread:$0]  %s720, 16, %s722, [#allocation14]
        $region68: #{encoder_decoder_forward.8} parent=11 // pred_fallthru
          _
        // Predicated region
        $region69: #{encoder_decoder_forward.8} parent=11 // pred_check
          %p725 = pneg %p456
        $region70: #{encoder_decoder_forward.8} parent=11 // pred_check_branch
          %727 = sbr.rel (%p725) target = $region72
        $region71: #{encoder_decoder_forward.8} parent=11 // pred_region
          _
        $region72: #{encoder_decoder_forward.8} parent=11 // pred_fallthru
          _
        // Predicated region
        $region73: #{encoder_decoder_forward.8} parent=11 // pred_check
          %p728 = pneg %p477
        $region74: #{encoder_decoder_forward.8} parent=11 // pred_check_branch
          %730 = sbr.rel (%p728) target = $region76
        $region75: #{encoder_decoder_forward.8} parent=11 // pred_region
          %732 = vsyncadd [#allocation17], 0
          %s734 = sshll.u32 %s19, 4
          %s735 = int_to_ptr.hbm [resolvable:$true] %s734
          %s736 = sshll.u32 [#allocation16], 4
          %s737 = int_to_ptr.vmem [resolvable:$true] %s736
          %739 = dma.hbm_to_vmem [thread:$0]  %s735, 16, %s737, [#allocation17]
        $region76: #{encoder_decoder_forward.8} parent=11 // pred_fallthru
          _
        // Predicated region
        $region77: #{encoder_decoder_forward.8} parent=11 // pred_check
          %p740 = pneg %p498
        $region78: #{encoder_decoder_forward.8} parent=11 // pred_check_branch
          %742 = sbr.rel (%p740) target = $region80
        $region79: #{encoder_decoder_forward.8} parent=11 // pred_region
          _
        $region80: #{encoder_decoder_forward.8} parent=11 // pred_fallthru
          _
        // Predicated region
        $region81: #{encoder_decoder_forward.8} parent=11 // pred_check
          %p743 = pneg %p519
        $region82: #{encoder_decoder_forward.8} parent=11 // pred_check_branch
          %745 = sbr.rel (%p743) target = $region84
        $region83: #{encoder_decoder_forward.8} parent=11 // pred_region
          %747 = vsyncadd [#allocation17], 0
          %s749 = sshll.u32 %s21, 4
          %s750 = int_to_ptr.hbm [resolvable:$true] %s749
          %s751 = sshll.u32 [#allocation18], 4
          %s752 = int_to_ptr.vmem [resolvable:$true] %s751
          %754 = dma.hbm_to_vmem [thread:$0]  %s750, 16, %s752, [#allocation17]
        $region84: #{encoder_decoder_forward.8} parent=11 // pred_fallthru
          _
        // Predicated region
        $region85: #{encoder_decoder_forward.8} parent=11 // pred_check
          %p755 = pneg %p540
        $region86: #{encoder_decoder_forward.8} parent=11 // pred_check_branch
          %757 = sbr.rel (%p755) target = $region88
        $region87: #{encoder_decoder_forward.8} parent=11 // pred_region
          %759 = vsyncadd [#allocation20], 0
          %s761 = sshll.u32 %s22, 4
          %s762 = int_to_ptr.hbm [resolvable:$true] %s761
          %s763 = sshll.u32 [#allocation19], 4
          %s764 = int_to_ptr.vmem [resolvable:$true] %s763
          %766 = dma.hbm_to_vmem [thread:$0]  %s762, 16, %s764, [#allocation20]
        $region88: #{encoder_decoder_forward.8} parent=11 // pred_fallthru
          _
        // Predicated region
        $region89: #{encoder_decoder_forward.8} parent=11 // pred_check
          %p767 = pneg %p561
        $region90: #{encoder_decoder_forward.8} parent=11 // pred_check_branch
          %769 = sbr.rel (%p767) target = $region92
        $region91: #{encoder_decoder_forward.8} parent=11 // pred_region
          %771 = vsyncadd [#allocation20], 0
          %s773 = sshll.u32 %s23, 4
          %s774 = int_to_ptr.hbm [resolvable:$true] %s773
          %s775 = sshll.u32 [#allocation21], 4
          %s776 = int_to_ptr.vmem [resolvable:$true] %s775
          %778 = dma.hbm_to_vmem [thread:$0]  %s774, 16, %s776, [#allocation20]
        $region92: #{encoder_decoder_forward.8} parent=11 // pred_fallthru
          _
      $region12: #{encoder_decoder_forward.8} parent=5 // pred_fallthru
        _
      %p779 = scmp.lt.s32.totalorder %s37, 2
      // Predicated region
      $region93: #{encoder_decoder_forward.8} parent=5 // pred_check
        %p780 = pneg %p779
      $region94: #{encoder_decoder_forward.8} parent=5 // pred_check_branch
        %782 = sbr.rel (%p780) target = $region96
      $region95: #{encoder_decoder_forward.8} parent=5 // pred_region
        // Predicated region
        $region97: #{encoder_decoder_forward.8} parent=95 // pred_check
          %p783 = pneg %p57
        $region98: #{encoder_decoder_forward.8} parent=95 // pred_check_branch
          %785 = sbr.rel (%p783) target = $region100
        $region99: #{encoder_decoder_forward.8} parent=95 // pred_region
          %p786 = scmp.lt.s32.totalorder %s37, 1
          %s787 = scalar_select %p786, %s37, 1
          %s788 = smul.addr %s787, 4
          %s789 = scalar_lea.vmem %s0, %s788
        $region100: #{encoder_decoder_forward.8} parent=95 // pred_fallthru
          _
        // Predicated region
        $region101: #{encoder_decoder_forward.8} parent=95 // pred_check
          %p790 = pneg %p83
        $region102: #{encoder_decoder_forward.8} parent=95 // pred_check_branch
          %792 = sbr.rel (%p790) target = $region104
        $region103: #{encoder_decoder_forward.8} parent=95 // pred_region
          %p793 = scmp.lt.s32.totalorder %s37, 1
          %s794 = scalar_select %p793, %s37, 1
          %s795 = smul.addr %s794, 4
          %s796 = scalar_lea.vmem %s1, %s795
        $region104: #{encoder_decoder_forward.8} parent=95 // pred_fallthru
          _
        // Predicated region
        $region105: #{encoder_decoder_forward.8} parent=95 // pred_check
          %p797 = pneg %p109
        $region106: #{encoder_decoder_forward.8} parent=95 // pred_check_branch
          %799 = sbr.rel (%p797) target = $region108
        $region107: #{encoder_decoder_forward.8} parent=95 // pred_region
          %p800 = scmp.lt.s32.totalorder %s37, 1
          %s801 = scalar_select %p800, %s37, 1
          %s802 = scalar_lea.vmem %s2, %s801
        $region108: #{encoder_decoder_forward.8} parent=95 // pred_fallthru
          _
        // Predicated region
        $region109: #{encoder_decoder_forward.8} parent=95 // pred_check
          %p803 = pneg %p135
        $region110: #{encoder_decoder_forward.8} parent=95 // pred_check_branch
          %805 = sbr.rel (%p803) target = $region112
        $region111: #{encoder_decoder_forward.8} parent=95 // pred_region
          %p806 = scmp.lt.s32.totalorder %s37, 1
          %s807 = scalar_select %p806, %s37, 1
          %s808 = scalar_lea.vmem %s3, %s807
        $region112: #{encoder_decoder_forward.8} parent=95 // pred_fallthru
          _
      $region96: #{encoder_decoder_forward.8} parent=5 // pred_fallthru
        _
      %p809 = scmp.le.s32.totalorder 1, %s37
      %p810 = scmp.lt.s32.totalorder %s37, 3
      %p811 = pnand %p809, %p810
      %p812 = pneg %p811
      // Predicated region
      $region113: #{encoder_decoder_forward.8} parent=5 // pred_check
        _
      $region114: #{encoder_decoder_forward.8} parent=5 // pred_check_branch
        %814 = sbr.rel (%p811) target = $region116
      $region115: #{encoder_decoder_forward.8} parent=5 // pred_region
        %s815 = ssub.s32 %s37, 1
        // Predicated region
        $region117: #{encoder_decoder_forward.8} parent=115 // pred_check
          %p816 = pneg %p183
        $region118: #{encoder_decoder_forward.8} parent=115 // pred_check_branch
          %818 = sbr.rel (%p816) target = $region120
        $region119: #{encoder_decoder_forward.8} parent=115 // pred_region
          %820 = dma.done [#allocation3], 16
        $region120: #{encoder_decoder_forward.8} parent=115 // pred_fallthru
          _
        // Predicated region
        $region121: #{encoder_decoder_forward.8} parent=115 // pred_check
          %p821 = pneg %p225
        $region122: #{encoder_decoder_forward.8} parent=115 // pred_check_branch
          %823 = sbr.rel (%p821) target = $region124
        $region123: #{encoder_decoder_forward.8} parent=115 // pred_region
          %825 = dma.done [#allocation5], 16
        $region124: #{encoder_decoder_forward.8} parent=115 // pred_fallthru
          _
        // Predicated region
        $region125: #{encoder_decoder_forward.8} parent=115 // pred_check
          %p826 = pneg %p246
        $region126: #{encoder_decoder_forward.8} parent=115 // pred_check_branch
          %828 = sbr.rel (%p826) target = $region128
        $region127: #{encoder_decoder_forward.8} parent=115 // pred_region
          %830 = dma.done [#allocation5], 16
        $region128: #{encoder_decoder_forward.8} parent=115 // pred_fallthru
          _
        // Predicated region
        $region129: #{encoder_decoder_forward.8} parent=115 // pred_check
          %p831 = pneg %p267
        $region130: #{encoder_decoder_forward.8} parent=115 // pred_check_branch
          %833 = sbr.rel (%p831) target = $region132
        $region131: #{encoder_decoder_forward.8} parent=115 // pred_region
          %835 = dma.done [#allocation8], 16
        $region132: #{encoder_decoder_forward.8} parent=115 // pred_fallthru
          _
        // Predicated region
        $region133: #{encoder_decoder_forward.8} parent=115 // pred_check
          %p836 = pneg %p309
        $region134: #{encoder_decoder_forward.8} parent=115 // pred_check_branch
          %838 = sbr.rel (%p836) target = $region136
        $region135: #{encoder_decoder_forward.8} parent=115 // pred_region
          %840 = dma.done [#allocation8], 16
        $region136: #{encoder_decoder_forward.8} parent=115 // pred_fallthru
          _
        // Predicated region
        $region137: #{encoder_decoder_forward.8} parent=115 // pred_check
          %p841 = pneg %p351
        $region138: #{encoder_decoder_forward.8} parent=115 // pred_check_branch
          %843 = sbr.rel (%p841) target = $region140
        $region139: #{encoder_decoder_forward.8} parent=115 // pred_region
          %845 = dma.done [#allocation11], 16
        $region140: #{encoder_decoder_forward.8} parent=115 // pred_fallthru
          _
        // Predicated region
        $region141: #{encoder_decoder_forward.8} parent=115 // pred_check
          %p846 = pneg %p393
        $region142: #{encoder_decoder_forward.8} parent=115 // pred_check_branch
          %848 = sbr.rel (%p846) target = $region144
        $region143: #{encoder_decoder_forward.8} parent=115 // pred_region
          %850 = dma.done [#allocation11], 16
        $region144: #{encoder_decoder_forward.8} parent=115 // pred_fallthru
          _
        // Predicated region
        $region145: #{encoder_decoder_forward.8} parent=115 // pred_check
          %p851 = pneg %p414
        $region146: #{encoder_decoder_forward.8} parent=115 // pred_check_branch
          %853 = sbr.rel (%p851) target = $region148
        $region147: #{encoder_decoder_forward.8} parent=115 // pred_region
          %855 = dma.done [#allocation14], 16
        $region148: #{encoder_decoder_forward.8} parent=115 // pred_fallthru
          _
        // Predicated region
        $region149: #{encoder_decoder_forward.8} parent=115 // pred_check
          %p856 = pneg %p435
        $region150: #{encoder_decoder_forward.8} parent=115 // pred_check_branch
          %858 = sbr.rel (%p856) target = $region152
        $region151: #{encoder_decoder_forward.8} parent=115 // pred_region
          %860 = dma.done [#allocation14], 16
        $region152: #{encoder_decoder_forward.8} parent=115 // pred_fallthru
          _
        // Predicated region
        $region153: #{encoder_decoder_forward.8} parent=115 // pred_check
          %p861 = pneg %p477
        $region154: #{encoder_decoder_forward.8} parent=115 // pred_check_branch
          %863 = sbr.rel (%p861) target = $region156
        $region155: #{encoder_decoder_forward.8} parent=115 // pred_region
          %865 = dma.done [#allocation17], 16
        $region156: #{encoder_decoder_forward.8} parent=115 // pred_fallthru
          _
        // Predicated region
        $region157: #{encoder_decoder_forward.8} parent=115 // pred_check
          %p866 = pneg %p519
        $region158: #{encoder_decoder_forward.8} parent=115 // pred_check_branch
          %868 = sbr.rel (%p866) target = $region160
        $region159: #{encoder_decoder_forward.8} parent=115 // pred_region
          %870 = dma.done [#allocation17], 16
        $region160: #{encoder_decoder_forward.8} parent=115 // pred_fallthru
          _
        // Predicated region
        $region161: #{encoder_decoder_forward.8} parent=115 // pred_check
          %p871 = pneg %p540
        $region162: #{encoder_decoder_forward.8} parent=115 // pred_check_branch
          %873 = sbr.rel (%p871) target = $region164
        $region163: #{encoder_decoder_forward.8} parent=115 // pred_region
          %875 = dma.done [#allocation20], 16
        $region164: #{encoder_decoder_forward.8} parent=115 // pred_fallthru
          _
        // Predicated region
        $region165: #{encoder_decoder_forward.8} parent=115 // pred_check
          %p876 = pneg %p561
        $region166: #{encoder_decoder_forward.8} parent=115 // pred_check_branch
          %878 = sbr.rel (%p876) target = $region168
        $region167: #{encoder_decoder_forward.8} parent=115 // pred_region
          %880 = dma.done [#allocation20], 16
        $region168: #{encoder_decoder_forward.8} parent=115 // pred_fallthru
          _
        %p881 = scmp.lt.s32.totalorder %s42, 1
        %s882 = scalar_select %p881, %s42, 1
        %s883 = smul.addr %s882, 4
        %s884 = scalar_lea.vmem %s0, %s883
        %p885 = pneg %p63
        %p886 = pneg %p60
        %p887 = scmp.lt.s32.totalorder %s42, 1
        %s888 = scalar_select %p887, %s42, 1
        %s889 = smul.addr %s888, 4
        %s890 = scalar_lea.vmem %s1, %s889
        %p891 = pneg %p89
        %p892 = pneg %p86
        %p893 = scmp.lt.s32.totalorder %s42, 1
        %s894 = scalar_select %p893, %s42, 1
        %s895 = scalar_lea.vmem %s2, %s894
        %p896 = pneg %p115
        %p897 = pneg %p112
        %p898 = scmp.lt.s32.totalorder %s42, 1
        %s899 = scalar_select %p898, %s42, 1
        %s900 = scalar_lea.vmem %s3, %s899
        %p901 = pneg %p141
        %p902 = pneg %p138
        %p903 = pneg %p162
        %p904 = pneg %p159
        %p905 = pneg %p183
        %p906 = pneg %p180
        %p907 = pneg %p204
        %p908 = pneg %p201
        %p909 = pneg %p225
        %p910 = pneg %p222
        %p911 = pneg %p246
        %p912 = pneg %p243
        %p913 = pneg %p267
        %p914 = pneg %p264
        %p915 = pneg %p288
        %p916 = pneg %p285
        %p917 = pneg %p309
        %p918 = pneg %p306
        %p919 = pneg %p330
        %p920 = pneg %p327
        %p921 = pneg %p351
        %p922 = pneg %p348
        %p923 = pneg %p372
        %p924 = pneg %p369
        %p925 = pneg %p393
        %p926 = pneg %p390
        %p927 = pneg %p414
        %p928 = pneg %p411
        %p929 = pneg %p435
        %p930 = pneg %p432
        %p931 = pneg %p456
        %p932 = pneg %p453
        %p933 = pneg %p477
        %p934 = pneg %p474
        %p935 = pneg %p498
        %p936 = pneg %p495
        %p937 = pneg %p519
        %p938 = pneg %p516
        %p939 = pneg %p540
        %p940 = pneg %p537
        %p941 = pneg %p561
        %p942 = pneg %p558
        %p943 = pneg %p587
        %p944 = pneg %p584
        %p945 = scmp.lt.s32.totalorder %s42, 1
        %s946 = scalar_select %p945, %s42, 1
        %s947 = smul.addr %s946, 4
        %s948 = scalar_lea.vmem %s24, %s947
        %p949 = scmp.lt.s32.totalorder %s42, 1
        %s950 = scalar_select %p949, %s42, 1
        %s951 = smul.addr %s950, 4
        %s952 = scalar_lea.vmem %s0, %s951
        %p953 = scmp.lt.s32.totalorder %s42, 1
        %s954 = scalar_select %p953, %s42, 1
        %s955 = smul.addr %s954, 4
        %s956 = scalar_lea.vmem %s1, %s955
        %p957 = scmp.lt.s32.totalorder %s42, 1
        %s958 = scalar_select %p957, %s42, 1
        %s959 = scalar_lea.vmem %s2, %s958
        %p960 = scmp.lt.s32.totalorder %s42, 1
        %s961 = scalar_select %p960, %s42, 1
        %s962 = scalar_lea.vmem %s3, %s961
        %p963 = scmp.lt.s32.totalorder %s42, 1
        %s964 = scalar_select %p963, %s42, 1
        %s965 = smul.addr %s964, 4
        %s966 = scalar_lea.vmem %s24, %s965
        %v968 = vld [vmem:[%s952] sm:$0xf]
        %v969 = vld [vmem:[%s956] sm:$0xf]
        %v970 = vunpack.c.l.bf16 %v968
        %v971 = vlaneseq
        %v972 = vshrl.u32 %v971, 7
        %v973 = vlaneseq
        %v974 = vand.u32 %v973, 127
        %vm975 = vcmp.gt.s32.totalorder %v974, %v972
        %v976 = vsel %vm975, -10000.0, 0.0
        %v977 = vld [vmem:[%s959] sm:$0x1]
        %vm978 = vcmp.eq.f32.partialorder %v977, 0.0
        %v979 = vsel %vm978, -10000.0, 0.0
        %v981 = vperm.slane %v979, 0
        %v983 = vadd.f32 %v976, %v981
        %v984 = vld [vmem:[%s962] sm:$0x1]
        %vm985 = vcmp.eq.f32.partialorder %v984, 0.0
        %v986 = vsel %vm985, -10000.0, 0.0
        %v987 = vld [vmem:[%s4] sm:$0xf]
        %v988 = vld [vmem:[%s4 + $0x4] sm:$0xf]
        %v989 = vld [vmem:[%s4 + $0x8] sm:$0xf]
        %v990 = vld [vmem:[%s4 + $0xc] sm:$0xf]
        %v991 = vld [vmem:[#allocation2] sm:$0x1]
        %v993 = vperm.slane %v991, 0
        %v999 = vunpack.c.l.b16 %v987
        %v1000 = vunpack.c.l.b16 %v988
        %v1001 = vunpack.c.l.b16 %v989
        %v1002 = vunpack.c.l.b16 %v990
        %v1003 = vpack.c.b16 %v1000, %v999
        %v1004 = vpack.c.b16 %v1002, %v1001
        %vm1007 = vcmask 261120
        %v1009 = vsel %vm1007, %v968, 0
        %1011 = vmatpush.bf16.msra.mxu0 0
        %1012 = vmatpush.bf16.msra.mxu0 0
        %1013 = vmatpush.bf16.msra.mxu0 0
        %1014 = vmatpush.bf16.msra.mxu0 0
        %1015 = vmatpush.bf16.msra.mxu0 0
        %1016 = vmatpush.bf16.msra.mxu0 0
        %1017 = vmatpush.bf16.msra.mxu0 %v1004
        %1018 = vmatpush.bf16.msra.mxu0 %v1003
        %1019 = vmatmul.bf16.gmra.mxu0 %v1009
        %v1020 = vpop.f32.mrf.mxu0
        %v1021 = vadd.f32 %v993, %v1020
        %v1022 = vpop.f32.mrf.mxu0
        %1023 = vdwg.mxu0
        %v1024 = vmul.f32 %v1021, 0.35355338
        %v1025 = vpack.c.bf16 %v1024, %v1024
        %v1026 = vpack.c.bf16 %v1021, %v1021
        %v1028 = vunpack.c.l.b16 %v1026
        %v1029 = vpack.c.b16 %v1028, %v1028
        %1030 = vrot.lane.b32.xlu0 %v1029, 96
        %v1031 = vpop.permute.xlu0 %1030
        %vm1032 = vcmask 64512
        %v1034 = vsel %vm1032, %v1025, 0
        %v1037 = vsel %vm1032, %v1031, 0
        %1039 = vmatpush.bf16.xpose.msra.mxu0 0
        %1040 = vmatpush.bf16.xpose.msra.mxu0 0
        %1041 = vmatpush.bf16.xpose.msra.mxu0 0
        %1042 = vmatpush.bf16.xpose.msra.mxu0 0
        %1043 = vmatpush.bf16.xpose.msra.mxu0 0
        %1044 = vmatpush.bf16.xpose.msra.mxu0 0
        %1045 = vmatpush.bf16.xpose.msra.mxu0 0
        %1046 = vmatpush.bf16.xpose.msra.mxu0 %v1037
        %1047 = vmatmul.bf16.gmra.mxu0 %v1034
        %v1048 = vpop.f32.mrf.mxu0
        %v1049 = vadd.f32 %v983, %v1048
        %v1050 = vpop.f32.mrf.mxu0
        %1051 = vdwg.mxu0
        %v1052 = vsel %vm1032, %v1049, -inf
        %1053 = vmax.xlane.f32.xlu0 %v1052
        %v1054 = vpop.xlane.xlu0 %1053
        %v1055 = vsub.f32 %v1049, %v1054
        %v1056 = vmul.f32 %v1055, 1.442695
        %v1057 = vpow.pop %v1056
        %v1058 = vsel %vm1032, %v1057, 0.0
        %1059 = vadd.xlane.f32.xlu0 %v1058
        %v1060 = vpop.xlane.xlu0 %1059
        %v1061 = vrcp.pop %v1060
        %v1062 = vmul.f32 %v1057, %v1061
        %v1063 = vpack.c.bf16 %v1062, %v1062
        %1064 = vrot.lane.b32.xlu0 %v1029, 64
        %v1065 = vpop.permute.xlu0 %1064
        %v1067 = vsel %vm1032, %v1063, 0
        %vm1069 = vcmask 1043456
        %v1071 = vsel %vm1069, %v1065, 0
        %1073 = vmatpush.bf16.msra.mxu0 0
        %1074 = vmatpush.bf16.msra.mxu0 0
        %1075 = vmatpush.bf16.msra.mxu0 0
        %1076 = vmatpush.bf16.msra.mxu0 0
        %1077 = vmatpush.bf16.msra.mxu0 0
        %1078 = vmatpush.bf16.msra.mxu0 0
        %1079 = vmatpush.bf16.msra.mxu0 0
        %1080 = vmatpush.bf16.msra.mxu0 %v1071
        %1081 = vmatmul.bf16.gmra.mxu0 %v1067
        %v1082 = vpop.f32.mrf.mxu0
        %v1083 = vadd.f32 0.0, %v1082
        %v1084 = vpop.f32.mrf.mxu0
        %1085 = vdwg.mxu0
        %v1087 = vunpack.c.l.b16 %v1025
        %v1088 = vpack.c.b16 %v1087, %v1087
        %1089 = vrot.lane.b32.xlu0 %v1088, 120
        %v1090 = vpop.permute.xlu0 %1089
        %1091 = vrot.lane.b32.xlu0 %v1029, 88
        %v1092 = vpop.permute.xlu0 %1091
        %v1094 = vsel %vm1032, %v1090, 0
        %v1097 = vsel %vm1032, %v1092, 0
        %1099 = vmatpush.bf16.xpose.msra.mxu0 0
        %1100 = vmatpush.bf16.xpose.msra.mxu0 0
        %1101 = vmatpush.bf16.xpose.msra.mxu0 0
        %1102 = vmatpush.bf16.xpose.msra.mxu0 0
        %1103 = vmatpush.bf16.xpose.msra.mxu0 0
        %1104 = vmatpush.bf16.xpose.msra.mxu0 0
        %1105 = vmatpush.bf16.xpose.msra.mxu0 0
        %1106 = vmatpush.bf16.xpose.msra.mxu0 %v1097
        %1107 = vmatmul.bf16.gmra.mxu0 %v1094
        %v1108 = vpop.f32.mrf.mxu0
        %v1109 = vadd.f32 %v983, %v1108
        %v1110 = vpop.f32.mrf.mxu0
        %1111 = vdwg.mxu0
        %v1112 = vsel %vm1032, %v1109, -inf
        %1113 = vmax.xlane.f32.xlu0 %v1112
        %v1114 = vpop.xlane.xlu0 %1113
        %v1115 = vsub.f32 %v1109, %v1114
        %v1116 = vmul.f32 %v1115, 1.442695
        %v1117 = vpow.pop %v1116
        %v1118 = vsel %vm1032, %v1117, 0.0
        %1119 = vadd.xlane.f32.xlu0 %v1118
        %v1120 = vpop.xlane.xlu0 %1119
        %v1121 = vrcp.pop %v1120
        %v1122 = vmul.f32 %v1117, %v1121
        %v1123 = vpack.c.bf16 %v1122, %v1122
        %1124 = vrot.lane.b32.xlu0 %v1029, 56
        %v1125 = vpop.permute.xlu0 %1124
        %v1127 = vsel %vm1032, %v1123, 0
        %v1130 = vsel %vm1069, %v1125, 0
        %1132 = vmatpush.bf16.msra.mxu0 0
        %1133 = vmatpush.bf16.msra.mxu0 0
        %1134 = vmatpush.bf16.msra.mxu0 0
        %1135 = vmatpush.bf16.msra.mxu0 0
        %1136 = vmatpush.bf16.msra.mxu0 0
        %1137 = vmatpush.bf16.msra.mxu0 0
        %1138 = vmatpush.bf16.msra.mxu0 0
        %1139 = vmatpush.bf16.msra.mxu0 %v1130
        %1140 = vmatmul.bf16.gmra.mxu0 %v1127
        %v1141 = vpop.f32.mrf.mxu0
        %v1142 = vadd.f32 0.0, %v1141
        %v1143 = vpop.f32.mrf.mxu0
        %1144 = vdwg.mxu0
        %1145 = vrot.lane.b32.xlu0 %v1088, 112
        %v1146 = vpop.permute.xlu0 %1145
        %1147 = vrot.lane.b32.xlu0 %v1029, 80
        %v1148 = vpop.permute.xlu0 %1147
        %v1150 = vsel %vm1032, %v1146, 0
        %v1153 = vsel %vm1032, %v1148, 0
        %1155 = vmatpush.bf16.xpose.msra.mxu0 0
        %1156 = vmatpush.bf16.xpose.msra.mxu0 0
        %1157 = vmatpush.bf16.xpose.msra.mxu0 0
        %1158 = vmatpush.bf16.xpose.msra.mxu0 0
        %1159 = vmatpush.bf16.xpose.msra.mxu0 0
        %1160 = vmatpush.bf16.xpose.msra.mxu0 0
        %1161 = vmatpush.bf16.xpose.msra.mxu0 0
        %1162 = vmatpush.bf16.xpose.msra.mxu0 %v1153
        %1163 = vmatmul.bf16.gmra.mxu0 %v1150
        %v1164 = vpop.f32.mrf.mxu0
        %v1165 = vadd.f32 %v983, %v1164
        %v1166 = vpop.f32.mrf.mxu0
        %1167 = vdwg.mxu0
        %v1168 = vsel %vm1032, %v1165, -inf
        %1169 = vmax.xlane.f32.xlu0 %v1168
        %v1170 = vpop.xlane.xlu0 %1169
        %v1171 = vsub.f32 %v1165, %v1170
        %v1172 = vmul.f32 %v1171, 1.442695
        %v1173 = vpow.pop %v1172
        %v1174 = vsel %vm1032, %v1173, 0.0
        %1175 = vadd.xlane.f32.xlu0 %v1174
        %v1176 = vpop.xlane.xlu0 %1175
        %v1177 = vrcp.pop %v1176
        %v1178 = vmul.f32 %v1173, %v1177
        %v1179 = vpack.c.bf16 %v1178, %v1178
        %1180 = vrot.lane.b32.xlu0 %v1029, 48
        %v1181 = vpop.permute.xlu0 %1180
        %v1183 = vsel %vm1032, %v1179, 0
        %v1186 = vsel %vm1069, %v1181, 0
        %1188 = vmatpush.bf16.msra.mxu0 0
        %1189 = vmatpush.bf16.msra.mxu0 0
        %1190 = vmatpush.bf16.msra.mxu0 0
        %1191 = vmatpush.bf16.msra.mxu0 0
        %1192 = vmatpush.bf16.msra.mxu0 0
        %1193 = vmatpush.bf16.msra.mxu0 0
        %1194 = vmatpush.bf16.msra.mxu0 0
        %1195 = vmatpush.bf16.msra.mxu0 %v1186
        %1196 = vmatmul.bf16.gmra.mxu0 %v1183
        %v1197 = vpop.f32.mrf.mxu0
        %v1198 = vadd.f32 0.0, %v1197
        %v1199 = vpop.f32.mrf.mxu0
        %1200 = vdwg.mxu0
        %1201 = vrot.lane.b32.xlu0 %v1088, 104
        %v1202 = vpop.permute.xlu0 %1201
        %1203 = vrot.lane.b32.xlu0 %v1029, 72
        %v1204 = vpop.permute.xlu0 %1203
        %v1206 = vsel %vm1032, %v1202, 0
        %v1209 = vsel %vm1032, %v1204, 0
        %1211 = vmatpush.bf16.xpose.msra.mxu0 0
        %1212 = vmatpush.bf16.xpose.msra.mxu0 0
        %1213 = vmatpush.bf16.xpose.msra.mxu0 0
        %1214 = vmatpush.bf16.xpose.msra.mxu0 0
        %1215 = vmatpush.bf16.xpose.msra.mxu0 0
        %1216 = vmatpush.bf16.xpose.msra.mxu0 0
        %1217 = vmatpush.bf16.xpose.msra.mxu0 0
        %1218 = vmatpush.bf16.xpose.msra.mxu0 %v1209
        %1219 = vmatmul.bf16.gmra.mxu0 %v1206
        %v1220 = vpop.f32.mrf.mxu0
        %v1221 = vadd.f32 %v983, %v1220
        %v1222 = vpop.f32.mrf.mxu0
        %1223 = vdwg.mxu0
        %v1224 = vsel %vm1032, %v1221, -inf
        %1225 = vmax.xlane.f32.xlu0 %v1224
        %v1226 = vpop.xlane.xlu0 %1225
        %v1227 = vsub.f32 %v1221, %v1226
        %v1228 = vmul.f32 %v1227, 1.442695
        %v1229 = vpow.pop %v1228
        %v1230 = vsel %vm1032, %v1229, 0.0
        %1231 = vadd.xlane.f32.xlu0 %v1230
        %v1232 = vpop.xlane.xlu0 %1231
        %v1233 = vrcp.pop %v1232
        %v1234 = vmul.f32 %v1229, %v1233
        %v1235 = vpack.c.bf16 %v1234, %v1234
        %1236 = vrot.lane.b32.xlu0 %v1029, 40
        %v1237 = vpop.permute.xlu0 %1236
        %v1239 = vsel %vm1032, %v1235, 0
        %v1242 = vsel %vm1069, %v1237, 0
        %1244 = vmatpush.bf16.msra.mxu0 0
        %1245 = vmatpush.bf16.msra.mxu0 0
        %1246 = vmatpush.bf16.msra.mxu0 0
        %1247 = vmatpush.bf16.msra.mxu0 0
        %1248 = vmatpush.bf16.msra.mxu0 0
        %1249 = vmatpush.bf16.msra.mxu0 0
        %1250 = vmatpush.bf16.msra.mxu0 0
        %1251 = vmatpush.bf16.msra.mxu0 %v1242
        %1252 = vmatmul.bf16.gmra.mxu0 %v1239
        %v1253 = vpop.f32.mrf.mxu0
        %v1254 = vadd.f32 0.0, %v1253
        %v1255 = vpop.f32.mrf.mxu0
        %1256 = vdwg.mxu0
        %1258 = vrot.lane.b32.xlu0 %v1142, 8
        %v1259 = vpop.permute.xlu0 %1258
        %1262 = vrot.lane.b32.xlu0 %v1198, 16
        %v1263 = vpop.permute.xlu0 %1262
        %1266 = vrot.lane.b32.xlu0 %v1254, 24
        %v1267 = vpop.permute.xlu0 %1266
        %v1269 = vsel %vm1032, %v1083, %v1259
        %vm1270 = vcmask 130048
        %v1271 = vsel %vm1270, %v1269, %v1263
        %vm1272 = vcmask 195584
        %v1273 = vsel %vm1272, %v1271, %v1267
        %v1274 = vpack.c.bf16 %v1273, %v1273
        %v1275 = vld [vmem:[%s6] sm:$0xf]
        %v1276 = vld [vmem:[%s6 + $0x4] sm:$0xf]
        %v1277 = vld [vmem:[%s6 + $0x8] sm:$0xf]
        %v1278 = vld [vmem:[%s6 + $0xc] sm:$0xf]
        %v1279 = vld [vmem:[#allocation4] sm:$0x1]
        %v1281 = vperm.slane %v1279, 0
        %v1287 = vunpack.c.l.b16 %v1275
        %v1288 = vunpack.c.l.b16 %v1276
        %v1289 = vunpack.c.l.b16 %v1277
        %v1290 = vunpack.c.l.b16 %v1278
        %v1291 = vpack.c.b16 %v1288, %v1287
        %v1292 = vpack.c.b16 %v1290, %v1289
        %v1296 = vsel %vm1007, %v1274, 0
        %1298 = vmatpush.bf16.msra.mxu0 0
        %1299 = vmatpush.bf16.msra.mxu0 0
        %1300 = vmatpush.bf16.msra.mxu0 0
        %1301 = vmatpush.bf16.msra.mxu0 0
        %1302 = vmatpush.bf16.msra.mxu0 0
        %1303 = vmatpush.bf16.msra.mxu0 0
        %1304 = vmatpush.bf16.msra.mxu0 %v1292
        %1305 = vmatpush.bf16.msra.mxu0 %v1291
        %1306 = vmatmul.bf16.gmra.mxu0 %v1296
        %v1307 = vpop.f32.mrf.mxu0
        %v1308 = vadd.f32 %v1281, %v1307
        %v1309 = vpop.f32.mrf.mxu0
        %1310 = vdwg.mxu0
        %v1311 = vadd.f32 %v1308, %v970
        %v1312 = vld [vmem:[#allocation6] sm:$0x1]
        %v1313 = vld [vmem:[#allocation7] sm:$0x1]
        %v1314 = vsel %vm1007, %v1311, 0.0
        %1315 = vadd.xlane.f32.xlu0 %v1314
        %v1316 = vpop.xlane.xlu0 %1315
        %v1317 = vrcp.pop 32.0
        %v1318 = vmul.f32 32.0, %v1317
        %v1319 = vsub.f32 1.0, %v1318
        %v1320 = vmul.f32 %v1317, %v1319
        %v1321 = vadd.f32 %v1317, %v1320
        %vm1322 = vweird.f32 %v1317
        %v1323 = vsel %vm1322, %v1317, %v1321
        %v1324 = vmul.f32 %v1316, %v1323
        %v1325 = vsub.f32 %v1311, %v1324
        %v1326 = vmul.f32 %v1325, %v1325
        %v1327 = vsel %vm1007, %v1326, 0.0
        %1328 = vadd.xlane.f32.xlu0 %v1327
        %v1329 = vpop.xlane.xlu0 %1328
        %v1330 = vmul.f32 %v1329, %v1323
        %v1331 = vadd.f32 %v1330, 1e-12
        %v1332 = vrsqrt.pop %v1331
        %v1333 = vmul.f32 %v1332, %v1331
        %v1334 = vmul.f32 %v1333, %v1332
        %v1335 = vmul.f32 0.5, %v1334
        %v1336 = vsub.f32 1.5, %v1335
        %v1337 = vmul.f32 %v1332, %v1336
        %vm1338 = vweird.f32 %v1331
        %vm1339 = vweird.f32 %v1332
        %vm1340 = vmor %vm1338, %vm1339
        %v1341 = vsel %vm1340, %v1332, %v1337
        %v1342 = vmul.f32 %v1325, %v1341
        %v1344 = vperm.slane %v1312, 0
        %v1346 = vmul.f32 %v1342, %v1344
        %v1348 = vperm.slane %v1313, 0
        %v1350 = vadd.f32 %v1346, %v1348
        %v1351 = vpack.c.bf16 %v1350, %v1350
        %v1352 = vld [vmem:[%s10] sm:$0xf]
        %v1353 = vld [vmem:[%s10 + $0x4] sm:$0xf]
        %v1354 = vld [vmem:[%s10 + $0x8] sm:$0xf]
        %v1355 = vld [vmem:[%s10 + $0xc] sm:$0xf]
        %v1356 = vld [vmem:[#allocation9] sm:$0x1]
        %v1358 = vperm.slane %v1356, 0
        %v1364 = vunpack.c.l.b16 %v1352
        %v1365 = vunpack.c.l.b16 %v1353
        %v1366 = vunpack.c.l.b16 %v1354
        %v1367 = vunpack.c.l.b16 %v1355
        %v1368 = vpack.c.b16 %v1365, %v1364
        %v1369 = vpack.c.b16 %v1367, %v1366
        %v1373 = vsel %vm1007, %v1351, 0
        %1375 = vmatpush.bf16.msra.mxu0 0
        %1376 = vmatpush.bf16.msra.mxu0 0
        %1377 = vmatpush.bf16.msra.mxu0 0
        %1378 = vmatpush.bf16.msra.mxu0 0
        %1379 = vmatpush.bf16.msra.mxu0 0
        %1380 = vmatpush.bf16.msra.mxu0 0
        %1381 = vmatpush.bf16.msra.mxu0 %v1369
        %1382 = vmatpush.bf16.msra.mxu0 %v1368
        %1383 = vmatmul.bf16.gmra.mxu0 %v1373
        %v1384 = vpop.f32.mrf.mxu0
        %v1385 = vadd.f32 %v1358, %v1384
        %v1386 = vpop.f32.mrf.mxu0
        %1387 = vdwg.mxu0
        %v1388 = vmul.f32 %v1385, 0.35355338
        %v1389 = vpack.c.bf16 %v1388, %v1388
        %v1390 = vld [vmem:[%s12] sm:$0xf]
        %v1391 = vld [vmem:[%s12 + $0x4] sm:$0xf]
        %v1392 = vld [vmem:[%s12 + $0x8] sm:$0xf]
        %v1393 = vld [vmem:[%s12 + $0xc] sm:$0xf]
        %v1394 = vld [vmem:[#allocation10] sm:$0x1]
        %v1396 = vperm.slane %v1394, 0
        %v1402 = vunpack.c.l.b16 %v1390
        %v1403 = vunpack.c.l.b16 %v1391
        %v1404 = vunpack.c.l.b16 %v1392
        %v1405 = vunpack.c.l.b16 %v1393
        %v1406 = vpack.c.b16 %v1403, %v1402
        %v1407 = vpack.c.b16 %v1405, %v1404
        %v1411 = vsel %vm1007, %v969, 0
        %1413 = vmatpush.bf16.msra.mxu0 0
        %1414 = vmatpush.bf16.msra.mxu0 0
        %1415 = vmatpush.bf16.msra.mxu0 0
        %1416 = vmatpush.bf16.msra.mxu0 0
        %1417 = vmatpush.bf16.msra.mxu0 0
        %1418 = vmatpush.bf16.msra.mxu0 0
        %1419 = vmatpush.bf16.msra.mxu0 %v1407
        %1420 = vmatpush.bf16.msra.mxu0 %v1406
        %1421 = vmatmul.bf16.gmra.mxu0 %v1411
        %v1422 = vpop.f32.mrf.mxu0
        %v1423 = vadd.f32 %v1396, %v1422
        %v1424 = vpop.f32.mrf.mxu0
        %1425 = vdwg.mxu0
        %v1426 = vpack.c.bf16 %v1423, %v1423
        %v1428 = vperm.slane %v986, 0
        %v1431 = vsel %vm1032, %v1389, 0
        %v1434 = vsel %vm1032, %v1426, 0
        %1436 = vmatpush.bf16.xpose.msra.mxu0 0
        %1437 = vmatpush.bf16.xpose.msra.mxu0 0
        %1438 = vmatpush.bf16.xpose.msra.mxu0 0
        %1439 = vmatpush.bf16.xpose.msra.mxu0 0
        %1440 = vmatpush.bf16.xpose.msra.mxu0 0
        %1441 = vmatpush.bf16.xpose.msra.mxu0 0
        %1442 = vmatpush.bf16.xpose.msra.mxu0 0
        %1443 = vmatpush.bf16.xpose.msra.mxu0 %v1434
        %1444 = vmatmul.bf16.gmra.mxu0 %v1431
        %v1445 = vpop.f32.mrf.mxu0
        %v1446 = vadd.f32 %v1428, %v1445
        %v1447 = vpop.f32.mrf.mxu0
        %1448 = vdwg.mxu0
        %v1449 = vsel %vm1032, %v1446, -inf
        %1450 = vmax.xlane.f32.xlu0 %v1449
        %v1451 = vpop.xlane.xlu0 %1450
        %v1452 = vsub.f32 %v1446, %v1451
        %v1453 = vmul.f32 %v1452, 1.442695
        %v1454 = vpow.pop %v1453
        %v1455 = vsel %vm1032, %v1454, 0.0
        %1456 = vadd.xlane.f32.xlu0 %v1455
        %v1457 = vpop.xlane.xlu0 %1456
        %v1458 = vrcp.pop %v1457
        %v1459 = vmul.f32 %v1454, %v1458
        %v1460 = vpack.c.bf16 %v1459, %v1459
        %v1462 = vunpack.c.l.b16 %v1426
        %v1463 = vpack.c.b16 %v1462, %v1462
        %1464 = vrot.lane.b32.xlu0 %v1463, 96
        %v1465 = vpop.permute.xlu0 %1464
        %v1467 = vsel %vm1032, %v1460, 0
        %v1470 = vsel %vm1069, %v1465, 0
        %1472 = vmatpush.bf16.msra.mxu0 0
        %1473 = vmatpush.bf16.msra.mxu0 0
        %1474 = vmatpush.bf16.msra.mxu0 0
        %1475 = vmatpush.bf16.msra.mxu0 0
        %1476 = vmatpush.bf16.msra.mxu0 0
        %1477 = vmatpush.bf16.msra.mxu0 0
        %1478 = vmatpush.bf16.msra.mxu0 0
        %1479 = vmatpush.bf16.msra.mxu0 %v1470
        %1480 = vmatmul.bf16.gmra.mxu0 %v1467
        %v1481 = vpop.f32.mrf.mxu0
        %v1482 = vadd.f32 0.0, %v1481
        %v1483 = vpop.f32.mrf.mxu0
        %1484 = vdwg.mxu0
        %v1486 = vunpack.c.l.b16 %v1389
        %v1487 = vpack.c.b16 %v1486, %v1486
        %1488 = vrot.lane.b32.xlu0 %v1487, 120
        %v1489 = vpop.permute.xlu0 %1488
        %1490 = vrot.lane.b32.xlu0 %v1463, 120
        %v1491 = vpop.permute.xlu0 %1490
        %v1493 = vsel %vm1032, %v1489, 0
        %v1496 = vsel %vm1032, %v1491, 0
        %1498 = vmatpush.bf16.xpose.msra.mxu0 0
        %1499 = vmatpush.bf16.xpose.msra.mxu0 0
        %1500 = vmatpush.bf16.xpose.msra.mxu0 0
        %1501 = vmatpush.bf16.xpose.msra.mxu0 0
        %1502 = vmatpush.bf16.xpose.msra.mxu0 0
        %1503 = vmatpush.bf16.xpose.msra.mxu0 0
        %1504 = vmatpush.bf16.xpose.msra.mxu0 0
        %1505 = vmatpush.bf16.xpose.msra.mxu0 %v1496
        %1506 = vmatmul.bf16.gmra.mxu0 %v1493
        %v1507 = vpop.f32.mrf.mxu0
        %v1508 = vadd.f32 %v1428, %v1507
        %v1509 = vpop.f32.mrf.mxu0
        %1510 = vdwg.mxu0
        %v1511 = vsel %vm1032, %v1508, -inf
        %1512 = vmax.xlane.f32.xlu0 %v1511
        %v1513 = vpop.xlane.xlu0 %1512
        %v1514 = vsub.f32 %v1508, %v1513
        %v1515 = vmul.f32 %v1514, 1.442695
        %v1516 = vpow.pop %v1515
        %v1517 = vsel %vm1032, %v1516, 0.0
        %1518 = vadd.xlane.f32.xlu0 %v1517
        %v1519 = vpop.xlane.xlu0 %1518
        %v1520 = vrcp.pop %v1519
        %v1521 = vmul.f32 %v1516, %v1520
        %v1522 = vpack.c.bf16 %v1521, %v1521
        %1523 = vrot.lane.b32.xlu0 %v1463, 88
        %v1524 = vpop.permute.xlu0 %1523
        %v1526 = vsel %vm1032, %v1522, 0
        %v1529 = vsel %vm1069, %v1524, 0
        %1531 = vmatpush.bf16.msra.mxu0 0
        %1532 = vmatpush.bf16.msra.mxu0 0
        %1533 = vmatpush.bf16.msra.mxu0 0
        %1534 = vmatpush.bf16.msra.mxu0 0
        %1535 = vmatpush.bf16.msra.mxu0 0
        %1536 = vmatpush.bf16.msra.mxu0 0
        %1537 = vmatpush.bf16.msra.mxu0 0
        %1538 = vmatpush.bf16.msra.mxu0 %v1529
        %1539 = vmatmul.bf16.gmra.mxu0 %v1526
        %v1540 = vpop.f32.mrf.mxu0
        %v1541 = vadd.f32 0.0, %v1540
        %v1542 = vpop.f32.mrf.mxu0
        %1543 = vdwg.mxu0
        %1544 = vrot.lane.b32.xlu0 %v1487, 112
        %v1545 = vpop.permute.xlu0 %1544
        %1546 = vrot.lane.b32.xlu0 %v1463, 112
        %v1547 = vpop.permute.xlu0 %1546
        %v1549 = vsel %vm1032, %v1545, 0
        %v1552 = vsel %vm1032, %v1547, 0
        %1554 = vmatpush.bf16.xpose.msra.mxu0 0
        %1555 = vmatpush.bf16.xpose.msra.mxu0 0
        %1556 = vmatpush.bf16.xpose.msra.mxu0 0
        %1557 = vmatpush.bf16.xpose.msra.mxu0 0
        %1558 = vmatpush.bf16.xpose.msra.mxu0 0
        %1559 = vmatpush.bf16.xpose.msra.mxu0 0
        %1560 = vmatpush.bf16.xpose.msra.mxu0 0
        %1561 = vmatpush.bf16.xpose.msra.mxu0 %v1552
        %1562 = vmatmul.bf16.gmra.mxu0 %v1549
        %v1563 = vpop.f32.mrf.mxu0
        %v1564 = vadd.f32 %v1428, %v1563
        %v1565 = vpop.f32.mrf.mxu0
        %1566 = vdwg.mxu0
        %v1567 = vsel %vm1032, %v1564, -inf
        %1568 = vmax.xlane.f32.xlu0 %v1567
        %v1569 = vpop.xlane.xlu0 %1568
        %v1570 = vsub.f32 %v1564, %v1569
        %v1571 = vmul.f32 %v1570, 1.442695
        %v1572 = vpow.pop %v1571
        %v1573 = vsel %vm1032, %v1572, 0.0
        %1574 = vadd.xlane.f32.xlu0 %v1573
        %v1575 = vpop.xlane.xlu0 %1574
        %v1576 = vrcp.pop %v1575
        %v1577 = vmul.f32 %v1572, %v1576
        %v1578 = vpack.c.bf16 %v1577, %v1577
        %1579 = vrot.lane.b32.xlu0 %v1463, 80
        %v1580 = vpop.permute.xlu0 %1579
        %v1582 = vsel %vm1032, %v1578, 0
        %v1585 = vsel %vm1069, %v1580, 0
        %1587 = vmatpush.bf16.msra.mxu0 0
        %1588 = vmatpush.bf16.msra.mxu0 0
        %1589 = vmatpush.bf16.msra.mxu0 0
        %1590 = vmatpush.bf16.msra.mxu0 0
        %1591 = vmatpush.bf16.msra.mxu0 0
        %1592 = vmatpush.bf16.msra.mxu0 0
        %1593 = vmatpush.bf16.msra.mxu0 0
        %1594 = vmatpush.bf16.msra.mxu0 %v1585
        %1595 = vmatmul.bf16.gmra.mxu0 %v1582
        %v1596 = vpop.f32.mrf.mxu0
        %v1597 = vadd.f32 0.0, %v1596
        %v1598 = vpop.f32.mrf.mxu0
        %1599 = vdwg.mxu0
        %1600 = vrot.lane.b32.xlu0 %v1487, 104
        %v1601 = vpop.permute.xlu0 %1600
        %1602 = vrot.lane.b32.xlu0 %v1463, 104
        %v1603 = vpop.permute.xlu0 %1602
        %v1605 = vsel %vm1032, %v1601, 0
        %v1608 = vsel %vm1032, %v1603, 0
        %1610 = vmatpush.bf16.xpose.msra.mxu0 0
        %1611 = vmatpush.bf16.xpose.msra.mxu0 0
        %1612 = vmatpush.bf16.xpose.msra.mxu0 0
        %1613 = vmatpush.bf16.xpose.msra.mxu0 0
        %1614 = vmatpush.bf16.xpose.msra.mxu0 0
        %1615 = vmatpush.bf16.xpose.msra.mxu0 0
        %1616 = vmatpush.bf16.xpose.msra.mxu0 0
        %1617 = vmatpush.bf16.xpose.msra.mxu0 %v1608
        %1618 = vmatmul.bf16.gmra.mxu0 %v1605
        %v1619 = vpop.f32.mrf.mxu0
        %v1620 = vadd.f32 %v1428, %v1619
        %v1621 = vpop.f32.mrf.mxu0
        %1622 = vdwg.mxu0
        %v1623 = vsel %vm1032, %v1620, -inf
        %1624 = vmax.xlane.f32.xlu0 %v1623
        %v1625 = vpop.xlane.xlu0 %1624
        %v1626 = vsub.f32 %v1620, %v1625
        %v1627 = vmul.f32 %v1626, 1.442695
        %v1628 = vpow.pop %v1627
        %v1629 = vsel %vm1032, %v1628, 0.0
        %1630 = vadd.xlane.f32.xlu0 %v1629
        %v1631 = vpop.xlane.xlu0 %1630
        %v1632 = vrcp.pop %v1631
        %v1633 = vmul.f32 %v1628, %v1632
        %v1634 = vpack.c.bf16 %v1633, %v1633
        %1635 = vrot.lane.b32.xlu0 %v1463, 72
        %v1636 = vpop.permute.xlu0 %1635
        %v1638 = vsel %vm1032, %v1634, 0
        %v1641 = vsel %vm1069, %v1636, 0
        %1643 = vmatpush.bf16.msra.mxu0 0
        %1644 = vmatpush.bf16.msra.mxu0 0
        %1645 = vmatpush.bf16.msra.mxu0 0
        %1646 = vmatpush.bf16.msra.mxu0 0
        %1647 = vmatpush.bf16.msra.mxu0 0
        %1648 = vmatpush.bf16.msra.mxu0 0
        %1649 = vmatpush.bf16.msra.mxu0 0
        %1650 = vmatpush.bf16.msra.mxu0 %v1641
        %1651 = vmatmul.bf16.gmra.mxu0 %v1638
        %v1652 = vpop.f32.mrf.mxu0
        %v1653 = vadd.f32 0.0, %v1652
        %v1654 = vpop.f32.mrf.mxu0
        %1655 = vdwg.mxu0
        %1657 = vrot.lane.b32.xlu0 %v1541, 8
        %v1658 = vpop.permute.xlu0 %1657
        %1661 = vrot.lane.b32.xlu0 %v1597, 16
        %v1662 = vpop.permute.xlu0 %1661
        %1665 = vrot.lane.b32.xlu0 %v1653, 24
        %v1666 = vpop.permute.xlu0 %1665
        %v1668 = vsel %vm1032, %v1482, %v1658
        %v1669 = vsel %vm1270, %v1668, %v1662
        %v1670 = vsel %vm1272, %v1669, %v1666
        %v1671 = vpack.c.bf16 %v1670, %v1670
        %v1672 = vld [vmem:[%s14] sm:$0xf]
        %v1673 = vld [vmem:[%s14 + $0x4] sm:$0xf]
        %v1674 = vld [vmem:[%s14 + $0x8] sm:$0xf]
        %v1675 = vld [vmem:[%s14 + $0xc] sm:$0xf]
        %v1676 = vld [vmem:[#allocation12] sm:$0x1]
        %v1678 = vperm.slane %v1676, 0
        %v1684 = vunpack.c.l.b16 %v1672
        %v1685 = vunpack.c.l.b16 %v1673
        %v1686 = vunpack.c.l.b16 %v1674
        %v1687 = vunpack.c.l.b16 %v1675
        %v1688 = vpack.c.b16 %v1685, %v1684
        %v1689 = vpack.c.b16 %v1687, %v1686
        %v1693 = vsel %vm1007, %v1671, 0
        %1695 = vmatpush.bf16.msra.mxu0 0
        %1696 = vmatpush.bf16.msra.mxu0 0
        %1697 = vmatpush.bf16.msra.mxu0 0
        %1698 = vmatpush.bf16.msra.mxu0 0
        %1699 = vmatpush.bf16.msra.mxu0 0
        %1700 = vmatpush.bf16.msra.mxu0 0
        %1701 = vmatpush.bf16.msra.mxu0 %v1689
        %1702 = vmatpush.bf16.msra.mxu0 %v1688
        %1703 = vmatmul.bf16.gmra.mxu0 %v1693
        %v1704 = vpop.f32.mrf.mxu0
        %v1705 = vadd.f32 %v1678, %v1704
        %v1706 = vpop.f32.mrf.mxu0
        %1707 = vdwg.mxu0
        %v1708 = vadd.f32 %v1705, %v1350
        %v1709 = vld [vmem:[#allocation13] sm:$0x1]
        %v1710 = vld [vmem:[#allocation15] sm:$0x1]
        %v1711 = vsel %vm1007, %v1708, 0.0
        %1712 = vadd.xlane.f32.xlu0 %v1711
        %v1713 = vpop.xlane.xlu0 %1712
        %v1714 = vmul.f32 %v1713, %v1323
        %v1715 = vsub.f32 %v1708, %v1714
        %v1716 = vmul.f32 %v1715, %v1715
        %v1717 = vsel %vm1007, %v1716, 0.0
        %1718 = vadd.xlane.f32.xlu0 %v1717
        %v1719 = vpop.xlane.xlu0 %1718
        %v1720 = vmul.f32 %v1719, %v1323
        %v1721 = vadd.f32 %v1720, 1e-12
        %v1722 = vrsqrt.pop %v1721
        %v1723 = vmul.f32 %v1722, %v1721
        %v1724 = vmul.f32 %v1723, %v1722
        %v1725 = vmul.f32 0.5, %v1724
        %v1726 = vsub.f32 1.5, %v1725
        %v1727 = vmul.f32 %v1722, %v1726
        %vm1728 = vweird.f32 %v1721
        %vm1729 = vweird.f32 %v1722
        %vm1730 = vmor %vm1728, %vm1729
        %v1731 = vsel %vm1730, %v1722, %v1727
        %v1732 = vmul.f32 %v1715, %v1731
        %v1734 = vperm.slane %v1709, 0
        %v1736 = vmul.f32 %v1732, %v1734
        %v1738 = vperm.slane %v1710, 0
        %v1740 = vadd.f32 %v1736, %v1738
        %v1741 = vpack.c.bf16 %v1740, %v1740
        %v1742 = vld [vmem:[%s18] sm:$0xf]
        %v1743 = vld [vmem:[%s18 + $0x4] sm:$0xf]
        %v1744 = vld [vmem:[%s18 + $0x8] sm:$0xf]
        %v1745 = vld [vmem:[%s18 + $0xc] sm:$0xf]
        %v1746 = vld [vmem:[#allocation16] sm:$0x1]
        %v1748 = vperm.slane %v1746, 0
        %v1754 = vunpack.c.l.b16 %v1742
        %v1755 = vunpack.c.l.b16 %v1743
        %v1756 = vunpack.c.l.b16 %v1744
        %v1757 = vunpack.c.l.b16 %v1745
        %v1758 = vpack.c.b16 %v1755, %v1754
        %v1759 = vpack.c.b16 %v1757, %v1756
        %v1763 = vsel %vm1007, %v1741, 0
        %1765 = vmatpush.bf16.msra.mxu0 0
        %1766 = vmatpush.bf16.msra.mxu0 0
        %1767 = vmatpush.bf16.msra.mxu0 0
        %1768 = vmatpush.bf16.msra.mxu0 0
        %1769 = vmatpush.bf16.msra.mxu0 0
        %1770 = vmatpush.bf16.msra.mxu0 0
        %1771 = vmatpush.bf16.msra.mxu0 %v1759
        %1772 = vmatpush.bf16.msra.mxu0 %v1758
        %1773 = vmatmul.bf16.gmra.mxu0 %v1763
        %v1774 = vpop.f32.mrf.mxu0
        %v1775 = vadd.f32 %v1748, %v1774
        %v1776 = vpop.f32.mrf.mxu0
        %1777 = vdwg.mxu0
        %v1778 = vmax.f32 %v1775, 0.0
        %v1779 = vpack.c.bf16 %v1778, %v1778
        %v1780 = vld [vmem:[%s20] sm:$0xf]
        %v1781 = vld [vmem:[%s20 + $0x4] sm:$0xf]
        %v1782 = vld [vmem:[%s20 + $0x8] sm:$0xf]
        %v1783 = vld [vmem:[%s20 + $0xc] sm:$0xf]
        %v1784 = vld [vmem:[%s20 + $0x10] sm:$0xf]
        %v1785 = vld [vmem:[%s20 + $0x14] sm:$0xf]
        %v1786 = vld [vmem:[%s20 + $0x18] sm:$0xf]
        %v1787 = vld [vmem:[%s20 + $0x1c] sm:$0xf]
        %v1788 = vld [vmem:[#allocation18] sm:$0x1]
        %v1790 = vperm.slane %v1788, 0
        %v1800 = vunpack.c.l.b16 %v1780
        %v1801 = vunpack.c.l.b16 %v1781
        %v1802 = vunpack.c.l.b16 %v1782
        %v1803 = vunpack.c.l.b16 %v1783
        %v1804 = vunpack.c.l.b16 %v1784
        %v1805 = vunpack.c.l.b16 %v1785
        %v1806 = vunpack.c.l.b16 %v1786
        %v1807 = vunpack.c.l.b16 %v1787
        %v1808 = vpack.c.b16 %v1801, %v1800
        %v1809 = vpack.c.b16 %v1803, %v1802
        %v1810 = vpack.c.b16 %v1805, %v1804
        %v1811 = vpack.c.b16 %v1807, %v1806
        %vm1816 = vcmask 523264
        %v1818 = vsel %vm1816, %v1779, 0
        %1820 = vmatpush.bf16.msra.mxu0 0
        %1821 = vmatpush.bf16.msra.mxu0 0
        %1822 = vmatpush.bf16.msra.mxu0 0
        %1823 = vmatpush.bf16.msra.mxu0 0
        %1824 = vmatpush.bf16.msra.mxu0 %v1811
        %1825 = vmatpush.bf16.msra.mxu0 %v1810
        %1826 = vmatpush.bf16.msra.mxu0 %v1809
        %1827 = vmatpush.bf16.msra.mxu0 %v1808
        %1828 = vmatmul.bf16.gmra.mxu0 %v1818
        %v1829 = vpop.f32.mrf.mxu0
        %v1830 = vadd.f32 %v1790, %v1829
        %v1831 = vpop.f32.mrf.mxu0
        %1832 = vdwg.mxu0
        %v1833 = vadd.f32 %v1830, %v1740
        %v1834 = vld [vmem:[#allocation19] sm:$0x1]
        %v1835 = vld [vmem:[#allocation21] sm:$0x1]
        %v1836 = vsel %vm1007, %v1833, 0.0
        %1837 = vadd.xlane.f32.xlu0 %v1836
        %v1838 = vpop.xlane.xlu0 %1837
        %v1839 = vmul.f32 %v1838, %v1323
        %v1840 = vsub.f32 %v1833, %v1839
        %v1841 = vmul.f32 %v1840, %v1840
        %v1842 = vsel %vm1007, %v1841, 0.0
        %1843 = vadd.xlane.f32.xlu0 %v1842
        %v1844 = vpop.xlane.xlu0 %1843
        %v1845 = vmul.f32 %v1844, %v1323
        %v1846 = vadd.f32 %v1845, 1e-12
        %v1847 = vrsqrt.pop %v1846
        %v1848 = vmul.f32 %v1847, %v1846
        %v1849 = vmul.f32 %v1848, %v1847
        %v1850 = vmul.f32 0.5, %v1849
        %v1851 = vsub.f32 1.5, %v1850
        %v1852 = vmul.f32 %v1847, %v1851
        %vm1853 = vweird.f32 %v1846
        %vm1854 = vweird.f32 %v1847
        %vm1855 = vmor %vm1853, %vm1854
        %v1856 = vsel %vm1855, %v1847, %v1852
        %v1857 = vmul.f32 %v1840, %v1856
        %v1859 = vperm.slane %v1834, 0
        %v1861 = vmul.f32 %v1857, %v1859
        %v1863 = vperm.slane %v1835, 0
        %v1865 = vadd.f32 %v1861, %v1863
        %v1866 = vpack.c.bf16 %v1865, %v1865
        %vm1867 = vcmask 257024
        %1868 = vst.msk [vmem:[%s966] sm:$0xf] %vm1867, %v1866
        %p1869 = scmp.lt.s32.totalorder %s42, 1
        %s1870 = scalar_select %p1869, %s42, 1
        %s1871 = smul.addr %s1870, 4
        %s1872 = scalar_lea.vmem %s24, %s1871
        // Predicated region
        $region169: #{encoder_decoder_forward.8} parent=115 // pred_check
          %p1873 = pneg %p584
        $region170: #{encoder_decoder_forward.8} parent=115 // pred_check_branch
          %1875 = sbr.rel (%p1873) target = $region172
        $region171: #{encoder_decoder_forward.8} parent=115 // pred_region
          _
        $region172: #{encoder_decoder_forward.8} parent=115 // pred_fallthru
          _
      $region116: #{encoder_decoder_forward.8} parent=5 // pred_fallthru
        _
      %p1876 = scmp.le.s32.totalorder 2, %s37
      // Predicated region
      $region173: #{encoder_decoder_forward.8} parent=5 // pred_check
        %p1877 = pneg %p1876
      $region174: #{encoder_decoder_forward.8} parent=5 // pred_check_branch
        %1879 = sbr.rel (%p1877) target = $region176
      $region175: #{encoder_decoder_forward.8} parent=5 // pred_region
        %s1880 = ssub.s32 %s37, 2
        // Predicated region
        $region177: #{encoder_decoder_forward.8} parent=175 // pred_check
          %p1881 = pneg %p590
        $region178: #{encoder_decoder_forward.8} parent=175 // pred_check_branch
          %1883 = sbr.rel (%p1881) target = $region180
        $region179: #{encoder_decoder_forward.8} parent=175 // pred_region
          %p1884 = scmp.lt.s32.totalorder %s43, 1
          %s1885 = scalar_select %p1884, %s43, 1
          %s1886 = smul.addr %s1885, 4
          %s1887 = scalar_lea.vmem %s24, %s1886
        $region180: #{encoder_decoder_forward.8} parent=175 // pred_fallthru
          _
      $region176: #{encoder_decoder_forward.8} parent=5 // pred_fallthru
        _
    $region6: #{encoder_decoder_forward.8} parent=1 // loop_footer
      %s41 = sadd.s32 1, %s37
    $region7: #{encoder_decoder_forward.8} parent=1 // loop_footer_branch
      %36 = sbr.rel target = $region3
    $region8: #{encoder_decoder_forward.8} parent=1 // loop_exit
      _
    %1888 = vsyncpa [#allocation3], 1
    %s1889 = scalar_lea.sflag [#allocation3], 1
    %1890 = vsyncpa %s1889, 1
    %1891 = vsyncpa [#allocation5], 1
    %1892 = vsyncpa [#allocation8], 1
    %1893 = vsyncpa [#allocation11], 1
    %1894 = vsyncpa [#allocation14], 1
    %1895 = vsyncpa [#allocation17], 1
    %1896 = vsyncpa [#allocation20], 1

// kernel: encoder_decoder_forward.9
$region0: #{encoder_decoder_forward.9}
  #allocation0 [shape = 'u32[]', space=smem, size = 0x4, offset = 0x4, fixed_abs, tag = 'smem constant byte address 0x4 - core index']
  #allocation1 [shape = 'u32[72,128]{1,0:T(1,128)}', space=vmem, size = 0x9000, scoped, tag = 'internal scratch']
  #allocation2 [shape = 'f32[16,128]{1,0:T(8,128)}', space=vmem, size = 0x2000, scoped, tag = 'scratch operand']
  %s0 = inlined_call_operand.vmem [shape: bf16[16,32], index: 0, kind: input, shape index: {}]
  %s1 = inlined_call_operand.vmem [shape: bf16[32,128], index: 1, kind: input, shape index: {}]
  %s2 = inlined_call_operand.vmem [shape: f32[1,128], index: 2, kind: input, shape index: {}]
  %s3 = inlined_call_operand.hbm [shape: f32[16,128], index: 3, kind: output, shape index: {}]
  %s4 = sld [smem:[#allocation0]]
  $region30: #{encoder_decoder_forward.9} parent=0
    _
  %s6 = ssub.s32 1, %s4
  %s7 = scalar_select 0, %s6, %s4
  $region1: #{encoder_decoder_forward.9} parent=0
    #allocation3 [shape = 'u8[8192]{0}', space=vmem, size = 0x2000, scoped, tag = 'output window, operand 0, single buffered']
    #allocation4 [shape = 's32[1]{0}', space=sflag, size = 0x4, scoped, tag = 'scoped memory for encoder_decoder_forward.9']
    %8 = vsyncpa [#allocation4], 0
    // Predicated region
    $region2: #{encoder_decoder_forward.9} parent=1 // pred_check
      _
    $region3: #{encoder_decoder_forward.9} parent=1 // pred_check_branch
      %10 = sbr.rel (0) target = $region5
    $region4: #{encoder_decoder_forward.9} parent=1 // pred_region
      _
    $region5: #{encoder_decoder_forward.9} parent=1 // pred_fallthru
      _
    // Predicated region
    $region6: #{encoder_decoder_forward.9} parent=1 // pred_check
      _
    $region7: #{encoder_decoder_forward.9} parent=1 // pred_check_branch
      %12 = sbr.rel (0) target = $region9
    $region8: #{encoder_decoder_forward.9} parent=1 // pred_region
      _
    $region9: #{encoder_decoder_forward.9} parent=1 // pred_fallthru
      _
    // Predicated region
    $region10: #{encoder_decoder_forward.9} parent=1 // pred_check
      _
    $region11: #{encoder_decoder_forward.9} parent=1 // pred_check_branch
      %14 = sbr.rel (0) target = $region13
    $region12: #{encoder_decoder_forward.9} parent=1 // pred_region
      _
    $region13: #{encoder_decoder_forward.9} parent=1 // pred_fallthru
      _
    %p16 = scmp.eq.s32.totalorder 0, 0
    // Predicated region
    $region14: #{encoder_decoder_forward.9} parent=1 // pred_check
      %p17 = pneg %p16
    $region15: #{encoder_decoder_forward.9} parent=1 // pred_check_branch
      %19 = sbr.rel (%p17) target = $region17
    $region16: #{encoder_decoder_forward.9} parent=1 // pred_region
      %20 = vst [vmem:[#allocation2] sm:$0xff] 0.0
      %21 = vst [vmem:[#allocation2 + $0x8] sm:$0xff] 0.0
    $region17: #{encoder_decoder_forward.9} parent=1 // pred_fallthru
      _
    %v22 = vld [vmem:[#allocation2] sm:$0xff]
    %v23 = vld [vmem:[#allocation2 + $0x8] sm:$0xff]
    %v24 = vld [vmem:[%s0] sm:$0xf]
    %v25 = vld [vmem:[%s0 + $0x4] sm:$0xf]
    %v26 = vld [vmem:[%s1] sm:$0xf]
    %v27 = vld [vmem:[%s1 + $0x4] sm:$0xf]
    %v28 = vld [vmem:[%s1 + $0x8] sm:$0xf]
    %v29 = vld [vmem:[%s1 + $0xc] sm:$0xf]
    %v32 = vunpack.c.l.b16 %v24
    %v33 = vunpack.c.l.b16 %v25
    %v34 = vpack.c.b16 %v33, %v32
    %v39 = vunpack.c.l.b16 %v26
    %v40 = vunpack.c.l.b16 %v27
    %v41 = vunpack.c.l.b16 %v28
    %v42 = vunpack.c.l.b16 %v29
    %v43 = vpack.c.b16 %v40, %v39
    %v44 = vpack.c.b16 %v42, %v41
    %vm47 = vcmask 261120
    %v49 = vsel %vm47, %v34, 0
    %51 = vmatpush.bf16.msra.mxu0 0
    %52 = vmatpush.bf16.msra.mxu0 0
    %53 = vmatpush.bf16.msra.mxu0 0
    %54 = vmatpush.bf16.msra.mxu0 0
    %55 = vmatpush.bf16.msra.mxu0 0
    %56 = vmatpush.bf16.msra.mxu0 0
    %57 = vmatpush.bf16.msra.mxu0 %v44
    %58 = vmatpush.bf16.msra.mxu0 %v43
    %59 = vmatmul.bf16.gmra.mxu0 %v49
    %v60 = vpop.f32.mrf.mxu0
    %v61 = vadd.f32 0.0, %v60
    %v62 = vpop.f32.mrf.mxu0
    %v63 = vadd.f32 0.0, %v62
    %64 = vdwg.mxu0
    %v65 = vadd.f32 %v22, %v61
    %v66 = vadd.f32 %v23, %v63
    %67 = vst [vmem:[#allocation2] sm:$0xff] %v65
    %68 = vst [vmem:[#allocation2 + $0x8] sm:$0xff] %v66
    // Predicated region
    $region18: #{encoder_decoder_forward.9} parent=1 // pred_check
      %p69 = pneg %p16
    $region19: #{encoder_decoder_forward.9} parent=1 // pred_check_branch
      %71 = sbr.rel (%p69) target = $region21
    $region20: #{encoder_decoder_forward.9} parent=1 // pred_region
      %v72 = vld [vmem:[#allocation2] sm:$0xff]
      %v73 = vld [vmem:[#allocation2 + $0x8] sm:$0xff]
      %v74 = vld [vmem:[%s2] sm:$0x1]
      %v76 = vperm.slane %v74, 0
      %v78 = vadd.f32 %v72, %v76
      %v79 = vadd.f32 %v73, %v76
      %80 = vst [vmem:[#allocation3] sm:$0xff] %v78
      %81 = vst [vmem:[#allocation3 + $0x8] sm:$0xff] %v79
    $region21: #{encoder_decoder_forward.9} parent=1 // pred_fallthru
      _
    // Predicated region
    $region22: #{encoder_decoder_forward.9} parent=1 // pred_check
      _
    $region23: #{encoder_decoder_forward.9} parent=1 // pred_check_branch
      %83 = sbr.rel (0) target = $region25
    $region24: #{encoder_decoder_forward.9} parent=1 // pred_region
      %85 = vsyncadd [#allocation4], 0
      %s86 = sshll.u32 [#allocation3], 4
      %s87 = int_to_ptr.vmem [resolvable:$true] %s86
      %s88 = sshll.u32 %s3, 4
      %s89 = int_to_ptr.hbm [resolvable:$true] %s88
      %94 = dma.vmem_to_hbm [thread:$0]  %s87, 256, %s89, [#allocation4], 128, 128, 8
    $region25: #{encoder_decoder_forward.9} parent=1 // pred_fallthru
      _
    // Predicated region
    $region26: #{encoder_decoder_forward.9} parent=1 // pred_check
      _
    $region27: #{encoder_decoder_forward.9} parent=1 // pred_check_branch
      %96 = sbr.rel (0) target = $region29
    $region28: #{encoder_decoder_forward.9} parent=1 // pred_region
      %98 = dma.done [#allocation4], 256
    $region29: #{encoder_decoder_forward.9} parent=1 // pred_fallthru
      _
    %99 = vsyncpa [#allocation4], 1

</llo_original>
